<compile_context>
chip_gen: v7x
topology: tpu7x:2x2x1
jax: 0.10.0
libtpu: 0.0.40
codegen_flags: <defaults>
</compile_context>

<pallas_src>
import functools

import jax
import jax.numpy as jnp
from jax import lax
from jax.experimental import pallas as pl
from jax.experimental.pallas import tpu as pltpu

K = 9                 # Fsize of every resLevel
HALO = (K - 1) // 2   # 4
EPS = 1e-5            # BatchNorm2d / MyBN eps


def _round_up(a, b):
    return (a + b - 1) // b * b


# ----------------------------------------------------------------------------
# Fused kernel: one (image, level) pair per grid step.  X / X1 live in VMEM
# scratch that persists across the L grid axis, so a whole image's forward
# pass never leaves VMEM.
# ----------------------------------------------------------------------------
def _rescnn_kernel(x_ref, w_ref, sh_ref, thro_ref, pix_ref, o_ref,
                   xbuf, mbuf, col,
                   *, C, CPAD, WROW, PS_AL, OFF, RMARG):
    f32 = jnp.float32
    KC = K * CPAD
    XL = OFF + PS_AL + RMARG
    l = pl.program_id(1)

    # --- level 0: load X into the slab frame, zero the padding margins ------
    @pl.when(l == 0)
    def _init():
        zl = jnp.zeros((CPAD, OFF), f32)
        zr = jnp.zeros((CPAD, RMARG), f32)
        xbuf[:, 0:OFF] = zl
        xbuf[:, OFF + PS_AL:XL] = zr
        mbuf[:, 0:OFF] = zl
        mbuf[:, OFF + PS_AL:XL] = zr
        xbuf[0:C, OFF:OFF + PS_AL] = x_ref[0].astype(f32)
        if C < CPAD:
            xbuf[C:CPAD, OFF:OFF + PS_AL] = jnp.zeros((CPAD - C, PS_AL), f32)

    pix = pix_ref[...]            # (1, PS_AL): 1 on real pixels, 0 on row gaps
    thro = thro_ref[...]          # (CPAD, 1), broadcasts over lanes

    def conv(src, wc):
        """9x9 conv + folded bias/BN of the slab in `src`, accumulated per ky."""
        acc = jnp.zeros((CPAD, PS_AL), f32)
        for ky in range(K):
            par = (ky % 2) * KC                       # ping-pong strip slot
            for kx in range(K):
                d = (ky - HALO) * WROW + (kx - HALO)
                col[par + kx * CPAD:par + (kx + 1) * CPAD, :] = (
                    src[:, OFF + d:OFF + d + PS_AL])  # no masks: gaps are zero
            wrow = (wc * K + ky) * CPAD
            acc = acc + jnp.dot(w_ref[0, wrow:wrow + CPAD, :],
                                col[par:par + KC, :],
                                preferred_element_type=f32)
        return acc + sh_ref[0, wc * CPAD:(wc + 1) * CPAD, :]

    # X1 = ReLU(BN1(conv1(X) + b1));  gap lanes forced back to zero so they
    # keep acting as "same" padding for conv2.
    x1 = jnp.maximum(conv(xbuf, 0), 0.0) * pix
    mbuf[:, OFF:OFF + PS_AL] = x1

    # X2 = ReLU(BN2(conv2(X1) + b2));  X = ReLU(X + X2 - Thro)  (resLevel+ThroM)
    x2 = jnp.maximum(conv(mbuf, 1), 0.0)
    x_new = jnp.maximum(xbuf[:, OFF:OFF + PS_AL] + x2 - thro, 0.0) * pix
    xbuf[:, OFF:OFF + PS_AL] = x_new

    # Output block index depends only on n -> only the final level's value is
    # flushed to HBM; writing every step keeps the block always defined.
    o_ref[0] = x_new[0:C, :].astype(o_ref.dtype)


# ----------------------------------------------------------------------------
# Parameter folding / packing (plain JAX, outside the kernel)
# ----------------------------------------------------------------------------
def _fold_bn(bias, gamma, beta, mean, var):
    scale = gamma / jnp.sqrt(var + EPS)
    shift = scale * (bias - mean) + beta
    return scale, shift


def _pack_conv(w, bias, gamma, beta, mean, var, cpad):
    """(K,K,Cin,Cout) conv + bias + inference BN ->
       weight matrix rows [ky*CPAD+co], cols [kx*CPAD+ci], plus shift column."""
    scale, shift = _fold_bn(bias, gamma, beta, mean, var)
    _, _, cin, cout = w.shape
    wt = jnp.transpose(w, (3, 0, 1, 2)) * scale[:, None, None, None]  # (Co,K,K,Ci)
    wt = jnp.pad(wt, ((0, cpad - cout), (0, 0), (0, 0), (0, cpad - cin)))
    wt = jnp.transpose(wt, (1, 0, 2, 3)).reshape(K * cpad, K * cpad)  # [ky,co|kx,ci]
    sh = jnp.pad(shift, (0, cpad - cout))[:, None]
    return wt.astype(jnp.float32), sh.astype(jnp.float32)


# ----------------------------------------------------------------------------
# Forward wrapper (NCHW in / NCHW out, matches resCNNnetPlus.forward)
# ----------------------------------------------------------------------------
def rescnn_forward(x_nchw, params):
    N, C, H, W = x_nchw.shape
    levels = params["levels"]
    L = len(levels)
    if L == 0:
        return x_nchw

    CPAD = _round_up(C + 3, 8)                   # conv_bn_1 widens to C+3
    KC = K * CPAD
    WROW = W + 2 * HALO                          # image row + inter-row zero gap
    PS = H * WROW
    PS_AL = _round_up(PS, 128)                   # lane-dense slab width
    OFF = _round_up(HALO * WROW + HALO, 128)     # left margin >= max tap reach
    RMARG = _round_up(HALO * WROW + HALO, 128)   # right margin
    XL = OFF + PS_AL + RMARG

    # Per-level packed weights (L, 2*KC, KC) and folded BN shifts (L, 2*CPAD, 1)
    w_list, sh_list = [], []
    for lv in levels:
        w1, s1 = _pack_conv(lv["w1"], lv["b1"], lv["gamma1"], lv["beta1"],
                            lv["mean1"], lv["var1"], CPAD)
        w2, s2 = _pack_conv(lv["w2"], lv["b2"], lv["gamma2"], lv["beta2"],
                            lv["mean2"], lv["var2"], CPAD)
        w_list.append(jnp.concatenate([w1, w2], axis=0))
        sh_list.append(jnp.concatenate([s1, s2], axis=0))
    w_all = jnp.stack(w_list)                    # (L, 2*KC, KC)
    sh_all = jnp.stack(sh_list)                  # (L, 2*CPAD, 1)
    thro_col = jnp.pad(params["thro"], (0, CPAD - C))[:, None]      # (CPAD, 1)

    # Gap-padded, flattened input: one cheap XLA pad outside the kernel.
    x_pad = jnp.pad(x_nchw, ((0, 0), (0, 0), (0, 0), (0, WROW - W)))
    x_flat = x_pad.reshape(N, C, PS)
    if PS_AL > PS:
        x_flat = jnp.pad(x_flat, ((0, 0), (0, 0), (0, PS_AL - PS)))

    lane = jnp.arange(PS_AL)
    pix = (((lane % WROW) < W) & (lane < PS)).astype(jnp.float32)[None, :]

    kernel = functools.partial(_rescnn_kernel, C=C, CPAD=CPAD, WROW=WROW,
                               PS_AL=PS_AL, OFF=OFF, RMARG=RMARG)
    out_flat = pl.pallas_call(
        kernel,
        out_shape=jax.ShapeDtypeStruct((N, C, PS_AL), x_nchw.dtype),
        grid=(N, L),
        in_specs=[
            pl.BlockSpec((1, C, PS_AL), lambda n, l: (n, 0, 0)),      # X
            pl.BlockSpec((1, 2 * KC, KC), lambda n, l: (l, 0, 0)),    # weights/lvl
            pl.BlockSpec((1, 2 * CPAD, 1), lambda n, l: (l, 0, 0)),   # BN shift/lvl
            pl.BlockSpec((CPAD, 1), lambda n, l: (0, 0)),             # Thro
            pl.BlockSpec((1, PS_AL), lambda n, l: (0, 0)),            # pixel mask
        ],
        out_specs=pl.BlockSpec((1, C, PS_AL), lambda n, l: (n, 0, 0)),
        scratch_shapes=[
            pltpu.VMEM((CPAD, XL), jnp.float32),        # X  (carried over l)
            pltpu.VMEM((CPAD, XL), jnp.float32),        # X1
            pltpu.VMEM((2 * KC, PS_AL), jnp.float32),   # per-ky strip (ping-pong)
        ],
        compiler_params=pltpu.CompilerParams(
            dimension_semantics=("parallel", "arbitrary")),
    )(x_flat, w_all, sh_all, thro_col, pix)

    return out_flat[:, :, :PS].reshape(N, C, H, WROW)[:, :, :, :W]


# ----------------------------------------------------------------------------
# Synthetic parameters (non-trivial BN running stats to exercise the fold)
# ----------------------------------------------------------------------------
def init_params(key, channel, levelN):
    c_mid = channel + 3
    levels = []
    for _ in range(levelN - 1):
        key, *ks = jax.random.split(key, 13)
        ks = iter(ks)

        def nrm(shape, s):
            return s * jax.random.normal(next(ks), shape, jnp.float32)

        levels.append(dict(
            w1=nrm((K, K, channel, c_mid), 0.05),
            b1=nrm((c_mid,), 0.01),
            gamma1=1.0 + nrm((c_mid,), 0.1),
            beta1=nrm((c_mid,), 0.05),
            mean1=nrm((c_mid,), 0.1),
            var1=0.5 + jax.random.uniform(next(ks), (c_mid,), jnp.float32),
            w2=nrm((K, K, c_mid, channel), 0.05),
            b2=nrm((channel,), 0.01),
            gamma2=1.0 + nrm((channel,), 0.1),
            beta2=nrm((channel,), 0.05),
            mean2=nrm((channel,), 0.1),
            var2=0.5 + jax.random.uniform(next(ks), (channel,), jnp.float32),
        ))
    thro = jnp.full((channel,), 0.5, jnp.float32)   # ThroM parameter init
    return dict(levels=levels, thro=thro)


# ----------------------------------------------------------------------------
# Pure-JAX reference (un-folded BN; validates the scale/shift folding too)
# ----------------------------------------------------------------------------
def _bn_ref(y, gamma, beta, mean, var):
    inv = gamma / jnp.sqrt(var + EPS)
    return (y - mean[None, :, None, None]) * inv[None, :, None, None] \
        + beta[None, :, None, None]


def rescnn_reference(x_nchw, params):
    x = x_nchw
    for lv in params["levels"]:
        y1 = lax.conv_general_dilated(
            x, lv["w1"], (1, 1), "SAME",
            dimension_numbers=("NCHW", "HWIO", "NCHW")) \
            + lv["b1"][None, :, None, None]
        x1 = jnp.maximum(_bn_ref(y1, lv["gamma1"], lv["beta1"],
                                 lv["mean1"], lv["var1"]), 0.0)
        y2 = lax.conv_general_dilated(
            x1, lv["w2"], (1, 1), "SAME",
            dimension_numbers=("NCHW", "HWIO", "NCHW")) \
            + lv["b2"][None, :, None, None]
        x2 = jnp.maximum(_bn_ref(y2, lv["gamma2"], lv["beta2"],
                                 lv["mean2"], lv["var2"]), 0.0)
        x = jnp.maximum(x + x2 - params["thro"][None, :, None, None], 0.0)
    return x


if __name__ == "__main__":
    channel, levelN = 4, 3           # -> 2 resLevel blocks
    N, H, W = 2, 16, 16

    key = jax.random.PRNGKey(0)
    key, kx = jax.random.split(key)
    x = jax.random.normal(kx, (N, channel, H, W), jnp.float32)   # NCHW input
    params = init_params(key, channel, levelN)

    fwd = jax.jit(rescnn_forward)
    out = jax.block_until_ready(fwd(x, params))
    ref = jax.block_until_ready(rescnn_reference(x, params))

    assert out.shape == (N, channel, H, W)
    err = jnp.max(jnp.abs(out - ref))
    assert jnp.allclose(out, ref, rtol=1e-3, atol=1e-3), f"mismatch, max|err|={err}"
    print("KERNEL_OK")
</pallas_src>

<mosaic_0001>
module attributes {stable_mosaic.version = 11 : i64} {
  func.func @_rescnn_kernel(%arg0: i32, %arg1: i32, %arg2: memref<1x4x384xf32, #tpu.memory_space<vmem>>, %arg3: memref<1x144x72xf32, #tpu.memory_space<vmem>>, %arg4: memref<1x16x1xf32, #tpu.memory_space<vmem>>, %arg5: memref<8x1xf32, #tpu.memory_space<vmem>>, %arg6: memref<1x384xf32, #tpu.memory_space<vmem>>, %arg7: memref<1x4x384xf32, #tpu.memory_space<vmem>>, %arg8: memref<8x640xf32, #tpu.memory_space<vmem>>, %arg9: memref<8x640xf32, #tpu.memory_space<vmem>>, %arg10: memref<144x384xf32, #tpu.memory_space<vmem>>) attributes {dimension_semantics = [#tpu.dimension_semantics<parallel>, #tpu.dimension_semantics<arbitrary>], iteration_bounds = array<i64: 2, 2>, scalar_prefetch = 0 : i64, scratch_operands = 3 : i64, tpu.core_type = #tpu.core_type<tc>, window_params = [{transform_indices = @transform_0, window_bounds = array<i64: 1, 4, 384>}, {transform_indices = @transform_1, window_bounds = array<i64: 1, 144, 72>}, {transform_indices = @transform_2, window_bounds = array<i64: 1, 16, 1>}, {pipeline_mode = #tpu.pipeline_mode<synchronous>, transform_indices = @transform_3, window_bounds = array<i64: 8, 1>}, {pipeline_mode = #tpu.pipeline_mode<synchronous>, transform_indices = @transform_4, window_bounds = array<i64: 1, 384>}, {transform_indices = @transform_5, window_bounds = array<i64: 1, 4, 384>}]} {
    %c0_i32 = arith.constant 0 : i32
    %0 = arith.cmpi eq, %arg1, %c0_i32 : i32
    %1 = arith.extui %0 : i1 to i32
    %c0_i32_0 = arith.constant 0 : i32
    %2 = arith.cmpi ne, %1, %c0_i32_0 : i32
    scf.if %2 {
      %cst_686 = arith.constant 0.000000e+00 : f32
      %449 = vector.broadcast %cst_686 : f32 to vector<8x128xf32>
      %cst_687 = arith.constant 0.000000e+00 : f32
      %450 = vector.broadcast %cst_687 : f32 to vector<8x128xf32>
      %c0_688 = arith.constant 0 : index
      %c0_689 = arith.constant 0 : index
      %451 = vector.load %arg8[%c0_688, %c0_689] : memref<8x640xf32, #tpu.memory_space<vmem>>, vector<8x128xf32>
      tpu.vector_store %arg8[%c0_688, %c0_689], %449 {strides = array<i32>} : memref<8x640xf32, #tpu.memory_space<vmem>>, vector<8x128xf32>,
      %c0_690 = arith.constant 0 : index
      %c512 = arith.constant 512 : index
      %452 = vector.load %arg8[%c0_690, %c512] : memref<8x640xf32, #tpu.memory_space<vmem>>, vector<8x128xf32>
      tpu.vector_store %arg8[%c0_690, %c512], %450 {strides = array<i32>} : memref<8x640xf32, #tpu.memory_space<vmem>>, vector<8x128xf32>,
      %c0_691 = arith.constant 0 : index
      %c0_692 = arith.constant 0 : index
      %453 = vector.load %arg9[%c0_691, %c0_692] : memref<8x640xf32, #tpu.memory_space<vmem>>, vector<8x128xf32>
      tpu.vector_store %arg9[%c0_691, %c0_692], %449 {strides = array<i32>} : memref<8x640xf32, #tpu.memory_space<vmem>>, vector<8x128xf32>,
      %c0_693 = arith.constant 0 : index
      %c512_694 = arith.constant 512 : index
      %454 = vector.load %arg9[%c0_693, %c512_694] : memref<8x640xf32, #tpu.memory_space<vmem>>, vector<8x128xf32>
      tpu.vector_store %arg9[%c0_693, %c512_694], %450 {strides = array<i32>} : memref<8x640xf32, #tpu.memory_space<vmem>>, vector<8x128xf32>,
      %c0_695 = arith.constant 0 : index
      %c0_696 = arith.constant 0 : index
      %c0_697 = arith.constant 0 : index
      %455 = vector.load %arg2[%c0_695, %c0_696, %c0_697] : memref<1x4x384xf32, #tpu.memory_space<vmem>>, vector<1x4x384xf32>
      %456 = vector.shape_cast %455 : vector<1x4x384xf32> to vector<4x384xf32>
      %c0_698 = arith.constant 0 : index
      %c128_699 = arith.constant 128 : index
      %457 = vector.load %arg8[%c0_698, %c128_699] : memref<8x640xf32, #tpu.memory_space<vmem>>, vector<4x384xf32>
      tpu.vector_store %arg8[%c0_698, %c128_699], %456 {strides = array<i32>} : memref<8x640xf32, #tpu.memory_space<vmem>>, vector<4x384xf32>,
      %cst_700 = arith.constant 0.000000e+00 : f32
      %458 = vector.broadcast %cst_700 : f32 to vector<4x384xf32>
      %c4 = arith.constant 4 : index
      %c128_701 = arith.constant 128 : index
      %459 = vector.load %arg8[%c4, %c128_701] : memref<8x640xf32, #tpu.memory_space<vmem>>, vector<4x384xf32>
      tpu.vector_store %arg8[%c4, %c128_701], %458 {strides = array<i32>} : memref<8x640xf32, #tpu.memory_space<vmem>>, vector<4x384xf32>,
    } else {
    }
    %c0 = arith.constant 0 : index
    %c0_1 = arith.constant 0 : index
    %3 = vector.load %arg6[%c0, %c0_1] : memref<1x384xf32, #tpu.memory_space<vmem>>, vector<1x384xf32>
    %c0_2 = arith.constant 0 : index
    %c0_3 = arith.constant 0 : index
    %4 = vector.load %arg5[%c0_2, %c0_3] : memref<8x1xf32, #tpu.memory_space<vmem>>, vector<8x1xf32>
    %cst = arith.constant 0.000000e+00 : f32
    %5 = vector.broadcast %cst : f32 to vector<8x384xf32>
    %c0_4 = arith.constant 0 : index
    %c28 = arith.constant 28 : index
    %6 = vector.load %arg8[%c0_4, %c28] : memref<8x640xf32, #tpu.memory_space<vmem>>, vector<8x384xf32>
    %c0_5 = arith.constant 0 : index
    %c0_6 = arith.constant 0 : index
    %7 = vector.load %arg10[%c0_5, %c0_6] : memref<144x384xf32, #tpu.memory_space<vmem>>, vector<8x384xf32>
    tpu.vector_store %arg10[%c0_5, %c0_6], %6 {strides = array<i32>} : memref<144x384xf32, #tpu.memory_space<vmem>>, vector<8x384xf32>,
    %c0_7 = arith.constant 0 : index
    %c29 = arith.constant 29 : index
    %8 = vector.load %arg8[%c0_7, %c29] : memref<8x640xf32, #tpu.memory_space<vmem>>, vector<8x384xf32>
    %c8 = arith.constant 8 : index
    %c0_8 = arith.constant 0 : index
    %9 = vector.load %arg10[%c8, %c0_8] : memref<144x384xf32, #tpu.memory_space<vmem>>, vector<8x384xf32>
    tpu.vector_store %arg10[%c8, %c0_8], %8 {strides = array<i32>} : memref<144x384xf32, #tpu.memory_space<vmem>>, vector<8x384xf32>,
    %c0_9 = arith.constant 0 : index
    %c30 = arith.constant 30 : index
    %10 = vector.load %arg8[%c0_9, %c30] : memref<8x640xf32, #tpu.memory_space<vmem>>, vector<8x384xf32>
    %c16 = arith.constant 16 : index
    %c0_10 = arith.constant 0 : index
    %11 = vector.load %arg10[%c16, %c0_10] : memref<144x384xf32, #tpu.memory_space<vmem>>, vector<8x384xf32>
    tpu.vector_store %arg10[%c16, %c0_10], %10 {strides = array<i32>} : memref<144x384xf32, #tpu.memory_space<vmem>>, vector<8x384xf32>,
    %c0_11 = arith.constant 0 : index
    %c31 = arith.constant 31 : index
    %12 = vector.load %arg8[%c0_11, %c31] : memref<8x640xf32, #tpu.memory_space<vmem>>, vector<8x384xf32>
    %c24 = arith.constant 24 : index
    %c0_12 = arith.constant 0 : index
    %13 = vector.load %arg10[%c24, %c0_12] : memref<144x384xf32, #tpu.memory_space<vmem>>, vector<8x384xf32>
    tpu.vector_store %arg10[%c24, %c0_12], %12 {strides = array<i32>} : memref<144x384xf32, #tpu.memory_space<vmem>>, vector<8x384xf32>,
    %c0_13 = arith.constant 0 : index
    %c32 = arith.constant 32 : index
    %14 = vector.load %arg8[%c0_13, %c32] : memref<8x640xf32, #tpu.memory_space<vmem>>, vector<8x384xf32>
    %c32_14 = arith.constant 32 : index
    %c0_15 = arith.constant 0 : index
    %15 = vector.load %arg10[%c32_14, %c0_15] : memref<144x384xf32, #tpu.memory_space<vmem>>, vector<8x384xf32>
    tpu.vector_store %arg10[%c32_14, %c0_15], %14 {strides = array<i32>} : memref<144x384xf32, #tpu.memory_space<vmem>>, vector<8x384xf32>,
    %c0_16 = arith.constant 0 : index
    %c33 = arith.constant 33 : index
    %16 = vector.load %arg8[%c0_16, %c33] : memref<8x640xf32, #tpu.memory_space<vmem>>, vector<8x384xf32>
    %c40 = arith.constant 40 : index
    %c0_17 = arith.constant 0 : index
    %17 = vector.load %arg10[%c40, %c0_17] : memref<144x384xf32, #tpu.memory_space<vmem>>, vector<8x384xf32>
    tpu.vector_store %arg10[%c40, %c0_17], %16 {strides = array<i32>} : memref<144x384xf32, #tpu.memory_space<vmem>>, vector<8x384xf32>,
    %c0_18 = arith.constant 0 : index
    %c34 = arith.constant 34 : index
    %18 = vector.load %arg8[%c0_18, %c34] : memref<8x640xf32, #tpu.memory_space<vmem>>, vector<8x384xf32>
    %c48 = arith.constant 48 : index
    %c0_19 = arith.constant 0 : index
    %19 = vector.load %arg10[%c48, %c0_19] : memref<144x384xf32, #tpu.memory_space<vmem>>, vector<8x384xf32>
    tpu.vector_store %arg10[%c48, %c0_19], %18 {strides = array<i32>} : memref<144x384xf32, #tpu.memory_space<vmem>>, vector<8x384xf32>,
    %c0_20 = arith.constant 0 : index
    %c35 = arith.constant 35 : index
    %20 = vector.load %arg8[%c0_20, %c35] : memref<8x640xf32, #tpu.memory_space<vmem>>, vector<8x384xf32>
    %c56 = arith.constant 56 : index
    %c0_21 = arith.constant 0 : index
    %21 = vector.load %arg10[%c56, %c0_21] : memref<144x384xf32, #tpu.memory_space<vmem>>, vector<8x384xf32>
    tpu.vector_store %arg10[%c56, %c0_21], %20 {strides = array<i32>} : memref<144x384xf32, #tpu.memory_space<vmem>>, vector<8x384xf32>,
    %c0_22 = arith.constant 0 : index
    %c36 = arith.constant 36 : index
    %22 = vector.load %arg8[%c0_22, %c36] : memref<8x640xf32, #tpu.memory_space<vmem>>, vector<8x384xf32>
    %c64 = arith.constant 64 : index
    %c0_23 = arith.constant 0 : index
    %23 = vector.load %arg10[%c64, %c0_23] : memref<144x384xf32, #tpu.memory_space<vmem>>, vector<8x384xf32>
    tpu.vector_store %arg10[%c64, %c0_23], %22 {strides = array<i32>} : memref<144x384xf32, #tpu.memory_space<vmem>>, vector<8x384xf32>,
    %c0_24 = arith.constant 0 : index
    %c0_25 = arith.constant 0 : index
    %c0_26 = arith.constant 0 : index
    %24 = vector.load %arg3[%c0_24, %c0_25, %c0_26] : memref<1x144x72xf32, #tpu.memory_space<vmem>>, vector<1x8x72xf32>
    %25 = vector.shape_cast %24 : vector<1x8x72xf32> to vector<8x72xf32>
    %c0_27 = arith.constant 0 : index
    %c0_28 = arith.constant 0 : index
    %26 = vector.load %arg10[%c0_27, %c0_28] : memref<144x384xf32, #tpu.memory_space<vmem>>, vector<72x384xf32>
    %cst_29 = arith.constant dense<0.000000e+00> : vector<8x384xf32>
    %27 = tpu.matmul %25, %26, %cst_29 {dimension_numbers = #tpu.dot_dimension_numbers<[1], [0], [0], [1], [0, 0, 1, 1], [], []>} : vector<8x72xf32>, vector<72x384xf32>, vector<8x384xf32> -> vector<8x384xf32>
    %28 = arith.addf %5, %27 : vector<8x384xf32>
    %c0_30 = arith.constant 0 : index
    %c52 = arith.constant 52 : index
    %29 = vector.load %arg8[%c0_30, %c52] : memref<8x640xf32, #tpu.memory_space<vmem>>, vector<8x384xf32>
    %c72 = arith.constant 72 : index
    %c0_31 = arith.constant 0 : index
    %30 = vector.load %arg10[%c72, %c0_31] : memref<144x384xf32, #tpu.memory_space<vmem>>, vector<8x384xf32>
    tpu.vector_store %arg10[%c72, %c0_31], %29 {strides = array<i32>} : memref<144x384xf32, #tpu.memory_space<vmem>>, vector<8x384xf32>,
    %c0_32 = arith.constant 0 : index
    %c53 = arith.constant 53 : index
    %31 = vector.load %arg8[%c0_32, %c53] : memref<8x640xf32, #tpu.memory_space<vmem>>, vector<8x384xf32>
    %c80 = arith.constant 80 : index
    %c0_33 = arith.constant 0 : index
    %32 = vector.load %arg10[%c80, %c0_33] : memref<144x384xf32, #tpu.memory_space<vmem>>, vector<8x384xf32>
    tpu.vector_store %arg10[%c80, %c0_33], %31 {strides = array<i32>} : memref<144x384xf32, #tpu.memory_space<vmem>>, vector<8x384xf32>,
    %c0_34 = arith.constant 0 : index
    %c54 = arith.constant 54 : index
    %33 = vector.load %arg8[%c0_34, %c54] : memref<8x640xf32, #tpu.memory_space<vmem>>, vector<8x384xf32>
    %c88 = arith.constant 88 : index
    %c0_35 = arith.constant 0 : index
    %34 = vector.load %arg10[%c88, %c0_35] : memref<144x384xf32, #tpu.memory_space<vmem>>, vector<8x384xf32>
    tpu.vector_store %arg10[%c88, %c0_35], %33 {strides = array<i32>} : memref<144x384xf32, #tpu.memory_space<vmem>>, vector<8x384xf32>,
    %c0_36 = arith.constant 0 : index
    %c55 = arith.constant 55 : index
    %35 = vector.load %arg8[%c0_36, %c55] : memref<8x640xf32, #tpu.memory_space<vmem>>, vector<8x384xf32>
    %c96 = arith.constant 96 : index
    %c0_37 = arith.constant 0 : index
    %36 = vector.load %arg10[%c96, %c0_37] : memref<144x384xf32, #tpu.memory_space<vmem>>, vector<8x384xf32>
    tpu.vector_store %arg10[%c96, %c0_37], %35 {strides = array<i32>} : memref<144x384xf32, #tpu.memory_space<vmem>>, vector<8x384xf32>,
    %c0_38 = arith.constant 0 : index
    %c56_39 = arith.constant 56 : index
    %37 = vector.load %arg8[%c0_38, %c56_39] : memref<8x640xf32, #tpu.memory_space<vmem>>, vector<8x384xf32>
    %c104 = arith.constant 104 : index
    %c0_40 = arith.constant 0 : index
    %38 = vector.load %arg10[%c104, %c0_40] : memref<144x384xf32, #tpu.memory_space<vmem>>, vector<8x384xf32>
    tpu.vector_store %arg10[%c104, %c0_40], %37 {strides = array<i32>} : memref<144x384xf32, #tpu.memory_space<vmem>>, vector<8x384xf32>,
    %c0_41 = arith.constant 0 : index
    %c57 = arith.constant 57 : index
    %39 = vector.load %arg8[%c0_41, %c57] : memref<8x640xf32, #tpu.memory_space<vmem>>, vector<8x384xf32>
    %c112 = arith.constant 112 : index
    %c0_42 = arith.constant 0 : index
    %40 = vector.load %arg10[%c112, %c0_42] : memref<144x384xf32, #tpu.memory_space<vmem>>, vector<8x384xf32>
    tpu.vector_store %arg10[%c112, %c0_42], %39 {strides = array<i32>} : memref<144x384xf32, #tpu.memory_space<vmem>>, vector<8x384xf32>,
    %c0_43 = arith.constant 0 : index
    %c58 = arith.constant 58 : index
    %41 = vector.load %arg8[%c0_43, %c58] : memref<8x640xf32, #tpu.memory_space<vmem>>, vector<8x384xf32>
    %c120 = arith.constant 120 : index
    %c0_44 = arith.constant 0 : index
    %42 = vector.load %arg10[%c120, %c0_44] : memref<144x384xf32, #tpu.memory_space<vmem>>, vector<8x384xf32>
    tpu.vector_store %arg10[%c120, %c0_44], %41 {strides = array<i32>} : memref<144x384xf32, #tpu.memory_space<vmem>>, vector<8x384xf32>,
    %c0_45 = arith.constant 0 : index
    %c59 = arith.constant 59 : index
    %43 = vector.load %arg8[%c0_45, %c59] : memref<8x640xf32, #tpu.memory_space<vmem>>, vector<8x384xf32>
    %c128 = arith.constant 128 : index
    %c0_46 = arith.constant 0 : index
    %44 = vector.load %arg10[%c128, %c0_46] : memref<144x384xf32, #tpu.memory_space<vmem>>, vector<8x384xf32>
    tpu.vector_store %arg10[%c128, %c0_46], %43 {strides = array<i32>} : memref<144x384xf32, #tpu.memory_space<vmem>>, vector<8x384xf32>,
    %c0_47 = arith.constant 0 : index
    %c60 = arith.constant 60 : index
    %45 = vector.load %arg8[%c0_47, %c60] : memref<8x640xf32, #tpu.memory_space<vmem>>, vector<8x384xf32>
    %c136 = arith.constant 136 : index
    %c0_48 = arith.constant 0 : index
    %46 = vector.load %arg10[%c136, %c0_48] : memref<144x384xf32, #tpu.memory_space<vmem>>, vector<8x384xf32>
    tpu.vector_store %arg10[%c136, %c0_48], %45 {strides = array<i32>} : memref<144x384xf32, #tpu.memory_space<vmem>>, vector<8x384xf32>,
    %c0_49 = arith.constant 0 : index
    %c8_50 = arith.constant 8 : index
    %c0_51 = arith.constant 0 : index
    %47 = vector.load %arg3[%c0_49, %c8_50, %c0_51] : memref<1x144x72xf32, #tpu.memory_space<vmem>>, vector<1x8x72xf32>
    %48 = vector.shape_cast %47 : vector<1x8x72xf32> to vector<8x72xf32>
    %c72_52 = arith.constant 72 : index
    %c0_53 = arith.constant 0 : index
    %49 = vector.load %arg10[%c72_52, %c0_53] : memref<144x384xf32, #tpu.memory_space<vmem>>, vector<72x384xf32>
    %cst_54 = arith.constant dense<0.000000e+00> : vector<8x384xf32>
    %50 = tpu.matmul %48, %49, %cst_54 {dimension_numbers = #tpu.dot_dimension_numbers<[1], [0], [0], [1], [0, 0, 1, 1], [], []>} : vector<8x72xf32>, vector<72x384xf32>, vector<8x384xf32> -> vector<8x384xf32>
    %51 = arith.addf %28, %50 : vector<8x384xf32>
    %c0_55 = arith.constant 0 : index
    %c76 = arith.constant 76 : index
    %52 = vector.load %arg8[%c0_55, %c76] : memref<8x640xf32, #tpu.memory_space<vmem>>, vector<8x384xf32>
    %c0_56 = arith.constant 0 : index
    %c0_57 = arith.constant 0 : index
    %53 = vector.load %arg10[%c0_56, %c0_57] : memref<144x384xf32, #tpu.memory_space<vmem>>, vector<8x384xf32>
    tpu.vector_store %arg10[%c0_56, %c0_57], %52 {strides = array<i32>} : memref<144x384xf32, #tpu.memory_space<vmem>>, vector<8x384xf32>,
    %c0_58 = arith.constant 0 : index
    %c77 = arith.constant 77 : index
    %54 = vector.load %arg8[%c0_58, %c77] : memref<8x640xf32, #tpu.memory_space<vmem>>, vector<8x384xf32>
    %c8_59 = arith.constant 8 : index
    %c0_60 = arith.constant 0 : index
    %55 = vector.load %arg10[%c8_59, %c0_60] : memref<144x384xf32, #tpu.memory_space<vmem>>, vector<8x384xf32>
    tpu.vector_store %arg10[%c8_59, %c0_60], %54 {strides = array<i32>} : memref<144x384xf32, #tpu.memory_space<vmem>>, vector<8x384xf32>,
    %c0_61 = arith.constant 0 : index
    %c78 = arith.constant 78 : index
    %56 = vector.load %arg8[%c0_61, %c78] : memref<8x640xf32, #tpu.memory_space<vmem>>, vector<8x384xf32>
    %c16_62 = arith.constant 16 : index
    %c0_63 = arith.constant 0 : index
    %57 = vector.load %arg10[%c16_62, %c0_63] : memref<144x384xf32, #tpu.memory_space<vmem>>, vector<8x384xf32>
    tpu.vector_store %arg10[%c16_62, %c0_63], %56 {strides = array<i32>} : memref<144x384xf32, #tpu.memory_space<vmem>>, vector<8x384xf32>,
    %c0_64 = arith.constant 0 : index
    %c79 = arith.constant 79 : index
    %58 = vector.load %arg8[%c0_64, %c79] : memref<8x640xf32, #tpu.memory_space<vmem>>, vector<8x384xf32>
    %c24_65 = arith.constant 24 : index
    %c0_66 = arith.constant 0 : index
    %59 = vector.load %arg10[%c24_65, %c0_66] : memref<144x384xf32, #tpu.memory_space<vmem>>, vector<8x384xf32>
    tpu.vector_store %arg10[%c24_65, %c0_66], %58 {strides = array<i32>} : memref<144x384xf32, #tpu.memory_space<vmem>>, vector<8x384xf32>,
    %c0_67 = arith.constant 0 : index
    %c80_68 = arith.constant 80 : index
    %60 = vector.load %arg8[%c0_67, %c80_68] : memref<8x640xf32, #tpu.memory_space<vmem>>, vector<8x384xf32>
    %c32_69 = arith.constant 32 : index
    %c0_70 = arith.constant 0 : index
    %61 = vector.load %arg10[%c32_69, %c0_70] : memref<144x384xf32, #tpu.memory_space<vmem>>, vector<8x384xf32>
    tpu.vector_store %arg10[%c32_69, %c0_70], %60 {strides = array<i32>} : memref<144x384xf32, #tpu.memory_space<vmem>>, vector<8x384xf32>,
    %c0_71 = arith.constant 0 : index
    %c81 = arith.constant 81 : index
    %62 = vector.load %arg8[%c0_71, %c81] : memref<8x640xf32, #tpu.memory_space<vmem>>, vector<8x384xf32>
    %c40_72 = arith.constant 40 : index
    %c0_73 = arith.constant 0 : index
    %63 = vector.load %arg10[%c40_72, %c0_73] : memref<144x384xf32, #tpu.memory_space<vmem>>, vector<8x384xf32>
    tpu.vector_store %arg10[%c40_72, %c0_73], %62 {strides = array<i32>} : memref<144x384xf32, #tpu.memory_space<vmem>>, vector<8x384xf32>,
    %c0_74 = arith.constant 0 : index
    %c82 = arith.constant 82 : index
    %64 = vector.load %arg8[%c0_74, %c82] : memref<8x640xf32, #tpu.memory_space<vmem>>, vector<8x384xf32>
    %c48_75 = arith.constant 48 : index
    %c0_76 = arith.constant 0 : index
    %65 = vector.load %arg10[%c48_75, %c0_76] : memref<144x384xf32, #tpu.memory_space<vmem>>, vector<8x384xf32>
    tpu.vector_store %arg10[%c48_75, %c0_76], %64 {strides = array<i32>} : memref<144x384xf32, #tpu.memory_space<vmem>>, vector<8x384xf32>,
    %c0_77 = arith.constant 0 : index
    %c83 = arith.constant 83 : index
    %66 = vector.load %arg8[%c0_77, %c83] : memref<8x640xf32, #tpu.memory_space<vmem>>, vector<8x384xf32>
    %c56_78 = arith.constant 56 : index
    %c0_79 = arith.constant 0 : index
    %67 = vector.load %arg10[%c56_78, %c0_79] : memref<144x384xf32, #tpu.memory_space<vmem>>, vector<8x384xf32>
    tpu.vector_store %arg10[%c56_78, %c0_79], %66 {strides = array<i32>} : memref<144x384xf32, #tpu.memory_space<vmem>>, vector<8x384xf32>,
    %c0_80 = arith.constant 0 : index
    %c84 = arith.constant 84 : index
    %68 = vector.load %arg8[%c0_80, %c84] : memref<8x640xf32, #tpu.memory_space<vmem>>, vector<8x384xf32>
    %c64_81 = arith.constant 64 : index
    %c0_82 = arith.constant 0 : index
    %69 = vector.load %arg10[%c64_81, %c0_82] : memref<144x384xf32, #tpu.memory_space<vmem>>, vector<8x384xf32>
    tpu.vector_store %arg10[%c64_81, %c0_82], %68 {strides = array<i32>} : memref<144x384xf32, #tpu.memory_space<vmem>>, vector<8x384xf32>,
    %c0_83 = arith.constant 0 : index
    %c16_84 = arith.constant 16 : index
    %c0_85 = arith.constant 0 : index
    %70 = vector.load %arg3[%c0_83, %c16_84, %c0_85] : memref<1x144x72xf32, #tpu.memory_space<vmem>>, vector<1x8x72xf32>
    %71 = vector.shape_cast %70 : vector<1x8x72xf32> to vector<8x72xf32>
    %c0_86 = arith.constant 0 : index
    %c0_87 = arith.constant 0 : index
    %72 = vector.load %arg10[%c0_86, %c0_87] : memref<144x384xf32, #tpu.memory_space<vmem>>, vector<72x384xf32>
    %cst_88 = arith.constant dense<0.000000e+00> : vector<8x384xf32>
    %73 = tpu.matmul %71, %72, %cst_88 {dimension_numbers = #tpu.dot_dimension_numbers<[1], [0], [0], [1], [0, 0, 1, 1], [], []>} : vector<8x72xf32>, vector<72x384xf32>, vector<8x384xf32> -> vector<8x384xf32>
    %74 = arith.addf %51, %73 : vector<8x384xf32>
    %c0_89 = arith.constant 0 : index
    %c100 = arith.constant 100 : index
    %75 = vector.load %arg8[%c0_89, %c100] : memref<8x640xf32, #tpu.memory_space<vmem>>, vector<8x384xf32>
    %c72_90 = arith.constant 72 : index
    %c0_91 = arith.constant 0 : index
    %76 = vector.load %arg10[%c72_90, %c0_91] : memref<144x384xf32, #tpu.memory_space<vmem>>, vector<8x384xf32>
    tpu.vector_store %arg10[%c72_90, %c0_91], %75 {strides = array<i32>} : memref<144x384xf32, #tpu.memory_space<vmem>>, vector<8x384xf32>,
    %c0_92 = arith.constant 0 : index
    %c101 = arith.constant 101 : index
    %77 = vector.load %arg8[%c0_92, %c101] : memref<8x640xf32, #tpu.memory_space<vmem>>, vector<8x384xf32>
    %c80_93 = arith.constant 80 : index
    %c0_94 = arith.constant 0 : index
    %78 = vector.load %arg10[%c80_93, %c0_94] : memref<144x384xf32, #tpu.memory_space<vmem>>, vector<8x384xf32>
    tpu.vector_store %arg10[%c80_93, %c0_94], %77 {strides = array<i32>} : memref<144x384xf32, #tpu.memory_space<vmem>>, vector<8x384xf32>,
    %c0_95 = arith.constant 0 : index
    %c102 = arith.constant 102 : index
    %79 = vector.load %arg8[%c0_95, %c102] : memref<8x640xf32, #tpu.memory_space<vmem>>, vector<8x384xf32>
    %c88_96 = arith.constant 88 : index
    %c0_97 = arith.constant 0 : index
    %80 = vector.load %arg10[%c88_96, %c0_97] : memref<144x384xf32, #tpu.memory_space<vmem>>, vector<8x384xf32>
    tpu.vector_store %arg10[%c88_96, %c0_97], %79 {strides = array<i32>} : memref<144x384xf32, #tpu.memory_space<vmem>>, vector<8x384xf32>,
    %c0_98 = arith.constant 0 : index
    %c103 = arith.constant 103 : index
    %81 = vector.load %arg8[%c0_98, %c103] : memref<8x640xf32, #tpu.memory_space<vmem>>, vector<8x384xf32>
    %c96_99 = arith.constant 96 : index
    %c0_100 = arith.constant 0 : index
    %82 = vector.load %arg10[%c96_99, %c0_100] : memref<144x384xf32, #tpu.memory_space<vmem>>, vector<8x384xf32>
    tpu.vector_store %arg10[%c96_99, %c0_100], %81 {strides = array<i32>} : memref<144x384xf32, #tpu.memory_space<vmem>>, vector<8x384xf32>,
    %c0_101 = arith.constant 0 : index
    %c104_102 = arith.constant 104 : index
    %83 = vector.load %arg8[%c0_101, %c104_102] : memref<8x640xf32, #tpu.memory_space<vmem>>, vector<8x384xf32>
    %c104_103 = arith.constant 104 : index
    %c0_104 = arith.constant 0 : index
    %84 = vector.load %arg10[%c104_103, %c0_104] : memref<144x384xf32, #tpu.memory_space<vmem>>, vector<8x384xf32>
    tpu.vector_store %arg10[%c104_103, %c0_104], %83 {strides = array<i32>} : memref<144x384xf32, #tpu.memory_space<vmem>>, vector<8x384xf32>,
    %c0_105 = arith.constant 0 : index
    %c105 = arith.constant 105 : index
    %85 = vector.load %arg8[%c0_105, %c105] : memref<8x640xf32, #tpu.memory_space<vmem>>, vector<8x384xf32>
    %c112_106 = arith.constant 112 : index
    %c0_107 = arith.constant 0 : index
    %86 = vector.load %arg10[%c112_106, %c0_107] : memref<144x384xf32, #tpu.memory_space<vmem>>, vector<8x384xf32>
    tpu.vector_store %arg10[%c112_106, %c0_107], %85 {strides = array<i32>} : memref<144x384xf32, #tpu.memory_space<vmem>>, vector<8x384xf32>,
    %c0_108 = arith.constant 0 : index
    %c106 = arith.constant 106 : index
    %87 = vector.load %arg8[%c0_108, %c106] : memref<8x640xf32, #tpu.memory_space<vmem>>, vector<8x384xf32>
    %c120_109 = arith.constant 120 : index
    %c0_110 = arith.constant 0 : index
    %88 = vector.load %arg10[%c120_109, %c0_110] : memref<144x384xf32, #tpu.memory_space<vmem>>, vector<8x384xf32>
    tpu.vector_store %arg10[%c120_109, %c0_110], %87 {strides = array<i32>} : memref<144x384xf32, #tpu.memory_space<vmem>>, vector<8x384xf32>,
    %c0_111 = arith.constant 0 : index
    %c107 = arith.constant 107 : index
    %89 = vector.load %arg8[%c0_111, %c107] : memref<8x640xf32, #tpu.memory_space<vmem>>, vector<8x384xf32>
    %c128_112 = arith.constant 128 : index
    %c0_113 = arith.constant 0 : index
    %90 = vector.load %arg10[%c128_112, %c0_113] : memref<144x384xf32, #tpu.memory_space<vmem>>, vector<8x384xf32>
    tpu.vector_store %arg10[%c128_112, %c0_113], %89 {strides = array<i32>} : memref<144x384xf32, #tpu.memory_space<vmem>>, vector<8x384xf32>,
    %c0_114 = arith.constant 0 : index
    %c108 = arith.constant 108 : index
    %91 = vector.load %arg8[%c0_114, %c108] : memref<8x640xf32, #tpu.memory_space<vmem>>, vector<8x384xf32>
    %c136_115 = arith.constant 136 : index
    %c0_116 = arith.constant 0 : index
    %92 = vector.load %arg10[%c136_115, %c0_116] : memref<144x384xf32, #tpu.memory_space<vmem>>, vector<8x384xf32>
    tpu.vector_store %arg10[%c136_115, %c0_116], %91 {strides = array<i32>} : memref<144x384xf32, #tpu.memory_space<vmem>>, vector<8x384xf32>,
    %c0_117 = arith.constant 0 : index
    %c24_118 = arith.constant 24 : index
    %c0_119 = arith.constant 0 : index
    %93 = vector.load %arg3[%c0_117, %c24_118, %c0_119] : memref<1x144x72xf32, #tpu.memory_space<vmem>>, vector<1x8x72xf32>
    %94 = vector.shape_cast %93 : vector<1x8x72xf32> to vector<8x72xf32>
    %c72_120 = arith.constant 72 : index
    %c0_121 = arith.constant 0 : index
    %95 = vector.load %arg10[%c72_120, %c0_121] : memref<144x384xf32, #tpu.memory_space<vmem>>, vector<72x384xf32>
    %cst_122 = arith.constant dense<0.000000e+00> : vector<8x384xf32>
    %96 = tpu.matmul %94, %95, %cst_122 {dimension_numbers = #tpu.dot_dimension_numbers<[1], [0], [0], [1], [0, 0, 1, 1], [], []>} : vector<8x72xf32>, vector<72x384xf32>, vector<8x384xf32> -> vector<8x384xf32>
    %97 = arith.addf %74, %96 : vector<8x384xf32>
    %c0_123 = arith.constant 0 : index
    %c124 = arith.constant 124 : index
    %98 = vector.load %arg8[%c0_123, %c124] : memref<8x640xf32, #tpu.memory_space<vmem>>, vector<8x384xf32>
    %c0_124 = arith.constant 0 : index
    %c0_125 = arith.constant 0 : index
    %99 = vector.load %arg10[%c0_124, %c0_125] : memref<144x384xf32, #tpu.memory_space<vmem>>, vector<8x384xf32>
    tpu.vector_store %arg10[%c0_124, %c0_125], %98 {strides = array<i32>} : memref<144x384xf32, #tpu.memory_space<vmem>>, vector<8x384xf32>,
    %c0_126 = arith.constant 0 : index
    %c125 = arith.constant 125 : index
    %100 = vector.load %arg8[%c0_126, %c125] : memref<8x640xf32, #tpu.memory_space<vmem>>, vector<8x384xf32>
    %c8_127 = arith.constant 8 : index
    %c0_128 = arith.constant 0 : index
    %101 = vector.load %arg10[%c8_127, %c0_128] : memref<144x384xf32, #tpu.memory_space<vmem>>, vector<8x384xf32>
    tpu.vector_store %arg10[%c8_127, %c0_128], %100 {strides = array<i32>} : memref<144x384xf32, #tpu.memory_space<vmem>>, vector<8x384xf32>,
    %c0_129 = arith.constant 0 : index
    %c126 = arith.constant 126 : index
    %102 = vector.load %arg8[%c0_129, %c126] : memref<8x640xf32, #tpu.memory_space<vmem>>, vector<8x384xf32>
    %c16_130 = arith.constant 16 : index
    %c0_131 = arith.constant 0 : index
    %103 = vector.load %arg10[%c16_130, %c0_131] : memref<144x384xf32, #tpu.memory_space<vmem>>, vector<8x384xf32>
    tpu.vector_store %arg10[%c16_130, %c0_131], %102 {strides = array<i32>} : memref<144x384xf32, #tpu.memory_space<vmem>>, vector<8x384xf32>,
    %c0_132 = arith.constant 0 : index
    %c127 = arith.constant 127 : index
    %104 = vector.load %arg8[%c0_132, %c127] : memref<8x640xf32, #tpu.memory_space<vmem>>, vector<8x384xf32>
    %c24_133 = arith.constant 24 : index
    %c0_134 = arith.constant 0 : index
    %105 = vector.load %arg10[%c24_133, %c0_134] : memref<144x384xf32, #tpu.memory_space<vmem>>, vector<8x384xf32>
    tpu.vector_store %arg10[%c24_133, %c0_134], %104 {strides = array<i32>} : memref<144x384xf32, #tpu.memory_space<vmem>>, vector<8x384xf32>,
    %c0_135 = arith.constant 0 : index
    %c128_136 = arith.constant 128 : index
    %106 = vector.load %arg8[%c0_135, %c128_136] : memref<8x640xf32, #tpu.memory_space<vmem>>, vector<8x384xf32>
    %c32_137 = arith.constant 32 : index
    %c0_138 = arith.constant 0 : index
    %107 = vector.load %arg10[%c32_137, %c0_138] : memref<144x384xf32, #tpu.memory_space<vmem>>, vector<8x384xf32>
    tpu.vector_store %arg10[%c32_137, %c0_138], %106 {strides = array<i32>} : memref<144x384xf32, #tpu.memory_space<vmem>>, vector<8x384xf32>,
    %c0_139 = arith.constant 0 : index
    %c129 = arith.constant 129 : index
    %108 = vector.load %arg8[%c0_139, %c129] : memref<8x640xf32, #tpu.memory_space<vmem>>, vector<8x384xf32>
    %c40_140 = arith.constant 40 : index
    %c0_141 = arith.constant 0 : index
    %109 = vector.load %arg10[%c40_140, %c0_141] : memref<144x384xf32, #tpu.memory_space<vmem>>, vector<8x384xf32>
    tpu.vector_store %arg10[%c40_140, %c0_141], %108 {strides = array<i32>} : memref<144x384xf32, #tpu.memory_space<vmem>>, vector<8x384xf32>,
    %c0_142 = arith.constant 0 : index
    %c130 = arith.constant 130 : index
    %110 = vector.load %arg8[%c0_142, %c130] : memref<8x640xf32, #tpu.memory_space<vmem>>, vector<8x384xf32>
    %c48_143 = arith.constant 48 : index
    %c0_144 = arith.constant 0 : index
    %111 = vector.load %arg10[%c48_143, %c0_144] : memref<144x384xf32, #tpu.memory_space<vmem>>, vector<8x384xf32>
    tpu.vector_store %arg10[%c48_143, %c0_144], %110 {strides = array<i32>} : memref<144x384xf32, #tpu.memory_space<vmem>>, vector<8x384xf32>,
    %c0_145 = arith.constant 0 : index
    %c131 = arith.constant 131 : index
    %112 = vector.load %arg8[%c0_145, %c131] : memref<8x640xf32, #tpu.memory_space<vmem>>, vector<8x384xf32>
    %c56_146 = arith.constant 56 : index
    %c0_147 = arith.constant 0 : index
    %113 = vector.load %arg10[%c56_146, %c0_147] : memref<144x384xf32, #tpu.memory_space<vmem>>, vector<8x384xf32>
    tpu.vector_store %arg10[%c56_146, %c0_147], %112 {strides = array<i32>} : memref<144x384xf32, #tpu.memory_space<vmem>>, vector<8x384xf32>,
    %c0_148 = arith.constant 0 : index
    %c132 = arith.constant 132 : index
    %114 = vector.load %arg8[%c0_148, %c132] : memref<8x640xf32, #tpu.memory_space<vmem>>, vector<8x384xf32>
    %c64_149 = arith.constant 64 : index
    %c0_150 = arith.constant 0 : index
    %115 = vector.load %arg10[%c64_149, %c0_150] : memref<144x384xf32, #tpu.memory_space<vmem>>, vector<8x384xf32>
    tpu.vector_store %arg10[%c64_149, %c0_150], %114 {strides = array<i32>} : memref<144x384xf32, #tpu.memory_space<vmem>>, vector<8x384xf32>,
    %c0_151 = arith.constant 0 : index
    %c32_152 = arith.constant 32 : index
    %c0_153 = arith.constant 0 : index
    %116 = vector.load %arg3[%c0_151, %c32_152, %c0_153] : memref<1x144x72xf32, #tpu.memory_space<vmem>>, vector<1x8x72xf32>
    %117 = vector.shape_cast %116 : vector<1x8x72xf32> to vector<8x72xf32>
    %c0_154 = arith.constant 0 : index
    %c0_155 = arith.constant 0 : index
    %118 = vector.load %arg10[%c0_154, %c0_155] : memref<144x384xf32, #tpu.memory_space<vmem>>, vector<72x384xf32>
    %cst_156 = arith.constant dense<0.000000e+00> : vector<8x384xf32>
    %119 = tpu.matmul %117, %118, %cst_156 {dimension_numbers = #tpu.dot_dimension_numbers<[1], [0], [0], [1], [0, 0, 1, 1], [], []>} : vector<8x72xf32>, vector<72x384xf32>, vector<8x384xf32> -> vector<8x384xf32>
    %120 = arith.addf %97, %119 : vector<8x384xf32>
    %c0_157 = arith.constant 0 : index
    %c148 = arith.constant 148 : index
    %121 = vector.load %arg8[%c0_157, %c148] : memref<8x640xf32, #tpu.memory_space<vmem>>, vector<8x384xf32>
    %c72_158 = arith.constant 72 : index
    %c0_159 = arith.constant 0 : index
    %122 = vector.load %arg10[%c72_158, %c0_159] : memref<144x384xf32, #tpu.memory_space<vmem>>, vector<8x384xf32>
    tpu.vector_store %arg10[%c72_158, %c0_159], %121 {strides = array<i32>} : memref<144x384xf32, #tpu.memory_space<vmem>>, vector<8x384xf32>,
    %c0_160 = arith.constant 0 : index
    %c149 = arith.constant 149 : index
    %123 = vector.load %arg8[%c0_160, %c149] : memref<8x640xf32, #tpu.memory_space<vmem>>, vector<8x384xf32>
    %c80_161 = arith.constant 80 : index
    %c0_162 = arith.constant 0 : index
    %124 = vector.load %arg10[%c80_161, %c0_162] : memref<144x384xf32, #tpu.memory_space<vmem>>, vector<8x384xf32>
    tpu.vector_store %arg10[%c80_161, %c0_162], %123 {strides = array<i32>} : memref<144x384xf32, #tpu.memory_space<vmem>>, vector<8x384xf32>,
    %c0_163 = arith.constant 0 : index
    %c150 = arith.constant 150 : index
    %125 = vector.load %arg8[%c0_163, %c150] : memref<8x640xf32, #tpu.memory_space<vmem>>, vector<8x384xf32>
    %c88_164 = arith.constant 88 : index
    %c0_165 = arith.constant 0 : index
    %126 = vector.load %arg10[%c88_164, %c0_165] : memref<144x384xf32, #tpu.memory_space<vmem>>, vector<8x384xf32>
    tpu.vector_store %arg10[%c88_164, %c0_165], %125 {strides = array<i32>} : memref<144x384xf32, #tpu.memory_space<vmem>>, vector<8x384xf32>,
    %c0_166 = arith.constant 0 : index
    %c151 = arith.constant 151 : index
    %127 = vector.load %arg8[%c0_166, %c151] : memref<8x640xf32, #tpu.memory_space<vmem>>, vector<8x384xf32>
    %c96_167 = arith.constant 96 : index
    %c0_168 = arith.constant 0 : index
    %128 = vector.load %arg10[%c96_167, %c0_168] : memref<144x384xf32, #tpu.memory_space<vmem>>, vector<8x384xf32>
    tpu.vector_store %arg10[%c96_167, %c0_168], %127 {strides = array<i32>} : memref<144x384xf32, #tpu.memory_space<vmem>>, vector<8x384xf32>,
    %c0_169 = arith.constant 0 : index
    %c152 = arith.constant 152 : index
    %129 = vector.load %arg8[%c0_169, %c152] : memref<8x640xf32, #tpu.memory_space<vmem>>, vector<8x384xf32>
    %c104_170 = arith.constant 104 : index
    %c0_171 = arith.constant 0 : index
    %130 = vector.load %arg10[%c104_170, %c0_171] : memref<144x384xf32, #tpu.memory_space<vmem>>, vector<8x384xf32>
    tpu.vector_store %arg10[%c104_170, %c0_171], %129 {strides = array<i32>} : memref<144x384xf32, #tpu.memory_space<vmem>>, vector<8x384xf32>,
    %c0_172 = arith.constant 0 : index
    %c153 = arith.constant 153 : index
    %131 = vector.load %arg8[%c0_172, %c153] : memref<8x640xf32, #tpu.memory_space<vmem>>, vector<8x384xf32>
    %c112_173 = arith.constant 112 : index
    %c0_174 = arith.constant 0 : index
    %132 = vector.load %arg10[%c112_173, %c0_174] : memref<144x384xf32, #tpu.memory_space<vmem>>, vector<8x384xf32>
    tpu.vector_store %arg10[%c112_173, %c0_174], %131 {strides = array<i32>} : memref<144x384xf32, #tpu.memory_space<vmem>>, vector<8x384xf32>,
    %c0_175 = arith.constant 0 : index
    %c154 = arith.constant 154 : index
    %133 = vector.load %arg8[%c0_175, %c154] : memref<8x640xf32, #tpu.memory_space<vmem>>, vector<8x384xf32>
    %c120_176 = arith.constant 120 : index
    %c0_177 = arith.constant 0 : index
    %134 = vector.load %arg10[%c120_176, %c0_177] : memref<144x384xf32, #tpu.memory_space<vmem>>, vector<8x384xf32>
    tpu.vector_store %arg10[%c120_176, %c0_177], %133 {strides = array<i32>} : memref<144x384xf32, #tpu.memory_space<vmem>>, vector<8x384xf32>,
    %c0_178 = arith.constant 0 : index
    %c155 = arith.constant 155 : index
    %135 = vector.load %arg8[%c0_178, %c155] : memref<8x640xf32, #tpu.memory_space<vmem>>, vector<8x384xf32>
    %c128_179 = arith.constant 128 : index
    %c0_180 = arith.constant 0 : index
    %136 = vector.load %arg10[%c128_179, %c0_180] : memref<144x384xf32, #tpu.memory_space<vmem>>, vector<8x384xf32>
    tpu.vector_store %arg10[%c128_179, %c0_180], %135 {strides = array<i32>} : memref<144x384xf32, #tpu.memory_space<vmem>>, vector<8x384xf32>,
    %c0_181 = arith.constant 0 : index
    %c156 = arith.constant 156 : index
    %137 = vector.load %arg8[%c0_181, %c156] : memref<8x640xf32, #tpu.memory_space<vmem>>, vector<8x384xf32>
    %c136_182 = arith.constant 136 : index
    %c0_183 = arith.constant 0 : index
    %138 = vector.load %arg10[%c136_182, %c0_183] : memref<144x384xf32, #tpu.memory_space<vmem>>, vector<8x384xf32>
    tpu.vector_store %arg10[%c136_182, %c0_183], %137 {strides = array<i32>} : memref<144x384xf32, #tpu.memory_space<vmem>>, vector<8x384xf32>,
    %c0_184 = arith.constant 0 : index
    %c40_185 = arith.constant 40 : index
    %c0_186 = arith.constant 0 : index
    %139 = vector.load %arg3[%c0_184, %c40_185, %c0_186] : memref<1x144x72xf32, #tpu.memory_space<vmem>>, vector<1x8x72xf32>
    %140 = vector.shape_cast %139 : vector<1x8x72xf32> to vector<8x72xf32>
    %c72_187 = arith.constant 72 : index
    %c0_188 = arith.constant 0 : index
    %141 = vector.load %arg10[%c72_187, %c0_188] : memref<144x384xf32, #tpu.memory_space<vmem>>, vector<72x384xf32>
    %cst_189 = arith.constant dense<0.000000e+00> : vector<8x384xf32>
    %142 = tpu.matmul %140, %141, %cst_189 {dimension_numbers = #tpu.dot_dimension_numbers<[1], [0], [0], [1], [0, 0, 1, 1], [], []>} : vector<8x72xf32>, vector<72x384xf32>, vector<8x384xf32> -> vector<8x384xf32>
    %143 = arith.addf %120, %142 : vector<8x384xf32>
    %c0_190 = arith.constant 0 : index
    %c172 = arith.constant 172 : index
    %144 = vector.load %arg8[%c0_190, %c172] : memref<8x640xf32, #tpu.memory_space<vmem>>, vector<8x384xf32>
    %c0_191 = arith.constant 0 : index
    %c0_192 = arith.constant 0 : index
    %145 = vector.load %arg10[%c0_191, %c0_192] : memref<144x384xf32, #tpu.memory_space<vmem>>, vector<8x384xf32>
    tpu.vector_store %arg10[%c0_191, %c0_192], %144 {strides = array<i32>} : memref<144x384xf32, #tpu.memory_space<vmem>>, vector<8x384xf32>,
    %c0_193 = arith.constant 0 : index
    %c173 = arith.constant 173 : index
    %146 = vector.load %arg8[%c0_193, %c173] : memref<8x640xf32, #tpu.memory_space<vmem>>, vector<8x384xf32>
    %c8_194 = arith.constant 8 : index
    %c0_195 = arith.constant 0 : index
    %147 = vector.load %arg10[%c8_194, %c0_195] : memref<144x384xf32, #tpu.memory_space<vmem>>, vector<8x384xf32>
    tpu.vector_store %arg10[%c8_194, %c0_195], %146 {strides = array<i32>} : memref<144x384xf32, #tpu.memory_space<vmem>>, vector<8x384xf32>,
    %c0_196 = arith.constant 0 : index
    %c174 = arith.constant 174 : index
    %148 = vector.load %arg8[%c0_196, %c174] : memref<8x640xf32, #tpu.memory_space<vmem>>, vector<8x384xf32>
    %c16_197 = arith.constant 16 : index
    %c0_198 = arith.constant 0 : index
    %149 = vector.load %arg10[%c16_197, %c0_198] : memref<144x384xf32, #tpu.memory_space<vmem>>, vector<8x384xf32>
    tpu.vector_store %arg10[%c16_197, %c0_198], %148 {strides = array<i32>} : memref<144x384xf32, #tpu.memory_space<vmem>>, vector<8x384xf32>,
    %c0_199 = arith.constant 0 : index
    %c175 = arith.constant 175 : index
    %150 = vector.load %arg8[%c0_199, %c175] : memref<8x640xf32, #tpu.memory_space<vmem>>, vector<8x384xf32>
    %c24_200 = arith.constant 24 : index
    %c0_201 = arith.constant 0 : index
    %151 = vector.load %arg10[%c24_200, %c0_201] : memref<144x384xf32, #tpu.memory_space<vmem>>, vector<8x384xf32>
    tpu.vector_store %arg10[%c24_200, %c0_201], %150 {strides = array<i32>} : memref<144x384xf32, #tpu.memory_space<vmem>>, vector<8x384xf32>,
    %c0_202 = arith.constant 0 : index
    %c176 = arith.constant 176 : index
    %152 = vector.load %arg8[%c0_202, %c176] : memref<8x640xf32, #tpu.memory_space<vmem>>, vector<8x384xf32>
    %c32_203 = arith.constant 32 : index
    %c0_204 = arith.constant 0 : index
    %153 = vector.load %arg10[%c32_203, %c0_204] : memref<144x384xf32, #tpu.memory_space<vmem>>, vector<8x384xf32>
    tpu.vector_store %arg10[%c32_203, %c0_204], %152 {strides = array<i32>} : memref<144x384xf32, #tpu.memory_space<vmem>>, vector<8x384xf32>,
    %c0_205 = arith.constant 0 : index
    %c177 = arith.constant 177 : index
    %154 = vector.load %arg8[%c0_205, %c177] : memref<8x640xf32, #tpu.memory_space<vmem>>, vector<8x384xf32>
    %c40_206 = arith.constant 40 : index
    %c0_207 = arith.constant 0 : index
    %155 = vector.load %arg10[%c40_206, %c0_207] : memref<144x384xf32, #tpu.memory_space<vmem>>, vector<8x384xf32>
    tpu.vector_store %arg10[%c40_206, %c0_207], %154 {strides = array<i32>} : memref<144x384xf32, #tpu.memory_space<vmem>>, vector<8x384xf32>,
    %c0_208 = arith.constant 0 : index
    %c178 = arith.constant 178 : index
    %156 = vector.load %arg8[%c0_208, %c178] : memref<8x640xf32, #tpu.memory_space<vmem>>, vector<8x384xf32>
    %c48_209 = arith.constant 48 : index
    %c0_210 = arith.constant 0 : index
    %157 = vector.load %arg10[%c48_209, %c0_210] : memref<144x384xf32, #tpu.memory_space<vmem>>, vector<8x384xf32>
    tpu.vector_store %arg10[%c48_209, %c0_210], %156 {strides = array<i32>} : memref<144x384xf32, #tpu.memory_space<vmem>>, vector<8x384xf32>,
    %c0_211 = arith.constant 0 : index
    %c179 = arith.constant 179 : index
    %158 = vector.load %arg8[%c0_211, %c179] : memref<8x640xf32, #tpu.memory_space<vmem>>, vector<8x384xf32>
    %c56_212 = arith.constant 56 : index
    %c0_213 = arith.constant 0 : index
    %159 = vector.load %arg10[%c56_212, %c0_213] : memref<144x384xf32, #tpu.memory_space<vmem>>, vector<8x384xf32>
    tpu.vector_store %arg10[%c56_212, %c0_213], %158 {strides = array<i32>} : memref<144x384xf32, #tpu.memory_space<vmem>>, vector<8x384xf32>,
    %c0_214 = arith.constant 0 : index
    %c180 = arith.constant 180 : index
    %160 = vector.load %arg8[%c0_214, %c180] : memref<8x640xf32, #tpu.memory_space<vmem>>, vector<8x384xf32>
    %c64_215 = arith.constant 64 : index
    %c0_216 = arith.constant 0 : index
    %161 = vector.load %arg10[%c64_215, %c0_216] : memref<144x384xf32, #tpu.memory_space<vmem>>, vector<8x384xf32>
    tpu.vector_store %arg10[%c64_215, %c0_216], %160 {strides = array<i32>} : memref<144x384xf32, #tpu.memory_space<vmem>>, vector<8x384xf32>,
    %c0_217 = arith.constant 0 : index
    %c48_218 = arith.constant 48 : index
    %c0_219 = arith.constant 0 : index
    %162 = vector.load %arg3[%c0_217, %c48_218, %c0_219] : memref<1x144x72xf32, #tpu.memory_space<vmem>>, vector<1x8x72xf32>
    %163 = vector.shape_cast %162 : vector<1x8x72xf32> to vector<8x72xf32>
    %c0_220 = arith.constant 0 : index
    %c0_221 = arith.constant 0 : index
    %164 = vector.load %arg10[%c0_220, %c0_221] : memref<144x384xf32, #tpu.memory_space<vmem>>, vector<72x384xf32>
    %cst_222 = arith.constant dense<0.000000e+00> : vector<8x384xf32>
    %165 = tpu.matmul %163, %164, %cst_222 {dimension_numbers = #tpu.dot_dimension_numbers<[1], [0], [0], [1], [0, 0, 1, 1], [], []>} : vector<8x72xf32>, vector<72x384xf32>, vector<8x384xf32> -> vector<8x384xf32>
    %166 = arith.addf %143, %165 : vector<8x384xf32>
    %c0_223 = arith.constant 0 : index
    %c196 = arith.constant 196 : index
    %167 = vector.load %arg8[%c0_223, %c196] : memref<8x640xf32, #tpu.memory_space<vmem>>, vector<8x384xf32>
    %c72_224 = arith.constant 72 : index
    %c0_225 = arith.constant 0 : index
    %168 = vector.load %arg10[%c72_224, %c0_225] : memref<144x384xf32, #tpu.memory_space<vmem>>, vector<8x384xf32>
    tpu.vector_store %arg10[%c72_224, %c0_225], %167 {strides = array<i32>} : memref<144x384xf32, #tpu.memory_space<vmem>>, vector<8x384xf32>,
    %c0_226 = arith.constant 0 : index
    %c197 = arith.constant 197 : index
    %169 = vector.load %arg8[%c0_226, %c197] : memref<8x640xf32, #tpu.memory_space<vmem>>, vector<8x384xf32>
    %c80_227 = arith.constant 80 : index
    %c0_228 = arith.constant 0 : index
    %170 = vector.load %arg10[%c80_227, %c0_228] : memref<144x384xf32, #tpu.memory_space<vmem>>, vector<8x384xf32>
    tpu.vector_store %arg10[%c80_227, %c0_228], %169 {strides = array<i32>} : memref<144x384xf32, #tpu.memory_space<vmem>>, vector<8x384xf32>,
    %c0_229 = arith.constant 0 : index
    %c198 = arith.constant 198 : index
    %171 = vector.load %arg8[%c0_229, %c198] : memref<8x640xf32, #tpu.memory_space<vmem>>, vector<8x384xf32>
    %c88_230 = arith.constant 88 : index
    %c0_231 = arith.constant 0 : index
    %172 = vector.load %arg10[%c88_230, %c0_231] : memref<144x384xf32, #tpu.memory_space<vmem>>, vector<8x384xf32>
    tpu.vector_store %arg10[%c88_230, %c0_231], %171 {strides = array<i32>} : memref<144x384xf32, #tpu.memory_space<vmem>>, vector<8x384xf32>,
    %c0_232 = arith.constant 0 : index
    %c199 = arith.constant 199 : index
    %173 = vector.load %arg8[%c0_232, %c199] : memref<8x640xf32, #tpu.memory_space<vmem>>, vector<8x384xf32>
    %c96_233 = arith.constant 96 : index
    %c0_234 = arith.constant 0 : index
    %174 = vector.load %arg10[%c96_233, %c0_234] : memref<144x384xf32, #tpu.memory_space<vmem>>, vector<8x384xf32>
    tpu.vector_store %arg10[%c96_233, %c0_234], %173 {strides = array<i32>} : memref<144x384xf32, #tpu.memory_space<vmem>>, vector<8x384xf32>,
    %c0_235 = arith.constant 0 : index
    %c200 = arith.constant 200 : index
    %175 = vector.load %arg8[%c0_235, %c200] : memref<8x640xf32, #tpu.memory_space<vmem>>, vector<8x384xf32>
    %c104_236 = arith.constant 104 : index
    %c0_237 = arith.constant 0 : index
    %176 = vector.load %arg10[%c104_236, %c0_237] : memref<144x384xf32, #tpu.memory_space<vmem>>, vector<8x384xf32>
    tpu.vector_store %arg10[%c104_236, %c0_237], %175 {strides = array<i32>} : memref<144x384xf32, #tpu.memory_space<vmem>>, vector<8x384xf32>,
    %c0_238 = arith.constant 0 : index
    %c201 = arith.constant 201 : index
    %177 = vector.load %arg8[%c0_238, %c201] : memref<8x640xf32, #tpu.memory_space<vmem>>, vector<8x384xf32>
    %c112_239 = arith.constant 112 : index
    %c0_240 = arith.constant 0 : index
    %178 = vector.load %arg10[%c112_239, %c0_240] : memref<144x384xf32, #tpu.memory_space<vmem>>, vector<8x384xf32>
    tpu.vector_store %arg10[%c112_239, %c0_240], %177 {strides = array<i32>} : memref<144x384xf32, #tpu.memory_space<vmem>>, vector<8x384xf32>,
    %c0_241 = arith.constant 0 : index
    %c202 = arith.constant 202 : index
    %179 = vector.load %arg8[%c0_241, %c202] : memref<8x640xf32, #tpu.memory_space<vmem>>, vector<8x384xf32>
    %c120_242 = arith.constant 120 : index
    %c0_243 = arith.constant 0 : index
    %180 = vector.load %arg10[%c120_242, %c0_243] : memref<144x384xf32, #tpu.memory_space<vmem>>, vector<8x384xf32>
    tpu.vector_store %arg10[%c120_242, %c0_243], %179 {strides = array<i32>} : memref<144x384xf32, #tpu.memory_space<vmem>>, vector<8x384xf32>,
    %c0_244 = arith.constant 0 : index
    %c203 = arith.constant 203 : index
    %181 = vector.load %arg8[%c0_244, %c203] : memref<8x640xf32, #tpu.memory_space<vmem>>, vector<8x384xf32>
    %c128_245 = arith.constant 128 : index
    %c0_246 = arith.constant 0 : index
    %182 = vector.load %arg10[%c128_245, %c0_246] : memref<144x384xf32, #tpu.memory_space<vmem>>, vector<8x384xf32>
    tpu.vector_store %arg10[%c128_245, %c0_246], %181 {strides = array<i32>} : memref<144x384xf32, #tpu.memory_space<vmem>>, vector<8x384xf32>,
    %c0_247 = arith.constant 0 : index
    %c204 = arith.constant 204 : index
    %183 = vector.load %arg8[%c0_247, %c204] : memref<8x640xf32, #tpu.memory_space<vmem>>, vector<8x384xf32>
    %c136_248 = arith.constant 136 : index
    %c0_249 = arith.constant 0 : index
    %184 = vector.load %arg10[%c136_248, %c0_249] : memref<144x384xf32, #tpu.memory_space<vmem>>, vector<8x384xf32>
    tpu.vector_store %arg10[%c136_248, %c0_249], %183 {strides = array<i32>} : memref<144x384xf32, #tpu.memory_space<vmem>>, vector<8x384xf32>,
    %c0_250 = arith.constant 0 : index
    %c56_251 = arith.constant 56 : index
    %c0_252 = arith.constant 0 : index
    %185 = vector.load %arg3[%c0_250, %c56_251, %c0_252] : memref<1x144x72xf32, #tpu.memory_space<vmem>>, vector<1x8x72xf32>
    %186 = vector.shape_cast %185 : vector<1x8x72xf32> to vector<8x72xf32>
    %c72_253 = arith.constant 72 : index
    %c0_254 = arith.constant 0 : index
    %187 = vector.load %arg10[%c72_253, %c0_254] : memref<144x384xf32, #tpu.memory_space<vmem>>, vector<72x384xf32>
    %cst_255 = arith.constant dense<0.000000e+00> : vector<8x384xf32>
    %188 = tpu.matmul %186, %187, %cst_255 {dimension_numbers = #tpu.dot_dimension_numbers<[1], [0], [0], [1], [0, 0, 1, 1], [], []>} : vector<8x72xf32>, vector<72x384xf32>, vector<8x384xf32> -> vector<8x384xf32>
    %189 = arith.addf %166, %188 : vector<8x384xf32>
    %c0_256 = arith.constant 0 : index
    %c220 = arith.constant 220 : index
    %190 = vector.load %arg8[%c0_256, %c220] : memref<8x640xf32, #tpu.memory_space<vmem>>, vector<8x384xf32>
    %c0_257 = arith.constant 0 : index
    %c0_258 = arith.constant 0 : index
    %191 = vector.load %arg10[%c0_257, %c0_258] : memref<144x384xf32, #tpu.memory_space<vmem>>, vector<8x384xf32>
    tpu.vector_store %arg10[%c0_257, %c0_258], %190 {strides = array<i32>} : memref<144x384xf32, #tpu.memory_space<vmem>>, vector<8x384xf32>,
    %c0_259 = arith.constant 0 : index
    %c221 = arith.constant 221 : index
    %192 = vector.load %arg8[%c0_259, %c221] : memref<8x640xf32, #tpu.memory_space<vmem>>, vector<8x384xf32>
    %c8_260 = arith.constant 8 : index
    %c0_261 = arith.constant 0 : index
    %193 = vector.load %arg10[%c8_260, %c0_261] : memref<144x384xf32, #tpu.memory_space<vmem>>, vector<8x384xf32>
    tpu.vector_store %arg10[%c8_260, %c0_261], %192 {strides = array<i32>} : memref<144x384xf32, #tpu.memory_space<vmem>>, vector<8x384xf32>,
    %c0_262 = arith.constant 0 : index
    %c222 = arith.constant 222 : index
    %194 = vector.load %arg8[%c0_262, %c222] : memref<8x640xf32, #tpu.memory_space<vmem>>, vector<8x384xf32>
    %c16_263 = arith.constant 16 : index
    %c0_264 = arith.constant 0 : index
    %195 = vector.load %arg10[%c16_263, %c0_264] : memref<144x384xf32, #tpu.memory_space<vmem>>, vector<8x384xf32>
    tpu.vector_store %arg10[%c16_263, %c0_264], %194 {strides = array<i32>} : memref<144x384xf32, #tpu.memory_space<vmem>>, vector<8x384xf32>,
    %c0_265 = arith.constant 0 : index
    %c223 = arith.constant 223 : index
    %196 = vector.load %arg8[%c0_265, %c223] : memref<8x640xf32, #tpu.memory_space<vmem>>, vector<8x384xf32>
    %c24_266 = arith.constant 24 : index
    %c0_267 = arith.constant 0 : index
    %197 = vector.load %arg10[%c24_266, %c0_267] : memref<144x384xf32, #tpu.memory_space<vmem>>, vector<8x384xf32>
    tpu.vector_store %arg10[%c24_266, %c0_267], %196 {strides = array<i32>} : memref<144x384xf32, #tpu.memory_space<vmem>>, vector<8x384xf32>,
    %c0_268 = arith.constant 0 : index
    %c224 = arith.constant 224 : index
    %198 = vector.load %arg8[%c0_268, %c224] : memref<8x640xf32, #tpu.memory_space<vmem>>, vector<8x384xf32>
    %c32_269 = arith.constant 32 : index
    %c0_270 = arith.constant 0 : index
    %199 = vector.load %arg10[%c32_269, %c0_270] : memref<144x384xf32, #tpu.memory_space<vmem>>, vector<8x384xf32>
    tpu.vector_store %arg10[%c32_269, %c0_270], %198 {strides = array<i32>} : memref<144x384xf32, #tpu.memory_space<vmem>>, vector<8x384xf32>,
    %c0_271 = arith.constant 0 : index
    %c225 = arith.constant 225 : index
    %200 = vector.load %arg8[%c0_271, %c225] : memref<8x640xf32, #tpu.memory_space<vmem>>, vector<8x384xf32>
    %c40_272 = arith.constant 40 : index
    %c0_273 = arith.constant 0 : index
    %201 = vector.load %arg10[%c40_272, %c0_273] : memref<144x384xf32, #tpu.memory_space<vmem>>, vector<8x384xf32>
    tpu.vector_store %arg10[%c40_272, %c0_273], %200 {strides = array<i32>} : memref<144x384xf32, #tpu.memory_space<vmem>>, vector<8x384xf32>,
    %c0_274 = arith.constant 0 : index
    %c226 = arith.constant 226 : index
    %202 = vector.load %arg8[%c0_274, %c226] : memref<8x640xf32, #tpu.memory_space<vmem>>, vector<8x384xf32>
    %c48_275 = arith.constant 48 : index
    %c0_276 = arith.constant 0 : index
    %203 = vector.load %arg10[%c48_275, %c0_276] : memref<144x384xf32, #tpu.memory_space<vmem>>, vector<8x384xf32>
    tpu.vector_store %arg10[%c48_275, %c0_276], %202 {strides = array<i32>} : memref<144x384xf32, #tpu.memory_space<vmem>>, vector<8x384xf32>,
    %c0_277 = arith.constant 0 : index
    %c227 = arith.constant 227 : index
    %204 = vector.load %arg8[%c0_277, %c227] : memref<8x640xf32, #tpu.memory_space<vmem>>, vector<8x384xf32>
    %c56_278 = arith.constant 56 : index
    %c0_279 = arith.constant 0 : index
    %205 = vector.load %arg10[%c56_278, %c0_279] : memref<144x384xf32, #tpu.memory_space<vmem>>, vector<8x384xf32>
    tpu.vector_store %arg10[%c56_278, %c0_279], %204 {strides = array<i32>} : memref<144x384xf32, #tpu.memory_space<vmem>>, vector<8x384xf32>,
    %c0_280 = arith.constant 0 : index
    %c228 = arith.constant 228 : index
    %206 = vector.load %arg8[%c0_280, %c228] : memref<8x640xf32, #tpu.memory_space<vmem>>, vector<8x384xf32>
    %c64_281 = arith.constant 64 : index
    %c0_282 = arith.constant 0 : index
    %207 = vector.load %arg10[%c64_281, %c0_282] : memref<144x384xf32, #tpu.memory_space<vmem>>, vector<8x384xf32>
    tpu.vector_store %arg10[%c64_281, %c0_282], %206 {strides = array<i32>} : memref<144x384xf32, #tpu.memory_space<vmem>>, vector<8x384xf32>,
    %c0_283 = arith.constant 0 : index
    %c64_284 = arith.constant 64 : index
    %c0_285 = arith.constant 0 : index
    %208 = vector.load %arg3[%c0_283, %c64_284, %c0_285] : memref<1x144x72xf32, #tpu.memory_space<vmem>>, vector<1x8x72xf32>
    %209 = vector.shape_cast %208 : vector<1x8x72xf32> to vector<8x72xf32>
    %c0_286 = arith.constant 0 : index
    %c0_287 = arith.constant 0 : index
    %210 = vector.load %arg10[%c0_286, %c0_287] : memref<144x384xf32, #tpu.memory_space<vmem>>, vector<72x384xf32>
    %cst_288 = arith.constant dense<0.000000e+00> : vector<8x384xf32>
    %211 = tpu.matmul %209, %210, %cst_288 {dimension_numbers = #tpu.dot_dimension_numbers<[1], [0], [0], [1], [0, 0, 1, 1], [], []>} : vector<8x72xf32>, vector<72x384xf32>, vector<8x384xf32> -> vector<8x384xf32>
    %212 = arith.addf %189, %211 : vector<8x384xf32>
    %c0_289 = arith.constant 0 : index
    %c0_290 = arith.constant 0 : index
    %c0_291 = arith.constant 0 : index
    %213 = vector.load %arg4[%c0_289, %c0_290, %c0_291] : memref<1x16x1xf32, #tpu.memory_space<vmem>>, vector<1x8x1xf32>
    %214 = vector.shape_cast %213 : vector<1x8x1xf32> to vector<8x1xf32>
    %215 = vector.broadcast %214 : vector<8x1xf32> to vector<8x384xf32>
    %216 = arith.addf %212, %215 : vector<8x384xf32>
    %cst_292 = arith.constant 0.000000e+00 : f32
    %217 = vector.broadcast %cst_292 : f32 to vector<8x384xf32>
    %218 = arith.maximumf %216, %217 : vector<8x384xf32>
    %219 = vector.broadcast %3 : vector<1x384xf32> to vector<8x384xf32>
    %220 = arith.mulf %218, %219 : vector<8x384xf32>
    %c0_293 = arith.constant 0 : index
    %c128_294 = arith.constant 128 : index
    %221 = vector.load %arg9[%c0_293, %c128_294] : memref<8x640xf32, #tpu.memory_space<vmem>>, vector<8x384xf32>
    tpu.vector_store %arg9[%c0_293, %c128_294], %220 {strides = array<i32>} : memref<8x640xf32, #tpu.memory_space<vmem>>, vector<8x384xf32>,
    %cst_295 = arith.constant 0.000000e+00 : f32
    %222 = vector.broadcast %cst_295 : f32 to vector<8x384xf32>
    %c0_296 = arith.constant 0 : index
    %c28_297 = arith.constant 28 : index
    %223 = vector.load %arg9[%c0_296, %c28_297] : memref<8x640xf32, #tpu.memory_space<vmem>>, vector<8x384xf32>
    %c0_298 = arith.constant 0 : index
    %c0_299 = arith.constant 0 : index
    %224 = vector.load %arg10[%c0_298, %c0_299] : memref<144x384xf32, #tpu.memory_space<vmem>>, vector<8x384xf32>
    tpu.vector_store %arg10[%c0_298, %c0_299], %223 {strides = array<i32>} : memref<144x384xf32, #tpu.memory_space<vmem>>, vector<8x384xf32>,
    %c0_300 = arith.constant 0 : index
    %c29_301 = arith.constant 29 : index
    %225 = vector.load %arg9[%c0_300, %c29_301] : memref<8x640xf32, #tpu.memory_space<vmem>>, vector<8x384xf32>
    %c8_302 = arith.constant 8 : index
    %c0_303 = arith.constant 0 : index
    %226 = vector.load %arg10[%c8_302, %c0_303] : memref<144x384xf32, #tpu.memory_space<vmem>>, vector<8x384xf32>
    tpu.vector_store %arg10[%c8_302, %c0_303], %225 {strides = array<i32>} : memref<144x384xf32, #tpu.memory_space<vmem>>, vector<8x384xf32>,
    %c0_304 = arith.constant 0 : index
    %c30_305 = arith.constant 30 : index
    %227 = vector.load %arg9[%c0_304, %c30_305] : memref<8x640xf32, #tpu.memory_space<vmem>>, vector<8x384xf32>
    %c16_306 = arith.constant 16 : index
    %c0_307 = arith.constant 0 : index
    %228 = vector.load %arg10[%c16_306, %c0_307] : memref<144x384xf32, #tpu.memory_space<vmem>>, vector<8x384xf32>
    tpu.vector_store %arg10[%c16_306, %c0_307], %227 {strides = array<i32>} : memref<144x384xf32, #tpu.memory_space<vmem>>, vector<8x384xf32>,
    %c0_308 = arith.constant 0 : index
    %c31_309 = arith.constant 31 : index
    %229 = vector.load %arg9[%c0_308, %c31_309] : memref<8x640xf32, #tpu.memory_space<vmem>>, vector<8x384xf32>
    %c24_310 = arith.constant 24 : index
    %c0_311 = arith.constant 0 : index
    %230 = vector.load %arg10[%c24_310, %c0_311] : memref<144x384xf32, #tpu.memory_space<vmem>>, vector<8x384xf32>
    tpu.vector_store %arg10[%c24_310, %c0_311], %229 {strides = array<i32>} : memref<144x384xf32, #tpu.memory_space<vmem>>, vector<8x384xf32>,
    %c0_312 = arith.constant 0 : index
    %c32_313 = arith.constant 32 : index
    %231 = vector.load %arg9[%c0_312, %c32_313] : memref<8x640xf32, #tpu.memory_space<vmem>>, vector<8x384xf32>
    %c32_314 = arith.constant 32 : index
    %c0_315 = arith.constant 0 : index
    %232 = vector.load %arg10[%c32_314, %c0_315] : memref<144x384xf32, #tpu.memory_space<vmem>>, vector<8x384xf32>
    tpu.vector_store %arg10[%c32_314, %c0_315], %231 {strides = array<i32>} : memref<144x384xf32, #tpu.memory_space<vmem>>, vector<8x384xf32>,
    %c0_316 = arith.constant 0 : index
    %c33_317 = arith.constant 33 : index
    %233 = vector.load %arg9[%c0_316, %c33_317] : memref<8x640xf32, #tpu.memory_space<vmem>>, vector<8x384xf32>
    %c40_318 = arith.constant 40 : index
    %c0_319 = arith.constant 0 : index
    %234 = vector.load %arg10[%c40_318, %c0_319] : memref<144x384xf32, #tpu.memory_space<vmem>>, vector<8x384xf32>
    tpu.vector_store %arg10[%c40_318, %c0_319], %233 {strides = array<i32>} : memref<144x384xf32, #tpu.memory_space<vmem>>, vector<8x384xf32>,
    %c0_320 = arith.constant 0 : index
    %c34_321 = arith.constant 34 : index
    %235 = vector.load %arg9[%c0_320, %c34_321] : memref<8x640xf32, #tpu.memory_space<vmem>>, vector<8x384xf32>
    %c48_322 = arith.constant 48 : index
    %c0_323 = arith.constant 0 : index
    %236 = vector.load %arg10[%c48_322, %c0_323] : memref<144x384xf32, #tpu.memory_space<vmem>>, vector<8x384xf32>
    tpu.vector_store %arg10[%c48_322, %c0_323], %235 {strides = array<i32>} : memref<144x384xf32, #tpu.memory_space<vmem>>, vector<8x384xf32>,
    %c0_324 = arith.constant 0 : index
    %c35_325 = arith.constant 35 : index
    %237 = vector.load %arg9[%c0_324, %c35_325] : memref<8x640xf32, #tpu.memory_space<vmem>>, vector<8x384xf32>
    %c56_326 = arith.constant 56 : index
    %c0_327 = arith.constant 0 : index
    %238 = vector.load %arg10[%c56_326, %c0_327] : memref<144x384xf32, #tpu.memory_space<vmem>>, vector<8x384xf32>
    tpu.vector_store %arg10[%c56_326, %c0_327], %237 {strides = array<i32>} : memref<144x384xf32, #tpu.memory_space<vmem>>, vector<8x384xf32>,
    %c0_328 = arith.constant 0 : index
    %c36_329 = arith.constant 36 : index
    %239 = vector.load %arg9[%c0_328, %c36_329] : memref<8x640xf32, #tpu.memory_space<vmem>>, vector<8x384xf32>
    %c64_330 = arith.constant 64 : index
    %c0_331 = arith.constant 0 : index
    %240 = vector.load %arg10[%c64_330, %c0_331] : memref<144x384xf32, #tpu.memory_space<vmem>>, vector<8x384xf32>
    tpu.vector_store %arg10[%c64_330, %c0_331], %239 {strides = array<i32>} : memref<144x384xf32, #tpu.memory_space<vmem>>, vector<8x384xf32>,
    %c0_332 = arith.constant 0 : index
    %c72_333 = arith.constant 72 : index
    %c0_334 = arith.constant 0 : index
    %241 = vector.load %arg3[%c0_332, %c72_333, %c0_334] : memref<1x144x72xf32, #tpu.memory_space<vmem>>, vector<1x8x72xf32>
    %242 = vector.shape_cast %241 : vector<1x8x72xf32> to vector<8x72xf32>
    %c0_335 = arith.constant 0 : index
    %c0_336 = arith.constant 0 : index
    %243 = vector.load %arg10[%c0_335, %c0_336] : memref<144x384xf32, #tpu.memory_space<vmem>>, vector<72x384xf32>
    %cst_337 = arith.constant dense<0.000000e+00> : vector<8x384xf32>
    %244 = tpu.matmul %242, %243, %cst_337 {dimension_numbers = #tpu.dot_dimension_numbers<[1], [0], [0], [1], [0, 0, 1, 1], [], []>} : vector<8x72xf32>, vector<72x384xf32>, vector<8x384xf32> -> vector<8x384xf32>
    %245 = arith.addf %222, %244 : vector<8x384xf32>
    %c0_338 = arith.constant 0 : index
    %c52_339 = arith.constant 52 : index
    %246 = vector.load %arg9[%c0_338, %c52_339] : memref<8x640xf32, #tpu.memory_space<vmem>>, vector<8x384xf32>
    %c72_340 = arith.constant 72 : index
    %c0_341 = arith.constant 0 : index
    %247 = vector.load %arg10[%c72_340, %c0_341] : memref<144x384xf32, #tpu.memory_space<vmem>>, vector<8x384xf32>
    tpu.vector_store %arg10[%c72_340, %c0_341], %246 {strides = array<i32>} : memref<144x384xf32, #tpu.memory_space<vmem>>, vector<8x384xf32>,
    %c0_342 = arith.constant 0 : index
    %c53_343 = arith.constant 53 : index
    %248 = vector.load %arg9[%c0_342, %c53_343] : memref<8x640xf32, #tpu.memory_space<vmem>>, vector<8x384xf32>
    %c80_344 = arith.constant 80 : index
    %c0_345 = arith.constant 0 : index
    %249 = vector.load %arg10[%c80_344, %c0_345] : memref<144x384xf32, #tpu.memory_space<vmem>>, vector<8x384xf32>
    tpu.vector_store %arg10[%c80_344, %c0_345], %248 {strides = array<i32>} : memref<144x384xf32, #tpu.memory_space<vmem>>, vector<8x384xf32>,
    %c0_346 = arith.constant 0 : index
    %c54_347 = arith.constant 54 : index
    %250 = vector.load %arg9[%c0_346, %c54_347] : memref<8x640xf32, #tpu.memory_space<vmem>>, vector<8x384xf32>
    %c88_348 = arith.constant 88 : index
    %c0_349 = arith.constant 0 : index
    %251 = vector.load %arg10[%c88_348, %c0_349] : memref<144x384xf32, #tpu.memory_space<vmem>>, vector<8x384xf32>
    tpu.vector_store %arg10[%c88_348, %c0_349], %250 {strides = array<i32>} : memref<144x384xf32, #tpu.memory_space<vmem>>, vector<8x384xf32>,
    %c0_350 = arith.constant 0 : index
    %c55_351 = arith.constant 55 : index
    %252 = vector.load %arg9[%c0_350, %c55_351] : memref<8x640xf32, #tpu.memory_space<vmem>>, vector<8x384xf32>
    %c96_352 = arith.constant 96 : index
    %c0_353 = arith.constant 0 : index
    %253 = vector.load %arg10[%c96_352, %c0_353] : memref<144x384xf32, #tpu.memory_space<vmem>>, vector<8x384xf32>
    tpu.vector_store %arg10[%c96_352, %c0_353], %252 {strides = array<i32>} : memref<144x384xf32, #tpu.memory_space<vmem>>, vector<8x384xf32>,
    %c0_354 = arith.constant 0 : index
    %c56_355 = arith.constant 56 : index
    %254 = vector.load %arg9[%c0_354, %c56_355] : memref<8x640xf32, #tpu.memory_space<vmem>>, vector<8x384xf32>
    %c104_356 = arith.constant 104 : index
    %c0_357 = arith.constant 0 : index
    %255 = vector.load %arg10[%c104_356, %c0_357] : memref<144x384xf32, #tpu.memory_space<vmem>>, vector<8x384xf32>
    tpu.vector_store %arg10[%c104_356, %c0_357], %254 {strides = array<i32>} : memref<144x384xf32, #tpu.memory_space<vmem>>, vector<8x384xf32>,
    %c0_358 = arith.constant 0 : index
    %c57_359 = arith.constant 57 : index
    %256 = vector.load %arg9[%c0_358, %c57_359] : memref<8x640xf32, #tpu.memory_space<vmem>>, vector<8x384xf32>
    %c112_360 = arith.constant 112 : index
    %c0_361 = arith.constant 0 : index
    %257 = vector.load %arg10[%c112_360, %c0_361] : memref<144x384xf32, #tpu.memory_space<vmem>>, vector<8x384xf32>
    tpu.vector_store %arg10[%c112_360, %c0_361], %256 {strides = array<i32>} : memref<144x384xf32, #tpu.memory_space<vmem>>, vector<8x384xf32>,
    %c0_362 = arith.constant 0 : index
    %c58_363 = arith.constant 58 : index
    %258 = vector.load %arg9[%c0_362, %c58_363] : memref<8x640xf32, #tpu.memory_space<vmem>>, vector<8x384xf32>
    %c120_364 = arith.constant 120 : index
    %c0_365 = arith.constant 0 : index
    %259 = vector.load %arg10[%c120_364, %c0_365] : memref<144x384xf32, #tpu.memory_space<vmem>>, vector<8x384xf32>
    tpu.vector_store %arg10[%c120_364, %c0_365], %258 {strides = array<i32>} : memref<144x384xf32, #tpu.memory_space<vmem>>, vector<8x384xf32>,
    %c0_366 = arith.constant 0 : index
    %c59_367 = arith.constant 59 : index
    %260 = vector.load %arg9[%c0_366, %c59_367] : memref<8x640xf32, #tpu.memory_space<vmem>>, vector<8x384xf32>
    %c128_368 = arith.constant 128 : index
    %c0_369 = arith.constant 0 : index
    %261 = vector.load %arg10[%c128_368, %c0_369] : memref<144x384xf32, #tpu.memory_space<vmem>>, vector<8x384xf32>
    tpu.vector_store %arg10[%c128_368, %c0_369], %260 {strides = array<i32>} : memref<144x384xf32, #tpu.memory_space<vmem>>, vector<8x384xf32>,
    %c0_370 = arith.constant 0 : index
    %c60_371 = arith.constant 60 : index
    %262 = vector.load %arg9[%c0_370, %c60_371] : memref<8x640xf32, #tpu.memory_space<vmem>>, vector<8x384xf32>
    %c136_372 = arith.constant 136 : index
    %c0_373 = arith.constant 0 : index
    %263 = vector.load %arg10[%c136_372, %c0_373] : memref<144x384xf32, #tpu.memory_space<vmem>>, vector<8x384xf32>
    tpu.vector_store %arg10[%c136_372, %c0_373], %262 {strides = array<i32>} : memref<144x384xf32, #tpu.memory_space<vmem>>, vector<8x384xf32>,
    %c0_374 = arith.constant 0 : index
    %c80_375 = arith.constant 80 : index
    %c0_376 = arith.constant 0 : index
    %264 = vector.load %arg3[%c0_374, %c80_375, %c0_376] : memref<1x144x72xf32, #tpu.memory_space<vmem>>, vector<1x8x72xf32>
    %265 = vector.shape_cast %264 : vector<1x8x72xf32> to vector<8x72xf32>
    %c72_377 = arith.constant 72 : index
    %c0_378 = arith.constant 0 : index
    %266 = vector.load %arg10[%c72_377, %c0_378] : memref<144x384xf32, #tpu.memory_space<vmem>>, vector<72x384xf32>
    %cst_379 = arith.constant dense<0.000000e+00> : vector<8x384xf32>
    %267 = tpu.matmul %265, %266, %cst_379 {dimension_numbers = #tpu.dot_dimension_numbers<[1], [0], [0], [1], [0, 0, 1, 1], [], []>} : vector<8x72xf32>, vector<72x384xf32>, vector<8x384xf32> -> vector<8x384xf32>
    %268 = arith.addf %245, %267 : vector<8x384xf32>
    %c0_380 = arith.constant 0 : index
    %c76_381 = arith.constant 76 : index
    %269 = vector.load %arg9[%c0_380, %c76_381] : memref<8x640xf32, #tpu.memory_space<vmem>>, vector<8x384xf32>
    %c0_382 = arith.constant 0 : index
    %c0_383 = arith.constant 0 : index
    %270 = vector.load %arg10[%c0_382, %c0_383] : memref<144x384xf32, #tpu.memory_space<vmem>>, vector<8x384xf32>
    tpu.vector_store %arg10[%c0_382, %c0_383], %269 {strides = array<i32>} : memref<144x384xf32, #tpu.memory_space<vmem>>, vector<8x384xf32>,
    %c0_384 = arith.constant 0 : index
    %c77_385 = arith.constant 77 : index
    %271 = vector.load %arg9[%c0_384, %c77_385] : memref<8x640xf32, #tpu.memory_space<vmem>>, vector<8x384xf32>
    %c8_386 = arith.constant 8 : index
    %c0_387 = arith.constant 0 : index
    %272 = vector.load %arg10[%c8_386, %c0_387] : memref<144x384xf32, #tpu.memory_space<vmem>>, vector<8x384xf32>
    tpu.vector_store %arg10[%c8_386, %c0_387], %271 {strides = array<i32>} : memref<144x384xf32, #tpu.memory_space<vmem>>, vector<8x384xf32>,
    %c0_388 = arith.constant 0 : index
    %c78_389 = arith.constant 78 : index
    %273 = vector.load %arg9[%c0_388, %c78_389] : memref<8x640xf32, #tpu.memory_space<vmem>>, vector<8x384xf32>
    %c16_390 = arith.constant 16 : index
    %c0_391 = arith.constant 0 : index
    %274 = vector.load %arg10[%c16_390, %c0_391] : memref<144x384xf32, #tpu.memory_space<vmem>>, vector<8x384xf32>
    tpu.vector_store %arg10[%c16_390, %c0_391], %273 {strides = array<i32>} : memref<144x384xf32, #tpu.memory_space<vmem>>, vector<8x384xf32>,
    %c0_392 = arith.constant 0 : index
    %c79_393 = arith.constant 79 : index
    %275 = vector.load %arg9[%c0_392, %c79_393] : memref<8x640xf32, #tpu.memory_space<vmem>>, vector<8x384xf32>
    %c24_394 = arith.constant 24 : index
    %c0_395 = arith.constant 0 : index
    %276 = vector.load %arg10[%c24_394, %c0_395] : memref<144x384xf32, #tpu.memory_space<vmem>>, vector<8x384xf32>
    tpu.vector_store %arg10[%c24_394, %c0_395], %275 {strides = array<i32>} : memref<144x384xf32, #tpu.memory_space<vmem>>, vector<8x384xf32>,
    %c0_396 = arith.constant 0 : index
    %c80_397 = arith.constant 80 : index
    %277 = vector.load %arg9[%c0_396, %c80_397] : memref<8x640xf32, #tpu.memory_space<vmem>>, vector<8x384xf32>
    %c32_398 = arith.constant 32 : index
    %c0_399 = arith.constant 0 : index
    %278 = vector.load %arg10[%c32_398, %c0_399] : memref<144x384xf32, #tpu.memory_space<vmem>>, vector<8x384xf32>
    tpu.vector_store %arg10[%c32_398, %c0_399], %277 {strides = array<i32>} : memref<144x384xf32, #tpu.memory_space<vmem>>, vector<8x384xf32>,
    %c0_400 = arith.constant 0 : index
    %c81_401 = arith.constant 81 : index
    %279 = vector.load %arg9[%c0_400, %c81_401] : memref<8x640xf32, #tpu.memory_space<vmem>>, vector<8x384xf32>
    %c40_402 = arith.constant 40 : index
    %c0_403 = arith.constant 0 : index
    %280 = vector.load %arg10[%c40_402, %c0_403] : memref<144x384xf32, #tpu.memory_space<vmem>>, vector<8x384xf32>
    tpu.vector_store %arg10[%c40_402, %c0_403], %279 {strides = array<i32>} : memref<144x384xf32, #tpu.memory_space<vmem>>, vector<8x384xf32>,
    %c0_404 = arith.constant 0 : index
    %c82_405 = arith.constant 82 : index
    %281 = vector.load %arg9[%c0_404, %c82_405] : memref<8x640xf32, #tpu.memory_space<vmem>>, vector<8x384xf32>
    %c48_406 = arith.constant 48 : index
    %c0_407 = arith.constant 0 : index
    %282 = vector.load %arg10[%c48_406, %c0_407] : memref<144x384xf32, #tpu.memory_space<vmem>>, vector<8x384xf32>
    tpu.vector_store %arg10[%c48_406, %c0_407], %281 {strides = array<i32>} : memref<144x384xf32, #tpu.memory_space<vmem>>, vector<8x384xf32>,
    %c0_408 = arith.constant 0 : index
    %c83_409 = arith.constant 83 : index
    %283 = vector.load %arg9[%c0_408, %c83_409] : memref<8x640xf32, #tpu.memory_space<vmem>>, vector<8x384xf32>
    %c56_410 = arith.constant 56 : index
    %c0_411 = arith.constant 0 : index
    %284 = vector.load %arg10[%c56_410, %c0_411] : memref<144x384xf32, #tpu.memory_space<vmem>>, vector<8x384xf32>
    tpu.vector_store %arg10[%c56_410, %c0_411], %283 {strides = array<i32>} : memref<144x384xf32, #tpu.memory_space<vmem>>, vector<8x384xf32>,
    %c0_412 = arith.constant 0 : index
    %c84_413 = arith.constant 84 : index
    %285 = vector.load %arg9[%c0_412, %c84_413] : memref<8x640xf32, #tpu.memory_space<vmem>>, vector<8x384xf32>
    %c64_414 = arith.constant 64 : index
    %c0_415 = arith.constant 0 : index
    %286 = vector.load %arg10[%c64_414, %c0_415] : memref<144x384xf32, #tpu.memory_space<vmem>>, vector<8x384xf32>
    tpu.vector_store %arg10[%c64_414, %c0_415], %285 {strides = array<i32>} : memref<144x384xf32, #tpu.memory_space<vmem>>, vector<8x384xf32>,
    %c0_416 = arith.constant 0 : index
    %c88_417 = arith.constant 88 : index
    %c0_418 = arith.constant 0 : index
    %287 = vector.load %arg3[%c0_416, %c88_417, %c0_418] : memref<1x144x72xf32, #tpu.memory_space<vmem>>, vector<1x8x72xf32>
    %288 = vector.shape_cast %287 : vector<1x8x72xf32> to vector<8x72xf32>
    %c0_419 = arith.constant 0 : index
    %c0_420 = arith.constant 0 : index
    %289 = vector.load %arg10[%c0_419, %c0_420] : memref<144x384xf32, #tpu.memory_space<vmem>>, vector<72x384xf32>
    %cst_421 = arith.constant dense<0.000000e+00> : vector<8x384xf32>
    %290 = tpu.matmul %288, %289, %cst_421 {dimension_numbers = #tpu.dot_dimension_numbers<[1], [0], [0], [1], [0, 0, 1, 1], [], []>} : vector<8x72xf32>, vector<72x384xf32>, vector<8x384xf32> -> vector<8x384xf32>
    %291 = arith.addf %268, %290 : vector<8x384xf32>
    %c0_422 = arith.constant 0 : index
    %c100_423 = arith.constant 100 : index
    %292 = vector.load %arg9[%c0_422, %c100_423] : memref<8x640xf32, #tpu.memory_space<vmem>>, vector<8x384xf32>
    %c72_424 = arith.constant 72 : index
    %c0_425 = arith.constant 0 : index
    %293 = vector.load %arg10[%c72_424, %c0_425] : memref<144x384xf32, #tpu.memory_space<vmem>>, vector<8x384xf32>
    tpu.vector_store %arg10[%c72_424, %c0_425], %292 {strides = array<i32>} : memref<144x384xf32, #tpu.memory_space<vmem>>, vector<8x384xf32>,
    %c0_426 = arith.constant 0 : index
    %c101_427 = arith.constant 101 : index
    %294 = vector.load %arg9[%c0_426, %c101_427] : memref<8x640xf32, #tpu.memory_space<vmem>>, vector<8x384xf32>
    %c80_428 = arith.constant 80 : index
    %c0_429 = arith.constant 0 : index
    %295 = vector.load %arg10[%c80_428, %c0_429] : memref<144x384xf32, #tpu.memory_space<vmem>>, vector<8x384xf32>
    tpu.vector_store %arg10[%c80_428, %c0_429], %294 {strides = array<i32>} : memref<144x384xf32, #tpu.memory_space<vmem>>, vector<8x384xf32>,
    %c0_430 = arith.constant 0 : index
    %c102_431 = arith.constant 102 : index
    %296 = vector.load %arg9[%c0_430, %c102_431] : memref<8x640xf32, #tpu.memory_space<vmem>>, vector<8x384xf32>
    %c88_432 = arith.constant 88 : index
    %c0_433 = arith.constant 0 : index
    %297 = vector.load %arg10[%c88_432, %c0_433] : memref<144x384xf32, #tpu.memory_space<vmem>>, vector<8x384xf32>
    tpu.vector_store %arg10[%c88_432, %c0_433], %296 {strides = array<i32>} : memref<144x384xf32, #tpu.memory_space<vmem>>, vector<8x384xf32>,
    %c0_434 = arith.constant 0 : index
    %c103_435 = arith.constant 103 : index
    %298 = vector.load %arg9[%c0_434, %c103_435] : memref<8x640xf32, #tpu.memory_space<vmem>>, vector<8x384xf32>
    %c96_436 = arith.constant 96 : index
    %c0_437 = arith.constant 0 : index
    %299 = vector.load %arg10[%c96_436, %c0_437] : memref<144x384xf32, #tpu.memory_space<vmem>>, vector<8x384xf32>
    tpu.vector_store %arg10[%c96_436, %c0_437], %298 {strides = array<i32>} : memref<144x384xf32, #tpu.memory_space<vmem>>, vector<8x384xf32>,
    %c0_438 = arith.constant 0 : index
    %c104_439 = arith.constant 104 : index
    %300 = vector.load %arg9[%c0_438, %c104_439] : memref<8x640xf32, #tpu.memory_space<vmem>>, vector<8x384xf32>
    %c104_440 = arith.constant 104 : index
    %c0_441 = arith.constant 0 : index
    %301 = vector.load %arg10[%c104_440, %c0_441] : memref<144x384xf32, #tpu.memory_space<vmem>>, vector<8x384xf32>
    tpu.vector_store %arg10[%c104_440, %c0_441], %300 {strides = array<i32>} : memref<144x384xf32, #tpu.memory_space<vmem>>, vector<8x384xf32>,
    %c0_442 = arith.constant 0 : index
    %c105_443 = arith.constant 105 : index
    %302 = vector.load %arg9[%c0_442, %c105_443] : memref<8x640xf32, #tpu.memory_space<vmem>>, vector<8x384xf32>
    %c112_444 = arith.constant 112 : index
    %c0_445 = arith.constant 0 : index
    %303 = vector.load %arg10[%c112_444, %c0_445] : memref<144x384xf32, #tpu.memory_space<vmem>>, vector<8x384xf32>
    tpu.vector_store %arg10[%c112_444, %c0_445], %302 {strides = array<i32>} : memref<144x384xf32, #tpu.memory_space<vmem>>, vector<8x384xf32>,
    %c0_446 = arith.constant 0 : index
    %c106_447 = arith.constant 106 : index
    %304 = vector.load %arg9[%c0_446, %c106_447] : memref<8x640xf32, #tpu.memory_space<vmem>>, vector<8x384xf32>
    %c120_448 = arith.constant 120 : index
    %c0_449 = arith.constant 0 : index
    %305 = vector.load %arg10[%c120_448, %c0_449] : memref<144x384xf32, #tpu.memory_space<vmem>>, vector<8x384xf32>
    tpu.vector_store %arg10[%c120_448, %c0_449], %304 {strides = array<i32>} : memref<144x384xf32, #tpu.memory_space<vmem>>, vector<8x384xf32>,
    %c0_450 = arith.constant 0 : index
    %c107_451 = arith.constant 107 : index
    %306 = vector.load %arg9[%c0_450, %c107_451] : memref<8x640xf32, #tpu.memory_space<vmem>>, vector<8x384xf32>
    %c128_452 = arith.constant 128 : index
    %c0_453 = arith.constant 0 : index
    %307 = vector.load %arg10[%c128_452, %c0_453] : memref<144x384xf32, #tpu.memory_space<vmem>>, vector<8x384xf32>
    tpu.vector_store %arg10[%c128_452, %c0_453], %306 {strides = array<i32>} : memref<144x384xf32, #tpu.memory_space<vmem>>, vector<8x384xf32>,
    %c0_454 = arith.constant 0 : index
    %c108_455 = arith.constant 108 : index
    %308 = vector.load %arg9[%c0_454, %c108_455] : memref<8x640xf32, #tpu.memory_space<vmem>>, vector<8x384xf32>
    %c136_456 = arith.constant 136 : index
    %c0_457 = arith.constant 0 : index
    %309 = vector.load %arg10[%c136_456, %c0_457] : memref<144x384xf32, #tpu.memory_space<vmem>>, vector<8x384xf32>
    tpu.vector_store %arg10[%c136_456, %c0_457], %308 {strides = array<i32>} : memref<144x384xf32, #tpu.memory_space<vmem>>, vector<8x384xf32>,
    %c0_458 = arith.constant 0 : index
    %c96_459 = arith.constant 96 : index
    %c0_460 = arith.constant 0 : index
    %310 = vector.load %arg3[%c0_458, %c96_459, %c0_460] : memref<1x144x72xf32, #tpu.memory_space<vmem>>, vector<1x8x72xf32>
    %311 = vector.shape_cast %310 : vector<1x8x72xf32> to vector<8x72xf32>
    %c72_461 = arith.constant 72 : index
    %c0_462 = arith.constant 0 : index
    %312 = vector.load %arg10[%c72_461, %c0_462] : memref<144x384xf32, #tpu.memory_space<vmem>>, vector<72x384xf32>
    %cst_463 = arith.constant dense<0.000000e+00> : vector<8x384xf32>
    %313 = tpu.matmul %311, %312, %cst_463 {dimension_numbers = #tpu.dot_dimension_numbers<[1], [0], [0], [1], [0, 0, 1, 1], [], []>} : vector<8x72xf32>, vector<72x384xf32>, vector<8x384xf32> -> vector<8x384xf32>
    %314 = arith.addf %291, %313 : vector<8x384xf32>
    %c0_464 = arith.constant 0 : index
    %c124_465 = arith.constant 124 : index
    %315 = vector.load %arg9[%c0_464, %c124_465] : memref<8x640xf32, #tpu.memory_space<vmem>>, vector<8x384xf32>
    %c0_466 = arith.constant 0 : index
    %c0_467 = arith.constant 0 : index
    %316 = vector.load %arg10[%c0_466, %c0_467] : memref<144x384xf32, #tpu.memory_space<vmem>>, vector<8x384xf32>
    tpu.vector_store %arg10[%c0_466, %c0_467], %315 {strides = array<i32>} : memref<144x384xf32, #tpu.memory_space<vmem>>, vector<8x384xf32>,
    %c0_468 = arith.constant 0 : index
    %c125_469 = arith.constant 125 : index
    %317 = vector.load %arg9[%c0_468, %c125_469] : memref<8x640xf32, #tpu.memory_space<vmem>>, vector<8x384xf32>
    %c8_470 = arith.constant 8 : index
    %c0_471 = arith.constant 0 : index
    %318 = vector.load %arg10[%c8_470, %c0_471] : memref<144x384xf32, #tpu.memory_space<vmem>>, vector<8x384xf32>
    tpu.vector_store %arg10[%c8_470, %c0_471], %317 {strides = array<i32>} : memref<144x384xf32, #tpu.memory_space<vmem>>, vector<8x384xf32>,
    %c0_472 = arith.constant 0 : index
    %c126_473 = arith.constant 126 : index
    %319 = vector.load %arg9[%c0_472, %c126_473] : memref<8x640xf32, #tpu.memory_space<vmem>>, vector<8x384xf32>
    %c16_474 = arith.constant 16 : index
    %c0_475 = arith.constant 0 : index
    %320 = vector.load %arg10[%c16_474, %c0_475] : memref<144x384xf32, #tpu.memory_space<vmem>>, vector<8x384xf32>
    tpu.vector_store %arg10[%c16_474, %c0_475], %319 {strides = array<i32>} : memref<144x384xf32, #tpu.memory_space<vmem>>, vector<8x384xf32>,
    %c0_476 = arith.constant 0 : index
    %c127_477 = arith.constant 127 : index
    %321 = vector.load %arg9[%c0_476, %c127_477] : memref<8x640xf32, #tpu.memory_space<vmem>>, vector<8x384xf32>
    %c24_478 = arith.constant 24 : index
    %c0_479 = arith.constant 0 : index
    %322 = vector.load %arg10[%c24_478, %c0_479] : memref<144x384xf32, #tpu.memory_space<vmem>>, vector<8x384xf32>
    tpu.vector_store %arg10[%c24_478, %c0_479], %321 {strides = array<i32>} : memref<144x384xf32, #tpu.memory_space<vmem>>, vector<8x384xf32>,
    %c0_480 = arith.constant 0 : index
    %c128_481 = arith.constant 128 : index
    %323 = vector.load %arg9[%c0_480, %c128_481] : memref<8x640xf32, #tpu.memory_space<vmem>>, vector<8x384xf32>
    %c32_482 = arith.constant 32 : index
    %c0_483 = arith.constant 0 : index
    %324 = vector.load %arg10[%c32_482, %c0_483] : memref<144x384xf32, #tpu.memory_space<vmem>>, vector<8x384xf32>
    tpu.vector_store %arg10[%c32_482, %c0_483], %323 {strides = array<i32>} : memref<144x384xf32, #tpu.memory_space<vmem>>, vector<8x384xf32>,
    %c0_484 = arith.constant 0 : index
    %c129_485 = arith.constant 129 : index
    %325 = vector.load %arg9[%c0_484, %c129_485] : memref<8x640xf32, #tpu.memory_space<vmem>>, vector<8x384xf32>
    %c40_486 = arith.constant 40 : index
    %c0_487 = arith.constant 0 : index
    %326 = vector.load %arg10[%c40_486, %c0_487] : memref<144x384xf32, #tpu.memory_space<vmem>>, vector<8x384xf32>
    tpu.vector_store %arg10[%c40_486, %c0_487], %325 {strides = array<i32>} : memref<144x384xf32, #tpu.memory_space<vmem>>, vector<8x384xf32>,
    %c0_488 = arith.constant 0 : index
    %c130_489 = arith.constant 130 : index
    %327 = vector.load %arg9[%c0_488, %c130_489] : memref<8x640xf32, #tpu.memory_space<vmem>>, vector<8x384xf32>
    %c48_490 = arith.constant 48 : index
    %c0_491 = arith.constant 0 : index
    %328 = vector.load %arg10[%c48_490, %c0_491] : memref<144x384xf32, #tpu.memory_space<vmem>>, vector<8x384xf32>
    tpu.vector_store %arg10[%c48_490, %c0_491], %327 {strides = array<i32>} : memref<144x384xf32, #tpu.memory_space<vmem>>, vector<8x384xf32>,
    %c0_492 = arith.constant 0 : index
    %c131_493 = arith.constant 131 : index
    %329 = vector.load %arg9[%c0_492, %c131_493] : memref<8x640xf32, #tpu.memory_space<vmem>>, vector<8x384xf32>
    %c56_494 = arith.constant 56 : index
    %c0_495 = arith.constant 0 : index
    %330 = vector.load %arg10[%c56_494, %c0_495] : memref<144x384xf32, #tpu.memory_space<vmem>>, vector<8x384xf32>
    tpu.vector_store %arg10[%c56_494, %c0_495], %329 {strides = array<i32>} : memref<144x384xf32, #tpu.memory_space<vmem>>, vector<8x384xf32>,
    %c0_496 = arith.constant 0 : index
    %c132_497 = arith.constant 132 : index
    %331 = vector.load %arg9[%c0_496, %c132_497] : memref<8x640xf32, #tpu.memory_space<vmem>>, vector<8x384xf32>
    %c64_498 = arith.constant 64 : index
    %c0_499 = arith.constant 0 : index
    %332 = vector.load %arg10[%c64_498, %c0_499] : memref<144x384xf32, #tpu.memory_space<vmem>>, vector<8x384xf32>
    tpu.vector_store %arg10[%c64_498, %c0_499], %331 {strides = array<i32>} : memref<144x384xf32, #tpu.memory_space<vmem>>, vector<8x384xf32>,
    %c0_500 = arith.constant 0 : index
    %c104_501 = arith.constant 104 : index
    %c0_502 = arith.constant 0 : index
    %333 = vector.load %arg3[%c0_500, %c104_501, %c0_502] : memref<1x144x72xf32, #tpu.memory_space<vmem>>, vector<1x8x72xf32>
    %334 = vector.shape_cast %333 : vector<1x8x72xf32> to vector<8x72xf32>
    %c0_503 = arith.constant 0 : index
    %c0_504 = arith.constant 0 : index
    %335 = vector.load %arg10[%c0_503, %c0_504] : memref<144x384xf32, #tpu.memory_space<vmem>>, vector<72x384xf32>
    %cst_505 = arith.constant dense<0.000000e+00> : vector<8x384xf32>
    %336 = tpu.matmul %334, %335, %cst_505 {dimension_numbers = #tpu.dot_dimension_numbers<[1], [0], [0], [1], [0, 0, 1, 1], [], []>} : vector<8x72xf32>, vector<72x384xf32>, vector<8x384xf32> -> vector<8x384xf32>
    %337 = arith.addf %314, %336 : vector<8x384xf32>
    %c0_506 = arith.constant 0 : index
    %c148_507 = arith.constant 148 : index
    %338 = vector.load %arg9[%c0_506, %c148_507] : memref<8x640xf32, #tpu.memory_space<vmem>>, vector<8x384xf32>
    %c72_508 = arith.constant 72 : index
    %c0_509 = arith.constant 0 : index
    %339 = vector.load %arg10[%c72_508, %c0_509] : memref<144x384xf32, #tpu.memory_space<vmem>>, vector<8x384xf32>
    tpu.vector_store %arg10[%c72_508, %c0_509], %338 {strides = array<i32>} : memref<144x384xf32, #tpu.memory_space<vmem>>, vector<8x384xf32>,
    %c0_510 = arith.constant 0 : index
    %c149_511 = arith.constant 149 : index
    %340 = vector.load %arg9[%c0_510, %c149_511] : memref<8x640xf32, #tpu.memory_space<vmem>>, vector<8x384xf32>
    %c80_512 = arith.constant 80 : index
    %c0_513 = arith.constant 0 : index
    %341 = vector.load %arg10[%c80_512, %c0_513] : memref<144x384xf32, #tpu.memory_space<vmem>>, vector<8x384xf32>
    tpu.vector_store %arg10[%c80_512, %c0_513], %340 {strides = array<i32>} : memref<144x384xf32, #tpu.memory_space<vmem>>, vector<8x384xf32>,
    %c0_514 = arith.constant 0 : index
    %c150_515 = arith.constant 150 : index
    %342 = vector.load %arg9[%c0_514, %c150_515] : memref<8x640xf32, #tpu.memory_space<vmem>>, vector<8x384xf32>
    %c88_516 = arith.constant 88 : index
    %c0_517 = arith.constant 0 : index
    %343 = vector.load %arg10[%c88_516, %c0_517] : memref<144x384xf32, #tpu.memory_space<vmem>>, vector<8x384xf32>
    tpu.vector_store %arg10[%c88_516, %c0_517], %342 {strides = array<i32>} : memref<144x384xf32, #tpu.memory_space<vmem>>, vector<8x384xf32>,
    %c0_518 = arith.constant 0 : index
    %c151_519 = arith.constant 151 : index
    %344 = vector.load %arg9[%c0_518, %c151_519] : memref<8x640xf32, #tpu.memory_space<vmem>>, vector<8x384xf32>
    %c96_520 = arith.constant 96 : index
    %c0_521 = arith.constant 0 : index
    %345 = vector.load %arg10[%c96_520, %c0_521] : memref<144x384xf32, #tpu.memory_space<vmem>>, vector<8x384xf32>
    tpu.vector_store %arg10[%c96_520, %c0_521], %344 {strides = array<i32>} : memref<144x384xf32, #tpu.memory_space<vmem>>, vector<8x384xf32>,
    %c0_522 = arith.constant 0 : index
    %c152_523 = arith.constant 152 : index
    %346 = vector.load %arg9[%c0_522, %c152_523] : memref<8x640xf32, #tpu.memory_space<vmem>>, vector<8x384xf32>
    %c104_524 = arith.constant 104 : index
    %c0_525 = arith.constant 0 : index
    %347 = vector.load %arg10[%c104_524, %c0_525] : memref<144x384xf32, #tpu.memory_space<vmem>>, vector<8x384xf32>
    tpu.vector_store %arg10[%c104_524, %c0_525], %346 {strides = array<i32>} : memref<144x384xf32, #tpu.memory_space<vmem>>, vector<8x384xf32>,
    %c0_526 = arith.constant 0 : index
    %c153_527 = arith.constant 153 : index
    %348 = vector.load %arg9[%c0_526, %c153_527] : memref<8x640xf32, #tpu.memory_space<vmem>>, vector<8x384xf32>
    %c112_528 = arith.constant 112 : index
    %c0_529 = arith.constant 0 : index
    %349 = vector.load %arg10[%c112_528, %c0_529] : memref<144x384xf32, #tpu.memory_space<vmem>>, vector<8x384xf32>
    tpu.vector_store %arg10[%c112_528, %c0_529], %348 {strides = array<i32>} : memref<144x384xf32, #tpu.memory_space<vmem>>, vector<8x384xf32>,
    %c0_530 = arith.constant 0 : index
    %c154_531 = arith.constant 154 : index
    %350 = vector.load %arg9[%c0_530, %c154_531] : memref<8x640xf32, #tpu.memory_space<vmem>>, vector<8x384xf32>
    %c120_532 = arith.constant 120 : index
    %c0_533 = arith.constant 0 : index
    %351 = vector.load %arg10[%c120_532, %c0_533] : memref<144x384xf32, #tpu.memory_space<vmem>>, vector<8x384xf32>
    tpu.vector_store %arg10[%c120_532, %c0_533], %350 {strides = array<i32>} : memref<144x384xf32, #tpu.memory_space<vmem>>, vector<8x384xf32>,
    %c0_534 = arith.constant 0 : index
    %c155_535 = arith.constant 155 : index
    %352 = vector.load %arg9[%c0_534, %c155_535] : memref<8x640xf32, #tpu.memory_space<vmem>>, vector<8x384xf32>
    %c128_536 = arith.constant 128 : index
    %c0_537 = arith.constant 0 : index
    %353 = vector.load %arg10[%c128_536, %c0_537] : memref<144x384xf32, #tpu.memory_space<vmem>>, vector<8x384xf32>
    tpu.vector_store %arg10[%c128_536, %c0_537], %352 {strides = array<i32>} : memref<144x384xf32, #tpu.memory_space<vmem>>, vector<8x384xf32>,
    %c0_538 = arith.constant 0 : index
    %c156_539 = arith.constant 156 : index
    %354 = vector.load %arg9[%c0_538, %c156_539] : memref<8x640xf32, #tpu.memory_space<vmem>>, vector<8x384xf32>
    %c136_540 = arith.constant 136 : index
    %c0_541 = arith.constant 0 : index
    %355 = vector.load %arg10[%c136_540, %c0_541] : memref<144x384xf32, #tpu.memory_space<vmem>>, vector<8x384xf32>
    tpu.vector_store %arg10[%c136_540, %c0_541], %354 {strides = array<i32>} : memref<144x384xf32, #tpu.memory_space<vmem>>, vector<8x384xf32>,
    %c0_542 = arith.constant 0 : index
    %c112_543 = arith.constant 112 : index
    %c0_544 = arith.constant 0 : index
    %356 = vector.load %arg3[%c0_542, %c112_543, %c0_544] : memref<1x144x72xf32, #tpu.memory_space<vmem>>, vector<1x8x72xf32>
    %357 = vector.shape_cast %356 : vector<1x8x72xf32> to vector<8x72xf32>
    %c72_545 = arith.constant 72 : index
    %c0_546 = arith.constant 0 : index
    %358 = vector.load %arg10[%c72_545, %c0_546] : memref<144x384xf32, #tpu.memory_space<vmem>>, vector<72x384xf32>
    %cst_547 = arith.constant dense<0.000000e+00> : vector<8x384xf32>
    %359 = tpu.matmul %357, %358, %cst_547 {dimension_numbers = #tpu.dot_dimension_numbers<[1], [0], [0], [1], [0, 0, 1, 1], [], []>} : vector<8x72xf32>, vector<72x384xf32>, vector<8x384xf32> -> vector<8x384xf32>
    %360 = arith.addf %337, %359 : vector<8x384xf32>
    %c0_548 = arith.constant 0 : index
    %c172_549 = arith.constant 172 : index
    %361 = vector.load %arg9[%c0_548, %c172_549] : memref<8x640xf32, #tpu.memory_space<vmem>>, vector<8x384xf32>
    %c0_550 = arith.constant 0 : index
    %c0_551 = arith.constant 0 : index
    %362 = vector.load %arg10[%c0_550, %c0_551] : memref<144x384xf32, #tpu.memory_space<vmem>>, vector<8x384xf32>
    tpu.vector_store %arg10[%c0_550, %c0_551], %361 {strides = array<i32>} : memref<144x384xf32, #tpu.memory_space<vmem>>, vector<8x384xf32>,
    %c0_552 = arith.constant 0 : index
    %c173_553 = arith.constant 173 : index
    %363 = vector.load %arg9[%c0_552, %c173_553] : memref<8x640xf32, #tpu.memory_space<vmem>>, vector<8x384xf32>
    %c8_554 = arith.constant 8 : index
    %c0_555 = arith.constant 0 : index
    %364 = vector.load %arg10[%c8_554, %c0_555] : memref<144x384xf32, #tpu.memory_space<vmem>>, vector<8x384xf32>
    tpu.vector_store %arg10[%c8_554, %c0_555], %363 {strides = array<i32>} : memref<144x384xf32, #tpu.memory_space<vmem>>, vector<8x384xf32>,
    %c0_556 = arith.constant 0 : index
    %c174_557 = arith.constant 174 : index
    %365 = vector.load %arg9[%c0_556, %c174_557] : memref<8x640xf32, #tpu.memory_space<vmem>>, vector<8x384xf32>
    %c16_558 = arith.constant 16 : index
    %c0_559 = arith.constant 0 : index
    %366 = vector.load %arg10[%c16_558, %c0_559] : memref<144x384xf32, #tpu.memory_space<vmem>>, vector<8x384xf32>
    tpu.vector_store %arg10[%c16_558, %c0_559], %365 {strides = array<i32>} : memref<144x384xf32, #tpu.memory_space<vmem>>, vector<8x384xf32>,
    %c0_560 = arith.constant 0 : index
    %c175_561 = arith.constant 175 : index
    %367 = vector.load %arg9[%c0_560, %c175_561] : memref<8x640xf32, #tpu.memory_space<vmem>>, vector<8x384xf32>
    %c24_562 = arith.constant 24 : index
    %c0_563 = arith.constant 0 : index
    %368 = vector.load %arg10[%c24_562, %c0_563] : memref<144x384xf32, #tpu.memory_space<vmem>>, vector<8x384xf32>
    tpu.vector_store %arg10[%c24_562, %c0_563], %367 {strides = array<i32>} : memref<144x384xf32, #tpu.memory_space<vmem>>, vector<8x384xf32>,
    %c0_564 = arith.constant 0 : index
    %c176_565 = arith.constant 176 : index
    %369 = vector.load %arg9[%c0_564, %c176_565] : memref<8x640xf32, #tpu.memory_space<vmem>>, vector<8x384xf32>
    %c32_566 = arith.constant 32 : index
    %c0_567 = arith.constant 0 : index
    %370 = vector.load %arg10[%c32_566, %c0_567] : memref<144x384xf32, #tpu.memory_space<vmem>>, vector<8x384xf32>
    tpu.vector_store %arg10[%c32_566, %c0_567], %369 {strides = array<i32>} : memref<144x384xf32, #tpu.memory_space<vmem>>, vector<8x384xf32>,
    %c0_568 = arith.constant 0 : index
    %c177_569 = arith.constant 177 : index
    %371 = vector.load %arg9[%c0_568, %c177_569] : memref<8x640xf32, #tpu.memory_space<vmem>>, vector<8x384xf32>
    %c40_570 = arith.constant 40 : index
    %c0_571 = arith.constant 0 : index
    %372 = vector.load %arg10[%c40_570, %c0_571] : memref<144x384xf32, #tpu.memory_space<vmem>>, vector<8x384xf32>
    tpu.vector_store %arg10[%c40_570, %c0_571], %371 {strides = array<i32>} : memref<144x384xf32, #tpu.memory_space<vmem>>, vector<8x384xf32>,
    %c0_572 = arith.constant 0 : index
    %c178_573 = arith.constant 178 : index
    %373 = vector.load %arg9[%c0_572, %c178_573] : memref<8x640xf32, #tpu.memory_space<vmem>>, vector<8x384xf32>
    %c48_574 = arith.constant 48 : index
    %c0_575 = arith.constant 0 : index
    %374 = vector.load %arg10[%c48_574, %c0_575] : memref<144x384xf32, #tpu.memory_space<vmem>>, vector<8x384xf32>
    tpu.vector_store %arg10[%c48_574, %c0_575], %373 {strides = array<i32>} : memref<144x384xf32, #tpu.memory_space<vmem>>, vector<8x384xf32>,
    %c0_576 = arith.constant 0 : index
    %c179_577 = arith.constant 179 : index
    %375 = vector.load %arg9[%c0_576, %c179_577] : memref<8x640xf32, #tpu.memory_space<vmem>>, vector<8x384xf32>
    %c56_578 = arith.constant 56 : index
    %c0_579 = arith.constant 0 : index
    %376 = vector.load %arg10[%c56_578, %c0_579] : memref<144x384xf32, #tpu.memory_space<vmem>>, vector<8x384xf32>
    tpu.vector_store %arg10[%c56_578, %c0_579], %375 {strides = array<i32>} : memref<144x384xf32, #tpu.memory_space<vmem>>, vector<8x384xf32>,
    %c0_580 = arith.constant 0 : index
    %c180_581 = arith.constant 180 : index
    %377 = vector.load %arg9[%c0_580, %c180_581] : memref<8x640xf32, #tpu.memory_space<vmem>>, vector<8x384xf32>
    %c64_582 = arith.constant 64 : index
    %c0_583 = arith.constant 0 : index
    %378 = vector.load %arg10[%c64_582, %c0_583] : memref<144x384xf32, #tpu.memory_space<vmem>>, vector<8x384xf32>
    tpu.vector_store %arg10[%c64_582, %c0_583], %377 {strides = array<i32>} : memref<144x384xf32, #tpu.memory_space<vmem>>, vector<8x384xf32>,
    %c0_584 = arith.constant 0 : index
    %c120_585 = arith.constant 120 : index
    %c0_586 = arith.constant 0 : index
    %379 = vector.load %arg3[%c0_584, %c120_585, %c0_586] : memref<1x144x72xf32, #tpu.memory_space<vmem>>, vector<1x8x72xf32>
    %380 = vector.shape_cast %379 : vector<1x8x72xf32> to vector<8x72xf32>
    %c0_587 = arith.constant 0 : index
    %c0_588 = arith.constant 0 : index
    %381 = vector.load %arg10[%c0_587, %c0_588] : memref<144x384xf32, #tpu.memory_space<vmem>>, vector<72x384xf32>
    %cst_589 = arith.constant dense<0.000000e+00> : vector<8x384xf32>
    %382 = tpu.matmul %380, %381, %cst_589 {dimension_numbers = #tpu.dot_dimension_numbers<[1], [0], [0], [1], [0, 0, 1, 1], [], []>} : vector<8x72xf32>, vector<72x384xf32>, vector<8x384xf32> -> vector<8x384xf32>
    %383 = arith.addf %360, %382 : vector<8x384xf32>
    %c0_590 = arith.constant 0 : index
    %c196_591 = arith.constant 196 : index
    %384 = vector.load %arg9[%c0_590, %c196_591] : memref<8x640xf32, #tpu.memory_space<vmem>>, vector<8x384xf32>
    %c72_592 = arith.constant 72 : index
    %c0_593 = arith.constant 0 : index
    %385 = vector.load %arg10[%c72_592, %c0_593] : memref<144x384xf32, #tpu.memory_space<vmem>>, vector<8x384xf32>
    tpu.vector_store %arg10[%c72_592, %c0_593], %384 {strides = array<i32>} : memref<144x384xf32, #tpu.memory_space<vmem>>, vector<8x384xf32>,
    %c0_594 = arith.constant 0 : index
    %c197_595 = arith.constant 197 : index
    %386 = vector.load %arg9[%c0_594, %c197_595] : memref<8x640xf32, #tpu.memory_space<vmem>>, vector<8x384xf32>
    %c80_596 = arith.constant 80 : index
    %c0_597 = arith.constant 0 : index
    %387 = vector.load %arg10[%c80_596, %c0_597] : memref<144x384xf32, #tpu.memory_space<vmem>>, vector<8x384xf32>
    tpu.vector_store %arg10[%c80_596, %c0_597], %386 {strides = array<i32>} : memref<144x384xf32, #tpu.memory_space<vmem>>, vector<8x384xf32>,
    %c0_598 = arith.constant 0 : index
    %c198_599 = arith.constant 198 : index
    %388 = vector.load %arg9[%c0_598, %c198_599] : memref<8x640xf32, #tpu.memory_space<vmem>>, vector<8x384xf32>
    %c88_600 = arith.constant 88 : index
    %c0_601 = arith.constant 0 : index
    %389 = vector.load %arg10[%c88_600, %c0_601] : memref<144x384xf32, #tpu.memory_space<vmem>>, vector<8x384xf32>
    tpu.vector_store %arg10[%c88_600, %c0_601], %388 {strides = array<i32>} : memref<144x384xf32, #tpu.memory_space<vmem>>, vector<8x384xf32>,
    %c0_602 = arith.constant 0 : index
    %c199_603 = arith.constant 199 : index
    %390 = vector.load %arg9[%c0_602, %c199_603] : memref<8x640xf32, #tpu.memory_space<vmem>>, vector<8x384xf32>
    %c96_604 = arith.constant 96 : index
    %c0_605 = arith.constant 0 : index
    %391 = vector.load %arg10[%c96_604, %c0_605] : memref<144x384xf32, #tpu.memory_space<vmem>>, vector<8x384xf32>
    tpu.vector_store %arg10[%c96_604, %c0_605], %390 {strides = array<i32>} : memref<144x384xf32, #tpu.memory_space<vmem>>, vector<8x384xf32>,
    %c0_606 = arith.constant 0 : index
    %c200_607 = arith.constant 200 : index
    %392 = vector.load %arg9[%c0_606, %c200_607] : memref<8x640xf32, #tpu.memory_space<vmem>>, vector<8x384xf32>
    %c104_608 = arith.constant 104 : index
    %c0_609 = arith.constant 0 : index
    %393 = vector.load %arg10[%c104_608, %c0_609] : memref<144x384xf32, #tpu.memory_space<vmem>>, vector<8x384xf32>
    tpu.vector_store %arg10[%c104_608, %c0_609], %392 {strides = array<i32>} : memref<144x384xf32, #tpu.memory_space<vmem>>, vector<8x384xf32>,
    %c0_610 = arith.constant 0 : index
    %c201_611 = arith.constant 201 : index
    %394 = vector.load %arg9[%c0_610, %c201_611] : memref<8x640xf32, #tpu.memory_space<vmem>>, vector<8x384xf32>
    %c112_612 = arith.constant 112 : index
    %c0_613 = arith.constant 0 : index
    %395 = vector.load %arg10[%c112_612, %c0_613] : memref<144x384xf32, #tpu.memory_space<vmem>>, vector<8x384xf32>
    tpu.vector_store %arg10[%c112_612, %c0_613], %394 {strides = array<i32>} : memref<144x384xf32, #tpu.memory_space<vmem>>, vector<8x384xf32>,
    %c0_614 = arith.constant 0 : index
    %c202_615 = arith.constant 202 : index
    %396 = vector.load %arg9[%c0_614, %c202_615] : memref<8x640xf32, #tpu.memory_space<vmem>>, vector<8x384xf32>
    %c120_616 = arith.constant 120 : index
    %c0_617 = arith.constant 0 : index
    %397 = vector.load %arg10[%c120_616, %c0_617] : memref<144x384xf32, #tpu.memory_space<vmem>>, vector<8x384xf32>
    tpu.vector_store %arg10[%c120_616, %c0_617], %396 {strides = array<i32>} : memref<144x384xf32, #tpu.memory_space<vmem>>, vector<8x384xf32>,
    %c0_618 = arith.constant 0 : index
    %c203_619 = arith.constant 203 : index
    %398 = vector.load %arg9[%c0_618, %c203_619] : memref<8x640xf32, #tpu.memory_space<vmem>>, vector<8x384xf32>
    %c128_620 = arith.constant 128 : index
    %c0_621 = arith.constant 0 : index
    %399 = vector.load %arg10[%c128_620, %c0_621] : memref<144x384xf32, #tpu.memory_space<vmem>>, vector<8x384xf32>
    tpu.vector_store %arg10[%c128_620, %c0_621], %398 {strides = array<i32>} : memref<144x384xf32, #tpu.memory_space<vmem>>, vector<8x384xf32>,
    %c0_622 = arith.constant 0 : index
    %c204_623 = arith.constant 204 : index
    %400 = vector.load %arg9[%c0_622, %c204_623] : memref<8x640xf32, #tpu.memory_space<vmem>>, vector<8x384xf32>
    %c136_624 = arith.constant 136 : index
    %c0_625 = arith.constant 0 : index
    %401 = vector.load %arg10[%c136_624, %c0_625] : memref<144x384xf32, #tpu.memory_space<vmem>>, vector<8x384xf32>
    tpu.vector_store %arg10[%c136_624, %c0_625], %400 {strides = array<i32>} : memref<144x384xf32, #tpu.memory_space<vmem>>, vector<8x384xf32>,
    %c0_626 = arith.constant 0 : index
    %c128_627 = arith.constant 128 : index
    %c0_628 = arith.constant 0 : index
    %402 = vector.load %arg3[%c0_626, %c128_627, %c0_628] : memref<1x144x72xf32, #tpu.memory_space<vmem>>, vector<1x8x72xf32>
    %403 = vector.shape_cast %402 : vector<1x8x72xf32> to vector<8x72xf32>
    %c72_629 = arith.constant 72 : index
    %c0_630 = arith.constant 0 : index
    %404 = vector.load %arg10[%c72_629, %c0_630] : memref<144x384xf32, #tpu.memory_space<vmem>>, vector<72x384xf32>
    %cst_631 = arith.constant dense<0.000000e+00> : vector<8x384xf32>
    %405 = tpu.matmul %403, %404, %cst_631 {dimension_numbers = #tpu.dot_dimension_numbers<[1], [0], [0], [1], [0, 0, 1, 1], [], []>} : vector<8x72xf32>, vector<72x384xf32>, vector<8x384xf32> -> vector<8x384xf32>
    %406 = arith.addf %383, %405 : vector<8x384xf32>
    %c0_632 = arith.constant 0 : index
    %c220_633 = arith.constant 220 : index
    %407 = vector.load %arg9[%c0_632, %c220_633] : memref<8x640xf32, #tpu.memory_space<vmem>>, vector<8x384xf32>
    %c0_634 = arith.constant 0 : index
    %c0_635 = arith.constant 0 : index
    %408 = vector.load %arg10[%c0_634, %c0_635] : memref<144x384xf32, #tpu.memory_space<vmem>>, vector<8x384xf32>
    tpu.vector_store %arg10[%c0_634, %c0_635], %407 {strides = array<i32>} : memref<144x384xf32, #tpu.memory_space<vmem>>, vector<8x384xf32>,
    %c0_636 = arith.constant 0 : index
    %c221_637 = arith.constant 221 : index
    %409 = vector.load %arg9[%c0_636, %c221_637] : memref<8x640xf32, #tpu.memory_space<vmem>>, vector<8x384xf32>
    %c8_638 = arith.constant 8 : index
    %c0_639 = arith.constant 0 : index
    %410 = vector.load %arg10[%c8_638, %c0_639] : memref<144x384xf32, #tpu.memory_space<vmem>>, vector<8x384xf32>
    tpu.vector_store %arg10[%c8_638, %c0_639], %409 {strides = array<i32>} : memref<144x384xf32, #tpu.memory_space<vmem>>, vector<8x384xf32>,
    %c0_640 = arith.constant 0 : index
    %c222_641 = arith.constant 222 : index
    %411 = vector.load %arg9[%c0_640, %c222_641] : memref<8x640xf32, #tpu.memory_space<vmem>>, vector<8x384xf32>
    %c16_642 = arith.constant 16 : index
    %c0_643 = arith.constant 0 : index
    %412 = vector.load %arg10[%c16_642, %c0_643] : memref<144x384xf32, #tpu.memory_space<vmem>>, vector<8x384xf32>
    tpu.vector_store %arg10[%c16_642, %c0_643], %411 {strides = array<i32>} : memref<144x384xf32, #tpu.memory_space<vmem>>, vector<8x384xf32>,
    %c0_644 = arith.constant 0 : index
    %c223_645 = arith.constant 223 : index
    %413 = vector.load %arg9[%c0_644, %c223_645] : memref<8x640xf32, #tpu.memory_space<vmem>>, vector<8x384xf32>
    %c24_646 = arith.constant 24 : index
    %c0_647 = arith.constant 0 : index
    %414 = vector.load %arg10[%c24_646, %c0_647] : memref<144x384xf32, #tpu.memory_space<vmem>>, vector<8x384xf32>
    tpu.vector_store %arg10[%c24_646, %c0_647], %413 {strides = array<i32>} : memref<144x384xf32, #tpu.memory_space<vmem>>, vector<8x384xf32>,
    %c0_648 = arith.constant 0 : index
    %c224_649 = arith.constant 224 : index
    %415 = vector.load %arg9[%c0_648, %c224_649] : memref<8x640xf32, #tpu.memory_space<vmem>>, vector<8x384xf32>
    %c32_650 = arith.constant 32 : index
    %c0_651 = arith.constant 0 : index
    %416 = vector.load %arg10[%c32_650, %c0_651] : memref<144x384xf32, #tpu.memory_space<vmem>>, vector<8x384xf32>
    tpu.vector_store %arg10[%c32_650, %c0_651], %415 {strides = array<i32>} : memref<144x384xf32, #tpu.memory_space<vmem>>, vector<8x384xf32>,
    %c0_652 = arith.constant 0 : index
    %c225_653 = arith.constant 225 : index
    %417 = vector.load %arg9[%c0_652, %c225_653] : memref<8x640xf32, #tpu.memory_space<vmem>>, vector<8x384xf32>
    %c40_654 = arith.constant 40 : index
    %c0_655 = arith.constant 0 : index
    %418 = vector.load %arg10[%c40_654, %c0_655] : memref<144x384xf32, #tpu.memory_space<vmem>>, vector<8x384xf32>
    tpu.vector_store %arg10[%c40_654, %c0_655], %417 {strides = array<i32>} : memref<144x384xf32, #tpu.memory_space<vmem>>, vector<8x384xf32>,
    %c0_656 = arith.constant 0 : index
    %c226_657 = arith.constant 226 : index
    %419 = vector.load %arg9[%c0_656, %c226_657] : memref<8x640xf32, #tpu.memory_space<vmem>>, vector<8x384xf32>
    %c48_658 = arith.constant 48 : index
    %c0_659 = arith.constant 0 : index
    %420 = vector.load %arg10[%c48_658, %c0_659] : memref<144x384xf32, #tpu.memory_space<vmem>>, vector<8x384xf32>
    tpu.vector_store %arg10[%c48_658, %c0_659], %419 {strides = array<i32>} : memref<144x384xf32, #tpu.memory_space<vmem>>, vector<8x384xf32>,
    %c0_660 = arith.constant 0 : index
    %c227_661 = arith.constant 227 : index
    %421 = vector.load %arg9[%c0_660, %c227_661] : memref<8x640xf32, #tpu.memory_space<vmem>>, vector<8x384xf32>
    %c56_662 = arith.constant 56 : index
    %c0_663 = arith.constant 0 : index
    %422 = vector.load %arg10[%c56_662, %c0_663] : memref<144x384xf32, #tpu.memory_space<vmem>>, vector<8x384xf32>
    tpu.vector_store %arg10[%c56_662, %c0_663], %421 {strides = array<i32>} : memref<144x384xf32, #tpu.memory_space<vmem>>, vector<8x384xf32>,
    %c0_664 = arith.constant 0 : index
    %c228_665 = arith.constant 228 : index
    %423 = vector.load %arg9[%c0_664, %c228_665] : memref<8x640xf32, #tpu.memory_space<vmem>>, vector<8x384xf32>
    %c64_666 = arith.constant 64 : index
    %c0_667 = arith.constant 0 : index
    %424 = vector.load %arg10[%c64_666, %c0_667] : memref<144x384xf32, #tpu.memory_space<vmem>>, vector<8x384xf32>
    tpu.vector_store %arg10[%c64_666, %c0_667], %423 {strides = array<i32>} : memref<144x384xf32, #tpu.memory_space<vmem>>, vector<8x384xf32>,
    %c0_668 = arith.constant 0 : index
    %c136_669 = arith.constant 136 : index
    %c0_670 = arith.constant 0 : index
    %425 = vector.load %arg3[%c0_668, %c136_669, %c0_670] : memref<1x144x72xf32, #tpu.memory_space<vmem>>, vector<1x8x72xf32>
    %426 = vector.shape_cast %425 : vector<1x8x72xf32> to vector<8x72xf32>
    %c0_671 = arith.constant 0 : index
    %c0_672 = arith.constant 0 : index
    %427 = vector.load %arg10[%c0_671, %c0_672] : memref<144x384xf32, #tpu.memory_space<vmem>>, vector<72x384xf32>
    %cst_673 = arith.constant dense<0.000000e+00> : vector<8x384xf32>
    %428 = tpu.matmul %426, %427, %cst_673 {dimension_numbers = #tpu.dot_dimension_numbers<[1], [0], [0], [1], [0, 0, 1, 1], [], []>} : vector<8x72xf32>, vector<72x384xf32>, vector<8x384xf32> -> vector<8x384xf32>
    %429 = arith.addf %406, %428 : vector<8x384xf32>
    %c0_674 = arith.constant 0 : index
    %c8_675 = arith.constant 8 : index
    %c0_676 = arith.constant 0 : index
    %430 = vector.load %arg4[%c0_674, %c8_675, %c0_676] : memref<1x16x1xf32, #tpu.memory_space<vmem>>, vector<1x8x1xf32>
    %431 = vector.shape_cast %430 : vector<1x8x1xf32> to vector<8x1xf32>
    %432 = vector.broadcast %431 : vector<8x1xf32> to vector<8x384xf32>
    %433 = arith.addf %429, %432 : vector<8x384xf32>
    %cst_677 = arith.constant 0.000000e+00 : f32
    %434 = vector.broadcast %cst_677 : f32 to vector<8x384xf32>
    %435 = arith.maximumf %433, %434 : vector<8x384xf32>
    %c0_678 = arith.constant 0 : index
    %c128_679 = arith.constant 128 : index
    %436 = vector.load %arg8[%c0_678, %c128_679] : memref<8x640xf32, #tpu.memory_space<vmem>>, vector<8x384xf32>
    %437 = arith.addf %436, %435 : vector<8x384xf32>
    %438 = vector.broadcast %4 : vector<8x1xf32> to vector<8x384xf32>
    %439 = arith.subf %437, %438 : vector<8x384xf32>
    %cst_680 = arith.constant 0.000000e+00 : f32
    %440 = vector.broadcast %cst_680 : f32 to vector<8x384xf32>
    %441 = arith.maximumf %439, %440 : vector<8x384xf32>
    %442 = vector.broadcast %3 : vector<1x384xf32> to vector<8x384xf32>
    %443 = arith.mulf %441, %442 : vector<8x384xf32>
    %c0_681 = arith.constant 0 : index
    %c128_682 = arith.constant 128 : index
    %444 = vector.load %arg8[%c0_681, %c128_682] : memref<8x640xf32, #tpu.memory_space<vmem>>, vector<8x384xf32>
    tpu.vector_store %arg8[%c0_681, %c128_682], %443 {strides = array<i32>} : memref<8x640xf32, #tpu.memory_space<vmem>>, vector<8x384xf32>,
    %445 = vector.extract_strided_slice %443 {offsets = [0, 0], sizes = [4, 384], strides = [1, 1]} : vector<8x384xf32> to vector<4x384xf32>
    %c0_683 = arith.constant 0 : index
    %c0_684 = arith.constant 0 : index
    %c0_685 = arith.constant 0 : index
    %446 = vector.load %arg7[%c0_683, %c0_684, %c0_685] : memref<1x4x384xf32, #tpu.memory_space<vmem>>, vector<1x4x384xf32>
    %447 = vector.shape_cast %446 : vector<1x4x384xf32> to vector<4x384xf32>
    %448 = vector.shape_cast %445 : vector<4x384xf32> to vector<1x4x384xf32>
    tpu.vector_store %arg7[%c0_683, %c0_684, %c0_685], %448 {strides = array<i32>} : memref<1x4x384xf32, #tpu.memory_space<vmem>>, vector<1x4x384xf32>,
    return
  }
  func.func @transform_0(%arg0: i32, %arg1: i32) -> (i32, i32, i32) {
    %c0_i32 = arith.constant 0 : i32
    %c0_i32_0 = arith.constant 0 : i32
    %c0_i32_1 = arith.constant 0 : i32
    return %arg0, %c0_i32, %c0_i32_0 : i32, i32, i32
  }
  func.func @transform_1(%arg0: i32, %arg1: i32) -> (i32, i32, i32) {
    %c0_i32 = arith.constant 0 : i32
    %c0_i32_0 = arith.constant 0 : i32
    %c0_i32_1 = arith.constant 0 : i32
    return %arg1, %c0_i32, %c0_i32_0 : i32, i32, i32
  }
  func.func @transform_2(%arg0: i32, %arg1: i32) -> (i32, i32, i32) {
    %c0_i32 = arith.constant 0 : i32
    %c0_i32_0 = arith.constant 0 : i32
    %c0_i32_1 = arith.constant 0 : i32
    return %arg1, %c0_i32, %c0_i32_0 : i32, i32, i32
  }
  func.func @transform_3(%arg0: i32, %arg1: i32) -> (i32, i32) {
    %c0_i32 = arith.constant 0 : i32
    %c0_i32_0 = arith.constant 0 : i32
    %c0_i32_1 = arith.constant 0 : i32
    return %c0_i32, %c0_i32_0 : i32, i32
  }
  func.func @transform_4(%arg0: i32, %arg1: i32) -> (i32, i32) {
    %c0_i32 = arith.constant 0 : i32
    %c0_i32_0 = arith.constant 0 : i32
    %c0_i32_1 = arith.constant 0 : i32
    return %c0_i32, %c0_i32_0 : i32, i32
  }
  func.func @transform_5(%arg0: i32, %arg1: i32) -> (i32, i32, i32) {
    %c0_i32 = arith.constant 0 : i32
    %c0_i32_0 = arith.constant 0 : i32
    %c0_i32_1 = arith.constant 0 : i32
    return %arg0, %c0_i32, %c0_i32_0 : i32, i32, i32
  }
}

</mosaic_0001>

<llo_original>
// kernel: rescnn_forward.1
$region0: #{rescnn_forward.1}
  #allocation0 [shape = 'u32[]', space=smem, size = 0x4, offset = 0x4, fixed_abs, tag = 'smem constant byte address 0x4 - core index']
  #allocation1 [shape = 'u32[144,128]{1,0:T(1,128)}', space=vmem, size = 0x12000, scoped, tag = 'internal scratch']
  #allocation2 [shape = 'f32[8,640]{1,0:T(8,128)}', space=vmem, size = 0x5000, scoped, tag = 'scratch operand']
  #allocation3 [shape = 'f32[8,640]{1,0:T(8,128)}', space=vmem, size = 0x5000, scoped, tag = 'scratch operand']
  #allocation4 [shape = 'f32[144,384]{1,0:T(8,128)}', space=vmem, size = 0x36000, scoped, tag = 'scratch operand']
  %s0 = inlined_call_operand.vmem [shape: f32[2,4,384], index: 0, kind: input, shape index: {}]
  %s1 = inlined_call_operand.vmem [shape: f32[2,144,72], index: 1, kind: input, shape index: {}]
  %s2 = inlined_call_operand.vmem [shape: f32[2,16,1], index: 2, kind: input, shape index: {}]
  %s3 = inlined_call_operand.vmem [shape: f32[8,1], index: 3, kind: input, shape index: {}]
  %s4 = inlined_call_operand.vmem [shape: f32[1,384], index: 4, kind: input, shape index: {}]
  %s5 = inlined_call_operand.vmem [shape: f32[2,4,384], index: 5, kind: output, shape index: {}]
  %s6 = sld [smem:[#allocation0]]
  $region57: #{rescnn_forward.1} parent=0
    _
  %s8 = ssub.s32 1, %s6
  %s9 = scalar_select 0, %s8, %s6
  loop: start=0, step=1, limit=6
  $region2: #{rescnn_forward.1} parent=0 // loop_pre_header
    _
  $region3: #{rescnn_forward.1} parent=0 // loop_header
    %s11 = sphi 0, %s15
    %p12 = scmp.ge.s32.totalorder %s11, 6
    %s18 = sphi 0, %s30
    %s19 = sphi 0, %s26
    %s20 = sphi 0, %s18
    %s21 = sphi 0, %s19
    %s22 = sphi 0, %s20
    %s23 = sphi 0, %s21
    %s33 = sphi 0, %s35
    %s36 = sphi 0, %s33
    %s37 = sphi 0, %s36
    %s53 = sphi 0, %s37
    %s59 = sphi 0, %s61
    %s62 = sphi 0, %s59
    %s63 = sphi 0, %s62
    %s79 = sphi 0, %s63
    %s85 = sphi 0, %s87
    %s88 = sphi 0, %s85
    %s89 = sphi 0, %s88
    %s105 = sphi 0, %s89
    %s109 = sphi 0, %s109
    %s111 = sphi 0, %s109
    %s112 = sphi 0, %s111
    %s126 = sphi 0, %s112
    %s130 = sphi 0, %s130
    %s132 = sphi 0, %s130
    %s133 = sphi 0, %s132
    %s147 = sphi 0, %s133
    %s153 = sphi 0, %s155
    %s156 = sphi 0, %s153
    %s157 = sphi 0, %s156
    %s173 = sphi 0, %s157
  $region4: #{rescnn_forward.1} parent=0 // loop_header_branch
    %14 = sbr.rel (%p12) target = $region8
  $region5: #{rescnn_forward.1} parent=0 // loop_body
    %s16 = ssub.s32 %s11, 1
    %s17 = ssub.s32 %s11, 2
    %s24 = sadd.s32 1, %s19
    %p25 = scmp.ge.s32.totalorder %s24, 2
    %s26 = scalar_select %p25, 0, %s24
    %s27 = sadd.s32 1, %s18
    %s28 = scalar_select %p25, %s27, %s18
    %p29 = scmp.ge.s32.totalorder %s28, 2
    %s30 = scalar_select %p29, 0, %s28
    %s31 = ssub.s32 %s18, %s30
    %p32 = scmp.eq.s32.totalorder %s31, 0
    %s34 = sadd.s32 %s33, 1
    %s35 = scalar_select %p32, %s33, %s34
    %p38 = pneg %p32
    %p39 = scmp.eq.s32.totalorder %s11, 3
    %p40 = por %p38, %p39
    %p41 = scmp.ne.s32.totalorder %s33, %s36
    %p42 = scmp.eq.s32.totalorder %s11, 0
    %p43 = por %p41, %p42
    %p44 = scmp.ne.s32.totalorder %s33, %s36
    %p45 = scmp.eq.s32.totalorder %s16, 3
    %p46 = por %p44, %p45
    %p47 = scmp.ne.s32.totalorder %s36, %s37
    %p48 = scmp.eq.s32.totalorder %s16, 0
    %p49 = por %p47, %p48
    %p50 = scmp.ne.s32.totalorder %s36, %s37
    %p51 = scmp.eq.s32.totalorder %s17, 3
    %p52 = por %p50, %p51
    %p54 = scmp.ne.s32.totalorder %s37, %s53
    %p55 = scmp.eq.s32.totalorder %s17, 0
    %p56 = por %p54, %p55
    %s57 = ssub.s32 %s19, %s26
    %p58 = scmp.eq.s32.totalorder %s57, 0
    %s60 = sadd.s32 %s59, 1
    %s61 = scalar_select %p58, %s59, %s60
    %p64 = pneg %p58
    %p65 = scmp.eq.s32.totalorder %s11, 3
    %p66 = por %p64, %p65
    %p67 = scmp.ne.s32.totalorder %s59, %s62
    %p68 = scmp.eq.s32.totalorder %s11, 0
    %p69 = por %p67, %p68
    %p70 = scmp.ne.s32.totalorder %s59, %s62
    %p71 = scmp.eq.s32.totalorder %s16, 3
    %p72 = por %p70, %p71
    %p73 = scmp.ne.s32.totalorder %s62, %s63
    %p74 = scmp.eq.s32.totalorder %s16, 0
    %p75 = por %p73, %p74
    %p76 = scmp.ne.s32.totalorder %s62, %s63
    %p77 = scmp.eq.s32.totalorder %s17, 3
    %p78 = por %p76, %p77
    %p80 = scmp.ne.s32.totalorder %s63, %s79
    %p81 = scmp.eq.s32.totalorder %s17, 0
    %p82 = por %p80, %p81
    %s83 = ssub.s32 %s19, %s26
    %p84 = scmp.eq.s32.totalorder %s83, 0
    %s86 = sadd.s32 %s85, 1
    %s87 = scalar_select %p84, %s85, %s86
    %p90 = pneg %p84
    %p91 = scmp.eq.s32.totalorder %s11, 3
    %p92 = por %p90, %p91
    %p93 = scmp.ne.s32.totalorder %s85, %s88
    %p94 = scmp.eq.s32.totalorder %s11, 0
    %p95 = por %p93, %p94
    %p96 = scmp.ne.s32.totalorder %s85, %s88
    %p97 = scmp.eq.s32.totalorder %s16, 3
    %p98 = por %p96, %p97
    %p99 = scmp.ne.s32.totalorder %s88, %s89
    %p100 = scmp.eq.s32.totalorder %s16, 0
    %p101 = por %p99, %p100
    %p102 = scmp.ne.s32.totalorder %s88, %s89
    %p103 = scmp.eq.s32.totalorder %s17, 3
    %p104 = por %p102, %p103
    %p106 = scmp.ne.s32.totalorder %s89, %s105
    %p107 = scmp.eq.s32.totalorder %s17, 0
    %p108 = por %p106, %p107
    %s110 = sadd.s32 %s109, 1
    %p113 = scmp.eq.s32.totalorder %s11, 3
    %p114 = scmp.ne.s32.totalorder %s109, %s111
    %p115 = scmp.eq.s32.totalorder %s11, 0
    %p116 = por %p114, %p115
    %p117 = scmp.ne.s32.totalorder %s109, %s111
    %p118 = scmp.eq.s32.totalorder %s16, 3
    %p119 = por %p117, %p118
    %p120 = scmp.ne.s32.totalorder %s111, %s112
    %p121 = scmp.eq.s32.totalorder %s16, 0
    %p122 = por %p120, %p121
    %p123 = scmp.ne.s32.totalorder %s111, %s112
    %p124 = scmp.eq.s32.totalorder %s17, 3
    %p125 = por %p123, %p124
    %p127 = scmp.ne.s32.totalorder %s112, %s126
    %p128 = scmp.eq.s32.totalorder %s17, 0
    %p129 = por %p127, %p128
    %s131 = sadd.s32 %s130, 1
    %p134 = scmp.eq.s32.totalorder %s11, 3
    %p135 = scmp.ne.s32.totalorder %s130, %s132
    %p136 = scmp.eq.s32.totalorder %s11, 0
    %p137 = por %p135, %p136
    %p138 = scmp.ne.s32.totalorder %s130, %s132
    %p139 = scmp.eq.s32.totalorder %s16, 3
    %p140 = por %p138, %p139
    %p141 = scmp.ne.s32.totalorder %s132, %s133
    %p142 = scmp.eq.s32.totalorder %s16, 0
    %p143 = por %p141, %p142
    %p144 = scmp.ne.s32.totalorder %s132, %s133
    %p145 = scmp.eq.s32.totalorder %s17, 3
    %p146 = por %p144, %p145
    %p148 = scmp.ne.s32.totalorder %s133, %s147
    %p149 = scmp.eq.s32.totalorder %s17, 0
    %p150 = por %p148, %p149
    %s151 = ssub.s32 %s18, %s30
    %p152 = scmp.eq.s32.totalorder %s151, 0
    %s154 = sadd.s32 %s153, 1
    %s155 = scalar_select %p152, %s153, %s154
    %p158 = pneg %p152
    %p159 = scmp.eq.s32.totalorder %s11, 3
    %p160 = por %p158, %p159
    %p161 = scmp.ne.s32.totalorder %s153, %s156
    %p162 = scmp.eq.s32.totalorder %s11, 0
    %p163 = por %p161, %p162
    %p164 = scmp.ne.s32.totalorder %s153, %s156
    %p165 = scmp.eq.s32.totalorder %s16, 3
    %p166 = por %p164, %p165
    %p167 = scmp.ne.s32.totalorder %s156, %s157
    %p168 = scmp.eq.s32.totalorder %s16, 0
    %p169 = por %p167, %p168
    %p170 = scmp.ne.s32.totalorder %s156, %s157
    %p171 = scmp.eq.s32.totalorder %s17, 3
    %p172 = por %p170, %p171
    %p174 = scmp.ne.s32.totalorder %s157, %s173
    %p175 = scmp.eq.s32.totalorder %s17, 0
    %p176 = por %p174, %p175
    %p177 = scmp.le.s32.totalorder 1, %s11
    %p178 = scmp.lt.s32.totalorder %s11, 5
    %p179 = pnand %p177, %p178
    %p180 = pneg %p179
    // Predicated region
    $region9: #{rescnn_forward.1} parent=5 // pred_check
      _
    $region10: #{rescnn_forward.1} parent=5 // pred_check_branch
      %182 = sbr.rel (%p179) target = $region12
    $region11: #{rescnn_forward.1} parent=5 // pred_region
      %s183 = ssub.s32 %s11, 1
      // Predicated region
      $region13: #{rescnn_forward.1} parent=11 // pred_check
        %p184 = pneg %p122
      $region14: #{rescnn_forward.1} parent=11 // pred_check_branch
        %186 = sbr.rel (%p184) target = $region16
      $region15: #{rescnn_forward.1} parent=11 // pred_region
        _
      $region16: #{rescnn_forward.1} parent=11 // pred_fallthru
        _
      // Predicated region
      $region17: #{rescnn_forward.1} parent=11 // pred_check
        %p187 = pneg %p143
      $region18: #{rescnn_forward.1} parent=11 // pred_check_branch
        %189 = sbr.rel (%p187) target = $region20
      $region19: #{rescnn_forward.1} parent=11 // pred_region
        _
      $region20: #{rescnn_forward.1} parent=11 // pred_fallthru
        _
    $region12: #{rescnn_forward.1} parent=5 // pred_fallthru
      _
    %p190 = scmp.lt.s32.totalorder %s11, 4
    // Predicated region
    $region21: #{rescnn_forward.1} parent=5 // pred_check
      %p191 = pneg %p190
    $region22: #{rescnn_forward.1} parent=5 // pred_check_branch
      %193 = sbr.rel (%p191) target = $region24
    $region23: #{rescnn_forward.1} parent=5 // pred_region
      // Predicated region
      $region25: #{rescnn_forward.1} parent=23 // pred_check
        %p194 = pneg %p43
      $region26: #{rescnn_forward.1} parent=23 // pred_check_branch
        %196 = sbr.rel (%p194) target = $region28
      $region27: #{rescnn_forward.1} parent=23 // pred_region
        %p197 = scmp.lt.s32.totalorder %s18, 1
        %s198 = scalar_select %p197, %s18, 1
        %s199 = smul.addr %s198, 3
        %s200 = smul.addr %s199, 4
        %s201 = scalar_lea.vmem %s0, %s200
      $region28: #{rescnn_forward.1} parent=23 // pred_fallthru
        _
      // Predicated region
      $region29: #{rescnn_forward.1} parent=23 // pred_check
        %p202 = pneg %p69
      $region30: #{rescnn_forward.1} parent=23 // pred_check_branch
        %204 = sbr.rel (%p202) target = $region32
      $region31: #{rescnn_forward.1} parent=23 // pred_region
        %p205 = scmp.lt.s32.totalorder %s19, 1
        %s206 = scalar_select %p205, %s19, 1
        %s207 = smul.addr %s206, 18
        %s208 = smul.addr %s207, 8
        %s209 = scalar_lea.vmem %s1, %s208
      $region32: #{rescnn_forward.1} parent=23 // pred_fallthru
        _
      // Predicated region
      $region33: #{rescnn_forward.1} parent=23 // pred_check
        %p210 = pneg %p95
      $region34: #{rescnn_forward.1} parent=23 // pred_check_branch
        %212 = sbr.rel (%p210) target = $region36
      $region35: #{rescnn_forward.1} parent=23 // pred_region
        %p213 = scmp.lt.s32.totalorder %s19, 1
        %s214 = scalar_select %p213, %s19, 1
        %s215 = smul.addr %s214, 2
        %s216 = smul.addr %s215, 8
        %s217 = scalar_lea.vmem %s2, %s216
      $region36: #{rescnn_forward.1} parent=23 // pred_fallthru
        _
    $region24: #{rescnn_forward.1} parent=5 // pred_fallthru
      _
    %p218 = scmp.le.s32.totalorder 1, %s11
    %p219 = scmp.lt.s32.totalorder %s11, 5
    %p220 = pnand %p218, %p219
    %p221 = pneg %p220
    // Predicated region
    $region37: #{rescnn_forward.1} parent=5 // pred_check
      _
    $region38: #{rescnn_forward.1} parent=5 // pred_check_branch
      %223 = sbr.rel (%p220) target = $region40
    $region39: #{rescnn_forward.1} parent=5 // pred_region
      %s224 = ssub.s32 %s11, 1
      %p225 = scmp.lt.s32.totalorder %s20, 1
      %s226 = scalar_select %p225, %s20, 1
      %s227 = smul.addr %s226, 3
      %s228 = smul.addr %s227, 4
      %s229 = scalar_lea.vmem %s0, %s228
      %p230 = pneg %p49
      %p231 = pneg %p46
      %p232 = scmp.lt.s32.totalorder %s21, 1
      %s233 = scalar_select %p232, %s21, 1
      %s234 = smul.addr %s233, 18
      %s235 = smul.addr %s234, 8
      %s236 = scalar_lea.vmem %s1, %s235
      %p237 = pneg %p75
      %p238 = pneg %p72
      %p239 = scmp.lt.s32.totalorder %s21, 1
      %s240 = scalar_select %p239, %s21, 1
      %s241 = smul.addr %s240, 2
      %s242 = smul.addr %s241, 8
      %s243 = scalar_lea.vmem %s2, %s242
      %p244 = pneg %p101
      %p245 = pneg %p98
      %p246 = pneg %p122
      %p247 = pneg %p119
      %p248 = pneg %p143
      %p249 = pneg %p140
      %p250 = pneg %p169
      %p251 = pneg %p166
      %p252 = scmp.lt.s32.totalorder %s20, 1
      %s253 = scalar_select %p252, %s20, 1
      %s254 = smul.addr %s253, 3
      %s255 = smul.addr %s254, 4
      %s256 = scalar_lea.vmem %s5, %s255
      %p257 = scmp.lt.s32.totalorder %s20, 1
      %s258 = scalar_select %p257, %s20, 1
      %s259 = smul.addr %s258, 3
      %s260 = smul.addr %s259, 4
      %s261 = scalar_lea.vmem %s0, %s260
      %p262 = scmp.lt.s32.totalorder %s21, 1
      %s263 = scalar_select %p262, %s21, 1
      %s264 = smul.addr %s263, 18
      %s265 = smul.addr %s264, 8
      %s266 = scalar_lea.vmem %s1, %s265
      %p267 = scmp.lt.s32.totalorder %s21, 1
      %s268 = scalar_select %p267, %s21, 1
      %s269 = smul.addr %s268, 2
      %s270 = smul.addr %s269, 8
      %s271 = scalar_lea.vmem %s2, %s270
      %p272 = scmp.lt.s32.totalorder %s20, 1
      %s273 = scalar_select %p272, %s20, 1
      %s274 = smul.addr %s273, 3
      %s275 = smul.addr %s274, 4
      %s276 = scalar_lea.vmem %s5, %s275
      %p277 = scmp.eq.s32.totalorder %s21, 0
      // Predicated region
      $region41: #{rescnn_forward.1} parent=39 // pred_check
        %p278 = pneg %p277
      $region42: #{rescnn_forward.1} parent=39 // pred_check_branch
        %280 = sbr.rel (%p278) target = $region44
      $region43: #{rescnn_forward.1} parent=39 // pred_region
        %281 = vst [vmem:[#allocation2] sm:$0xff] 0.0
        %282 = vst [vmem:[#allocation2 + $0x20] sm:$0xff] 0.0
        %283 = vst [vmem:[#allocation3] sm:$0xff] 0.0
        %284 = vst [vmem:[#allocation3 + $0x20] sm:$0xff] 0.0
        %v285 = vld [vmem:[%s261] sm:$0xff]
        %v286 = vld [vmem:[%s261 + $0x8] sm:$0xf]
        %v288 = vcombine.high %v285, %v285
        %290 = vst [vmem:[#allocation2 + $0x8] sm:$0xf] %v285
        %291 = vst [vmem:[#allocation2 + $0x10] sm:$0xf] %v288
        %292 = vst [vmem:[#allocation2 + $0x18] sm:$0xf] %v286
        %293 = vst [vmem:[#allocation2 + $0x8] sm:$0xf0] 0.0
        %294 = vst [vmem:[#allocation2 + $0x10] sm:$0xf0] 0.0
        %295 = vst [vmem:[#allocation2 + $0x18] sm:$0xf0] 0.0
      $region44: #{rescnn_forward.1} parent=39 // pred_fallthru
        _
      %v296 = vld [vmem:[%s4] sm:$0x7]
      %v297 = vld [vmem:[%s3] sm:$0xff]
      %v298 = vld [vmem:[#allocation2] sm:$0xff]
      %v299 = vld [vmem:[#allocation2 + $0x8] sm:$0xff]
      %v300 = vld [vmem:[#allocation2 + $0x10] sm:$0xff]
      %v301 = vld [vmem:[#allocation2 + $0x18] sm:$0xff]
      %306 = vrot.lane.b32.xlu0 %v298, 100
      %v307 = vpop.permute.xlu0 %306
      %308 = vrot.lane.b32.xlu0 %v299, 100
      %v309 = vpop.permute.xlu0 %308
      %310 = vrot.lane.b32.xlu0 %v300, 100
      %v311 = vpop.permute.xlu0 %310
      %312 = vrot.lane.b32.xlu0 %v301, 100
      %v313 = vpop.permute.xlu0 %312
      %vm314 = vcmask 818176
      %v315 = vsel %vm314, %v307, %v309
      %v316 = vsel %vm314, %v309, %v311
      %v317 = vsel %vm314, %v311, %v313
      %321 = vst [vmem:[#allocation4] sm:$0xff] %v315
      %322 = vst [vmem:[#allocation4 + $0x8] sm:$0xff] %v316
      %323 = vst [vmem:[#allocation4 + $0x10] sm:$0xff] %v317
      %v324 = vld [vmem:[#allocation2] sm:$0xff]
      %v325 = vld [vmem:[#allocation2 + $0x8] sm:$0xff]
      %v326 = vld [vmem:[#allocation2 + $0x10] sm:$0xff]
      %v327 = vld [vmem:[#allocation2 + $0x18] sm:$0xff]
      %332 = vrot.lane.b32.xlu0 %v324, 99
      %v333 = vpop.permute.xlu0 %332
      %334 = vrot.lane.b32.xlu0 %v325, 99
      %v335 = vpop.permute.xlu0 %334
      %336 = vrot.lane.b32.xlu0 %v326, 99
      %v337 = vpop.permute.xlu0 %336
      %338 = vrot.lane.b32.xlu0 %v327, 99
      %v339 = vpop.permute.xlu0 %338
      %vm340 = vcmask 809984
      %v341 = vsel %vm340, %v333, %v335
      %v342 = vsel %vm340, %v335, %v337
      %v343 = vsel %vm340, %v337, %v339
      %347 = vst [vmem:[#allocation4 + $0x18] sm:$0xff] %v341
      %348 = vst [vmem:[#allocation4 + $0x20] sm:$0xff] %v342
      %349 = vst [vmem:[#allocation4 + $0x28] sm:$0xff] %v343
      %v350 = vld [vmem:[#allocation2] sm:$0xff]
      %v351 = vld [vmem:[#allocation2 + $0x8] sm:$0xff]
      %v352 = vld [vmem:[#allocation2 + $0x10] sm:$0xff]
      %v353 = vld [vmem:[#allocation2 + $0x18] sm:$0xff]
      %358 = vrot.lane.b32.xlu0 %v350, 98
      %v359 = vpop.permute.xlu0 %358
      %360 = vrot.lane.b32.xlu0 %v351, 98
      %v361 = vpop.permute.xlu0 %360
      %362 = vrot.lane.b32.xlu0 %v352, 98
      %v363 = vpop.permute.xlu0 %362
      %364 = vrot.lane.b32.xlu0 %v353, 98
      %v365 = vpop.permute.xlu0 %364
      %vm366 = vcmask 801792
      %v367 = vsel %vm366, %v359, %v361
      %v368 = vsel %vm366, %v361, %v363
      %v369 = vsel %vm366, %v363, %v365
      %373 = vst [vmem:[#allocation4 + $0x30] sm:$0xff] %v367
      %374 = vst [vmem:[#allocation4 + $0x38] sm:$0xff] %v368
      %375 = vst [vmem:[#allocation4 + $0x40] sm:$0xff] %v369
      %v376 = vld [vmem:[#allocation2] sm:$0xff]
      %v377 = vld [vmem:[#allocation2 + $0x8] sm:$0xff]
      %v378 = vld [vmem:[#allocation2 + $0x10] sm:$0xff]
      %v379 = vld [vmem:[#allocation2 + $0x18] sm:$0xff]
      %384 = vrot.lane.b32.xlu0 %v376, 97
      %v385 = vpop.permute.xlu0 %384
      %386 = vrot.lane.b32.xlu0 %v377, 97
      %v387 = vpop.permute.xlu0 %386
      %388 = vrot.lane.b32.xlu0 %v378, 97
      %v389 = vpop.permute.xlu0 %388
      %390 = vrot.lane.b32.xlu0 %v379, 97
      %v391 = vpop.permute.xlu0 %390
      %vm392 = vcmask 793600
      %v393 = vsel %vm392, %v385, %v387
      %v394 = vsel %vm392, %v387, %v389
      %v395 = vsel %vm392, %v389, %v391
      %399 = vst [vmem:[#allocation4 + $0x48] sm:$0xff] %v393
      %400 = vst [vmem:[#allocation4 + $0x50] sm:$0xff] %v394
      %401 = vst [vmem:[#allocation4 + $0x58] sm:$0xff] %v395
      %v402 = vld [vmem:[#allocation2] sm:$0xff]
      %v403 = vld [vmem:[#allocation2 + $0x8] sm:$0xff]
      %v404 = vld [vmem:[#allocation2 + $0x10] sm:$0xff]
      %v405 = vld [vmem:[#allocation2 + $0x18] sm:$0xff]
      %410 = vrot.lane.b32.xlu0 %v402, 96
      %v411 = vpop.permute.xlu0 %410
      %412 = vrot.lane.b32.xlu0 %v403, 96
      %v413 = vpop.permute.xlu0 %412
      %414 = vrot.lane.b32.xlu0 %v404, 96
      %v415 = vpop.permute.xlu0 %414
      %416 = vrot.lane.b32.xlu0 %v405, 96
      %v417 = vpop.permute.xlu0 %416
      %vm418 = vcmask 785408
      %v419 = vsel %vm418, %v411, %v413
      %v420 = vsel %vm418, %v413, %v415
      %v421 = vsel %vm418, %v415, %v417
      %425 = vst [vmem:[#allocation4 + $0x60] sm:$0xff] %v419
      %426 = vst [vmem:[#allocation4 + $0x68] sm:$0xff] %v420
      %427 = vst [vmem:[#allocation4 + $0x70] sm:$0xff] %v421
      %v428 = vld [vmem:[#allocation2] sm:$0xff]
      %v429 = vld [vmem:[#allocation2 + $0x8] sm:$0xff]
      %v430 = vld [vmem:[#allocation2 + $0x10] sm:$0xff]
      %v431 = vld [vmem:[#allocation2 + $0x18] sm:$0xff]
      %436 = vrot.lane.b32.xlu0 %v428, 95
      %v437 = vpop.permute.xlu0 %436
      %438 = vrot.lane.b32.xlu0 %v429, 95
      %v439 = vpop.permute.xlu0 %438
      %440 = vrot.lane.b32.xlu0 %v430, 95
      %v441 = vpop.permute.xlu0 %440
      %442 = vrot.lane.b32.xlu0 %v431, 95
      %v443 = vpop.permute.xlu0 %442
      %vm444 = vcmask 777216
      %v445 = vsel %vm444, %v437, %v439
      %v446 = vsel %vm444, %v439, %v441
      %v447 = vsel %vm444, %v441, %v443
      %451 = vst [vmem:[#allocation4 + $0x78] sm:$0xff] %v445
      %452 = vst [vmem:[#allocation4 + $0x80] sm:$0xff] %v446
      %453 = vst [vmem:[#allocation4 + $0x88] sm:$0xff] %v447
      %v454 = vld [vmem:[#allocation2] sm:$0xff]
      %v455 = vld [vmem:[#allocation2 + $0x8] sm:$0xff]
      %v456 = vld [vmem:[#allocation2 + $0x10] sm:$0xff]
      %v457 = vld [vmem:[#allocation2 + $0x18] sm:$0xff]
      %462 = vrot.lane.b32.xlu0 %v454, 94
      %v463 = vpop.permute.xlu0 %462
      %464 = vrot.lane.b32.xlu0 %v455, 94
      %v465 = vpop.permute.xlu0 %464
      %466 = vrot.lane.b32.xlu0 %v456, 94
      %v467 = vpop.permute.xlu0 %466
      %468 = vrot.lane.b32.xlu0 %v457, 94
      %v469 = vpop.permute.xlu0 %468
      %vm470 = vcmask 769024
      %v471 = vsel %vm470, %v463, %v465
      %v472 = vsel %vm470, %v465, %v467
      %v473 = vsel %vm470, %v467, %v469
      %477 = vst [vmem:[#allocation4 + $0x90] sm:$0xff] %v471
      %478 = vst [vmem:[#allocation4 + $0x98] sm:$0xff] %v472
      %479 = vst [vmem:[#allocation4 + $0xa0] sm:$0xff] %v473
      %v480 = vld [vmem:[#allocation2] sm:$0xff]
      %v481 = vld [vmem:[#allocation2 + $0x8] sm:$0xff]
      %v482 = vld [vmem:[#allocation2 + $0x10] sm:$0xff]
      %v483 = vld [vmem:[#allocation2 + $0x18] sm:$0xff]
      %488 = vrot.lane.b32.xlu0 %v480, 93
      %v489 = vpop.permute.xlu0 %488
      %490 = vrot.lane.b32.xlu0 %v481, 93
      %v491 = vpop.permute.xlu0 %490
      %492 = vrot.lane.b32.xlu0 %v482, 93
      %v493 = vpop.permute.xlu0 %492
      %494 = vrot.lane.b32.xlu0 %v483, 93
      %v495 = vpop.permute.xlu0 %494
      %vm496 = vcmask 760832
      %v497 = vsel %vm496, %v489, %v491
      %v498 = vsel %vm496, %v491, %v493
      %v499 = vsel %vm496, %v493, %v495
      %503 = vst [vmem:[#allocation4 + $0xa8] sm:$0xff] %v497
      %504 = vst [vmem:[#allocation4 + $0xb0] sm:$0xff] %v498
      %505 = vst [vmem:[#allocation4 + $0xb8] sm:$0xff] %v499
      %v506 = vld [vmem:[#allocation2] sm:$0xff]
      %v507 = vld [vmem:[#allocation2 + $0x8] sm:$0xff]
      %v508 = vld [vmem:[#allocation2 + $0x10] sm:$0xff]
      %v509 = vld [vmem:[#allocation2 + $0x18] sm:$0xff]
      %514 = vrot.lane.b32.xlu0 %v506, 92
      %v515 = vpop.permute.xlu0 %514
      %516 = vrot.lane.b32.xlu0 %v507, 92
      %v517 = vpop.permute.xlu0 %516
      %518 = vrot.lane.b32.xlu0 %v508, 92
      %v519 = vpop.permute.xlu0 %518
      %520 = vrot.lane.b32.xlu0 %v509, 92
      %v521 = vpop.permute.xlu0 %520
      %vm522 = vcmask 752640
      %v523 = vsel %vm522, %v515, %v517
      %v524 = vsel %vm522, %v517, %v519
      %v525 = vsel %vm522, %v519, %v521
      %529 = vst [vmem:[#allocation4 + $0xc0] sm:$0xff] %v523
      %530 = vst [vmem:[#allocation4 + $0xc8] sm:$0xff] %v524
      %531 = vst [vmem:[#allocation4 + $0xd0] sm:$0xff] %v525
      %v532 = vld [vmem:[%s266] sm:$0xff]
      %v533 = vld [vmem:[#allocation4] sm:$0xff]
      %v534 = vld [vmem:[#allocation4 + $0x8] sm:$0xff]
      %v535 = vld [vmem:[#allocation4 + $0x10] sm:$0xff]
      %v536 = vld [vmem:[#allocation4 + $0x18] sm:$0xff]
      %v537 = vld [vmem:[#allocation4 + $0x20] sm:$0xff]
      %v538 = vld [vmem:[#allocation4 + $0x28] sm:$0xff]
      %v539 = vld [vmem:[#allocation4 + $0x30] sm:$0xff]
      %v540 = vld [vmem:[#allocation4 + $0x38] sm:$0xff]
      %v541 = vld [vmem:[#allocation4 + $0x40] sm:$0xff]
      %v542 = vld [vmem:[#allocation4 + $0x48] sm:$0xff]
      %v543 = vld [vmem:[#allocation4 + $0x50] sm:$0xff]
      %v544 = vld [vmem:[#allocation4 + $0x58] sm:$0xff]
      %v545 = vld [vmem:[#allocation4 + $0x60] sm:$0xff]
      %v546 = vld [vmem:[#allocation4 + $0x68] sm:$0xff]
      %v547 = vld [vmem:[#allocation4 + $0x70] sm:$0xff]
      %v548 = vld [vmem:[#allocation4 + $0x78] sm:$0xff]
      %v549 = vld [vmem:[#allocation4 + $0x80] sm:$0xff]
      %v550 = vld [vmem:[#allocation4 + $0x88] sm:$0xff]
      %v551 = vld [vmem:[#allocation4 + $0x90] sm:$0xff]
      %v552 = vld [vmem:[#allocation4 + $0x98] sm:$0xff]
      %v553 = vld [vmem:[#allocation4 + $0xa0] sm:$0xff]
      %v554 = vld [vmem:[#allocation4 + $0xa8] sm:$0xff]
      %v555 = vld [vmem:[#allocation4 + $0xb0] sm:$0xff]
      %v556 = vld [vmem:[#allocation4 + $0xb8] sm:$0xff]
      %v557 = vld [vmem:[#allocation4 + $0xc0] sm:$0xff]
      %v558 = vld [vmem:[#allocation4 + $0xc8] sm:$0xff]
      %v559 = vld [vmem:[#allocation4 + $0xd0] sm:$0xff]
      %v560 = vld [vmem:[#allocation2] sm:$0xff]
      %v561 = vld [vmem:[#allocation2 + $0x8] sm:$0xff]
      %v562 = vld [vmem:[#allocation2 + $0x10] sm:$0xff]
      %v563 = vld [vmem:[#allocation2 + $0x18] sm:$0xff]
      %568 = vrot.lane.b32.xlu0 %v560, 76
      %v569 = vpop.permute.xlu0 %568
      %570 = vrot.lane.b32.xlu0 %v561, 76
      %v571 = vpop.permute.xlu0 %570
      %572 = vrot.lane.b32.xlu0 %v562, 76
      %v573 = vpop.permute.xlu0 %572
      %574 = vrot.lane.b32.xlu0 %v563, 76
      %v575 = vpop.permute.xlu0 %574
      %vm576 = vcmask 621568
      %v577 = vsel %vm576, %v569, %v571
      %v578 = vsel %vm576, %v571, %v573
      %v579 = vsel %vm576, %v573, %v575
      %583 = vst [vmem:[#allocation4 + $0xd8] sm:$0xff] %v577
      %584 = vst [vmem:[#allocation4 + $0xe0] sm:$0xff] %v578
      %585 = vst [vmem:[#allocation4 + $0xe8] sm:$0xff] %v579
      %v586 = vld [vmem:[#allocation2] sm:$0xff]
      %v587 = vld [vmem:[#allocation2 + $0x8] sm:$0xff]
      %v588 = vld [vmem:[#allocation2 + $0x10] sm:$0xff]
      %v589 = vld [vmem:[#allocation2 + $0x18] sm:$0xff]
      %594 = vrot.lane.b32.xlu0 %v586, 75
      %v595 = vpop.permute.xlu0 %594
      %596 = vrot.lane.b32.xlu0 %v587, 75
      %v597 = vpop.permute.xlu0 %596
      %598 = vrot.lane.b32.xlu0 %v588, 75
      %v599 = vpop.permute.xlu0 %598
      %600 = vrot.lane.b32.xlu0 %v589, 75
      %v601 = vpop.permute.xlu0 %600
      %vm602 = vcmask 613376
      %v603 = vsel %vm602, %v595, %v597
      %v604 = vsel %vm602, %v597, %v599
      %v605 = vsel %vm602, %v599, %v601
      %609 = vst [vmem:[#allocation4 + $0xf0] sm:$0xff] %v603
      %610 = vst [vmem:[#allocation4 + $0xf8] sm:$0xff] %v604
      %611 = vst [vmem:[#allocation4 + $0x100] sm:$0xff] %v605
      %v612 = vld [vmem:[#allocation2] sm:$0xff]
      %v613 = vld [vmem:[#allocation2 + $0x8] sm:$0xff]
      %v614 = vld [vmem:[#allocation2 + $0x10] sm:$0xff]
      %v615 = vld [vmem:[#allocation2 + $0x18] sm:$0xff]
      %620 = vrot.lane.b32.xlu0 %v612, 74
      %v621 = vpop.permute.xlu0 %620
      %622 = vrot.lane.b32.xlu0 %v613, 74
      %v623 = vpop.permute.xlu0 %622
      %624 = vrot.lane.b32.xlu0 %v614, 74
      %v625 = vpop.permute.xlu0 %624
      %626 = vrot.lane.b32.xlu0 %v615, 74
      %v627 = vpop.permute.xlu0 %626
      %vm628 = vcmask 605184
      %v629 = vsel %vm628, %v621, %v623
      %v630 = vsel %vm628, %v623, %v625
      %v631 = vsel %vm628, %v625, %v627
      %635 = vst [vmem:[#allocation4 + $0x108] sm:$0xff] %v629
      %636 = vst [vmem:[#allocation4 + $0x110] sm:$0xff] %v630
      %637 = vst [vmem:[#allocation4 + $0x118] sm:$0xff] %v631
      %v638 = vld [vmem:[#allocation2] sm:$0xff]
      %v639 = vld [vmem:[#allocation2 + $0x8] sm:$0xff]
      %v640 = vld [vmem:[#allocation2 + $0x10] sm:$0xff]
      %v641 = vld [vmem:[#allocation2 + $0x18] sm:$0xff]
      %646 = vrot.lane.b32.xlu0 %v638, 73
      %v647 = vpop.permute.xlu0 %646
      %648 = vrot.lane.b32.xlu0 %v639, 73
      %v649 = vpop.permute.xlu0 %648
      %650 = vrot.lane.b32.xlu0 %v640, 73
      %v651 = vpop.permute.xlu0 %650
      %652 = vrot.lane.b32.xlu0 %v641, 73
      %v653 = vpop.permute.xlu0 %652
      %vm654 = vcmask 596992
      %v655 = vsel %vm654, %v647, %v649
      %v656 = vsel %vm654, %v649, %v651
      %v657 = vsel %vm654, %v651, %v653
      %661 = vst [vmem:[#allocation4 + $0x120] sm:$0xff] %v655
      %662 = vst [vmem:[#allocation4 + $0x128] sm:$0xff] %v656
      %663 = vst [vmem:[#allocation4 + $0x130] sm:$0xff] %v657
      %v664 = vld [vmem:[#allocation2] sm:$0xff]
      %v665 = vld [vmem:[#allocation2 + $0x8] sm:$0xff]
      %v666 = vld [vmem:[#allocation2 + $0x10] sm:$0xff]
      %v667 = vld [vmem:[#allocation2 + $0x18] sm:$0xff]
      %672 = vrot.lane.b32.xlu0 %v664, 72
      %v673 = vpop.permute.xlu0 %672
      %674 = vrot.lane.b32.xlu0 %v665, 72
      %v675 = vpop.permute.xlu0 %674
      %676 = vrot.lane.b32.xlu0 %v666, 72
      %v677 = vpop.permute.xlu0 %676
      %678 = vrot.lane.b32.xlu0 %v667, 72
      %v679 = vpop.permute.xlu0 %678
      %vm680 = vcmask 588800
      %v681 = vsel %vm680, %v673, %v675
      %v682 = vsel %vm680, %v675, %v677
      %v683 = vsel %vm680, %v677, %v679
      %687 = vst [vmem:[#allocation4 + $0x138] sm:$0xff] %v681
      %688 = vst [vmem:[#allocation4 + $0x140] sm:$0xff] %v682
      %689 = vst [vmem:[#allocation4 + $0x148] sm:$0xff] %v683
      %v690 = vld [vmem:[#allocation2] sm:$0xff]
      %v691 = vld [vmem:[#allocation2 + $0x8] sm:$0xff]
      %v692 = vld [vmem:[#allocation2 + $0x10] sm:$0xff]
      %v693 = vld [vmem:[#allocation2 + $0x18] sm:$0xff]
      %698 = vrot.lane.b32.xlu0 %v690, 71
      %v699 = vpop.permute.xlu0 %698
      %700 = vrot.lane.b32.xlu0 %v691, 71
      %v701 = vpop.permute.xlu0 %700
      %702 = vrot.lane.b32.xlu0 %v692, 71
      %v703 = vpop.permute.xlu0 %702
      %704 = vrot.lane.b32.xlu0 %v693, 71
      %v705 = vpop.permute.xlu0 %704
      %vm706 = vcmask 580608
      %v707 = vsel %vm706, %v699, %v701
      %v708 = vsel %vm706, %v701, %v703
      %v709 = vsel %vm706, %v703, %v705
      %713 = vst [vmem:[#allocation4 + $0x150] sm:$0xff] %v707
      %714 = vst [vmem:[#allocation4 + $0x158] sm:$0xff] %v708
      %715 = vst [vmem:[#allocation4 + $0x160] sm:$0xff] %v709
      %v716 = vld [vmem:[#allocation2] sm:$0xff]
      %v717 = vld [vmem:[#allocation2 + $0x8] sm:$0xff]
      %v718 = vld [vmem:[#allocation2 + $0x10] sm:$0xff]
      %v719 = vld [vmem:[#allocation2 + $0x18] sm:$0xff]
      %724 = vrot.lane.b32.xlu0 %v716, 70
      %v725 = vpop.permute.xlu0 %724
      %726 = vrot.lane.b32.xlu0 %v717, 70
      %v727 = vpop.permute.xlu0 %726
      %728 = vrot.lane.b32.xlu0 %v718, 70
      %v729 = vpop.permute.xlu0 %728
      %730 = vrot.lane.b32.xlu0 %v719, 70
      %v731 = vpop.permute.xlu0 %730
      %vm732 = vcmask 572416
      %v733 = vsel %vm732, %v725, %v727
      %v734 = vsel %vm732, %v727, %v729
      %v735 = vsel %vm732, %v729, %v731
      %739 = vst [vmem:[#allocation4 + $0x168] sm:$0xff] %v733
      %740 = vst [vmem:[#allocation4 + $0x170] sm:$0xff] %v734
      %741 = vst [vmem:[#allocation4 + $0x178] sm:$0xff] %v735
      %v742 = vld [vmem:[#allocation2] sm:$0xff]
      %v743 = vld [vmem:[#allocation2 + $0x8] sm:$0xff]
      %v744 = vld [vmem:[#allocation2 + $0x10] sm:$0xff]
      %v745 = vld [vmem:[#allocation2 + $0x18] sm:$0xff]
      %750 = vrot.lane.b32.xlu0 %v742, 69
      %v751 = vpop.permute.xlu0 %750
      %752 = vrot.lane.b32.xlu0 %v743, 69
      %v753 = vpop.permute.xlu0 %752
      %754 = vrot.lane.b32.xlu0 %v744, 69
      %v755 = vpop.permute.xlu0 %754
      %756 = vrot.lane.b32.xlu0 %v745, 69
      %v757 = vpop.permute.xlu0 %756
      %vm758 = vcmask 564224
      %v759 = vsel %vm758, %v751, %v753
      %v760 = vsel %vm758, %v753, %v755
      %v761 = vsel %vm758, %v755, %v757
      %765 = vst [vmem:[#allocation4 + $0x180] sm:$0xff] %v759
      %766 = vst [vmem:[#allocation4 + $0x188] sm:$0xff] %v760
      %767 = vst [vmem:[#allocation4 + $0x190] sm:$0xff] %v761
      %v768 = vld [vmem:[#allocation2] sm:$0xff]
      %v769 = vld [vmem:[#allocation2 + $0x8] sm:$0xff]
      %v770 = vld [vmem:[#allocation2 + $0x10] sm:$0xff]
      %v771 = vld [vmem:[#allocation2 + $0x18] sm:$0xff]
      %776 = vrot.lane.b32.xlu0 %v768, 68
      %v777 = vpop.permute.xlu0 %776
      %778 = vrot.lane.b32.xlu0 %v769, 68
      %v779 = vpop.permute.xlu0 %778
      %780 = vrot.lane.b32.xlu0 %v770, 68
      %v781 = vpop.permute.xlu0 %780
      %782 = vrot.lane.b32.xlu0 %v771, 68
      %v783 = vpop.permute.xlu0 %782
      %vm784 = vcmask 556032
      %v785 = vsel %vm784, %v777, %v779
      %v786 = vsel %vm784, %v779, %v781
      %v787 = vsel %vm784, %v781, %v783
      %791 = vst [vmem:[#allocation4 + $0x198] sm:$0xff] %v785
      %792 = vst [vmem:[#allocation4 + $0x1a0] sm:$0xff] %v786
      %793 = vst [vmem:[#allocation4 + $0x1a8] sm:$0xff] %v787
      %v794 = vld [vmem:[%s266 + $0x8] sm:$0xff]
      %v795 = vld [vmem:[#allocation4 + $0xd8] sm:$0xff]
      %v796 = vld [vmem:[#allocation4 + $0xe0] sm:$0xff]
      %v797 = vld [vmem:[#allocation4 + $0xe8] sm:$0xff]
      %v798 = vld [vmem:[#allocation4 + $0xf0] sm:$0xff]
      %v799 = vld [vmem:[#allocation4 + $0xf8] sm:$0xff]
      %v800 = vld [vmem:[#allocation4 + $0x100] sm:$0xff]
      %v801 = vld [vmem:[#allocation4 + $0x108] sm:$0xff]
      %v802 = vld [vmem:[#allocation4 + $0x110] sm:$0xff]
      %v803 = vld [vmem:[#allocation4 + $0x118] sm:$0xff]
      %v804 = vld [vmem:[#allocation4 + $0x120] sm:$0xff]
      %v805 = vld [vmem:[#allocation4 + $0x128] sm:$0xff]
      %v806 = vld [vmem:[#allocation4 + $0x130] sm:$0xff]
      %v807 = vld [vmem:[#allocation4 + $0x138] sm:$0xff]
      %v808 = vld [vmem:[#allocation4 + $0x140] sm:$0xff]
      %v809 = vld [vmem:[#allocation4 + $0x148] sm:$0xff]
      %v810 = vld [vmem:[#allocation4 + $0x150] sm:$0xff]
      %v811 = vld [vmem:[#allocation4 + $0x158] sm:$0xff]
      %v812 = vld [vmem:[#allocation4 + $0x160] sm:$0xff]
      %v813 = vld [vmem:[#allocation4 + $0x168] sm:$0xff]
      %v814 = vld [vmem:[#allocation4 + $0x170] sm:$0xff]
      %v815 = vld [vmem:[#allocation4 + $0x178] sm:$0xff]
      %v816 = vld [vmem:[#allocation4 + $0x180] sm:$0xff]
      %v817 = vld [vmem:[#allocation4 + $0x188] sm:$0xff]
      %v818 = vld [vmem:[#allocation4 + $0x190] sm:$0xff]
      %v819 = vld [vmem:[#allocation4 + $0x198] sm:$0xff]
      %v820 = vld [vmem:[#allocation4 + $0x1a0] sm:$0xff]
      %v821 = vld [vmem:[#allocation4 + $0x1a8] sm:$0xff]
      %v823 = vsel %vm680, %v794, 0
      %825 = vmatprep.subr.mxu0 %v796
      %826 = vmatpush1.msra.mxu0 %v795
      %827 = vmatprep.subr.mxu0 %v799
      %828 = vmatpush1.msra.mxu0 %v798
      %829 = vmatprep.subr.mxu0 %v802
      %830 = vmatpush1.msra.mxu0 %v801
      %831 = vmatprep.subr.mxu0 %v805
      %832 = vmatpush1.msra.mxu0 %v804
      %833 = vmatprep.subr.mxu0 %v808
      %834 = vmatpush1.msra.mxu0 %v807
      %835 = vmatprep.subr.mxu0 %v811
      %836 = vmatpush1.msra.mxu0 %v810
      %837 = vmatprep.subr.mxu0 %v814
      %838 = vmatpush1.msra.mxu0 %v813
      %839 = vmatprep.subr.mxu0 %v817
      %840 = vmatpush1.msra.mxu0 %v816
      %841 = vmatprep.subr.mxu0 %v820
      %842 = vmatpush1.msra.mxu0 %v819
      %843 = vmatprep.subr.mxu0 0.0
      %844 = vmatpush1.msra.mxu0 0.0
      %845 = vmatprep.subr.mxu0 0.0
      %846 = vmatpush1.msra.mxu0 0.0
      %847 = vmatprep.subr.mxu0 0.0
      %848 = vmatpush1.msra.mxu0 0.0
      %849 = vmatprep.subr.mxu0 0.0
      %850 = vmatpush1.msra.mxu0 0.0
      %851 = vmatprep.subr.mxu0 0.0
      %852 = vmatpush1.msra.mxu0 0.0
      %853 = vmatprep.subr.mxu0 0.0
      %854 = vmatpush1.msra.mxu0 0.0
      %855 = vmatprep.subr.mxu0 0.0
      %856 = vmatpush1.msra.mxu0 0.0
      %857 = vmatprep.subr.mxu0 0.0
      %858 = vmatpush1.msra.mxu0 0.0
      %859 = vmatprep.subr.mxu0 0.0
      %860 = vmatpush1.msra.mxu0 0.0
      %861 = vmatprep.subr.mxu0 0.0
      %862 = vmatpush1.msra.mxu0 0.0
      %863 = vmatprep.subr.mxu0 0.0
      %864 = vmatpush1.msra.mxu0 0.0
      %865 = vmatprep.subr.mxu0 0.0
      %866 = vmatpush1.msra.mxu0 0.0
      %867 = vmatprep.subr.mxu0 0.0
      %868 = vmatpush1.msra.mxu0 0.0
      %869 = vmatprep.subr.mxu0 0.0
      %870 = vmatpush1.msra.mxu0 0.0
      %871 = vmatprep.subr.mxu0 0.0
      %872 = vmatpush1.msra.mxu0 0.0
      %873 = vmatprep.subr.mxu0 0.0
      %874 = vmatpush1.msra.mxu0 0.0
      %875 = vmatprep.subr.mxu0 0.0
      %876 = vmatpush1.msra.mxu0 0.0
      %877 = vmatprep.subr.mxu0 0.0
      %878 = vmatpush1.msra.mxu0 0.0
      %879 = vmatprep.subr.mxu0 0.0
      %880 = vmatpush1.msra.mxu0 0.0
      %881 = vmatprep.subr.mxu0 0.0
      %882 = vmatpush1.msra.mxu0 0.0
      %883 = vmatprep.subr.mxu0 0.0
      %884 = vmatpush1.msra.mxu0 0.0
      %885 = vmatprep.subr.mxu0 0.0
      %886 = vmatpush1.msra.mxu0 0.0
      %887 = vmatprep.subr.mxu0 0.0
      %888 = vmatpush1.msra.mxu0 0.0
      %889 = vmatprep.mubr.f32.mxu0 0.0
      %890 = vmatmul.mubr.f32.gmra.mrb[0].mxu0 %v823
      %v891 = vpop.f32.mrb[0].mxu0
      %v892 = vadd.f32 0.0, %v891
      %v893 = vpop.f32.mrb[0].mxu0
      %v894 = vadd.f32 0.0, %v893
      %895 = vdwg.mxu0
      %896 = vmatprep.subr.mxu0 0.0
      %897 = vmatpush1.msra.mxu0 %v797
      %898 = vmatprep.subr.mxu0 0.0
      %899 = vmatpush1.msra.mxu0 %v800
      %900 = vmatprep.subr.mxu0 0.0
      %901 = vmatpush1.msra.mxu0 %v803
      %902 = vmatprep.subr.mxu0 0.0
      %903 = vmatpush1.msra.mxu0 %v806
      %904 = vmatprep.subr.mxu0 0.0
      %905 = vmatpush1.msra.mxu0 %v809
      %906 = vmatprep.subr.mxu0 0.0
      %907 = vmatpush1.msra.mxu0 %v812
      %908 = vmatprep.subr.mxu0 0.0
      %909 = vmatpush1.msra.mxu0 %v815
      %910 = vmatprep.subr.mxu0 0.0
      %911 = vmatpush1.msra.mxu0 %v818
      %912 = vmatprep.subr.mxu0 0.0
      %913 = vmatpush1.msra.mxu0 %v821
      %914 = vmatprep.subr.mxu0 0.0
      %915 = vmatpush1.msra.mxu0 0.0
      %916 = vmatprep.subr.mxu0 0.0
      %917 = vmatpush1.msra.mxu0 0.0
      %918 = vmatprep.subr.mxu0 0.0
      %919 = vmatpush1.msra.mxu0 0.0
      %920 = vmatprep.subr.mxu0 0.0
      %921 = vmatpush1.msra.mxu0 0.0
      %922 = vmatprep.subr.mxu0 0.0
      %923 = vmatpush1.msra.mxu0 0.0
      %924 = vmatprep.subr.mxu0 0.0
      %925 = vmatpush1.msra.mxu0 0.0
      %926 = vmatprep.subr.mxu0 0.0
      %927 = vmatpush1.msra.mxu0 0.0
      %928 = vmatprep.subr.mxu0 0.0
      %929 = vmatpush1.msra.mxu0 0.0
      %930 = vmatprep.subr.mxu0 0.0
      %931 = vmatpush1.msra.mxu0 0.0
      %932 = vmatprep.subr.mxu0 0.0
      %933 = vmatpush1.msra.mxu0 0.0
      %934 = vmatprep.subr.mxu0 0.0
      %935 = vmatpush1.msra.mxu0 0.0
      %936 = vmatprep.subr.mxu0 0.0
      %937 = vmatpush1.msra.mxu0 0.0
      %938 = vmatprep.subr.mxu0 0.0
      %939 = vmatpush1.msra.mxu0 0.0
      %940 = vmatprep.subr.mxu0 0.0
      %941 = vmatpush1.msra.mxu0 0.0
      %942 = vmatprep.subr.mxu0 0.0
      %943 = vmatpush1.msra.mxu0 0.0
      %944 = vmatprep.subr.mxu0 0.0
      %945 = vmatpush1.msra.mxu0 0.0
      %946 = vmatprep.subr.mxu0 0.0
      %947 = vmatpush1.msra.mxu0 0.0
      %948 = vmatprep.subr.mxu0 0.0
      %949 = vmatpush1.msra.mxu0 0.0
      %950 = vmatprep.subr.mxu0 0.0
      %951 = vmatpush1.msra.mxu0 0.0
      %952 = vmatprep.subr.mxu0 0.0
      %953 = vmatpush1.msra.mxu0 0.0
      %954 = vmatprep.subr.mxu0 0.0
      %955 = vmatpush1.msra.mxu0 0.0
      %956 = vmatprep.subr.mxu0 0.0
      %957 = vmatpush1.msra.mxu0 0.0
      %958 = vmatprep.subr.mxu0 0.0
      %959 = vmatpush1.msra.mxu0 0.0
      %960 = vmatprep.mubr.f32.mxu0 0.0
      %961 = vmatmul.mubr.f32.gmra.mrb[0].mxu0 %v823
      %v962 = vpop.f32.mrb[0].mxu0
      %v963 = vadd.f32 0.0, %v962
      %v964 = vpop.f32.mrb[0].mxu0
      %965 = vdwg.mxu0
      %v967 = vsel %vm680, %v532, 0
      %969 = vmatprep.subr.mxu0 %v534
      %970 = vmatpush1.msra.mxu0 %v533
      %971 = vmatprep.subr.mxu0 %v537
      %972 = vmatpush1.msra.mxu0 %v536
      %973 = vmatprep.subr.mxu0 %v540
      %974 = vmatpush1.msra.mxu0 %v539
      %975 = vmatprep.subr.mxu0 %v543
      %976 = vmatpush1.msra.mxu0 %v542
      %977 = vmatprep.subr.mxu0 %v546
      %978 = vmatpush1.msra.mxu0 %v545
      %979 = vmatprep.subr.mxu0 %v549
      %980 = vmatpush1.msra.mxu0 %v548
      %981 = vmatprep.subr.mxu0 %v552
      %982 = vmatpush1.msra.mxu0 %v551
      %983 = vmatprep.subr.mxu0 %v555
      %984 = vmatpush1.msra.mxu0 %v554
      %985 = vmatprep.subr.mxu0 %v558
      %986 = vmatpush1.msra.mxu0 %v557
      %987 = vmatprep.subr.mxu0 0.0
      %988 = vmatpush1.msra.mxu0 0.0
      %989 = vmatprep.subr.mxu0 0.0
      %990 = vmatpush1.msra.mxu0 0.0
      %991 = vmatprep.subr.mxu0 0.0
      %992 = vmatpush1.msra.mxu0 0.0
      %993 = vmatprep.subr.mxu0 0.0
      %994 = vmatpush1.msra.mxu0 0.0
      %995 = vmatprep.subr.mxu0 0.0
      %996 = vmatpush1.msra.mxu0 0.0
      %997 = vmatprep.subr.mxu0 0.0
      %998 = vmatpush1.msra.mxu0 0.0
      %999 = vmatprep.subr.mxu0 0.0
      %1000 = vmatpush1.msra.mxu0 0.0
      %1001 = vmatprep.subr.mxu0 0.0
      %1002 = vmatpush1.msra.mxu0 0.0
      %1003 = vmatprep.subr.mxu0 0.0
      %1004 = vmatpush1.msra.mxu0 0.0
      %1005 = vmatprep.subr.mxu0 0.0
      %1006 = vmatpush1.msra.mxu0 0.0
      %1007 = vmatprep.subr.mxu0 0.0
      %1008 = vmatpush1.msra.mxu0 0.0
      %1009 = vmatprep.subr.mxu0 0.0
      %1010 = vmatpush1.msra.mxu0 0.0
      %1011 = vmatprep.subr.mxu0 0.0
      %1012 = vmatpush1.msra.mxu0 0.0
      %1013 = vmatprep.subr.mxu0 0.0
      %1014 = vmatpush1.msra.mxu0 0.0
      %1015 = vmatprep.subr.mxu0 0.0
      %1016 = vmatpush1.msra.mxu0 0.0
      %1017 = vmatprep.subr.mxu0 0.0
      %1018 = vmatpush1.msra.mxu0 0.0
      %1019 = vmatprep.subr.mxu0 0.0
      %1020 = vmatpush1.msra.mxu0 0.0
      %1021 = vmatprep.subr.mxu0 0.0
      %1022 = vmatpush1.msra.mxu0 0.0
      %1023 = vmatprep.subr.mxu0 0.0
      %1024 = vmatpush1.msra.mxu0 0.0
      %1025 = vmatprep.subr.mxu0 0.0
      %1026 = vmatpush1.msra.mxu0 0.0
      %1027 = vmatprep.subr.mxu0 0.0
      %1028 = vmatpush1.msra.mxu0 0.0
      %1029 = vmatprep.subr.mxu0 0.0
      %1030 = vmatpush1.msra.mxu0 0.0
      %1031 = vmatprep.subr.mxu0 0.0
      %1032 = vmatpush1.msra.mxu0 0.0
      %1033 = vmatprep.mubr.f32.mxu0 0.0
      %1034 = vmatmul.mubr.f32.gmra.mrb[0].mxu0 %v967
      %v1035 = vpop.f32.mrb[0].mxu0
      %v1036 = vadd.f32 %v892, %v1035
      %v1037 = vpop.f32.mrb[0].mxu0
      %v1038 = vadd.f32 %v894, %v1037
      %1039 = vdwg.mxu0
      %1040 = vmatprep.subr.mxu0 0.0
      %1041 = vmatpush1.msra.mxu0 %v535
      %1042 = vmatprep.subr.mxu0 0.0
      %1043 = vmatpush1.msra.mxu0 %v538
      %1044 = vmatprep.subr.mxu0 0.0
      %1045 = vmatpush1.msra.mxu0 %v541
      %1046 = vmatprep.subr.mxu0 0.0
      %1047 = vmatpush1.msra.mxu0 %v544
      %1048 = vmatprep.subr.mxu0 0.0
      %1049 = vmatpush1.msra.mxu0 %v547
      %1050 = vmatprep.subr.mxu0 0.0
      %1051 = vmatpush1.msra.mxu0 %v550
      %1052 = vmatprep.subr.mxu0 0.0
      %1053 = vmatpush1.msra.mxu0 %v553
      %1054 = vmatprep.subr.mxu0 0.0
      %1055 = vmatpush1.msra.mxu0 %v556
      %1056 = vmatprep.subr.mxu0 0.0
      %1057 = vmatpush1.msra.mxu0 %v559
      %1058 = vmatprep.subr.mxu0 0.0
      %1059 = vmatpush1.msra.mxu0 0.0
      %1060 = vmatprep.subr.mxu0 0.0
      %1061 = vmatpush1.msra.mxu0 0.0
      %1062 = vmatprep.subr.mxu0 0.0
      %1063 = vmatpush1.msra.mxu0 0.0
      %1064 = vmatprep.subr.mxu0 0.0
      %1065 = vmatpush1.msra.mxu0 0.0
      %1066 = vmatprep.subr.mxu0 0.0
      %1067 = vmatpush1.msra.mxu0 0.0
      %1068 = vmatprep.subr.mxu0 0.0
      %1069 = vmatpush1.msra.mxu0 0.0
      %1070 = vmatprep.subr.mxu0 0.0
      %1071 = vmatpush1.msra.mxu0 0.0
      %1072 = vmatprep.subr.mxu0 0.0
      %1073 = vmatpush1.msra.mxu0 0.0
      %1074 = vmatprep.subr.mxu0 0.0
      %1075 = vmatpush1.msra.mxu0 0.0
      %1076 = vmatprep.subr.mxu0 0.0
      %1077 = vmatpush1.msra.mxu0 0.0
      %1078 = vmatprep.subr.mxu0 0.0
      %1079 = vmatpush1.msra.mxu0 0.0
      %1080 = vmatprep.subr.mxu0 0.0
      %1081 = vmatpush1.msra.mxu0 0.0
      %1082 = vmatprep.subr.mxu0 0.0
      %1083 = vmatpush1.msra.mxu0 0.0
      %1084 = vmatprep.subr.mxu0 0.0
      %1085 = vmatpush1.msra.mxu0 0.0
      %1086 = vmatprep.subr.mxu0 0.0
      %1087 = vmatpush1.msra.mxu0 0.0
      %1088 = vmatprep.subr.mxu0 0.0
      %1089 = vmatpush1.msra.mxu0 0.0
      %1090 = vmatprep.subr.mxu0 0.0
      %1091 = vmatpush1.msra.mxu0 0.0
      %1092 = vmatprep.subr.mxu0 0.0
      %1093 = vmatpush1.msra.mxu0 0.0
      %1094 = vmatprep.subr.mxu0 0.0
      %1095 = vmatpush1.msra.mxu0 0.0
      %1096 = vmatprep.subr.mxu0 0.0
      %1097 = vmatpush1.msra.mxu0 0.0
      %1098 = vmatprep.subr.mxu0 0.0
      %1099 = vmatpush1.msra.mxu0 0.0
      %1100 = vmatprep.subr.mxu0 0.0
      %1101 = vmatpush1.msra.mxu0 0.0
      %1102 = vmatprep.subr.mxu0 0.0
      %1103 = vmatpush1.msra.mxu0 0.0
      %1104 = vmatprep.mubr.f32.mxu0 0.0
      %1105 = vmatmul.mubr.f32.gmra.mrb[0].mxu0 %v967
      %v1106 = vpop.f32.mrb[0].mxu0
      %v1107 = vadd.f32 %v963, %v1106
      %v1108 = vpop.f32.mrb[0].mxu0
      %1109 = vdwg.mxu0
      %v1110 = vld [vmem:[#allocation2] sm:$0xff]
      %v1111 = vld [vmem:[#allocation2 + $0x8] sm:$0xff]
      %v1112 = vld [vmem:[#allocation2 + $0x10] sm:$0xff]
      %v1113 = vld [vmem:[#allocation2 + $0x18] sm:$0xff]
      %1118 = vrot.lane.b32.xlu0 %v1110, 52
      %v1119 = vpop.permute.xlu0 %1118
      %1120 = vrot.lane.b32.xlu0 %v1111, 52
      %v1121 = vpop.permute.xlu0 %1120
      %1122 = vrot.lane.b32.xlu0 %v1112, 52
      %v1123 = vpop.permute.xlu0 %1122
      %1124 = vrot.lane.b32.xlu0 %v1113, 52
      %v1125 = vpop.permute.xlu0 %1124
      %vm1126 = vcmask 424960
      %v1127 = vsel %vm1126, %v1119, %v1121
      %v1128 = vsel %vm1126, %v1121, %v1123
      %v1129 = vsel %vm1126, %v1123, %v1125
      %1133 = vst [vmem:[#allocation4] sm:$0xff] %v1127
      %1134 = vst [vmem:[#allocation4 + $0x8] sm:$0xff] %v1128
      %1135 = vst [vmem:[#allocation4 + $0x10] sm:$0xff] %v1129
      %v1136 = vld [vmem:[#allocation2] sm:$0xff]
      %v1137 = vld [vmem:[#allocation2 + $0x8] sm:$0xff]
      %v1138 = vld [vmem:[#allocation2 + $0x10] sm:$0xff]
      %v1139 = vld [vmem:[#allocation2 + $0x18] sm:$0xff]
      %1144 = vrot.lane.b32.xlu0 %v1136, 51
      %v1145 = vpop.permute.xlu0 %1144
      %1146 = vrot.lane.b32.xlu0 %v1137, 51
      %v1147 = vpop.permute.xlu0 %1146
      %1148 = vrot.lane.b32.xlu0 %v1138, 51
      %v1149 = vpop.permute.xlu0 %1148
      %1150 = vrot.lane.b32.xlu0 %v1139, 51
      %v1151 = vpop.permute.xlu0 %1150
      %vm1152 = vcmask 416768
      %v1153 = vsel %vm1152, %v1145, %v1147
      %v1154 = vsel %vm1152, %v1147, %v1149
      %v1155 = vsel %vm1152, %v1149, %v1151
      %1159 = vst [vmem:[#allocation4 + $0x18] sm:$0xff] %v1153
      %1160 = vst [vmem:[#allocation4 + $0x20] sm:$0xff] %v1154
      %1161 = vst [vmem:[#allocation4 + $0x28] sm:$0xff] %v1155
      %v1162 = vld [vmem:[#allocation2] sm:$0xff]
      %v1163 = vld [vmem:[#allocation2 + $0x8] sm:$0xff]
      %v1164 = vld [vmem:[#allocation2 + $0x10] sm:$0xff]
      %v1165 = vld [vmem:[#allocation2 + $0x18] sm:$0xff]
      %1170 = vrot.lane.b32.xlu0 %v1162, 50
      %v1171 = vpop.permute.xlu0 %1170
      %1172 = vrot.lane.b32.xlu0 %v1163, 50
      %v1173 = vpop.permute.xlu0 %1172
      %1174 = vrot.lane.b32.xlu0 %v1164, 50
      %v1175 = vpop.permute.xlu0 %1174
      %1176 = vrot.lane.b32.xlu0 %v1165, 50
      %v1177 = vpop.permute.xlu0 %1176
      %vm1178 = vcmask 408576
      %v1179 = vsel %vm1178, %v1171, %v1173
      %v1180 = vsel %vm1178, %v1173, %v1175
      %v1181 = vsel %vm1178, %v1175, %v1177
      %1185 = vst [vmem:[#allocation4 + $0x30] sm:$0xff] %v1179
      %1186 = vst [vmem:[#allocation4 + $0x38] sm:$0xff] %v1180
      %1187 = vst [vmem:[#allocation4 + $0x40] sm:$0xff] %v1181
      %v1188 = vld [vmem:[#allocation2] sm:$0xff]
      %v1189 = vld [vmem:[#allocation2 + $0x8] sm:$0xff]
      %v1190 = vld [vmem:[#allocation2 + $0x10] sm:$0xff]
      %v1191 = vld [vmem:[#allocation2 + $0x18] sm:$0xff]
      %1196 = vrot.lane.b32.xlu0 %v1188, 49
      %v1197 = vpop.permute.xlu0 %1196
      %1198 = vrot.lane.b32.xlu0 %v1189, 49
      %v1199 = vpop.permute.xlu0 %1198
      %1200 = vrot.lane.b32.xlu0 %v1190, 49
      %v1201 = vpop.permute.xlu0 %1200
      %1202 = vrot.lane.b32.xlu0 %v1191, 49
      %v1203 = vpop.permute.xlu0 %1202
      %vm1204 = vcmask 400384
      %v1205 = vsel %vm1204, %v1197, %v1199
      %v1206 = vsel %vm1204, %v1199, %v1201
      %v1207 = vsel %vm1204, %v1201, %v1203
      %1211 = vst [vmem:[#allocation4 + $0x48] sm:$0xff] %v1205
      %1212 = vst [vmem:[#allocation4 + $0x50] sm:$0xff] %v1206
      %1213 = vst [vmem:[#allocation4 + $0x58] sm:$0xff] %v1207
      %v1214 = vld [vmem:[#allocation2] sm:$0xff]
      %v1215 = vld [vmem:[#allocation2 + $0x8] sm:$0xff]
      %v1216 = vld [vmem:[#allocation2 + $0x10] sm:$0xff]
      %v1217 = vld [vmem:[#allocation2 + $0x18] sm:$0xff]
      %1222 = vrot.lane.b32.xlu0 %v1214, 48
      %v1223 = vpop.permute.xlu0 %1222
      %1224 = vrot.lane.b32.xlu0 %v1215, 48
      %v1225 = vpop.permute.xlu0 %1224
      %1226 = vrot.lane.b32.xlu0 %v1216, 48
      %v1227 = vpop.permute.xlu0 %1226
      %1228 = vrot.lane.b32.xlu0 %v1217, 48
      %v1229 = vpop.permute.xlu0 %1228
      %vm1230 = vcmask 392192
      %v1231 = vsel %vm1230, %v1223, %v1225
      %v1232 = vsel %vm1230, %v1225, %v1227
      %v1233 = vsel %vm1230, %v1227, %v1229
      %1237 = vst [vmem:[#allocation4 + $0x60] sm:$0xff] %v1231
      %1238 = vst [vmem:[#allocation4 + $0x68] sm:$0xff] %v1232
      %1239 = vst [vmem:[#allocation4 + $0x70] sm:$0xff] %v1233
      %v1240 = vld [vmem:[#allocation2] sm:$0xff]
      %v1241 = vld [vmem:[#allocation2 + $0x8] sm:$0xff]
      %v1242 = vld [vmem:[#allocation2 + $0x10] sm:$0xff]
      %v1243 = vld [vmem:[#allocation2 + $0x18] sm:$0xff]
      %1248 = vrot.lane.b32.xlu0 %v1240, 47
      %v1249 = vpop.permute.xlu0 %1248
      %1250 = vrot.lane.b32.xlu0 %v1241, 47
      %v1251 = vpop.permute.xlu0 %1250
      %1252 = vrot.lane.b32.xlu0 %v1242, 47
      %v1253 = vpop.permute.xlu0 %1252
      %1254 = vrot.lane.b32.xlu0 %v1243, 47
      %v1255 = vpop.permute.xlu0 %1254
      %vm1256 = vcmask 384000
      %v1257 = vsel %vm1256, %v1249, %v1251
      %v1258 = vsel %vm1256, %v1251, %v1253
      %v1259 = vsel %vm1256, %v1253, %v1255
      %1263 = vst [vmem:[#allocation4 + $0x78] sm:$0xff] %v1257
      %1264 = vst [vmem:[#allocation4 + $0x80] sm:$0xff] %v1258
      %1265 = vst [vmem:[#allocation4 + $0x88] sm:$0xff] %v1259
      %v1266 = vld [vmem:[#allocation2] sm:$0xff]
      %v1267 = vld [vmem:[#allocation2 + $0x8] sm:$0xff]
      %v1268 = vld [vmem:[#allocation2 + $0x10] sm:$0xff]
      %v1269 = vld [vmem:[#allocation2 + $0x18] sm:$0xff]
      %1274 = vrot.lane.b32.xlu0 %v1266, 46
      %v1275 = vpop.permute.xlu0 %1274
      %1276 = vrot.lane.b32.xlu0 %v1267, 46
      %v1277 = vpop.permute.xlu0 %1276
      %1278 = vrot.lane.b32.xlu0 %v1268, 46
      %v1279 = vpop.permute.xlu0 %1278
      %1280 = vrot.lane.b32.xlu0 %v1269, 46
      %v1281 = vpop.permute.xlu0 %1280
      %vm1282 = vcmask 375808
      %v1283 = vsel %vm1282, %v1275, %v1277
      %v1284 = vsel %vm1282, %v1277, %v1279
      %v1285 = vsel %vm1282, %v1279, %v1281
      %1289 = vst [vmem:[#allocation4 + $0x90] sm:$0xff] %v1283
      %1290 = vst [vmem:[#allocation4 + $0x98] sm:$0xff] %v1284
      %1291 = vst [vmem:[#allocation4 + $0xa0] sm:$0xff] %v1285
      %v1292 = vld [vmem:[#allocation2] sm:$0xff]
      %v1293 = vld [vmem:[#allocation2 + $0x8] sm:$0xff]
      %v1294 = vld [vmem:[#allocation2 + $0x10] sm:$0xff]
      %v1295 = vld [vmem:[#allocation2 + $0x18] sm:$0xff]
      %1300 = vrot.lane.b32.xlu0 %v1292, 45
      %v1301 = vpop.permute.xlu0 %1300
      %1302 = vrot.lane.b32.xlu0 %v1293, 45
      %v1303 = vpop.permute.xlu0 %1302
      %1304 = vrot.lane.b32.xlu0 %v1294, 45
      %v1305 = vpop.permute.xlu0 %1304
      %1306 = vrot.lane.b32.xlu0 %v1295, 45
      %v1307 = vpop.permute.xlu0 %1306
      %vm1308 = vcmask 367616
      %v1309 = vsel %vm1308, %v1301, %v1303
      %v1310 = vsel %vm1308, %v1303, %v1305
      %v1311 = vsel %vm1308, %v1305, %v1307
      %1315 = vst [vmem:[#allocation4 + $0xa8] sm:$0xff] %v1309
      %1316 = vst [vmem:[#allocation4 + $0xb0] sm:$0xff] %v1310
      %1317 = vst [vmem:[#allocation4 + $0xb8] sm:$0xff] %v1311
      %v1318 = vld [vmem:[#allocation2] sm:$0xff]
      %v1319 = vld [vmem:[#allocation2 + $0x8] sm:$0xff]
      %v1320 = vld [vmem:[#allocation2 + $0x10] sm:$0xff]
      %v1321 = vld [vmem:[#allocation2 + $0x18] sm:$0xff]
      %1326 = vrot.lane.b32.xlu0 %v1318, 44
      %v1327 = vpop.permute.xlu0 %1326
      %1328 = vrot.lane.b32.xlu0 %v1319, 44
      %v1329 = vpop.permute.xlu0 %1328
      %1330 = vrot.lane.b32.xlu0 %v1320, 44
      %v1331 = vpop.permute.xlu0 %1330
      %1332 = vrot.lane.b32.xlu0 %v1321, 44
      %v1333 = vpop.permute.xlu0 %1332
      %vm1334 = vcmask 359424
      %v1335 = vsel %vm1334, %v1327, %v1329
      %v1336 = vsel %vm1334, %v1329, %v1331
      %v1337 = vsel %vm1334, %v1331, %v1333
      %1341 = vst [vmem:[#allocation4 + $0xc0] sm:$0xff] %v1335
      %1342 = vst [vmem:[#allocation4 + $0xc8] sm:$0xff] %v1336
      %1343 = vst [vmem:[#allocation4 + $0xd0] sm:$0xff] %v1337
      %v1344 = vld [vmem:[%s266 + $0x10] sm:$0xff]
      %v1345 = vld [vmem:[#allocation4] sm:$0xff]
      %v1346 = vld [vmem:[#allocation4 + $0x8] sm:$0xff]
      %v1347 = vld [vmem:[#allocation4 + $0x10] sm:$0xff]
      %v1348 = vld [vmem:[#allocation4 + $0x18] sm:$0xff]
      %v1349 = vld [vmem:[#allocation4 + $0x20] sm:$0xff]
      %v1350 = vld [vmem:[#allocation4 + $0x28] sm:$0xff]
      %v1351 = vld [vmem:[#allocation4 + $0x30] sm:$0xff]
      %v1352 = vld [vmem:[#allocation4 + $0x38] sm:$0xff]
      %v1353 = vld [vmem:[#allocation4 + $0x40] sm:$0xff]
      %v1354 = vld [vmem:[#allocation4 + $0x48] sm:$0xff]
      %v1355 = vld [vmem:[#allocation4 + $0x50] sm:$0xff]
      %v1356 = vld [vmem:[#allocation4 + $0x58] sm:$0xff]
      %v1357 = vld [vmem:[#allocation4 + $0x60] sm:$0xff]
      %v1358 = vld [vmem:[#allocation4 + $0x68] sm:$0xff]
      %v1359 = vld [vmem:[#allocation4 + $0x70] sm:$0xff]
      %v1360 = vld [vmem:[#allocation4 + $0x78] sm:$0xff]
      %v1361 = vld [vmem:[#allocation4 + $0x80] sm:$0xff]
      %v1362 = vld [vmem:[#allocation4 + $0x88] sm:$0xff]
      %v1363 = vld [vmem:[#allocation4 + $0x90] sm:$0xff]
      %v1364 = vld [vmem:[#allocation4 + $0x98] sm:$0xff]
      %v1365 = vld [vmem:[#allocation4 + $0xa0] sm:$0xff]
      %v1366 = vld [vmem:[#allocation4 + $0xa8] sm:$0xff]
      %v1367 = vld [vmem:[#allocation4 + $0xb0] sm:$0xff]
      %v1368 = vld [vmem:[#allocation4 + $0xb8] sm:$0xff]
      %v1369 = vld [vmem:[#allocation4 + $0xc0] sm:$0xff]
      %v1370 = vld [vmem:[#allocation4 + $0xc8] sm:$0xff]
      %v1371 = vld [vmem:[#allocation4 + $0xd0] sm:$0xff]
      %v1373 = vsel %vm680, %v1344, 0
      %1375 = vmatprep.subr.mxu0 %v1346
      %1376 = vmatpush1.msra.mxu0 %v1345
      %1377 = vmatprep.subr.mxu0 %v1349
      %1378 = vmatpush1.msra.mxu0 %v1348
      %1379 = vmatprep.subr.mxu0 %v1352
      %1380 = vmatpush1.msra.mxu0 %v1351
      %1381 = vmatprep.subr.mxu0 %v1355
      %1382 = vmatpush1.msra.mxu0 %v1354
      %1383 = vmatprep.subr.mxu0 %v1358
      %1384 = vmatpush1.msra.mxu0 %v1357
      %1385 = vmatprep.subr.mxu0 %v1361
      %1386 = vmatpush1.msra.mxu0 %v1360
      %1387 = vmatprep.subr.mxu0 %v1364
      %1388 = vmatpush1.msra.mxu0 %v1363
      %1389 = vmatprep.subr.mxu0 %v1367
      %1390 = vmatpush1.msra.mxu0 %v1366
      %1391 = vmatprep.subr.mxu0 %v1370
      %1392 = vmatpush1.msra.mxu0 %v1369
      %1393 = vmatprep.subr.mxu0 0.0
      %1394 = vmatpush1.msra.mxu0 0.0
      %1395 = vmatprep.subr.mxu0 0.0
      %1396 = vmatpush1.msra.mxu0 0.0
      %1397 = vmatprep.subr.mxu0 0.0
      %1398 = vmatpush1.msra.mxu0 0.0
      %1399 = vmatprep.subr.mxu0 0.0
      %1400 = vmatpush1.msra.mxu0 0.0
      %1401 = vmatprep.subr.mxu0 0.0
      %1402 = vmatpush1.msra.mxu0 0.0
      %1403 = vmatprep.subr.mxu0 0.0
      %1404 = vmatpush1.msra.mxu0 0.0
      %1405 = vmatprep.subr.mxu0 0.0
      %1406 = vmatpush1.msra.mxu0 0.0
      %1407 = vmatprep.subr.mxu0 0.0
      %1408 = vmatpush1.msra.mxu0 0.0
      %1409 = vmatprep.subr.mxu0 0.0
      %1410 = vmatpush1.msra.mxu0 0.0
      %1411 = vmatprep.subr.mxu0 0.0
      %1412 = vmatpush1.msra.mxu0 0.0
      %1413 = vmatprep.subr.mxu0 0.0
      %1414 = vmatpush1.msra.mxu0 0.0
      %1415 = vmatprep.subr.mxu0 0.0
      %1416 = vmatpush1.msra.mxu0 0.0
      %1417 = vmatprep.subr.mxu0 0.0
      %1418 = vmatpush1.msra.mxu0 0.0
      %1419 = vmatprep.subr.mxu0 0.0
      %1420 = vmatpush1.msra.mxu0 0.0
      %1421 = vmatprep.subr.mxu0 0.0
      %1422 = vmatpush1.msra.mxu0 0.0
      %1423 = vmatprep.subr.mxu0 0.0
      %1424 = vmatpush1.msra.mxu0 0.0
      %1425 = vmatprep.subr.mxu0 0.0
      %1426 = vmatpush1.msra.mxu0 0.0
      %1427 = vmatprep.subr.mxu0 0.0
      %1428 = vmatpush1.msra.mxu0 0.0
      %1429 = vmatprep.subr.mxu0 0.0
      %1430 = vmatpush1.msra.mxu0 0.0
      %1431 = vmatprep.subr.mxu0 0.0
      %1432 = vmatpush1.msra.mxu0 0.0
      %1433 = vmatprep.subr.mxu0 0.0
      %1434 = vmatpush1.msra.mxu0 0.0
      %1435 = vmatprep.subr.mxu0 0.0
      %1436 = vmatpush1.msra.mxu0 0.0
      %1437 = vmatprep.subr.mxu0 0.0
      %1438 = vmatpush1.msra.mxu0 0.0
      %1439 = vmatprep.mubr.f32.mxu0 0.0
      %1440 = vmatmul.mubr.f32.gmra.mrb[0].mxu0 %v1373
      %v1441 = vpop.f32.mrb[0].mxu0
      %v1442 = vadd.f32 0.0, %v1441
      %v1443 = vpop.f32.mrb[0].mxu0
      %v1444 = vadd.f32 0.0, %v1443
      %1445 = vdwg.mxu0
      %1446 = vmatprep.subr.mxu0 0.0
      %1447 = vmatpush1.msra.mxu0 %v1347
      %1448 = vmatprep.subr.mxu0 0.0
      %1449 = vmatpush1.msra.mxu0 %v1350
      %1450 = vmatprep.subr.mxu0 0.0
      %1451 = vmatpush1.msra.mxu0 %v1353
      %1452 = vmatprep.subr.mxu0 0.0
      %1453 = vmatpush1.msra.mxu0 %v1356
      %1454 = vmatprep.subr.mxu0 0.0
      %1455 = vmatpush1.msra.mxu0 %v1359
      %1456 = vmatprep.subr.mxu0 0.0
      %1457 = vmatpush1.msra.mxu0 %v1362
      %1458 = vmatprep.subr.mxu0 0.0
      %1459 = vmatpush1.msra.mxu0 %v1365
      %1460 = vmatprep.subr.mxu0 0.0
      %1461 = vmatpush1.msra.mxu0 %v1368
      %1462 = vmatprep.subr.mxu0 0.0
      %1463 = vmatpush1.msra.mxu0 %v1371
      %1464 = vmatprep.subr.mxu0 0.0
      %1465 = vmatpush1.msra.mxu0 0.0
      %1466 = vmatprep.subr.mxu0 0.0
      %1467 = vmatpush1.msra.mxu0 0.0
      %1468 = vmatprep.subr.mxu0 0.0
      %1469 = vmatpush1.msra.mxu0 0.0
      %1470 = vmatprep.subr.mxu0 0.0
      %1471 = vmatpush1.msra.mxu0 0.0
      %1472 = vmatprep.subr.mxu0 0.0
      %1473 = vmatpush1.msra.mxu0 0.0
      %1474 = vmatprep.subr.mxu0 0.0
      %1475 = vmatpush1.msra.mxu0 0.0
      %1476 = vmatprep.subr.mxu0 0.0
      %1477 = vmatpush1.msra.mxu0 0.0
      %1478 = vmatprep.subr.mxu0 0.0
      %1479 = vmatpush1.msra.mxu0 0.0
      %1480 = vmatprep.subr.mxu0 0.0
      %1481 = vmatpush1.msra.mxu0 0.0
      %1482 = vmatprep.subr.mxu0 0.0
      %1483 = vmatpush1.msra.mxu0 0.0
      %1484 = vmatprep.subr.mxu0 0.0
      %1485 = vmatpush1.msra.mxu0 0.0
      %1486 = vmatprep.subr.mxu0 0.0
      %1487 = vmatpush1.msra.mxu0 0.0
      %1488 = vmatprep.subr.mxu0 0.0
      %1489 = vmatpush1.msra.mxu0 0.0
      %1490 = vmatprep.subr.mxu0 0.0
      %1491 = vmatpush1.msra.mxu0 0.0
      %1492 = vmatprep.subr.mxu0 0.0
      %1493 = vmatpush1.msra.mxu0 0.0
      %1494 = vmatprep.subr.mxu0 0.0
      %1495 = vmatpush1.msra.mxu0 0.0
      %1496 = vmatprep.subr.mxu0 0.0
      %1497 = vmatpush1.msra.mxu0 0.0
      %1498 = vmatprep.subr.mxu0 0.0
      %1499 = vmatpush1.msra.mxu0 0.0
      %1500 = vmatprep.subr.mxu0 0.0
      %1501 = vmatpush1.msra.mxu0 0.0
      %1502 = vmatprep.subr.mxu0 0.0
      %1503 = vmatpush1.msra.mxu0 0.0
      %1504 = vmatprep.subr.mxu0 0.0
      %1505 = vmatpush1.msra.mxu0 0.0
      %1506 = vmatprep.subr.mxu0 0.0
      %1507 = vmatpush1.msra.mxu0 0.0
      %1508 = vmatprep.subr.mxu0 0.0
      %1509 = vmatpush1.msra.mxu0 0.0
      %1510 = vmatprep.mubr.f32.mxu0 0.0
      %1511 = vmatmul.mubr.f32.gmra.mrb[0].mxu0 %v1373
      %v1512 = vpop.f32.mrb[0].mxu0
      %v1513 = vadd.f32 0.0, %v1512
      %v1514 = vpop.f32.mrb[0].mxu0
      %1515 = vdwg.mxu0
      %v1516 = vadd.f32 %v1036, %v1442
      %v1517 = vadd.f32 %v1038, %v1444
      %v1518 = vadd.f32 %v1107, %v1513
      %v1519 = vld [vmem:[#allocation2] sm:$0xff]
      %v1520 = vld [vmem:[#allocation2 + $0x8] sm:$0xff]
      %v1521 = vld [vmem:[#allocation2 + $0x10] sm:$0xff]
      %v1522 = vld [vmem:[#allocation2 + $0x18] sm:$0xff]
      %1527 = vrot.lane.b32.xlu0 %v1519, 28
      %v1528 = vpop.permute.xlu0 %1527
      %1529 = vrot.lane.b32.xlu0 %v1520, 28
      %v1530 = vpop.permute.xlu0 %1529
      %1531 = vrot.lane.b32.xlu0 %v1521, 28
      %v1532 = vpop.permute.xlu0 %1531
      %1533 = vrot.lane.b32.xlu0 %v1522, 28
      %v1534 = vpop.permute.xlu0 %1533
      %vm1535 = vcmask 228352
      %v1536 = vsel %vm1535, %v1528, %v1530
      %v1537 = vsel %vm1535, %v1530, %v1532
      %v1538 = vsel %vm1535, %v1532, %v1534
      %1542 = vst [vmem:[#allocation4 + $0xd8] sm:$0xff] %v1536
      %1543 = vst [vmem:[#allocation4 + $0xe0] sm:$0xff] %v1537
      %1544 = vst [vmem:[#allocation4 + $0xe8] sm:$0xff] %v1538
      %v1545 = vld [vmem:[#allocation2] sm:$0xff]
      %v1546 = vld [vmem:[#allocation2 + $0x8] sm:$0xff]
      %v1547 = vld [vmem:[#allocation2 + $0x10] sm:$0xff]
      %v1548 = vld [vmem:[#allocation2 + $0x18] sm:$0xff]
      %1553 = vrot.lane.b32.xlu0 %v1545, 27
      %v1554 = vpop.permute.xlu0 %1553
      %1555 = vrot.lane.b32.xlu0 %v1546, 27
      %v1556 = vpop.permute.xlu0 %1555
      %1557 = vrot.lane.b32.xlu0 %v1547, 27
      %v1558 = vpop.permute.xlu0 %1557
      %1559 = vrot.lane.b32.xlu0 %v1548, 27
      %v1560 = vpop.permute.xlu0 %1559
      %vm1561 = vcmask 220160
      %v1562 = vsel %vm1561, %v1554, %v1556
      %v1563 = vsel %vm1561, %v1556, %v1558
      %v1564 = vsel %vm1561, %v1558, %v1560
      %1568 = vst [vmem:[#allocation4 + $0xf0] sm:$0xff] %v1562
      %1569 = vst [vmem:[#allocation4 + $0xf8] sm:$0xff] %v1563
      %1570 = vst [vmem:[#allocation4 + $0x100] sm:$0xff] %v1564
      %v1571 = vld [vmem:[#allocation2] sm:$0xff]
      %v1572 = vld [vmem:[#allocation2 + $0x8] sm:$0xff]
      %v1573 = vld [vmem:[#allocation2 + $0x10] sm:$0xff]
      %v1574 = vld [vmem:[#allocation2 + $0x18] sm:$0xff]
      %1579 = vrot.lane.b32.xlu0 %v1571, 26
      %v1580 = vpop.permute.xlu0 %1579
      %1581 = vrot.lane.b32.xlu0 %v1572, 26
      %v1582 = vpop.permute.xlu0 %1581
      %1583 = vrot.lane.b32.xlu0 %v1573, 26
      %v1584 = vpop.permute.xlu0 %1583
      %1585 = vrot.lane.b32.xlu0 %v1574, 26
      %v1586 = vpop.permute.xlu0 %1585
      %vm1587 = vcmask 211968
      %v1588 = vsel %vm1587, %v1580, %v1582
      %v1589 = vsel %vm1587, %v1582, %v1584
      %v1590 = vsel %vm1587, %v1584, %v1586
      %1594 = vst [vmem:[#allocation4 + $0x108] sm:$0xff] %v1588
      %1595 = vst [vmem:[#allocation4 + $0x110] sm:$0xff] %v1589
      %1596 = vst [vmem:[#allocation4 + $0x118] sm:$0xff] %v1590
      %v1597 = vld [vmem:[#allocation2] sm:$0xff]
      %v1598 = vld [vmem:[#allocation2 + $0x8] sm:$0xff]
      %v1599 = vld [vmem:[#allocation2 + $0x10] sm:$0xff]
      %v1600 = vld [vmem:[#allocation2 + $0x18] sm:$0xff]
      %1605 = vrot.lane.b32.xlu0 %v1597, 25
      %v1606 = vpop.permute.xlu0 %1605
      %1607 = vrot.lane.b32.xlu0 %v1598, 25
      %v1608 = vpop.permute.xlu0 %1607
      %1609 = vrot.lane.b32.xlu0 %v1599, 25
      %v1610 = vpop.permute.xlu0 %1609
      %1611 = vrot.lane.b32.xlu0 %v1600, 25
      %v1612 = vpop.permute.xlu0 %1611
      %vm1613 = vcmask 203776
      %v1614 = vsel %vm1613, %v1606, %v1608
      %v1615 = vsel %vm1613, %v1608, %v1610
      %v1616 = vsel %vm1613, %v1610, %v1612
      %1620 = vst [vmem:[#allocation4 + $0x120] sm:$0xff] %v1614
      %1621 = vst [vmem:[#allocation4 + $0x128] sm:$0xff] %v1615
      %1622 = vst [vmem:[#allocation4 + $0x130] sm:$0xff] %v1616
      %v1623 = vld [vmem:[#allocation2] sm:$0xff]
      %v1624 = vld [vmem:[#allocation2 + $0x8] sm:$0xff]
      %v1625 = vld [vmem:[#allocation2 + $0x10] sm:$0xff]
      %v1626 = vld [vmem:[#allocation2 + $0x18] sm:$0xff]
      %1631 = vrot.lane.b32.xlu0 %v1623, 24
      %v1632 = vpop.permute.xlu0 %1631
      %1633 = vrot.lane.b32.xlu0 %v1624, 24
      %v1634 = vpop.permute.xlu0 %1633
      %1635 = vrot.lane.b32.xlu0 %v1625, 24
      %v1636 = vpop.permute.xlu0 %1635
      %1637 = vrot.lane.b32.xlu0 %v1626, 24
      %v1638 = vpop.permute.xlu0 %1637
      %vm1639 = vcmask 195584
      %v1640 = vsel %vm1639, %v1632, %v1634
      %v1641 = vsel %vm1639, %v1634, %v1636
      %v1642 = vsel %vm1639, %v1636, %v1638
      %1646 = vst [vmem:[#allocation4 + $0x138] sm:$0xff] %v1640
      %1647 = vst [vmem:[#allocation4 + $0x140] sm:$0xff] %v1641
      %1648 = vst [vmem:[#allocation4 + $0x148] sm:$0xff] %v1642
      %v1649 = vld [vmem:[#allocation2] sm:$0xff]
      %v1650 = vld [vmem:[#allocation2 + $0x8] sm:$0xff]
      %v1651 = vld [vmem:[#allocation2 + $0x10] sm:$0xff]
      %v1652 = vld [vmem:[#allocation2 + $0x18] sm:$0xff]
      %1657 = vrot.lane.b32.xlu0 %v1649, 23
      %v1658 = vpop.permute.xlu0 %1657
      %1659 = vrot.lane.b32.xlu0 %v1650, 23
      %v1660 = vpop.permute.xlu0 %1659
      %1661 = vrot.lane.b32.xlu0 %v1651, 23
      %v1662 = vpop.permute.xlu0 %1661
      %1663 = vrot.lane.b32.xlu0 %v1652, 23
      %v1664 = vpop.permute.xlu0 %1663
      %vm1665 = vcmask 187392
      %v1666 = vsel %vm1665, %v1658, %v1660
      %v1667 = vsel %vm1665, %v1660, %v1662
      %v1668 = vsel %vm1665, %v1662, %v1664
      %1672 = vst [vmem:[#allocation4 + $0x150] sm:$0xff] %v1666
      %1673 = vst [vmem:[#allocation4 + $0x158] sm:$0xff] %v1667
      %1674 = vst [vmem:[#allocation4 + $0x160] sm:$0xff] %v1668
      %v1675 = vld [vmem:[#allocation2] sm:$0xff]
      %v1676 = vld [vmem:[#allocation2 + $0x8] sm:$0xff]
      %v1677 = vld [vmem:[#allocation2 + $0x10] sm:$0xff]
      %v1678 = vld [vmem:[#allocation2 + $0x18] sm:$0xff]
      %1683 = vrot.lane.b32.xlu0 %v1675, 22
      %v1684 = vpop.permute.xlu0 %1683
      %1685 = vrot.lane.b32.xlu0 %v1676, 22
      %v1686 = vpop.permute.xlu0 %1685
      %1687 = vrot.lane.b32.xlu0 %v1677, 22
      %v1688 = vpop.permute.xlu0 %1687
      %1689 = vrot.lane.b32.xlu0 %v1678, 22
      %v1690 = vpop.permute.xlu0 %1689
      %vm1691 = vcmask 179200
      %v1692 = vsel %vm1691, %v1684, %v1686
      %v1693 = vsel %vm1691, %v1686, %v1688
      %v1694 = vsel %vm1691, %v1688, %v1690
      %1698 = vst [vmem:[#allocation4 + $0x168] sm:$0xff] %v1692
      %1699 = vst [vmem:[#allocation4 + $0x170] sm:$0xff] %v1693
      %1700 = vst [vmem:[#allocation4 + $0x178] sm:$0xff] %v1694
      %v1701 = vld [vmem:[#allocation2] sm:$0xff]
      %v1702 = vld [vmem:[#allocation2 + $0x8] sm:$0xff]
      %v1703 = vld [vmem:[#allocation2 + $0x10] sm:$0xff]
      %v1704 = vld [vmem:[#allocation2 + $0x18] sm:$0xff]
      %1709 = vrot.lane.b32.xlu0 %v1701, 21
      %v1710 = vpop.permute.xlu0 %1709
      %1711 = vrot.lane.b32.xlu0 %v1702, 21
      %v1712 = vpop.permute.xlu0 %1711
      %1713 = vrot.lane.b32.xlu0 %v1703, 21
      %v1714 = vpop.permute.xlu0 %1713
      %1715 = vrot.lane.b32.xlu0 %v1704, 21
      %v1716 = vpop.permute.xlu0 %1715
      %vm1717 = vcmask 171008
      %v1718 = vsel %vm1717, %v1710, %v1712
      %v1719 = vsel %vm1717, %v1712, %v1714
      %v1720 = vsel %vm1717, %v1714, %v1716
      %1724 = vst [vmem:[#allocation4 + $0x180] sm:$0xff] %v1718
      %1725 = vst [vmem:[#allocation4 + $0x188] sm:$0xff] %v1719
      %1726 = vst [vmem:[#allocation4 + $0x190] sm:$0xff] %v1720
      %v1727 = vld [vmem:[#allocation2] sm:$0xff]
      %v1728 = vld [vmem:[#allocation2 + $0x8] sm:$0xff]
      %v1729 = vld [vmem:[#allocation2 + $0x10] sm:$0xff]
      %v1730 = vld [vmem:[#allocation2 + $0x18] sm:$0xff]
      %1735 = vrot.lane.b32.xlu0 %v1727, 20
      %v1736 = vpop.permute.xlu0 %1735
      %1737 = vrot.lane.b32.xlu0 %v1728, 20
      %v1738 = vpop.permute.xlu0 %1737
      %1739 = vrot.lane.b32.xlu0 %v1729, 20
      %v1740 = vpop.permute.xlu0 %1739
      %1741 = vrot.lane.b32.xlu0 %v1730, 20
      %v1742 = vpop.permute.xlu0 %1741
      %vm1743 = vcmask 162816
      %v1744 = vsel %vm1743, %v1736, %v1738
      %v1745 = vsel %vm1743, %v1738, %v1740
      %v1746 = vsel %vm1743, %v1740, %v1742
      %1750 = vst [vmem:[#allocation4 + $0x198] sm:$0xff] %v1744
      %1751 = vst [vmem:[#allocation4 + $0x1a0] sm:$0xff] %v1745
      %1752 = vst [vmem:[#allocation4 + $0x1a8] sm:$0xff] %v1746
      %v1753 = vld [vmem:[%s266 + $0x18] sm:$0xff]
      %v1754 = vld [vmem:[#allocation4 + $0xd8] sm:$0xff]
      %v1755 = vld [vmem:[#allocation4 + $0xe0] sm:$0xff]
      %v1756 = vld [vmem:[#allocation4 + $0xe8] sm:$0xff]
      %v1757 = vld [vmem:[#allocation4 + $0xf0] sm:$0xff]
      %v1758 = vld [vmem:[#allocation4 + $0xf8] sm:$0xff]
      %v1759 = vld [vmem:[#allocation4 + $0x100] sm:$0xff]
      %v1760 = vld [vmem:[#allocation4 + $0x108] sm:$0xff]
      %v1761 = vld [vmem:[#allocation4 + $0x110] sm:$0xff]
      %v1762 = vld [vmem:[#allocation4 + $0x118] sm:$0xff]
      %v1763 = vld [vmem:[#allocation4 + $0x120] sm:$0xff]
      %v1764 = vld [vmem:[#allocation4 + $0x128] sm:$0xff]
      %v1765 = vld [vmem:[#allocation4 + $0x130] sm:$0xff]
      %v1766 = vld [vmem:[#allocation4 + $0x138] sm:$0xff]
      %v1767 = vld [vmem:[#allocation4 + $0x140] sm:$0xff]
      %v1768 = vld [vmem:[#allocation4 + $0x148] sm:$0xff]
      %v1769 = vld [vmem:[#allocation4 + $0x150] sm:$0xff]
      %v1770 = vld [vmem:[#allocation4 + $0x158] sm:$0xff]
      %v1771 = vld [vmem:[#allocation4 + $0x160] sm:$0xff]
      %v1772 = vld [vmem:[#allocation4 + $0x168] sm:$0xff]
      %v1773 = vld [vmem:[#allocation4 + $0x170] sm:$0xff]
      %v1774 = vld [vmem:[#allocation4 + $0x178] sm:$0xff]
      %v1775 = vld [vmem:[#allocation4 + $0x180] sm:$0xff]
      %v1776 = vld [vmem:[#allocation4 + $0x188] sm:$0xff]
      %v1777 = vld [vmem:[#allocation4 + $0x190] sm:$0xff]
      %v1778 = vld [vmem:[#allocation4 + $0x198] sm:$0xff]
      %v1779 = vld [vmem:[#allocation4 + $0x1a0] sm:$0xff]
      %v1780 = vld [vmem:[#allocation4 + $0x1a8] sm:$0xff]
      %v1782 = vsel %vm680, %v1753, 0
      %1784 = vmatprep.subr.mxu0 %v1755
      %1785 = vmatpush1.msra.mxu0 %v1754
      %1786 = vmatprep.subr.mxu0 %v1758
      %1787 = vmatpush1.msra.mxu0 %v1757
      %1788 = vmatprep.subr.mxu0 %v1761
      %1789 = vmatpush1.msra.mxu0 %v1760
      %1790 = vmatprep.subr.mxu0 %v1764
      %1791 = vmatpush1.msra.mxu0 %v1763
      %1792 = vmatprep.subr.mxu0 %v1767
      %1793 = vmatpush1.msra.mxu0 %v1766
      %1794 = vmatprep.subr.mxu0 %v1770
      %1795 = vmatpush1.msra.mxu0 %v1769
      %1796 = vmatprep.subr.mxu0 %v1773
      %1797 = vmatpush1.msra.mxu0 %v1772
      %1798 = vmatprep.subr.mxu0 %v1776
      %1799 = vmatpush1.msra.mxu0 %v1775
      %1800 = vmatprep.subr.mxu0 %v1779
      %1801 = vmatpush1.msra.mxu0 %v1778
      %1802 = vmatprep.subr.mxu0 0.0
      %1803 = vmatpush1.msra.mxu0 0.0
      %1804 = vmatprep.subr.mxu0 0.0
      %1805 = vmatpush1.msra.mxu0 0.0
      %1806 = vmatprep.subr.mxu0 0.0
      %1807 = vmatpush1.msra.mxu0 0.0
      %1808 = vmatprep.subr.mxu0 0.0
      %1809 = vmatpush1.msra.mxu0 0.0
      %1810 = vmatprep.subr.mxu0 0.0
      %1811 = vmatpush1.msra.mxu0 0.0
      %1812 = vmatprep.subr.mxu0 0.0
      %1813 = vmatpush1.msra.mxu0 0.0
      %1814 = vmatprep.subr.mxu0 0.0
      %1815 = vmatpush1.msra.mxu0 0.0
      %1816 = vmatprep.subr.mxu0 0.0
      %1817 = vmatpush1.msra.mxu0 0.0
      %1818 = vmatprep.subr.mxu0 0.0
      %1819 = vmatpush1.msra.mxu0 0.0
      %1820 = vmatprep.subr.mxu0 0.0
      %1821 = vmatpush1.msra.mxu0 0.0
      %1822 = vmatprep.subr.mxu0 0.0
      %1823 = vmatpush1.msra.mxu0 0.0
      %1824 = vmatprep.subr.mxu0 0.0
      %1825 = vmatpush1.msra.mxu0 0.0
      %1826 = vmatprep.subr.mxu0 0.0
      %1827 = vmatpush1.msra.mxu0 0.0
      %1828 = vmatprep.subr.mxu0 0.0
      %1829 = vmatpush1.msra.mxu0 0.0
      %1830 = vmatprep.subr.mxu0 0.0
      %1831 = vmatpush1.msra.mxu0 0.0
      %1832 = vmatprep.subr.mxu0 0.0
      %1833 = vmatpush1.msra.mxu0 0.0
      %1834 = vmatprep.subr.mxu0 0.0
      %1835 = vmatpush1.msra.mxu0 0.0
      %1836 = vmatprep.subr.mxu0 0.0
      %1837 = vmatpush1.msra.mxu0 0.0
      %1838 = vmatprep.subr.mxu0 0.0
      %1839 = vmatpush1.msra.mxu0 0.0
      %1840 = vmatprep.subr.mxu0 0.0
      %1841 = vmatpush1.msra.mxu0 0.0
      %1842 = vmatprep.subr.mxu0 0.0
      %1843 = vmatpush1.msra.mxu0 0.0
      %1844 = vmatprep.subr.mxu0 0.0
      %1845 = vmatpush1.msra.mxu0 0.0
      %1846 = vmatprep.subr.mxu0 0.0
      %1847 = vmatpush1.msra.mxu0 0.0
      %1848 = vmatprep.mubr.f32.mxu0 0.0
      %1849 = vmatmul.mubr.f32.gmra.mrb[0].mxu0 %v1782
      %v1850 = vpop.f32.mrb[0].mxu0
      %v1851 = vadd.f32 0.0, %v1850
      %v1852 = vpop.f32.mrb[0].mxu0
      %v1853 = vadd.f32 0.0, %v1852
      %1854 = vdwg.mxu0
      %1855 = vmatprep.subr.mxu0 0.0
      %1856 = vmatpush1.msra.mxu0 %v1756
      %1857 = vmatprep.subr.mxu0 0.0
      %1858 = vmatpush1.msra.mxu0 %v1759
      %1859 = vmatprep.subr.mxu0 0.0
      %1860 = vmatpush1.msra.mxu0 %v1762
      %1861 = vmatprep.subr.mxu0 0.0
      %1862 = vmatpush1.msra.mxu0 %v1765
      %1863 = vmatprep.subr.mxu0 0.0
      %1864 = vmatpush1.msra.mxu0 %v1768
      %1865 = vmatprep.subr.mxu0 0.0
      %1866 = vmatpush1.msra.mxu0 %v1771
      %1867 = vmatprep.subr.mxu0 0.0
      %1868 = vmatpush1.msra.mxu0 %v1774
      %1869 = vmatprep.subr.mxu0 0.0
      %1870 = vmatpush1.msra.mxu0 %v1777
      %1871 = vmatprep.subr.mxu0 0.0
      %1872 = vmatpush1.msra.mxu0 %v1780
      %1873 = vmatprep.subr.mxu0 0.0
      %1874 = vmatpush1.msra.mxu0 0.0
      %1875 = vmatprep.subr.mxu0 0.0
      %1876 = vmatpush1.msra.mxu0 0.0
      %1877 = vmatprep.subr.mxu0 0.0
      %1878 = vmatpush1.msra.mxu0 0.0
      %1879 = vmatprep.subr.mxu0 0.0
      %1880 = vmatpush1.msra.mxu0 0.0
      %1881 = vmatprep.subr.mxu0 0.0
      %1882 = vmatpush1.msra.mxu0 0.0
      %1883 = vmatprep.subr.mxu0 0.0
      %1884 = vmatpush1.msra.mxu0 0.0
      %1885 = vmatprep.subr.mxu0 0.0
      %1886 = vmatpush1.msra.mxu0 0.0
      %1887 = vmatprep.subr.mxu0 0.0
      %1888 = vmatpush1.msra.mxu0 0.0
      %1889 = vmatprep.subr.mxu0 0.0
      %1890 = vmatpush1.msra.mxu0 0.0
      %1891 = vmatprep.subr.mxu0 0.0
      %1892 = vmatpush1.msra.mxu0 0.0
      %1893 = vmatprep.subr.mxu0 0.0
      %1894 = vmatpush1.msra.mxu0 0.0
      %1895 = vmatprep.subr.mxu0 0.0
      %1896 = vmatpush1.msra.mxu0 0.0
      %1897 = vmatprep.subr.mxu0 0.0
      %1898 = vmatpush1.msra.mxu0 0.0
      %1899 = vmatprep.subr.mxu0 0.0
      %1900 = vmatpush1.msra.mxu0 0.0
      %1901 = vmatprep.subr.mxu0 0.0
      %1902 = vmatpush1.msra.mxu0 0.0
      %1903 = vmatprep.subr.mxu0 0.0
      %1904 = vmatpush1.msra.mxu0 0.0
      %1905 = vmatprep.subr.mxu0 0.0
      %1906 = vmatpush1.msra.mxu0 0.0
      %1907 = vmatprep.subr.mxu0 0.0
      %1908 = vmatpush1.msra.mxu0 0.0
      %1909 = vmatprep.subr.mxu0 0.0
      %1910 = vmatpush1.msra.mxu0 0.0
      %1911 = vmatprep.subr.mxu0 0.0
      %1912 = vmatpush1.msra.mxu0 0.0
      %1913 = vmatprep.subr.mxu0 0.0
      %1914 = vmatpush1.msra.mxu0 0.0
      %1915 = vmatprep.subr.mxu0 0.0
      %1916 = vmatpush1.msra.mxu0 0.0
      %1917 = vmatprep.subr.mxu0 0.0
      %1918 = vmatpush1.msra.mxu0 0.0
      %1919 = vmatprep.mubr.f32.mxu0 0.0
      %1920 = vmatmul.mubr.f32.gmra.mrb[0].mxu0 %v1782
      %v1921 = vpop.f32.mrb[0].mxu0
      %v1922 = vadd.f32 0.0, %v1921
      %v1923 = vpop.f32.mrb[0].mxu0
      %1924 = vdwg.mxu0
      %v1925 = vadd.f32 %v1516, %v1851
      %v1926 = vadd.f32 %v1517, %v1853
      %v1927 = vadd.f32 %v1518, %v1922
      %v1928 = vld [vmem:[#allocation2] sm:$0xff]
      %v1929 = vld [vmem:[#allocation2 + $0x8] sm:$0xff]
      %v1930 = vld [vmem:[#allocation2 + $0x10] sm:$0xff]
      %v1931 = vld [vmem:[#allocation2 + $0x18] sm:$0xff]
      %1936 = vrot.lane.b32.xlu0 %v1928, 4
      %v1937 = vpop.permute.xlu0 %1936
      %1938 = vrot.lane.b32.xlu0 %v1929, 4
      %v1939 = vpop.permute.xlu0 %1938
      %1940 = vrot.lane.b32.xlu0 %v1930, 4
      %v1941 = vpop.permute.xlu0 %1940
      %1942 = vrot.lane.b32.xlu0 %v1931, 4
      %v1943 = vpop.permute.xlu0 %1942
      %vm1944 = vcmask 31744
      %v1945 = vsel %vm1944, %v1937, %v1939
      %v1946 = vsel %vm1944, %v1939, %v1941
      %v1947 = vsel %vm1944, %v1941, %v1943
      %1951 = vst [vmem:[#allocation4] sm:$0xff] %v1945
      %1952 = vst [vmem:[#allocation4 + $0x8] sm:$0xff] %v1946
      %1953 = vst [vmem:[#allocation4 + $0x10] sm:$0xff] %v1947
      %v1954 = vld [vmem:[#allocation2] sm:$0xff]
      %v1955 = vld [vmem:[#allocation2 + $0x8] sm:$0xff]
      %v1956 = vld [vmem:[#allocation2 + $0x10] sm:$0xff]
      %v1957 = vld [vmem:[#allocation2 + $0x18] sm:$0xff]
      %1962 = vrot.lane.b32.xlu0 %v1954, 3
      %v1963 = vpop.permute.xlu0 %1962
      %1964 = vrot.lane.b32.xlu0 %v1955, 3
      %v1965 = vpop.permute.xlu0 %1964
      %1966 = vrot.lane.b32.xlu0 %v1956, 3
      %v1967 = vpop.permute.xlu0 %1966
      %1968 = vrot.lane.b32.xlu0 %v1957, 3
      %v1969 = vpop.permute.xlu0 %1968
      %vm1970 = vcmask 23552
      %v1971 = vsel %vm1970, %v1963, %v1965
      %v1972 = vsel %vm1970, %v1965, %v1967
      %v1973 = vsel %vm1970, %v1967, %v1969
      %1977 = vst [vmem:[#allocation4 + $0x18] sm:$0xff] %v1971
      %1978 = vst [vmem:[#allocation4 + $0x20] sm:$0xff] %v1972
      %1979 = vst [vmem:[#allocation4 + $0x28] sm:$0xff] %v1973
      %v1980 = vld [vmem:[#allocation2] sm:$0xff]
      %v1981 = vld [vmem:[#allocation2 + $0x8] sm:$0xff]
      %v1982 = vld [vmem:[#allocation2 + $0x10] sm:$0xff]
      %v1983 = vld [vmem:[#allocation2 + $0x18] sm:$0xff]
      %1988 = vrot.lane.b32.xlu0 %v1980, 2
      %v1989 = vpop.permute.xlu0 %1988
      %1990 = vrot.lane.b32.xlu0 %v1981, 2
      %v1991 = vpop.permute.xlu0 %1990
      %1992 = vrot.lane.b32.xlu0 %v1982, 2
      %v1993 = vpop.permute.xlu0 %1992
      %1994 = vrot.lane.b32.xlu0 %v1983, 2
      %v1995 = vpop.permute.xlu0 %1994
      %vm1996 = vcmask 15360
      %v1997 = vsel %vm1996, %v1989, %v1991
      %v1998 = vsel %vm1996, %v1991, %v1993
      %v1999 = vsel %vm1996, %v1993, %v1995
      %2003 = vst [vmem:[#allocation4 + $0x30] sm:$0xff] %v1997
      %2004 = vst [vmem:[#allocation4 + $0x38] sm:$0xff] %v1998
      %2005 = vst [vmem:[#allocation4 + $0x40] sm:$0xff] %v1999
      %v2006 = vld [vmem:[#allocation2] sm:$0xff]
      %v2007 = vld [vmem:[#allocation2 + $0x8] sm:$0xff]
      %v2008 = vld [vmem:[#allocation2 + $0x10] sm:$0xff]
      %v2009 = vld [vmem:[#allocation2 + $0x18] sm:$0xff]
      %2014 = vrot.lane.b32.xlu0 %v2006, 1
      %v2015 = vpop.permute.xlu0 %2014
      %2016 = vrot.lane.b32.xlu0 %v2007, 1
      %v2017 = vpop.permute.xlu0 %2016
      %2018 = vrot.lane.b32.xlu0 %v2008, 1
      %v2019 = vpop.permute.xlu0 %2018
      %2020 = vrot.lane.b32.xlu0 %v2009, 1
      %v2021 = vpop.permute.xlu0 %2020
      %vm2022 = vcmask 7168
      %v2023 = vsel %vm2022, %v2015, %v2017
      %v2024 = vsel %vm2022, %v2017, %v2019
      %v2025 = vsel %vm2022, %v2019, %v2021
      %2029 = vst [vmem:[#allocation4 + $0x48] sm:$0xff] %v2023
      %2030 = vst [vmem:[#allocation4 + $0x50] sm:$0xff] %v2024
      %2031 = vst [vmem:[#allocation4 + $0x58] sm:$0xff] %v2025
      %v2032 = vld [vmem:[#allocation2 + $0x8] sm:$0xff]
      %v2033 = vld [vmem:[#allocation2 + $0x10] sm:$0xff]
      %v2034 = vld [vmem:[#allocation2 + $0x18] sm:$0xff]
      %2035 = vst [vmem:[#allocation4 + $0x60] sm:$0xff] %v2032
      %2036 = vst [vmem:[#allocation4 + $0x68] sm:$0xff] %v2033
      %2037 = vst [vmem:[#allocation4 + $0x70] sm:$0xff] %v2034
      %v2038 = vld [vmem:[#allocation2 + $0x8] sm:$0xff]
      %v2039 = vld [vmem:[#allocation2 + $0x10] sm:$0xff]
      %v2040 = vld [vmem:[#allocation2 + $0x18] sm:$0xff]
      %v2041 = vld [vmem:[#allocation2 + $0x20] sm:$0xff]
      %2046 = vrot.lane.b32.xlu0 %v2038, 127
      %v2047 = vpop.permute.xlu0 %2046
      %2048 = vrot.lane.b32.xlu0 %v2039, 127
      %v2049 = vpop.permute.xlu0 %2048
      %2050 = vrot.lane.b32.xlu0 %v2040, 127
      %v2051 = vpop.permute.xlu0 %2050
      %2052 = vrot.lane.b32.xlu0 %v2041, 127
      %v2053 = vpop.permute.xlu0 %2052
      %vm2054 = vcmask 1039360
      %v2055 = vsel %vm2054, %v2047, %v2049
      %v2056 = vsel %vm2054, %v2049, %v2051
      %v2057 = vsel %vm2054, %v2051, %v2053
      %2061 = vst [vmem:[#allocation4 + $0x78] sm:$0xff] %v2055
      %2062 = vst [vmem:[#allocation4 + $0x80] sm:$0xff] %v2056
      %2063 = vst [vmem:[#allocation4 + $0x88] sm:$0xff] %v2057
      %v2064 = vld [vmem:[#allocation2 + $0x8] sm:$0xff]
      %v2065 = vld [vmem:[#allocation2 + $0x10] sm:$0xff]
      %v2066 = vld [vmem:[#allocation2 + $0x18] sm:$0xff]
      %v2067 = vld [vmem:[#allocation2 + $0x20] sm:$0xff]
      %2072 = vrot.lane.b32.xlu0 %v2064, 126
      %v2073 = vpop.permute.xlu0 %2072
      %2074 = vrot.lane.b32.xlu0 %v2065, 126
      %v2075 = vpop.permute.xlu0 %2074
      %2076 = vrot.lane.b32.xlu0 %v2066, 126
      %v2077 = vpop.permute.xlu0 %2076
      %2078 = vrot.lane.b32.xlu0 %v2067, 126
      %v2079 = vpop.permute.xlu0 %2078
      %vm2080 = vcmask 1031168
      %v2081 = vsel %vm2080, %v2073, %v2075
      %v2082 = vsel %vm2080, %v2075, %v2077
      %v2083 = vsel %vm2080, %v2077, %v2079
      %2087 = vst [vmem:[#allocation4 + $0x90] sm:$0xff] %v2081
      %2088 = vst [vmem:[#allocation4 + $0x98] sm:$0xff] %v2082
      %2089 = vst [vmem:[#allocation4 + $0xa0] sm:$0xff] %v2083
      %v2090 = vld [vmem:[#allocation2 + $0x8] sm:$0xff]
      %v2091 = vld [vmem:[#allocation2 + $0x10] sm:$0xff]
      %v2092 = vld [vmem:[#allocation2 + $0x18] sm:$0xff]
      %v2093 = vld [vmem:[#allocation2 + $0x20] sm:$0xff]
      %2098 = vrot.lane.b32.xlu0 %v2090, 125
      %v2099 = vpop.permute.xlu0 %2098
      %2100 = vrot.lane.b32.xlu0 %v2091, 125
      %v2101 = vpop.permute.xlu0 %2100
      %2102 = vrot.lane.b32.xlu0 %v2092, 125
      %v2103 = vpop.permute.xlu0 %2102
      %2104 = vrot.lane.b32.xlu0 %v2093, 125
      %v2105 = vpop.permute.xlu0 %2104
      %vm2106 = vcmask 1022976
      %v2107 = vsel %vm2106, %v2099, %v2101
      %v2108 = vsel %vm2106, %v2101, %v2103
      %v2109 = vsel %vm2106, %v2103, %v2105
      %2113 = vst [vmem:[#allocation4 + $0xa8] sm:$0xff] %v2107
      %2114 = vst [vmem:[#allocation4 + $0xb0] sm:$0xff] %v2108
      %2115 = vst [vmem:[#allocation4 + $0xb8] sm:$0xff] %v2109
      %v2116 = vld [vmem:[#allocation2 + $0x8] sm:$0xff]
      %v2117 = vld [vmem:[#allocation2 + $0x10] sm:$0xff]
      %v2118 = vld [vmem:[#allocation2 + $0x18] sm:$0xff]
      %v2119 = vld [vmem:[#allocation2 + $0x20] sm:$0xff]
      %2124 = vrot.lane.b32.xlu0 %v2116, 124
      %v2125 = vpop.permute.xlu0 %2124
      %2126 = vrot.lane.b32.xlu0 %v2117, 124
      %v2127 = vpop.permute.xlu0 %2126
      %2128 = vrot.lane.b32.xlu0 %v2118, 124
      %v2129 = vpop.permute.xlu0 %2128
      %2130 = vrot.lane.b32.xlu0 %v2119, 124
      %v2131 = vpop.permute.xlu0 %2130
      %vm2132 = vcmask 1014784
      %v2133 = vsel %vm2132, %v2125, %v2127
      %v2134 = vsel %vm2132, %v2127, %v2129
      %v2135 = vsel %vm2132, %v2129, %v2131
      %2139 = vst [vmem:[#allocation4 + $0xc0] sm:$0xff] %v2133
      %2140 = vst [vmem:[#allocation4 + $0xc8] sm:$0xff] %v2134
      %2141 = vst [vmem:[#allocation4 + $0xd0] sm:$0xff] %v2135
      %v2142 = vld [vmem:[%s266 + $0x20] sm:$0xff]
      %v2143 = vld [vmem:[#allocation4] sm:$0xff]
      %v2144 = vld [vmem:[#allocation4 + $0x8] sm:$0xff]
      %v2145 = vld [vmem:[#allocation4 + $0x10] sm:$0xff]
      %v2146 = vld [vmem:[#allocation4 + $0x18] sm:$0xff]
      %v2147 = vld [vmem:[#allocation4 + $0x20] sm:$0xff]
      %v2148 = vld [vmem:[#allocation4 + $0x28] sm:$0xff]
      %v2149 = vld [vmem:[#allocation4 + $0x30] sm:$0xff]
      %v2150 = vld [vmem:[#allocation4 + $0x38] sm:$0xff]
      %v2151 = vld [vmem:[#allocation4 + $0x40] sm:$0xff]
      %v2152 = vld [vmem:[#allocation4 + $0x48] sm:$0xff]
      %v2153 = vld [vmem:[#allocation4 + $0x50] sm:$0xff]
      %v2154 = vld [vmem:[#allocation4 + $0x58] sm:$0xff]
      %v2155 = vld [vmem:[#allocation4 + $0x60] sm:$0xff]
      %v2156 = vld [vmem:[#allocation4 + $0x68] sm:$0xff]
      %v2157 = vld [vmem:[#allocation4 + $0x70] sm:$0xff]
      %v2158 = vld [vmem:[#allocation4 + $0x78] sm:$0xff]
      %v2159 = vld [vmem:[#allocation4 + $0x80] sm:$0xff]
      %v2160 = vld [vmem:[#allocation4 + $0x88] sm:$0xff]
      %v2161 = vld [vmem:[#allocation4 + $0x90] sm:$0xff]
      %v2162 = vld [vmem:[#allocation4 + $0x98] sm:$0xff]
      %v2163 = vld [vmem:[#allocation4 + $0xa0] sm:$0xff]
      %v2164 = vld [vmem:[#allocation4 + $0xa8] sm:$0xff]
      %v2165 = vld [vmem:[#allocation4 + $0xb0] sm:$0xff]
      %v2166 = vld [vmem:[#allocation4 + $0xb8] sm:$0xff]
      %v2167 = vld [vmem:[#allocation4 + $0xc0] sm:$0xff]
      %v2168 = vld [vmem:[#allocation4 + $0xc8] sm:$0xff]
      %v2169 = vld [vmem:[#allocation4 + $0xd0] sm:$0xff]
      %v2171 = vsel %vm680, %v2142, 0
      %2173 = vmatprep.subr.mxu0 %v2144
      %2174 = vmatpush1.msra.mxu0 %v2143
      %2175 = vmatprep.subr.mxu0 %v2147
      %2176 = vmatpush1.msra.mxu0 %v2146
      %2177 = vmatprep.subr.mxu0 %v2150
      %2178 = vmatpush1.msra.mxu0 %v2149
      %2179 = vmatprep.subr.mxu0 %v2153
      %2180 = vmatpush1.msra.mxu0 %v2152
      %2181 = vmatprep.subr.mxu0 %v2156
      %2182 = vmatpush1.msra.mxu0 %v2155
      %2183 = vmatprep.subr.mxu0 %v2159
      %2184 = vmatpush1.msra.mxu0 %v2158
      %2185 = vmatprep.subr.mxu0 %v2162
      %2186 = vmatpush1.msra.mxu0 %v2161
      %2187 = vmatprep.subr.mxu0 %v2165
      %2188 = vmatpush1.msra.mxu0 %v2164
      %2189 = vmatprep.subr.mxu0 %v2168
      %2190 = vmatpush1.msra.mxu0 %v2167
      %2191 = vmatprep.subr.mxu0 0.0
      %2192 = vmatpush1.msra.mxu0 0.0
      %2193 = vmatprep.subr.mxu0 0.0
      %2194 = vmatpush1.msra.mxu0 0.0
      %2195 = vmatprep.subr.mxu0 0.0
      %2196 = vmatpush1.msra.mxu0 0.0
      %2197 = vmatprep.subr.mxu0 0.0
      %2198 = vmatpush1.msra.mxu0 0.0
      %2199 = vmatprep.subr.mxu0 0.0
      %2200 = vmatpush1.msra.mxu0 0.0
      %2201 = vmatprep.subr.mxu0 0.0
      %2202 = vmatpush1.msra.mxu0 0.0
      %2203 = vmatprep.subr.mxu0 0.0
      %2204 = vmatpush1.msra.mxu0 0.0
      %2205 = vmatprep.subr.mxu0 0.0
      %2206 = vmatpush1.msra.mxu0 0.0
      %2207 = vmatprep.subr.mxu0 0.0
      %2208 = vmatpush1.msra.mxu0 0.0
      %2209 = vmatprep.subr.mxu0 0.0
      %2210 = vmatpush1.msra.mxu0 0.0
      %2211 = vmatprep.subr.mxu0 0.0
      %2212 = vmatpush1.msra.mxu0 0.0
      %2213 = vmatprep.subr.mxu0 0.0
      %2214 = vmatpush1.msra.mxu0 0.0
      %2215 = vmatprep.subr.mxu0 0.0
      %2216 = vmatpush1.msra.mxu0 0.0
      %2217 = vmatprep.subr.mxu0 0.0
      %2218 = vmatpush1.msra.mxu0 0.0
      %2219 = vmatprep.subr.mxu0 0.0
      %2220 = vmatpush1.msra.mxu0 0.0
      %2221 = vmatprep.subr.mxu0 0.0
      %2222 = vmatpush1.msra.mxu0 0.0
      %2223 = vmatprep.subr.mxu0 0.0
      %2224 = vmatpush1.msra.mxu0 0.0
      %2225 = vmatprep.subr.mxu0 0.0
      %2226 = vmatpush1.msra.mxu0 0.0
      %2227 = vmatprep.subr.mxu0 0.0
      %2228 = vmatpush1.msra.mxu0 0.0
      %2229 = vmatprep.subr.mxu0 0.0
      %2230 = vmatpush1.msra.mxu0 0.0
      %2231 = vmatprep.subr.mxu0 0.0
      %2232 = vmatpush1.msra.mxu0 0.0
      %2233 = vmatprep.subr.mxu0 0.0
      %2234 = vmatpush1.msra.mxu0 0.0
      %2235 = vmatprep.subr.mxu0 0.0
      %2236 = vmatpush1.msra.mxu0 0.0
      %2237 = vmatprep.mubr.f32.mxu0 0.0
      %2238 = vmatmul.mubr.f32.gmra.mrb[0].mxu0 %v2171
      %v2239 = vpop.f32.mrb[0].mxu0
      %v2240 = vadd.f32 0.0, %v2239
      %v2241 = vpop.f32.mrb[0].mxu0
      %v2242 = vadd.f32 0.0, %v2241
      %2243 = vdwg.mxu0
      %2244 = vmatprep.subr.mxu0 0.0
      %2245 = vmatpush1.msra.mxu0 %v2145
      %2246 = vmatprep.subr.mxu0 0.0
      %2247 = vmatpush1.msra.mxu0 %v2148
      %2248 = vmatprep.subr.mxu0 0.0
      %2249 = vmatpush1.msra.mxu0 %v2151
      %2250 = vmatprep.subr.mxu0 0.0
      %2251 = vmatpush1.msra.mxu0 %v2154
      %2252 = vmatprep.subr.mxu0 0.0
      %2253 = vmatpush1.msra.mxu0 %v2157
      %2254 = vmatprep.subr.mxu0 0.0
      %2255 = vmatpush1.msra.mxu0 %v2160
      %2256 = vmatprep.subr.mxu0 0.0
      %2257 = vmatpush1.msra.mxu0 %v2163
      %2258 = vmatprep.subr.mxu0 0.0
      %2259 = vmatpush1.msra.mxu0 %v2166
      %2260 = vmatprep.subr.mxu0 0.0
      %2261 = vmatpush1.msra.mxu0 %v2169
      %2262 = vmatprep.subr.mxu0 0.0
      %2263 = vmatpush1.msra.mxu0 0.0
      %2264 = vmatprep.subr.mxu0 0.0
      %2265 = vmatpush1.msra.mxu0 0.0
      %2266 = vmatprep.subr.mxu0 0.0
      %2267 = vmatpush1.msra.mxu0 0.0
      %2268 = vmatprep.subr.mxu0 0.0
      %2269 = vmatpush1.msra.mxu0 0.0
      %2270 = vmatprep.subr.mxu0 0.0
      %2271 = vmatpush1.msra.mxu0 0.0
      %2272 = vmatprep.subr.mxu0 0.0
      %2273 = vmatpush1.msra.mxu0 0.0
      %2274 = vmatprep.subr.mxu0 0.0
      %2275 = vmatpush1.msra.mxu0 0.0
      %2276 = vmatprep.subr.mxu0 0.0
      %2277 = vmatpush1.msra.mxu0 0.0
      %2278 = vmatprep.subr.mxu0 0.0
      %2279 = vmatpush1.msra.mxu0 0.0
      %2280 = vmatprep.subr.mxu0 0.0
      %2281 = vmatpush1.msra.mxu0 0.0
      %2282 = vmatprep.subr.mxu0 0.0
      %2283 = vmatpush1.msra.mxu0 0.0
      %2284 = vmatprep.subr.mxu0 0.0
      %2285 = vmatpush1.msra.mxu0 0.0
      %2286 = vmatprep.subr.mxu0 0.0
      %2287 = vmatpush1.msra.mxu0 0.0
      %2288 = vmatprep.subr.mxu0 0.0
      %2289 = vmatpush1.msra.mxu0 0.0
      %2290 = vmatprep.subr.mxu0 0.0
      %2291 = vmatpush1.msra.mxu0 0.0
      %2292 = vmatprep.subr.mxu0 0.0
      %2293 = vmatpush1.msra.mxu0 0.0
      %2294 = vmatprep.subr.mxu0 0.0
      %2295 = vmatpush1.msra.mxu0 0.0
      %2296 = vmatprep.subr.mxu0 0.0
      %2297 = vmatpush1.msra.mxu0 0.0
      %2298 = vmatprep.subr.mxu0 0.0
      %2299 = vmatpush1.msra.mxu0 0.0
      %2300 = vmatprep.subr.mxu0 0.0
      %2301 = vmatpush1.msra.mxu0 0.0
      %2302 = vmatprep.subr.mxu0 0.0
      %2303 = vmatpush1.msra.mxu0 0.0
      %2304 = vmatprep.subr.mxu0 0.0
      %2305 = vmatpush1.msra.mxu0 0.0
      %2306 = vmatprep.subr.mxu0 0.0
      %2307 = vmatpush1.msra.mxu0 0.0
      %2308 = vmatprep.mubr.f32.mxu0 0.0
      %2309 = vmatmul.mubr.f32.gmra.mrb[0].mxu0 %v2171
      %v2310 = vpop.f32.mrb[0].mxu0
      %v2311 = vadd.f32 0.0, %v2310
      %v2312 = vpop.f32.mrb[0].mxu0
      %2313 = vdwg.mxu0
      %v2314 = vadd.f32 %v1925, %v2240
      %v2315 = vadd.f32 %v1926, %v2242
      %v2316 = vadd.f32 %v1927, %v2311
      %v2317 = vld [vmem:[#allocation2 + $0x8] sm:$0xff]
      %v2318 = vld [vmem:[#allocation2 + $0x10] sm:$0xff]
      %v2319 = vld [vmem:[#allocation2 + $0x18] sm:$0xff]
      %v2320 = vld [vmem:[#allocation2 + $0x20] sm:$0xff]
      %2325 = vrot.lane.b32.xlu0 %v2317, 108
      %v2326 = vpop.permute.xlu0 %2325
      %2327 = vrot.lane.b32.xlu0 %v2318, 108
      %v2328 = vpop.permute.xlu0 %2327
      %2329 = vrot.lane.b32.xlu0 %v2319, 108
      %v2330 = vpop.permute.xlu0 %2329
      %2331 = vrot.lane.b32.xlu0 %v2320, 108
      %v2332 = vpop.permute.xlu0 %2331
      %vm2333 = vcmask 883712
      %v2334 = vsel %vm2333, %v2326, %v2328
      %v2335 = vsel %vm2333, %v2328, %v2330
      %v2336 = vsel %vm2333, %v2330, %v2332
      %2340 = vst [vmem:[#allocation4 + $0xd8] sm:$0xff] %v2334
      %2341 = vst [vmem:[#allocation4 + $0xe0] sm:$0xff] %v2335
      %2342 = vst [vmem:[#allocation4 + $0xe8] sm:$0xff] %v2336
      %v2343 = vld [vmem:[#allocation2 + $0x8] sm:$0xff]
      %v2344 = vld [vmem:[#allocation2 + $0x10] sm:$0xff]
      %v2345 = vld [vmem:[#allocation2 + $0x18] sm:$0xff]
      %v2346 = vld [vmem:[#allocation2 + $0x20] sm:$0xff]
      %2351 = vrot.lane.b32.xlu0 %v2343, 107
      %v2352 = vpop.permute.xlu0 %2351
      %2353 = vrot.lane.b32.xlu0 %v2344, 107
      %v2354 = vpop.permute.xlu0 %2353
      %2355 = vrot.lane.b32.xlu0 %v2345, 107
      %v2356 = vpop.permute.xlu0 %2355
      %2357 = vrot.lane.b32.xlu0 %v2346, 107
      %v2358 = vpop.permute.xlu0 %2357
      %vm2359 = vcmask 875520
      %v2360 = vsel %vm2359, %v2352, %v2354
      %v2361 = vsel %vm2359, %v2354, %v2356
      %v2362 = vsel %vm2359, %v2356, %v2358
      %2366 = vst [vmem:[#allocation4 + $0xf0] sm:$0xff] %v2360
      %2367 = vst [vmem:[#allocation4 + $0xf8] sm:$0xff] %v2361
      %2368 = vst [vmem:[#allocation4 + $0x100] sm:$0xff] %v2362
      %v2369 = vld [vmem:[#allocation2 + $0x8] sm:$0xff]
      %v2370 = vld [vmem:[#allocation2 + $0x10] sm:$0xff]
      %v2371 = vld [vmem:[#allocation2 + $0x18] sm:$0xff]
      %v2372 = vld [vmem:[#allocation2 + $0x20] sm:$0xff]
      %2377 = vrot.lane.b32.xlu0 %v2369, 106
      %v2378 = vpop.permute.xlu0 %2377
      %2379 = vrot.lane.b32.xlu0 %v2370, 106
      %v2380 = vpop.permute.xlu0 %2379
      %2381 = vrot.lane.b32.xlu0 %v2371, 106
      %v2382 = vpop.permute.xlu0 %2381
      %2383 = vrot.lane.b32.xlu0 %v2372, 106
      %v2384 = vpop.permute.xlu0 %2383
      %vm2385 = vcmask 867328
      %v2386 = vsel %vm2385, %v2378, %v2380
      %v2387 = vsel %vm2385, %v2380, %v2382
      %v2388 = vsel %vm2385, %v2382, %v2384
      %2392 = vst [vmem:[#allocation4 + $0x108] sm:$0xff] %v2386
      %2393 = vst [vmem:[#allocation4 + $0x110] sm:$0xff] %v2387
      %2394 = vst [vmem:[#allocation4 + $0x118] sm:$0xff] %v2388
      %v2395 = vld [vmem:[#allocation2 + $0x8] sm:$0xff]
      %v2396 = vld [vmem:[#allocation2 + $0x10] sm:$0xff]
      %v2397 = vld [vmem:[#allocation2 + $0x18] sm:$0xff]
      %v2398 = vld [vmem:[#allocation2 + $0x20] sm:$0xff]
      %2403 = vrot.lane.b32.xlu0 %v2395, 105
      %v2404 = vpop.permute.xlu0 %2403
      %2405 = vrot.lane.b32.xlu0 %v2396, 105
      %v2406 = vpop.permute.xlu0 %2405
      %2407 = vrot.lane.b32.xlu0 %v2397, 105
      %v2408 = vpop.permute.xlu0 %2407
      %2409 = vrot.lane.b32.xlu0 %v2398, 105
      %v2410 = vpop.permute.xlu0 %2409
      %vm2411 = vcmask 859136
      %v2412 = vsel %vm2411, %v2404, %v2406
      %v2413 = vsel %vm2411, %v2406, %v2408
      %v2414 = vsel %vm2411, %v2408, %v2410
      %2418 = vst [vmem:[#allocation4 + $0x120] sm:$0xff] %v2412
      %2419 = vst [vmem:[#allocation4 + $0x128] sm:$0xff] %v2413
      %2420 = vst [vmem:[#allocation4 + $0x130] sm:$0xff] %v2414
      %v2421 = vld [vmem:[#allocation2 + $0x8] sm:$0xff]
      %v2422 = vld [vmem:[#allocation2 + $0x10] sm:$0xff]
      %v2423 = vld [vmem:[#allocation2 + $0x18] sm:$0xff]
      %v2424 = vld [vmem:[#allocation2 + $0x20] sm:$0xff]
      %2429 = vrot.lane.b32.xlu0 %v2421, 104
      %v2430 = vpop.permute.xlu0 %2429
      %2431 = vrot.lane.b32.xlu0 %v2422, 104
      %v2432 = vpop.permute.xlu0 %2431
      %2433 = vrot.lane.b32.xlu0 %v2423, 104
      %v2434 = vpop.permute.xlu0 %2433
      %2435 = vrot.lane.b32.xlu0 %v2424, 104
      %v2436 = vpop.permute.xlu0 %2435
      %vm2437 = vcmask 850944
      %v2438 = vsel %vm2437, %v2430, %v2432
      %v2439 = vsel %vm2437, %v2432, %v2434
      %v2440 = vsel %vm2437, %v2434, %v2436
      %2444 = vst [vmem:[#allocation4 + $0x138] sm:$0xff] %v2438
      %2445 = vst [vmem:[#allocation4 + $0x140] sm:$0xff] %v2439
      %2446 = vst [vmem:[#allocation4 + $0x148] sm:$0xff] %v2440
      %v2447 = vld [vmem:[#allocation2 + $0x8] sm:$0xff]
      %v2448 = vld [vmem:[#allocation2 + $0x10] sm:$0xff]
      %v2449 = vld [vmem:[#allocation2 + $0x18] sm:$0xff]
      %v2450 = vld [vmem:[#allocation2 + $0x20] sm:$0xff]
      %2455 = vrot.lane.b32.xlu0 %v2447, 103
      %v2456 = vpop.permute.xlu0 %2455
      %2457 = vrot.lane.b32.xlu0 %v2448, 103
      %v2458 = vpop.permute.xlu0 %2457
      %2459 = vrot.lane.b32.xlu0 %v2449, 103
      %v2460 = vpop.permute.xlu0 %2459
      %2461 = vrot.lane.b32.xlu0 %v2450, 103
      %v2462 = vpop.permute.xlu0 %2461
      %vm2463 = vcmask 842752
      %v2464 = vsel %vm2463, %v2456, %v2458
      %v2465 = vsel %vm2463, %v2458, %v2460
      %v2466 = vsel %vm2463, %v2460, %v2462
      %2470 = vst [vmem:[#allocation4 + $0x150] sm:$0xff] %v2464
      %2471 = vst [vmem:[#allocation4 + $0x158] sm:$0xff] %v2465
      %2472 = vst [vmem:[#allocation4 + $0x160] sm:$0xff] %v2466
      %v2473 = vld [vmem:[#allocation2 + $0x8] sm:$0xff]
      %v2474 = vld [vmem:[#allocation2 + $0x10] sm:$0xff]
      %v2475 = vld [vmem:[#allocation2 + $0x18] sm:$0xff]
      %v2476 = vld [vmem:[#allocation2 + $0x20] sm:$0xff]
      %2481 = vrot.lane.b32.xlu0 %v2473, 102
      %v2482 = vpop.permute.xlu0 %2481
      %2483 = vrot.lane.b32.xlu0 %v2474, 102
      %v2484 = vpop.permute.xlu0 %2483
      %2485 = vrot.lane.b32.xlu0 %v2475, 102
      %v2486 = vpop.permute.xlu0 %2485
      %2487 = vrot.lane.b32.xlu0 %v2476, 102
      %v2488 = vpop.permute.xlu0 %2487
      %vm2489 = vcmask 834560
      %v2490 = vsel %vm2489, %v2482, %v2484
      %v2491 = vsel %vm2489, %v2484, %v2486
      %v2492 = vsel %vm2489, %v2486, %v2488
      %2496 = vst [vmem:[#allocation4 + $0x168] sm:$0xff] %v2490
      %2497 = vst [vmem:[#allocation4 + $0x170] sm:$0xff] %v2491
      %2498 = vst [vmem:[#allocation4 + $0x178] sm:$0xff] %v2492
      %v2499 = vld [vmem:[#allocation2 + $0x8] sm:$0xff]
      %v2500 = vld [vmem:[#allocation2 + $0x10] sm:$0xff]
      %v2501 = vld [vmem:[#allocation2 + $0x18] sm:$0xff]
      %v2502 = vld [vmem:[#allocation2 + $0x20] sm:$0xff]
      %2507 = vrot.lane.b32.xlu0 %v2499, 101
      %v2508 = vpop.permute.xlu0 %2507
      %2509 = vrot.lane.b32.xlu0 %v2500, 101
      %v2510 = vpop.permute.xlu0 %2509
      %2511 = vrot.lane.b32.xlu0 %v2501, 101
      %v2512 = vpop.permute.xlu0 %2511
      %2513 = vrot.lane.b32.xlu0 %v2502, 101
      %v2514 = vpop.permute.xlu0 %2513
      %vm2515 = vcmask 826368
      %v2516 = vsel %vm2515, %v2508, %v2510
      %v2517 = vsel %vm2515, %v2510, %v2512
      %v2518 = vsel %vm2515, %v2512, %v2514
      %2522 = vst [vmem:[#allocation4 + $0x180] sm:$0xff] %v2516
      %2523 = vst [vmem:[#allocation4 + $0x188] sm:$0xff] %v2517
      %2524 = vst [vmem:[#allocation4 + $0x190] sm:$0xff] %v2518
      %v2525 = vld [vmem:[#allocation2 + $0x8] sm:$0xff]
      %v2526 = vld [vmem:[#allocation2 + $0x10] sm:$0xff]
      %v2527 = vld [vmem:[#allocation2 + $0x18] sm:$0xff]
      %v2528 = vld [vmem:[#allocation2 + $0x20] sm:$0xff]
      %2533 = vrot.lane.b32.xlu0 %v2525, 100
      %v2534 = vpop.permute.xlu0 %2533
      %2535 = vrot.lane.b32.xlu0 %v2526, 100
      %v2536 = vpop.permute.xlu0 %2535
      %2537 = vrot.lane.b32.xlu0 %v2527, 100
      %v2538 = vpop.permute.xlu0 %2537
      %2539 = vrot.lane.b32.xlu0 %v2528, 100
      %v2540 = vpop.permute.xlu0 %2539
      %v2541 = vsel %vm314, %v2534, %v2536
      %v2542 = vsel %vm314, %v2536, %v2538
      %v2543 = vsel %vm314, %v2538, %v2540
      %2547 = vst [vmem:[#allocation4 + $0x198] sm:$0xff] %v2541
      %2548 = vst [vmem:[#allocation4 + $0x1a0] sm:$0xff] %v2542
      %2549 = vst [vmem:[#allocation4 + $0x1a8] sm:$0xff] %v2543
      %v2550 = vld [vmem:[%s266 + $0x28] sm:$0xff]
      %v2551 = vld [vmem:[#allocation4 + $0xd8] sm:$0xff]
      %v2552 = vld [vmem:[#allocation4 + $0xe0] sm:$0xff]
      %v2553 = vld [vmem:[#allocation4 + $0xe8] sm:$0xff]
      %v2554 = vld [vmem:[#allocation4 + $0xf0] sm:$0xff]
      %v2555 = vld [vmem:[#allocation4 + $0xf8] sm:$0xff]
      %v2556 = vld [vmem:[#allocation4 + $0x100] sm:$0xff]
      %v2557 = vld [vmem:[#allocation4 + $0x108] sm:$0xff]
      %v2558 = vld [vmem:[#allocation4 + $0x110] sm:$0xff]
      %v2559 = vld [vmem:[#allocation4 + $0x118] sm:$0xff]
      %v2560 = vld [vmem:[#allocation4 + $0x120] sm:$0xff]
      %v2561 = vld [vmem:[#allocation4 + $0x128] sm:$0xff]
      %v2562 = vld [vmem:[#allocation4 + $0x130] sm:$0xff]
      %v2563 = vld [vmem:[#allocation4 + $0x138] sm:$0xff]
      %v2564 = vld [vmem:[#allocation4 + $0x140] sm:$0xff]
      %v2565 = vld [vmem:[#allocation4 + $0x148] sm:$0xff]
      %v2566 = vld [vmem:[#allocation4 + $0x150] sm:$0xff]
      %v2567 = vld [vmem:[#allocation4 + $0x158] sm:$0xff]
      %v2568 = vld [vmem:[#allocation4 + $0x160] sm:$0xff]
      %v2569 = vld [vmem:[#allocation4 + $0x168] sm:$0xff]
      %v2570 = vld [vmem:[#allocation4 + $0x170] sm:$0xff]
      %v2571 = vld [vmem:[#allocation4 + $0x178] sm:$0xff]
      %v2572 = vld [vmem:[#allocation4 + $0x180] sm:$0xff]
      %v2573 = vld [vmem:[#allocation4 + $0x188] sm:$0xff]
      %v2574 = vld [vmem:[#allocation4 + $0x190] sm:$0xff]
      %v2575 = vld [vmem:[#allocation4 + $0x198] sm:$0xff]
      %v2576 = vld [vmem:[#allocation4 + $0x1a0] sm:$0xff]
      %v2577 = vld [vmem:[#allocation4 + $0x1a8] sm:$0xff]
      %v2579 = vsel %vm680, %v2550, 0
      %2581 = vmatprep.subr.mxu0 %v2552
      %2582 = vmatpush1.msra.mxu0 %v2551
      %2583 = vmatprep.subr.mxu0 %v2555
      %2584 = vmatpush1.msra.mxu0 %v2554
      %2585 = vmatprep.subr.mxu0 %v2558
      %2586 = vmatpush1.msra.mxu0 %v2557
      %2587 = vmatprep.subr.mxu0 %v2561
      %2588 = vmatpush1.msra.mxu0 %v2560
      %2589 = vmatprep.subr.mxu0 %v2564
      %2590 = vmatpush1.msra.mxu0 %v2563
      %2591 = vmatprep.subr.mxu0 %v2567
      %2592 = vmatpush1.msra.mxu0 %v2566
      %2593 = vmatprep.subr.mxu0 %v2570
      %2594 = vmatpush1.msra.mxu0 %v2569
      %2595 = vmatprep.subr.mxu0 %v2573
      %2596 = vmatpush1.msra.mxu0 %v2572
      %2597 = vmatprep.subr.mxu0 %v2576
      %2598 = vmatpush1.msra.mxu0 %v2575
      %2599 = vmatprep.subr.mxu0 0.0
      %2600 = vmatpush1.msra.mxu0 0.0
      %2601 = vmatprep.subr.mxu0 0.0
      %2602 = vmatpush1.msra.mxu0 0.0
      %2603 = vmatprep.subr.mxu0 0.0
      %2604 = vmatpush1.msra.mxu0 0.0
      %2605 = vmatprep.subr.mxu0 0.0
      %2606 = vmatpush1.msra.mxu0 0.0
      %2607 = vmatprep.subr.mxu0 0.0
      %2608 = vmatpush1.msra.mxu0 0.0
      %2609 = vmatprep.subr.mxu0 0.0
      %2610 = vmatpush1.msra.mxu0 0.0
      %2611 = vmatprep.subr.mxu0 0.0
      %2612 = vmatpush1.msra.mxu0 0.0
      %2613 = vmatprep.subr.mxu0 0.0
      %2614 = vmatpush1.msra.mxu0 0.0
      %2615 = vmatprep.subr.mxu0 0.0
      %2616 = vmatpush1.msra.mxu0 0.0
      %2617 = vmatprep.subr.mxu0 0.0
      %2618 = vmatpush1.msra.mxu0 0.0
      %2619 = vmatprep.subr.mxu0 0.0
      %2620 = vmatpush1.msra.mxu0 0.0
      %2621 = vmatprep.subr.mxu0 0.0
      %2622 = vmatpush1.msra.mxu0 0.0
      %2623 = vmatprep.subr.mxu0 0.0
      %2624 = vmatpush1.msra.mxu0 0.0
      %2625 = vmatprep.subr.mxu0 0.0
      %2626 = vmatpush1.msra.mxu0 0.0
      %2627 = vmatprep.subr.mxu0 0.0
      %2628 = vmatpush1.msra.mxu0 0.0
      %2629 = vmatprep.subr.mxu0 0.0
      %2630 = vmatpush1.msra.mxu0 0.0
      %2631 = vmatprep.subr.mxu0 0.0
      %2632 = vmatpush1.msra.mxu0 0.0
      %2633 = vmatprep.subr.mxu0 0.0
      %2634 = vmatpush1.msra.mxu0 0.0
      %2635 = vmatprep.subr.mxu0 0.0
      %2636 = vmatpush1.msra.mxu0 0.0
      %2637 = vmatprep.subr.mxu0 0.0
      %2638 = vmatpush1.msra.mxu0 0.0
      %2639 = vmatprep.subr.mxu0 0.0
      %2640 = vmatpush1.msra.mxu0 0.0
      %2641 = vmatprep.subr.mxu0 0.0
      %2642 = vmatpush1.msra.mxu0 0.0
      %2643 = vmatprep.subr.mxu0 0.0
      %2644 = vmatpush1.msra.mxu0 0.0
      %2645 = vmatprep.mubr.f32.mxu0 0.0
      %2646 = vmatmul.mubr.f32.gmra.mrb[0].mxu0 %v2579
      %v2647 = vpop.f32.mrb[0].mxu0
      %v2648 = vadd.f32 0.0, %v2647
      %v2649 = vpop.f32.mrb[0].mxu0
      %v2650 = vadd.f32 0.0, %v2649
      %2651 = vdwg.mxu0
      %2652 = vmatprep.subr.mxu0 0.0
      %2653 = vmatpush1.msra.mxu0 %v2553
      %2654 = vmatprep.subr.mxu0 0.0
      %2655 = vmatpush1.msra.mxu0 %v2556
      %2656 = vmatprep.subr.mxu0 0.0
      %2657 = vmatpush1.msra.mxu0 %v2559
      %2658 = vmatprep.subr.mxu0 0.0
      %2659 = vmatpush1.msra.mxu0 %v2562
      %2660 = vmatprep.subr.mxu0 0.0
      %2661 = vmatpush1.msra.mxu0 %v2565
      %2662 = vmatprep.subr.mxu0 0.0
      %2663 = vmatpush1.msra.mxu0 %v2568
      %2664 = vmatprep.subr.mxu0 0.0
      %2665 = vmatpush1.msra.mxu0 %v2571
      %2666 = vmatprep.subr.mxu0 0.0
      %2667 = vmatpush1.msra.mxu0 %v2574
      %2668 = vmatprep.subr.mxu0 0.0
      %2669 = vmatpush1.msra.mxu0 %v2577
      %2670 = vmatprep.subr.mxu0 0.0
      %2671 = vmatpush1.msra.mxu0 0.0
      %2672 = vmatprep.subr.mxu0 0.0
      %2673 = vmatpush1.msra.mxu0 0.0
      %2674 = vmatprep.subr.mxu0 0.0
      %2675 = vmatpush1.msra.mxu0 0.0
      %2676 = vmatprep.subr.mxu0 0.0
      %2677 = vmatpush1.msra.mxu0 0.0
      %2678 = vmatprep.subr.mxu0 0.0
      %2679 = vmatpush1.msra.mxu0 0.0
      %2680 = vmatprep.subr.mxu0 0.0
      %2681 = vmatpush1.msra.mxu0 0.0
      %2682 = vmatprep.subr.mxu0 0.0
      %2683 = vmatpush1.msra.mxu0 0.0
      %2684 = vmatprep.subr.mxu0 0.0
      %2685 = vmatpush1.msra.mxu0 0.0
      %2686 = vmatprep.subr.mxu0 0.0
      %2687 = vmatpush1.msra.mxu0 0.0
      %2688 = vmatprep.subr.mxu0 0.0
      %2689 = vmatpush1.msra.mxu0 0.0
      %2690 = vmatprep.subr.mxu0 0.0
      %2691 = vmatpush1.msra.mxu0 0.0
      %2692 = vmatprep.subr.mxu0 0.0
      %2693 = vmatpush1.msra.mxu0 0.0
      %2694 = vmatprep.subr.mxu0 0.0
      %2695 = vmatpush1.msra.mxu0 0.0
      %2696 = vmatprep.subr.mxu0 0.0
      %2697 = vmatpush1.msra.mxu0 0.0
      %2698 = vmatprep.subr.mxu0 0.0
      %2699 = vmatpush1.msra.mxu0 0.0
      %2700 = vmatprep.subr.mxu0 0.0
      %2701 = vmatpush1.msra.mxu0 0.0
      %2702 = vmatprep.subr.mxu0 0.0
      %2703 = vmatpush1.msra.mxu0 0.0
      %2704 = vmatprep.subr.mxu0 0.0
      %2705 = vmatpush1.msra.mxu0 0.0
      %2706 = vmatprep.subr.mxu0 0.0
      %2707 = vmatpush1.msra.mxu0 0.0
      %2708 = vmatprep.subr.mxu0 0.0
      %2709 = vmatpush1.msra.mxu0 0.0
      %2710 = vmatprep.subr.mxu0 0.0
      %2711 = vmatpush1.msra.mxu0 0.0
      %2712 = vmatprep.subr.mxu0 0.0
      %2713 = vmatpush1.msra.mxu0 0.0
      %2714 = vmatprep.subr.mxu0 0.0
      %2715 = vmatpush1.msra.mxu0 0.0
      %2716 = vmatprep.mubr.f32.mxu0 0.0
      %2717 = vmatmul.mubr.f32.gmra.mrb[0].mxu0 %v2579
      %v2718 = vpop.f32.mrb[0].mxu0
      %v2719 = vadd.f32 0.0, %v2718
      %v2720 = vpop.f32.mrb[0].mxu0
      %2721 = vdwg.mxu0
      %v2722 = vadd.f32 %v2314, %v2648
      %v2723 = vadd.f32 %v2315, %v2650
      %v2724 = vadd.f32 %v2316, %v2719
      %v2725 = vld [vmem:[#allocation2 + $0x8] sm:$0xff]
      %v2726 = vld [vmem:[#allocation2 + $0x10] sm:$0xff]
      %v2727 = vld [vmem:[#allocation2 + $0x18] sm:$0xff]
      %v2728 = vld [vmem:[#allocation2 + $0x20] sm:$0xff]
      %2733 = vrot.lane.b32.xlu0 %v2725, 84
      %v2734 = vpop.permute.xlu0 %2733
      %2735 = vrot.lane.b32.xlu0 %v2726, 84
      %v2736 = vpop.permute.xlu0 %2735
      %2737 = vrot.lane.b32.xlu0 %v2727, 84
      %v2738 = vpop.permute.xlu0 %2737
      %2739 = vrot.lane.b32.xlu0 %v2728, 84
      %v2740 = vpop.permute.xlu0 %2739
      %vm2741 = vcmask 687104
      %v2742 = vsel %vm2741, %v2734, %v2736
      %v2743 = vsel %vm2741, %v2736, %v2738
      %v2744 = vsel %vm2741, %v2738, %v2740
      %2748 = vst [vmem:[#allocation4] sm:$0xff] %v2742
      %2749 = vst [vmem:[#allocation4 + $0x8] sm:$0xff] %v2743
      %2750 = vst [vmem:[#allocation4 + $0x10] sm:$0xff] %v2744
      %v2751 = vld [vmem:[#allocation2 + $0x8] sm:$0xff]
      %v2752 = vld [vmem:[#allocation2 + $0x10] sm:$0xff]
      %v2753 = vld [vmem:[#allocation2 + $0x18] sm:$0xff]
      %v2754 = vld [vmem:[#allocation2 + $0x20] sm:$0xff]
      %2759 = vrot.lane.b32.xlu0 %v2751, 83
      %v2760 = vpop.permute.xlu0 %2759
      %2761 = vrot.lane.b32.xlu0 %v2752, 83
      %v2762 = vpop.permute.xlu0 %2761
      %2763 = vrot.lane.b32.xlu0 %v2753, 83
      %v2764 = vpop.permute.xlu0 %2763
      %2765 = vrot.lane.b32.xlu0 %v2754, 83
      %v2766 = vpop.permute.xlu0 %2765
      %vm2767 = vcmask 678912
      %v2768 = vsel %vm2767, %v2760, %v2762
      %v2769 = vsel %vm2767, %v2762, %v2764
      %v2770 = vsel %vm2767, %v2764, %v2766
      %2774 = vst [vmem:[#allocation4 + $0x18] sm:$0xff] %v2768
      %2775 = vst [vmem:[#allocation4 + $0x20] sm:$0xff] %v2769
      %2776 = vst [vmem:[#allocation4 + $0x28] sm:$0xff] %v2770
      %v2777 = vld [vmem:[#allocation2 + $0x8] sm:$0xff]
      %v2778 = vld [vmem:[#allocation2 + $0x10] sm:$0xff]
      %v2779 = vld [vmem:[#allocation2 + $0x18] sm:$0xff]
      %v2780 = vld [vmem:[#allocation2 + $0x20] sm:$0xff]
      %2785 = vrot.lane.b32.xlu0 %v2777, 82
      %v2786 = vpop.permute.xlu0 %2785
      %2787 = vrot.lane.b32.xlu0 %v2778, 82
      %v2788 = vpop.permute.xlu0 %2787
      %2789 = vrot.lane.b32.xlu0 %v2779, 82
      %v2790 = vpop.permute.xlu0 %2789
      %2791 = vrot.lane.b32.xlu0 %v2780, 82
      %v2792 = vpop.permute.xlu0 %2791
      %vm2793 = vcmask 670720
      %v2794 = vsel %vm2793, %v2786, %v2788
      %v2795 = vsel %vm2793, %v2788, %v2790
      %v2796 = vsel %vm2793, %v2790, %v2792
      %2800 = vst [vmem:[#allocation4 + $0x30] sm:$0xff] %v2794
      %2801 = vst [vmem:[#allocation4 + $0x38] sm:$0xff] %v2795
      %2802 = vst [vmem:[#allocation4 + $0x40] sm:$0xff] %v2796
      %v2803 = vld [vmem:[#allocation2 + $0x8] sm:$0xff]
      %v2804 = vld [vmem:[#allocation2 + $0x10] sm:$0xff]
      %v2805 = vld [vmem:[#allocation2 + $0x18] sm:$0xff]
      %v2806 = vld [vmem:[#allocation2 + $0x20] sm:$0xff]
      %2811 = vrot.lane.b32.xlu0 %v2803, 81
      %v2812 = vpop.permute.xlu0 %2811
      %2813 = vrot.lane.b32.xlu0 %v2804, 81
      %v2814 = vpop.permute.xlu0 %2813
      %2815 = vrot.lane.b32.xlu0 %v2805, 81
      %v2816 = vpop.permute.xlu0 %2815
      %2817 = vrot.lane.b32.xlu0 %v2806, 81
      %v2818 = vpop.permute.xlu0 %2817
      %vm2819 = vcmask 662528
      %v2820 = vsel %vm2819, %v2812, %v2814
      %v2821 = vsel %vm2819, %v2814, %v2816
      %v2822 = vsel %vm2819, %v2816, %v2818
      %2826 = vst [vmem:[#allocation4 + $0x48] sm:$0xff] %v2820
      %2827 = vst [vmem:[#allocation4 + $0x50] sm:$0xff] %v2821
      %2828 = vst [vmem:[#allocation4 + $0x58] sm:$0xff] %v2822
      %v2829 = vld [vmem:[#allocation2 + $0x8] sm:$0xff]
      %v2830 = vld [vmem:[#allocation2 + $0x10] sm:$0xff]
      %v2831 = vld [vmem:[#allocation2 + $0x18] sm:$0xff]
      %v2832 = vld [vmem:[#allocation2 + $0x20] sm:$0xff]
      %2837 = vrot.lane.b32.xlu0 %v2829, 80
      %v2838 = vpop.permute.xlu0 %2837
      %2839 = vrot.lane.b32.xlu0 %v2830, 80
      %v2840 = vpop.permute.xlu0 %2839
      %2841 = vrot.lane.b32.xlu0 %v2831, 80
      %v2842 = vpop.permute.xlu0 %2841
      %2843 = vrot.lane.b32.xlu0 %v2832, 80
      %v2844 = vpop.permute.xlu0 %2843
      %vm2845 = vcmask 654336
      %v2846 = vsel %vm2845, %v2838, %v2840
      %v2847 = vsel %vm2845, %v2840, %v2842
      %v2848 = vsel %vm2845, %v2842, %v2844
      %2852 = vst [vmem:[#allocation4 + $0x60] sm:$0xff] %v2846
      %2853 = vst [vmem:[#allocation4 + $0x68] sm:$0xff] %v2847
      %2854 = vst [vmem:[#allocation4 + $0x70] sm:$0xff] %v2848
      %v2855 = vld [vmem:[#allocation2 + $0x8] sm:$0xff]
      %v2856 = vld [vmem:[#allocation2 + $0x10] sm:$0xff]
      %v2857 = vld [vmem:[#allocation2 + $0x18] sm:$0xff]
      %v2858 = vld [vmem:[#allocation2 + $0x20] sm:$0xff]
      %2863 = vrot.lane.b32.xlu0 %v2855, 79
      %v2864 = vpop.permute.xlu0 %2863
      %2865 = vrot.lane.b32.xlu0 %v2856, 79
      %v2866 = vpop.permute.xlu0 %2865
      %2867 = vrot.lane.b32.xlu0 %v2857, 79
      %v2868 = vpop.permute.xlu0 %2867
      %2869 = vrot.lane.b32.xlu0 %v2858, 79
      %v2870 = vpop.permute.xlu0 %2869
      %vm2871 = vcmask 646144
      %v2872 = vsel %vm2871, %v2864, %v2866
      %v2873 = vsel %vm2871, %v2866, %v2868
      %v2874 = vsel %vm2871, %v2868, %v2870
      %2878 = vst [vmem:[#allocation4 + $0x78] sm:$0xff] %v2872
      %2879 = vst [vmem:[#allocation4 + $0x80] sm:$0xff] %v2873
      %2880 = vst [vmem:[#allocation4 + $0x88] sm:$0xff] %v2874
      %v2881 = vld [vmem:[#allocation2 + $0x8] sm:$0xff]
      %v2882 = vld [vmem:[#allocation2 + $0x10] sm:$0xff]
      %v2883 = vld [vmem:[#allocation2 + $0x18] sm:$0xff]
      %v2884 = vld [vmem:[#allocation2 + $0x20] sm:$0xff]
      %2889 = vrot.lane.b32.xlu0 %v2881, 78
      %v2890 = vpop.permute.xlu0 %2889
      %2891 = vrot.lane.b32.xlu0 %v2882, 78
      %v2892 = vpop.permute.xlu0 %2891
      %2893 = vrot.lane.b32.xlu0 %v2883, 78
      %v2894 = vpop.permute.xlu0 %2893
      %2895 = vrot.lane.b32.xlu0 %v2884, 78
      %v2896 = vpop.permute.xlu0 %2895
      %vm2897 = vcmask 637952
      %v2898 = vsel %vm2897, %v2890, %v2892
      %v2899 = vsel %vm2897, %v2892, %v2894
      %v2900 = vsel %vm2897, %v2894, %v2896
      %2904 = vst [vmem:[#allocation4 + $0x90] sm:$0xff] %v2898
      %2905 = vst [vmem:[#allocation4 + $0x98] sm:$0xff] %v2899
      %2906 = vst [vmem:[#allocation4 + $0xa0] sm:$0xff] %v2900
      %v2907 = vld [vmem:[#allocation2 + $0x8] sm:$0xff]
      %v2908 = vld [vmem:[#allocation2 + $0x10] sm:$0xff]
      %v2909 = vld [vmem:[#allocation2 + $0x18] sm:$0xff]
      %v2910 = vld [vmem:[#allocation2 + $0x20] sm:$0xff]
      %2915 = vrot.lane.b32.xlu0 %v2907, 77
      %v2916 = vpop.permute.xlu0 %2915
      %2917 = vrot.lane.b32.xlu0 %v2908, 77
      %v2918 = vpop.permute.xlu0 %2917
      %2919 = vrot.lane.b32.xlu0 %v2909, 77
      %v2920 = vpop.permute.xlu0 %2919
      %2921 = vrot.lane.b32.xlu0 %v2910, 77
      %v2922 = vpop.permute.xlu0 %2921
      %vm2923 = vcmask 629760
      %v2924 = vsel %vm2923, %v2916, %v2918
      %v2925 = vsel %vm2923, %v2918, %v2920
      %v2926 = vsel %vm2923, %v2920, %v2922
      %2930 = vst [vmem:[#allocation4 + $0xa8] sm:$0xff] %v2924
      %2931 = vst [vmem:[#allocation4 + $0xb0] sm:$0xff] %v2925
      %2932 = vst [vmem:[#allocation4 + $0xb8] sm:$0xff] %v2926
      %v2933 = vld [vmem:[#allocation2 + $0x8] sm:$0xff]
      %v2934 = vld [vmem:[#allocation2 + $0x10] sm:$0xff]
      %v2935 = vld [vmem:[#allocation2 + $0x18] sm:$0xff]
      %v2936 = vld [vmem:[#allocation2 + $0x20] sm:$0xff]
      %2941 = vrot.lane.b32.xlu0 %v2933, 76
      %v2942 = vpop.permute.xlu0 %2941
      %2943 = vrot.lane.b32.xlu0 %v2934, 76
      %v2944 = vpop.permute.xlu0 %2943
      %2945 = vrot.lane.b32.xlu0 %v2935, 76
      %v2946 = vpop.permute.xlu0 %2945
      %2947 = vrot.lane.b32.xlu0 %v2936, 76
      %v2948 = vpop.permute.xlu0 %2947
      %v2949 = vsel %vm576, %v2942, %v2944
      %v2950 = vsel %vm576, %v2944, %v2946
      %v2951 = vsel %vm576, %v2946, %v2948
      %2955 = vst [vmem:[#allocation4 + $0xc0] sm:$0xff] %v2949
      %2956 = vst [vmem:[#allocation4 + $0xc8] sm:$0xff] %v2950
      %2957 = vst [vmem:[#allocation4 + $0xd0] sm:$0xff] %v2951
      %v2958 = vld [vmem:[%s266 + $0x30] sm:$0xff]
      %v2959 = vld [vmem:[#allocation4] sm:$0xff]
      %v2960 = vld [vmem:[#allocation4 + $0x8] sm:$0xff]
      %v2961 = vld [vmem:[#allocation4 + $0x10] sm:$0xff]
      %v2962 = vld [vmem:[#allocation4 + $0x18] sm:$0xff]
      %v2963 = vld [vmem:[#allocation4 + $0x20] sm:$0xff]
      %v2964 = vld [vmem:[#allocation4 + $0x28] sm:$0xff]
      %v2965 = vld [vmem:[#allocation4 + $0x30] sm:$0xff]
      %v2966 = vld [vmem:[#allocation4 + $0x38] sm:$0xff]
      %v2967 = vld [vmem:[#allocation4 + $0x40] sm:$0xff]
      %v2968 = vld [vmem:[#allocation4 + $0x48] sm:$0xff]
      %v2969 = vld [vmem:[#allocation4 + $0x50] sm:$0xff]
      %v2970 = vld [vmem:[#allocation4 + $0x58] sm:$0xff]
      %v2971 = vld [vmem:[#allocation4 + $0x60] sm:$0xff]
      %v2972 = vld [vmem:[#allocation4 + $0x68] sm:$0xff]
      %v2973 = vld [vmem:[#allocation4 + $0x70] sm:$0xff]
      %v2974 = vld [vmem:[#allocation4 + $0x78] sm:$0xff]
      %v2975 = vld [vmem:[#allocation4 + $0x80] sm:$0xff]
      %v2976 = vld [vmem:[#allocation4 + $0x88] sm:$0xff]
      %v2977 = vld [vmem:[#allocation4 + $0x90] sm:$0xff]
      %v2978 = vld [vmem:[#allocation4 + $0x98] sm:$0xff]
      %v2979 = vld [vmem:[#allocation4 + $0xa0] sm:$0xff]
      %v2980 = vld [vmem:[#allocation4 + $0xa8] sm:$0xff]
      %v2981 = vld [vmem:[#allocation4 + $0xb0] sm:$0xff]
      %v2982 = vld [vmem:[#allocation4 + $0xb8] sm:$0xff]
      %v2983 = vld [vmem:[#allocation4 + $0xc0] sm:$0xff]
      %v2984 = vld [vmem:[#allocation4 + $0xc8] sm:$0xff]
      %v2985 = vld [vmem:[#allocation4 + $0xd0] sm:$0xff]
      %v2987 = vsel %vm680, %v2958, 0
      %2989 = vmatprep.subr.mxu0 %v2960
      %2990 = vmatpush1.msra.mxu0 %v2959
      %2991 = vmatprep.subr.mxu0 %v2963
      %2992 = vmatpush1.msra.mxu0 %v2962
      %2993 = vmatprep.subr.mxu0 %v2966
      %2994 = vmatpush1.msra.mxu0 %v2965
      %2995 = vmatprep.subr.mxu0 %v2969
      %2996 = vmatpush1.msra.mxu0 %v2968
      %2997 = vmatprep.subr.mxu0 %v2972
      %2998 = vmatpush1.msra.mxu0 %v2971
      %2999 = vmatprep.subr.mxu0 %v2975
      %3000 = vmatpush1.msra.mxu0 %v2974
      %3001 = vmatprep.subr.mxu0 %v2978
      %3002 = vmatpush1.msra.mxu0 %v2977
      %3003 = vmatprep.subr.mxu0 %v2981
      %3004 = vmatpush1.msra.mxu0 %v2980
      %3005 = vmatprep.subr.mxu0 %v2984
      %3006 = vmatpush1.msra.mxu0 %v2983
      %3007 = vmatprep.subr.mxu0 0.0
      %3008 = vmatpush1.msra.mxu0 0.0
      %3009 = vmatprep.subr.mxu0 0.0
      %3010 = vmatpush1.msra.mxu0 0.0
      %3011 = vmatprep.subr.mxu0 0.0
      %3012 = vmatpush1.msra.mxu0 0.0
      %3013 = vmatprep.subr.mxu0 0.0
      %3014 = vmatpush1.msra.mxu0 0.0
      %3015 = vmatprep.subr.mxu0 0.0
      %3016 = vmatpush1.msra.mxu0 0.0
      %3017 = vmatprep.subr.mxu0 0.0
      %3018 = vmatpush1.msra.mxu0 0.0
      %3019 = vmatprep.subr.mxu0 0.0
      %3020 = vmatpush1.msra.mxu0 0.0
      %3021 = vmatprep.subr.mxu0 0.0
      %3022 = vmatpush1.msra.mxu0 0.0
      %3023 = vmatprep.subr.mxu0 0.0
      %3024 = vmatpush1.msra.mxu0 0.0
      %3025 = vmatprep.subr.mxu0 0.0
      %3026 = vmatpush1.msra.mxu0 0.0
      %3027 = vmatprep.subr.mxu0 0.0
      %3028 = vmatpush1.msra.mxu0 0.0
      %3029 = vmatprep.subr.mxu0 0.0
      %3030 = vmatpush1.msra.mxu0 0.0
      %3031 = vmatprep.subr.mxu0 0.0
      %3032 = vmatpush1.msra.mxu0 0.0
      %3033 = vmatprep.subr.mxu0 0.0
      %3034 = vmatpush1.msra.mxu0 0.0
      %3035 = vmatprep.subr.mxu0 0.0
      %3036 = vmatpush1.msra.mxu0 0.0
      %3037 = vmatprep.subr.mxu0 0.0
      %3038 = vmatpush1.msra.mxu0 0.0
      %3039 = vmatprep.subr.mxu0 0.0
      %3040 = vmatpush1.msra.mxu0 0.0
      %3041 = vmatprep.subr.mxu0 0.0
      %3042 = vmatpush1.msra.mxu0 0.0
      %3043 = vmatprep.subr.mxu0 0.0
      %3044 = vmatpush1.msra.mxu0 0.0
      %3045 = vmatprep.subr.mxu0 0.0
      %3046 = vmatpush1.msra.mxu0 0.0
      %3047 = vmatprep.subr.mxu0 0.0
      %3048 = vmatpush1.msra.mxu0 0.0
      %3049 = vmatprep.subr.mxu0 0.0
      %3050 = vmatpush1.msra.mxu0 0.0
      %3051 = vmatprep.subr.mxu0 0.0
      %3052 = vmatpush1.msra.mxu0 0.0
      %3053 = vmatprep.mubr.f32.mxu0 0.0
      %3054 = vmatmul.mubr.f32.gmra.mrb[0].mxu0 %v2987
      %v3055 = vpop.f32.mrb[0].mxu0
      %v3056 = vadd.f32 0.0, %v3055
      %v3057 = vpop.f32.mrb[0].mxu0
      %v3058 = vadd.f32 0.0, %v3057
      %3059 = vdwg.mxu0
      %3060 = vmatprep.subr.mxu0 0.0
      %3061 = vmatpush1.msra.mxu0 %v2961
      %3062 = vmatprep.subr.mxu0 0.0
      %3063 = vmatpush1.msra.mxu0 %v2964
      %3064 = vmatprep.subr.mxu0 0.0
      %3065 = vmatpush1.msra.mxu0 %v2967
      %3066 = vmatprep.subr.mxu0 0.0
      %3067 = vmatpush1.msra.mxu0 %v2970
      %3068 = vmatprep.subr.mxu0 0.0
      %3069 = vmatpush1.msra.mxu0 %v2973
      %3070 = vmatprep.subr.mxu0 0.0
      %3071 = vmatpush1.msra.mxu0 %v2976
      %3072 = vmatprep.subr.mxu0 0.0
      %3073 = vmatpush1.msra.mxu0 %v2979
      %3074 = vmatprep.subr.mxu0 0.0
      %3075 = vmatpush1.msra.mxu0 %v2982
      %3076 = vmatprep.subr.mxu0 0.0
      %3077 = vmatpush1.msra.mxu0 %v2985
      %3078 = vmatprep.subr.mxu0 0.0
      %3079 = vmatpush1.msra.mxu0 0.0
      %3080 = vmatprep.subr.mxu0 0.0
      %3081 = vmatpush1.msra.mxu0 0.0
      %3082 = vmatprep.subr.mxu0 0.0
      %3083 = vmatpush1.msra.mxu0 0.0
      %3084 = vmatprep.subr.mxu0 0.0
      %3085 = vmatpush1.msra.mxu0 0.0
      %3086 = vmatprep.subr.mxu0 0.0
      %3087 = vmatpush1.msra.mxu0 0.0
      %3088 = vmatprep.subr.mxu0 0.0
      %3089 = vmatpush1.msra.mxu0 0.0
      %3090 = vmatprep.subr.mxu0 0.0
      %3091 = vmatpush1.msra.mxu0 0.0
      %3092 = vmatprep.subr.mxu0 0.0
      %3093 = vmatpush1.msra.mxu0 0.0
      %3094 = vmatprep.subr.mxu0 0.0
      %3095 = vmatpush1.msra.mxu0 0.0
      %3096 = vmatprep.subr.mxu0 0.0
      %3097 = vmatpush1.msra.mxu0 0.0
      %3098 = vmatprep.subr.mxu0 0.0
      %3099 = vmatpush1.msra.mxu0 0.0
      %3100 = vmatprep.subr.mxu0 0.0
      %3101 = vmatpush1.msra.mxu0 0.0
      %3102 = vmatprep.subr.mxu0 0.0
      %3103 = vmatpush1.msra.mxu0 0.0
      %3104 = vmatprep.subr.mxu0 0.0
      %3105 = vmatpush1.msra.mxu0 0.0
      %3106 = vmatprep.subr.mxu0 0.0
      %3107 = vmatpush1.msra.mxu0 0.0
      %3108 = vmatprep.subr.mxu0 0.0
      %3109 = vmatpush1.msra.mxu0 0.0
      %3110 = vmatprep.subr.mxu0 0.0
      %3111 = vmatpush1.msra.mxu0 0.0
      %3112 = vmatprep.subr.mxu0 0.0
      %3113 = vmatpush1.msra.mxu0 0.0
      %3114 = vmatprep.subr.mxu0 0.0
      %3115 = vmatpush1.msra.mxu0 0.0
      %3116 = vmatprep.subr.mxu0 0.0
      %3117 = vmatpush1.msra.mxu0 0.0
      %3118 = vmatprep.subr.mxu0 0.0
      %3119 = vmatpush1.msra.mxu0 0.0
      %3120 = vmatprep.subr.mxu0 0.0
      %3121 = vmatpush1.msra.mxu0 0.0
      %3122 = vmatprep.subr.mxu0 0.0
      %3123 = vmatpush1.msra.mxu0 0.0
      %3124 = vmatprep.mubr.f32.mxu0 0.0
      %3125 = vmatmul.mubr.f32.gmra.mrb[0].mxu0 %v2987
      %v3126 = vpop.f32.mrb[0].mxu0
      %v3127 = vadd.f32 0.0, %v3126
      %v3128 = vpop.f32.mrb[0].mxu0
      %3129 = vdwg.mxu0
      %v3130 = vadd.f32 %v2722, %v3056
      %v3131 = vadd.f32 %v2723, %v3058
      %v3132 = vadd.f32 %v2724, %v3127
      %v3133 = vld [vmem:[#allocation2 + $0x8] sm:$0xff]
      %v3134 = vld [vmem:[#allocation2 + $0x10] sm:$0xff]
      %v3135 = vld [vmem:[#allocation2 + $0x18] sm:$0xff]
      %v3136 = vld [vmem:[#allocation2 + $0x20] sm:$0xff]
      %3141 = vrot.lane.b32.xlu0 %v3133, 60
      %v3142 = vpop.permute.xlu0 %3141
      %3143 = vrot.lane.b32.xlu0 %v3134, 60
      %v3144 = vpop.permute.xlu0 %3143
      %3145 = vrot.lane.b32.xlu0 %v3135, 60
      %v3146 = vpop.permute.xlu0 %3145
      %3147 = vrot.lane.b32.xlu0 %v3136, 60
      %v3148 = vpop.permute.xlu0 %3147
      %vm3149 = vcmask 490496
      %v3150 = vsel %vm3149, %v3142, %v3144
      %v3151 = vsel %vm3149, %v3144, %v3146
      %v3152 = vsel %vm3149, %v3146, %v3148
      %3156 = vst [vmem:[#allocation4 + $0xd8] sm:$0xff] %v3150
      %3157 = vst [vmem:[#allocation4 + $0xe0] sm:$0xff] %v3151
      %3158 = vst [vmem:[#allocation4 + $0xe8] sm:$0xff] %v3152
      %v3159 = vld [vmem:[#allocation2 + $0x8] sm:$0xff]
      %v3160 = vld [vmem:[#allocation2 + $0x10] sm:$0xff]
      %v3161 = vld [vmem:[#allocation2 + $0x18] sm:$0xff]
      %v3162 = vld [vmem:[#allocation2 + $0x20] sm:$0xff]
      %3167 = vrot.lane.b32.xlu0 %v3159, 59
      %v3168 = vpop.permute.xlu0 %3167
      %3169 = vrot.lane.b32.xlu0 %v3160, 59
      %v3170 = vpop.permute.xlu0 %3169
      %3171 = vrot.lane.b32.xlu0 %v3161, 59
      %v3172 = vpop.permute.xlu0 %3171
      %3173 = vrot.lane.b32.xlu0 %v3162, 59
      %v3174 = vpop.permute.xlu0 %3173
      %vm3175 = vcmask 482304
      %v3176 = vsel %vm3175, %v3168, %v3170
      %v3177 = vsel %vm3175, %v3170, %v3172
      %v3178 = vsel %vm3175, %v3172, %v3174
      %3182 = vst [vmem:[#allocation4 + $0xf0] sm:$0xff] %v3176
      %3183 = vst [vmem:[#allocation4 + $0xf8] sm:$0xff] %v3177
      %3184 = vst [vmem:[#allocation4 + $0x100] sm:$0xff] %v3178
      %v3185 = vld [vmem:[#allocation2 + $0x8] sm:$0xff]
      %v3186 = vld [vmem:[#allocation2 + $0x10] sm:$0xff]
      %v3187 = vld [vmem:[#allocation2 + $0x18] sm:$0xff]
      %v3188 = vld [vmem:[#allocation2 + $0x20] sm:$0xff]
      %3193 = vrot.lane.b32.xlu0 %v3185, 58
      %v3194 = vpop.permute.xlu0 %3193
      %3195 = vrot.lane.b32.xlu0 %v3186, 58
      %v3196 = vpop.permute.xlu0 %3195
      %3197 = vrot.lane.b32.xlu0 %v3187, 58
      %v3198 = vpop.permute.xlu0 %3197
      %3199 = vrot.lane.b32.xlu0 %v3188, 58
      %v3200 = vpop.permute.xlu0 %3199
      %vm3201 = vcmask 474112
      %v3202 = vsel %vm3201, %v3194, %v3196
      %v3203 = vsel %vm3201, %v3196, %v3198
      %v3204 = vsel %vm3201, %v3198, %v3200
      %3208 = vst [vmem:[#allocation4 + $0x108] sm:$0xff] %v3202
      %3209 = vst [vmem:[#allocation4 + $0x110] sm:$0xff] %v3203
      %3210 = vst [vmem:[#allocation4 + $0x118] sm:$0xff] %v3204
      %v3211 = vld [vmem:[#allocation2 + $0x8] sm:$0xff]
      %v3212 = vld [vmem:[#allocation2 + $0x10] sm:$0xff]
      %v3213 = vld [vmem:[#allocation2 + $0x18] sm:$0xff]
      %v3214 = vld [vmem:[#allocation2 + $0x20] sm:$0xff]
      %3219 = vrot.lane.b32.xlu0 %v3211, 57
      %v3220 = vpop.permute.xlu0 %3219
      %3221 = vrot.lane.b32.xlu0 %v3212, 57
      %v3222 = vpop.permute.xlu0 %3221
      %3223 = vrot.lane.b32.xlu0 %v3213, 57
      %v3224 = vpop.permute.xlu0 %3223
      %3225 = vrot.lane.b32.xlu0 %v3214, 57
      %v3226 = vpop.permute.xlu0 %3225
      %vm3227 = vcmask 465920
      %v3228 = vsel %vm3227, %v3220, %v3222
      %v3229 = vsel %vm3227, %v3222, %v3224
      %v3230 = vsel %vm3227, %v3224, %v3226
      %3234 = vst [vmem:[#allocation4 + $0x120] sm:$0xff] %v3228
      %3235 = vst [vmem:[#allocation4 + $0x128] sm:$0xff] %v3229
      %3236 = vst [vmem:[#allocation4 + $0x130] sm:$0xff] %v3230
      %v3237 = vld [vmem:[#allocation2 + $0x8] sm:$0xff]
      %v3238 = vld [vmem:[#allocation2 + $0x10] sm:$0xff]
      %v3239 = vld [vmem:[#allocation2 + $0x18] sm:$0xff]
      %v3240 = vld [vmem:[#allocation2 + $0x20] sm:$0xff]
      %3245 = vrot.lane.b32.xlu0 %v3237, 56
      %v3246 = vpop.permute.xlu0 %3245
      %3247 = vrot.lane.b32.xlu0 %v3238, 56
      %v3248 = vpop.permute.xlu0 %3247
      %3249 = vrot.lane.b32.xlu0 %v3239, 56
      %v3250 = vpop.permute.xlu0 %3249
      %3251 = vrot.lane.b32.xlu0 %v3240, 56
      %v3252 = vpop.permute.xlu0 %3251
      %vm3253 = vcmask 457728
      %v3254 = vsel %vm3253, %v3246, %v3248
      %v3255 = vsel %vm3253, %v3248, %v3250
      %v3256 = vsel %vm3253, %v3250, %v3252
      %3260 = vst [vmem:[#allocation4 + $0x138] sm:$0xff] %v3254
      %3261 = vst [vmem:[#allocation4 + $0x140] sm:$0xff] %v3255
      %3262 = vst [vmem:[#allocation4 + $0x148] sm:$0xff] %v3256
      %v3263 = vld [vmem:[#allocation2 + $0x8] sm:$0xff]
      %v3264 = vld [vmem:[#allocation2 + $0x10] sm:$0xff]
      %v3265 = vld [vmem:[#allocation2 + $0x18] sm:$0xff]
      %v3266 = vld [vmem:[#allocation2 + $0x20] sm:$0xff]
      %3271 = vrot.lane.b32.xlu0 %v3263, 55
      %v3272 = vpop.permute.xlu0 %3271
      %3273 = vrot.lane.b32.xlu0 %v3264, 55
      %v3274 = vpop.permute.xlu0 %3273
      %3275 = vrot.lane.b32.xlu0 %v3265, 55
      %v3276 = vpop.permute.xlu0 %3275
      %3277 = vrot.lane.b32.xlu0 %v3266, 55
      %v3278 = vpop.permute.xlu0 %3277
      %vm3279 = vcmask 449536
      %v3280 = vsel %vm3279, %v3272, %v3274
      %v3281 = vsel %vm3279, %v3274, %v3276
      %v3282 = vsel %vm3279, %v3276, %v3278
      %3286 = vst [vmem:[#allocation4 + $0x150] sm:$0xff] %v3280
      %3287 = vst [vmem:[#allocation4 + $0x158] sm:$0xff] %v3281
      %3288 = vst [vmem:[#allocation4 + $0x160] sm:$0xff] %v3282
      %v3289 = vld [vmem:[#allocation2 + $0x8] sm:$0xff]
      %v3290 = vld [vmem:[#allocation2 + $0x10] sm:$0xff]
      %v3291 = vld [vmem:[#allocation2 + $0x18] sm:$0xff]
      %v3292 = vld [vmem:[#allocation2 + $0x20] sm:$0xff]
      %3297 = vrot.lane.b32.xlu0 %v3289, 54
      %v3298 = vpop.permute.xlu0 %3297
      %3299 = vrot.lane.b32.xlu0 %v3290, 54
      %v3300 = vpop.permute.xlu0 %3299
      %3301 = vrot.lane.b32.xlu0 %v3291, 54
      %v3302 = vpop.permute.xlu0 %3301
      %3303 = vrot.lane.b32.xlu0 %v3292, 54
      %v3304 = vpop.permute.xlu0 %3303
      %vm3305 = vcmask 441344
      %v3306 = vsel %vm3305, %v3298, %v3300
      %v3307 = vsel %vm3305, %v3300, %v3302
      %v3308 = vsel %vm3305, %v3302, %v3304
      %3312 = vst [vmem:[#allocation4 + $0x168] sm:$0xff] %v3306
      %3313 = vst [vmem:[#allocation4 + $0x170] sm:$0xff] %v3307
      %3314 = vst [vmem:[#allocation4 + $0x178] sm:$0xff] %v3308
      %v3315 = vld [vmem:[#allocation2 + $0x8] sm:$0xff]
      %v3316 = vld [vmem:[#allocation2 + $0x10] sm:$0xff]
      %v3317 = vld [vmem:[#allocation2 + $0x18] sm:$0xff]
      %v3318 = vld [vmem:[#allocation2 + $0x20] sm:$0xff]
      %3323 = vrot.lane.b32.xlu0 %v3315, 53
      %v3324 = vpop.permute.xlu0 %3323
      %3325 = vrot.lane.b32.xlu0 %v3316, 53
      %v3326 = vpop.permute.xlu0 %3325
      %3327 = vrot.lane.b32.xlu0 %v3317, 53
      %v3328 = vpop.permute.xlu0 %3327
      %3329 = vrot.lane.b32.xlu0 %v3318, 53
      %v3330 = vpop.permute.xlu0 %3329
      %vm3331 = vcmask 433152
      %v3332 = vsel %vm3331, %v3324, %v3326
      %v3333 = vsel %vm3331, %v3326, %v3328
      %v3334 = vsel %vm3331, %v3328, %v3330
      %3338 = vst [vmem:[#allocation4 + $0x180] sm:$0xff] %v3332
      %3339 = vst [vmem:[#allocation4 + $0x188] sm:$0xff] %v3333
      %3340 = vst [vmem:[#allocation4 + $0x190] sm:$0xff] %v3334
      %v3341 = vld [vmem:[#allocation2 + $0x8] sm:$0xff]
      %v3342 = vld [vmem:[#allocation2 + $0x10] sm:$0xff]
      %v3343 = vld [vmem:[#allocation2 + $0x18] sm:$0xff]
      %v3344 = vld [vmem:[#allocation2 + $0x20] sm:$0xff]
      %3349 = vrot.lane.b32.xlu0 %v3341, 52
      %v3350 = vpop.permute.xlu0 %3349
      %3351 = vrot.lane.b32.xlu0 %v3342, 52
      %v3352 = vpop.permute.xlu0 %3351
      %3353 = vrot.lane.b32.xlu0 %v3343, 52
      %v3354 = vpop.permute.xlu0 %3353
      %3355 = vrot.lane.b32.xlu0 %v3344, 52
      %v3356 = vpop.permute.xlu0 %3355
      %v3357 = vsel %vm1126, %v3350, %v3352
      %v3358 = vsel %vm1126, %v3352, %v3354
      %v3359 = vsel %vm1126, %v3354, %v3356
      %3363 = vst [vmem:[#allocation4 + $0x198] sm:$0xff] %v3357
      %3364 = vst [vmem:[#allocation4 + $0x1a0] sm:$0xff] %v3358
      %3365 = vst [vmem:[#allocation4 + $0x1a8] sm:$0xff] %v3359
      %v3366 = vld [vmem:[%s266 + $0x38] sm:$0xff]
      %v3367 = vld [vmem:[#allocation4 + $0xd8] sm:$0xff]
      %v3368 = vld [vmem:[#allocation4 + $0xe0] sm:$0xff]
      %v3369 = vld [vmem:[#allocation4 + $0xe8] sm:$0xff]
      %v3370 = vld [vmem:[#allocation4 + $0xf0] sm:$0xff]
      %v3371 = vld [vmem:[#allocation4 + $0xf8] sm:$0xff]
      %v3372 = vld [vmem:[#allocation4 + $0x100] sm:$0xff]
      %v3373 = vld [vmem:[#allocation4 + $0x108] sm:$0xff]
      %v3374 = vld [vmem:[#allocation4 + $0x110] sm:$0xff]
      %v3375 = vld [vmem:[#allocation4 + $0x118] sm:$0xff]
      %v3376 = vld [vmem:[#allocation4 + $0x120] sm:$0xff]
      %v3377 = vld [vmem:[#allocation4 + $0x128] sm:$0xff]
      %v3378 = vld [vmem:[#allocation4 + $0x130] sm:$0xff]
      %v3379 = vld [vmem:[#allocation4 + $0x138] sm:$0xff]
      %v3380 = vld [vmem:[#allocation4 + $0x140] sm:$0xff]
      %v3381 = vld [vmem:[#allocation4 + $0x148] sm:$0xff]
      %v3382 = vld [vmem:[#allocation4 + $0x150] sm:$0xff]
      %v3383 = vld [vmem:[#allocation4 + $0x158] sm:$0xff]
      %v3384 = vld [vmem:[#allocation4 + $0x160] sm:$0xff]
      %v3385 = vld [vmem:[#allocation4 + $0x168] sm:$0xff]
      %v3386 = vld [vmem:[#allocation4 + $0x170] sm:$0xff]
      %v3387 = vld [vmem:[#allocation4 + $0x178] sm:$0xff]
      %v3388 = vld [vmem:[#allocation4 + $0x180] sm:$0xff]
      %v3389 = vld [vmem:[#allocation4 + $0x188] sm:$0xff]
      %v3390 = vld [vmem:[#allocation4 + $0x190] sm:$0xff]
      %v3391 = vld [vmem:[#allocation4 + $0x198] sm:$0xff]
      %v3392 = vld [vmem:[#allocation4 + $0x1a0] sm:$0xff]
      %v3393 = vld [vmem:[#allocation4 + $0x1a8] sm:$0xff]
      %v3395 = vsel %vm680, %v3366, 0
      %3397 = vmatprep.subr.mxu0 %v3368
      %3398 = vmatpush1.msra.mxu0 %v3367
      %3399 = vmatprep.subr.mxu0 %v3371
      %3400 = vmatpush1.msra.mxu0 %v3370
      %3401 = vmatprep.subr.mxu0 %v3374
      %3402 = vmatpush1.msra.mxu0 %v3373
      %3403 = vmatprep.subr.mxu0 %v3377
      %3404 = vmatpush1.msra.mxu0 %v3376
      %3405 = vmatprep.subr.mxu0 %v3380
      %3406 = vmatpush1.msra.mxu0 %v3379
      %3407 = vmatprep.subr.mxu0 %v3383
      %3408 = vmatpush1.msra.mxu0 %v3382
      %3409 = vmatprep.subr.mxu0 %v3386
      %3410 = vmatpush1.msra.mxu0 %v3385
      %3411 = vmatprep.subr.mxu0 %v3389
      %3412 = vmatpush1.msra.mxu0 %v3388
      %3413 = vmatprep.subr.mxu0 %v3392
      %3414 = vmatpush1.msra.mxu0 %v3391
      %3415 = vmatprep.subr.mxu0 0.0
      %3416 = vmatpush1.msra.mxu0 0.0
      %3417 = vmatprep.subr.mxu0 0.0
      %3418 = vmatpush1.msra.mxu0 0.0
      %3419 = vmatprep.subr.mxu0 0.0
      %3420 = vmatpush1.msra.mxu0 0.0
      %3421 = vmatprep.subr.mxu0 0.0
      %3422 = vmatpush1.msra.mxu0 0.0
      %3423 = vmatprep.subr.mxu0 0.0
      %3424 = vmatpush1.msra.mxu0 0.0
      %3425 = vmatprep.subr.mxu0 0.0
      %3426 = vmatpush1.msra.mxu0 0.0
      %3427 = vmatprep.subr.mxu0 0.0
      %3428 = vmatpush1.msra.mxu0 0.0
      %3429 = vmatprep.subr.mxu0 0.0
      %3430 = vmatpush1.msra.mxu0 0.0
      %3431 = vmatprep.subr.mxu0 0.0
      %3432 = vmatpush1.msra.mxu0 0.0
      %3433 = vmatprep.subr.mxu0 0.0
      %3434 = vmatpush1.msra.mxu0 0.0
      %3435 = vmatprep.subr.mxu0 0.0
      %3436 = vmatpush1.msra.mxu0 0.0
      %3437 = vmatprep.subr.mxu0 0.0
      %3438 = vmatpush1.msra.mxu0 0.0
      %3439 = vmatprep.subr.mxu0 0.0
      %3440 = vmatpush1.msra.mxu0 0.0
      %3441 = vmatprep.subr.mxu0 0.0
      %3442 = vmatpush1.msra.mxu0 0.0
      %3443 = vmatprep.subr.mxu0 0.0
      %3444 = vmatpush1.msra.mxu0 0.0
      %3445 = vmatprep.subr.mxu0 0.0
      %3446 = vmatpush1.msra.mxu0 0.0
      %3447 = vmatprep.subr.mxu0 0.0
      %3448 = vmatpush1.msra.mxu0 0.0
      %3449 = vmatprep.subr.mxu0 0.0
      %3450 = vmatpush1.msra.mxu0 0.0
      %3451 = vmatprep.subr.mxu0 0.0
      %3452 = vmatpush1.msra.mxu0 0.0
      %3453 = vmatprep.subr.mxu0 0.0
      %3454 = vmatpush1.msra.mxu0 0.0
      %3455 = vmatprep.subr.mxu0 0.0
      %3456 = vmatpush1.msra.mxu0 0.0
      %3457 = vmatprep.subr.mxu0 0.0
      %3458 = vmatpush1.msra.mxu0 0.0
      %3459 = vmatprep.subr.mxu0 0.0
      %3460 = vmatpush1.msra.mxu0 0.0
      %3461 = vmatprep.mubr.f32.mxu0 0.0
      %3462 = vmatmul.mubr.f32.gmra.mrb[0].mxu0 %v3395
      %v3463 = vpop.f32.mrb[0].mxu0
      %v3464 = vadd.f32 0.0, %v3463
      %v3465 = vpop.f32.mrb[0].mxu0
      %v3466 = vadd.f32 0.0, %v3465
      %3467 = vdwg.mxu0
      %3468 = vmatprep.subr.mxu0 0.0
      %3469 = vmatpush1.msra.mxu0 %v3369
      %3470 = vmatprep.subr.mxu0 0.0
      %3471 = vmatpush1.msra.mxu0 %v3372
      %3472 = vmatprep.subr.mxu0 0.0
      %3473 = vmatpush1.msra.mxu0 %v3375
      %3474 = vmatprep.subr.mxu0 0.0
      %3475 = vmatpush1.msra.mxu0 %v3378
      %3476 = vmatprep.subr.mxu0 0.0
      %3477 = vmatpush1.msra.mxu0 %v3381
      %3478 = vmatprep.subr.mxu0 0.0
      %3479 = vmatpush1.msra.mxu0 %v3384
      %3480 = vmatprep.subr.mxu0 0.0
      %3481 = vmatpush1.msra.mxu0 %v3387
      %3482 = vmatprep.subr.mxu0 0.0
      %3483 = vmatpush1.msra.mxu0 %v3390
      %3484 = vmatprep.subr.mxu0 0.0
      %3485 = vmatpush1.msra.mxu0 %v3393
      %3486 = vmatprep.subr.mxu0 0.0
      %3487 = vmatpush1.msra.mxu0 0.0
      %3488 = vmatprep.subr.mxu0 0.0
      %3489 = vmatpush1.msra.mxu0 0.0
      %3490 = vmatprep.subr.mxu0 0.0
      %3491 = vmatpush1.msra.mxu0 0.0
      %3492 = vmatprep.subr.mxu0 0.0
      %3493 = vmatpush1.msra.mxu0 0.0
      %3494 = vmatprep.subr.mxu0 0.0
      %3495 = vmatpush1.msra.mxu0 0.0
      %3496 = vmatprep.subr.mxu0 0.0
      %3497 = vmatpush1.msra.mxu0 0.0
      %3498 = vmatprep.subr.mxu0 0.0
      %3499 = vmatpush1.msra.mxu0 0.0
      %3500 = vmatprep.subr.mxu0 0.0
      %3501 = vmatpush1.msra.mxu0 0.0
      %3502 = vmatprep.subr.mxu0 0.0
      %3503 = vmatpush1.msra.mxu0 0.0
      %3504 = vmatprep.subr.mxu0 0.0
      %3505 = vmatpush1.msra.mxu0 0.0
      %3506 = vmatprep.subr.mxu0 0.0
      %3507 = vmatpush1.msra.mxu0 0.0
      %3508 = vmatprep.subr.mxu0 0.0
      %3509 = vmatpush1.msra.mxu0 0.0
      %3510 = vmatprep.subr.mxu0 0.0
      %3511 = vmatpush1.msra.mxu0 0.0
      %3512 = vmatprep.subr.mxu0 0.0
      %3513 = vmatpush1.msra.mxu0 0.0
      %3514 = vmatprep.subr.mxu0 0.0
      %3515 = vmatpush1.msra.mxu0 0.0
      %3516 = vmatprep.subr.mxu0 0.0
      %3517 = vmatpush1.msra.mxu0 0.0
      %3518 = vmatprep.subr.mxu0 0.0
      %3519 = vmatpush1.msra.mxu0 0.0
      %3520 = vmatprep.subr.mxu0 0.0
      %3521 = vmatpush1.msra.mxu0 0.0
      %3522 = vmatprep.subr.mxu0 0.0
      %3523 = vmatpush1.msra.mxu0 0.0
      %3524 = vmatprep.subr.mxu0 0.0
      %3525 = vmatpush1.msra.mxu0 0.0
      %3526 = vmatprep.subr.mxu0 0.0
      %3527 = vmatpush1.msra.mxu0 0.0
      %3528 = vmatprep.subr.mxu0 0.0
      %3529 = vmatpush1.msra.mxu0 0.0
      %3530 = vmatprep.subr.mxu0 0.0
      %3531 = vmatpush1.msra.mxu0 0.0
      %3532 = vmatprep.mubr.f32.mxu0 0.0
      %3533 = vmatmul.mubr.f32.gmra.mrb[0].mxu0 %v3395
      %v3534 = vpop.f32.mrb[0].mxu0
      %v3535 = vadd.f32 0.0, %v3534
      %v3536 = vpop.f32.mrb[0].mxu0
      %3537 = vdwg.mxu0
      %v3538 = vadd.f32 %v3130, %v3464
      %v3539 = vadd.f32 %v3131, %v3466
      %v3540 = vadd.f32 %v3132, %v3535
      %v3541 = vld [vmem:[#allocation2 + $0x8] sm:$0xff]
      %v3542 = vld [vmem:[#allocation2 + $0x10] sm:$0xff]
      %v3543 = vld [vmem:[#allocation2 + $0x18] sm:$0xff]
      %v3544 = vld [vmem:[#allocation2 + $0x20] sm:$0xff]
      %3549 = vrot.lane.b32.xlu0 %v3541, 36
      %v3550 = vpop.permute.xlu0 %3549
      %3551 = vrot.lane.b32.xlu0 %v3542, 36
      %v3552 = vpop.permute.xlu0 %3551
      %3553 = vrot.lane.b32.xlu0 %v3543, 36
      %v3554 = vpop.permute.xlu0 %3553
      %3555 = vrot.lane.b32.xlu0 %v3544, 36
      %v3556 = vpop.permute.xlu0 %3555
      %vm3557 = vcmask 293888
      %v3558 = vsel %vm3557, %v3550, %v3552
      %v3559 = vsel %vm3557, %v3552, %v3554
      %v3560 = vsel %vm3557, %v3554, %v3556
      %3564 = vst [vmem:[#allocation4] sm:$0xff] %v3558
      %3565 = vst [vmem:[#allocation4 + $0x8] sm:$0xff] %v3559
      %3566 = vst [vmem:[#allocation4 + $0x10] sm:$0xff] %v3560
      %v3567 = vld [vmem:[#allocation2 + $0x8] sm:$0xff]
      %v3568 = vld [vmem:[#allocation2 + $0x10] sm:$0xff]
      %v3569 = vld [vmem:[#allocation2 + $0x18] sm:$0xff]
      %v3570 = vld [vmem:[#allocation2 + $0x20] sm:$0xff]
      %3575 = vrot.lane.b32.xlu0 %v3567, 35
      %v3576 = vpop.permute.xlu0 %3575
      %3577 = vrot.lane.b32.xlu0 %v3568, 35
      %v3578 = vpop.permute.xlu0 %3577
      %3579 = vrot.lane.b32.xlu0 %v3569, 35
      %v3580 = vpop.permute.xlu0 %3579
      %3581 = vrot.lane.b32.xlu0 %v3570, 35
      %v3582 = vpop.permute.xlu0 %3581
      %vm3583 = vcmask 285696
      %v3584 = vsel %vm3583, %v3576, %v3578
      %v3585 = vsel %vm3583, %v3578, %v3580
      %v3586 = vsel %vm3583, %v3580, %v3582
      %3590 = vst [vmem:[#allocation4 + $0x18] sm:$0xff] %v3584
      %3591 = vst [vmem:[#allocation4 + $0x20] sm:$0xff] %v3585
      %3592 = vst [vmem:[#allocation4 + $0x28] sm:$0xff] %v3586
      %v3593 = vld [vmem:[#allocation2 + $0x8] sm:$0xff]
      %v3594 = vld [vmem:[#allocation2 + $0x10] sm:$0xff]
      %v3595 = vld [vmem:[#allocation2 + $0x18] sm:$0xff]
      %v3596 = vld [vmem:[#allocation2 + $0x20] sm:$0xff]
      %3601 = vrot.lane.b32.xlu0 %v3593, 34
      %v3602 = vpop.permute.xlu0 %3601
      %3603 = vrot.lane.b32.xlu0 %v3594, 34
      %v3604 = vpop.permute.xlu0 %3603
      %3605 = vrot.lane.b32.xlu0 %v3595, 34
      %v3606 = vpop.permute.xlu0 %3605
      %3607 = vrot.lane.b32.xlu0 %v3596, 34
      %v3608 = vpop.permute.xlu0 %3607
      %vm3609 = vcmask 277504
      %v3610 = vsel %vm3609, %v3602, %v3604
      %v3611 = vsel %vm3609, %v3604, %v3606
      %v3612 = vsel %vm3609, %v3606, %v3608
      %3616 = vst [vmem:[#allocation4 + $0x30] sm:$0xff] %v3610
      %3617 = vst [vmem:[#allocation4 + $0x38] sm:$0xff] %v3611
      %3618 = vst [vmem:[#allocation4 + $0x40] sm:$0xff] %v3612
      %v3619 = vld [vmem:[#allocation2 + $0x8] sm:$0xff]
      %v3620 = vld [vmem:[#allocation2 + $0x10] sm:$0xff]
      %v3621 = vld [vmem:[#allocation2 + $0x18] sm:$0xff]
      %v3622 = vld [vmem:[#allocation2 + $0x20] sm:$0xff]
      %3627 = vrot.lane.b32.xlu0 %v3619, 33
      %v3628 = vpop.permute.xlu0 %3627
      %3629 = vrot.lane.b32.xlu0 %v3620, 33
      %v3630 = vpop.permute.xlu0 %3629
      %3631 = vrot.lane.b32.xlu0 %v3621, 33
      %v3632 = vpop.permute.xlu0 %3631
      %3633 = vrot.lane.b32.xlu0 %v3622, 33
      %v3634 = vpop.permute.xlu0 %3633
      %vm3635 = vcmask 269312
      %v3636 = vsel %vm3635, %v3628, %v3630
      %v3637 = vsel %vm3635, %v3630, %v3632
      %v3638 = vsel %vm3635, %v3632, %v3634
      %3642 = vst [vmem:[#allocation4 + $0x48] sm:$0xff] %v3636
      %3643 = vst [vmem:[#allocation4 + $0x50] sm:$0xff] %v3637
      %3644 = vst [vmem:[#allocation4 + $0x58] sm:$0xff] %v3638
      %v3645 = vld [vmem:[#allocation2 + $0x8] sm:$0xff]
      %v3646 = vld [vmem:[#allocation2 + $0x10] sm:$0xff]
      %v3647 = vld [vmem:[#allocation2 + $0x18] sm:$0xff]
      %v3648 = vld [vmem:[#allocation2 + $0x20] sm:$0xff]
      %3653 = vrot.lane.b32.xlu0 %v3645, 32
      %v3654 = vpop.permute.xlu0 %3653
      %3655 = vrot.lane.b32.xlu0 %v3646, 32
      %v3656 = vpop.permute.xlu0 %3655
      %3657 = vrot.lane.b32.xlu0 %v3647, 32
      %v3658 = vpop.permute.xlu0 %3657
      %3659 = vrot.lane.b32.xlu0 %v3648, 32
      %v3660 = vpop.permute.xlu0 %3659
      %vm3661 = vcmask 261120
      %v3662 = vsel %vm3661, %v3654, %v3656
      %v3663 = vsel %vm3661, %v3656, %v3658
      %v3664 = vsel %vm3661, %v3658, %v3660
      %3668 = vst [vmem:[#allocation4 + $0x60] sm:$0xff] %v3662
      %3669 = vst [vmem:[#allocation4 + $0x68] sm:$0xff] %v3663
      %3670 = vst [vmem:[#allocation4 + $0x70] sm:$0xff] %v3664
      %v3671 = vld [vmem:[#allocation2 + $0x8] sm:$0xff]
      %v3672 = vld [vmem:[#allocation2 + $0x10] sm:$0xff]
      %v3673 = vld [vmem:[#allocation2 + $0x18] sm:$0xff]
      %v3674 = vld [vmem:[#allocation2 + $0x20] sm:$0xff]
      %3679 = vrot.lane.b32.xlu0 %v3671, 31
      %v3680 = vpop.permute.xlu0 %3679
      %3681 = vrot.lane.b32.xlu0 %v3672, 31
      %v3682 = vpop.permute.xlu0 %3681
      %3683 = vrot.lane.b32.xlu0 %v3673, 31
      %v3684 = vpop.permute.xlu0 %3683
      %3685 = vrot.lane.b32.xlu0 %v3674, 31
      %v3686 = vpop.permute.xlu0 %3685
      %vm3687 = vcmask 252928
      %v3688 = vsel %vm3687, %v3680, %v3682
      %v3689 = vsel %vm3687, %v3682, %v3684
      %v3690 = vsel %vm3687, %v3684, %v3686
      %3694 = vst [vmem:[#allocation4 + $0x78] sm:$0xff] %v3688
      %3695 = vst [vmem:[#allocation4 + $0x80] sm:$0xff] %v3689
      %3696 = vst [vmem:[#allocation4 + $0x88] sm:$0xff] %v3690
      %v3697 = vld [vmem:[#allocation2 + $0x8] sm:$0xff]
      %v3698 = vld [vmem:[#allocation2 + $0x10] sm:$0xff]
      %v3699 = vld [vmem:[#allocation2 + $0x18] sm:$0xff]
      %v3700 = vld [vmem:[#allocation2 + $0x20] sm:$0xff]
      %3705 = vrot.lane.b32.xlu0 %v3697, 30
      %v3706 = vpop.permute.xlu0 %3705
      %3707 = vrot.lane.b32.xlu0 %v3698, 30
      %v3708 = vpop.permute.xlu0 %3707
      %3709 = vrot.lane.b32.xlu0 %v3699, 30
      %v3710 = vpop.permute.xlu0 %3709
      %3711 = vrot.lane.b32.xlu0 %v3700, 30
      %v3712 = vpop.permute.xlu0 %3711
      %vm3713 = vcmask 244736
      %v3714 = vsel %vm3713, %v3706, %v3708
      %v3715 = vsel %vm3713, %v3708, %v3710
      %v3716 = vsel %vm3713, %v3710, %v3712
      %3720 = vst [vmem:[#allocation4 + $0x90] sm:$0xff] %v3714
      %3721 = vst [vmem:[#allocation4 + $0x98] sm:$0xff] %v3715
      %3722 = vst [vmem:[#allocation4 + $0xa0] sm:$0xff] %v3716
      %v3723 = vld [vmem:[#allocation2 + $0x8] sm:$0xff]
      %v3724 = vld [vmem:[#allocation2 + $0x10] sm:$0xff]
      %v3725 = vld [vmem:[#allocation2 + $0x18] sm:$0xff]
      %v3726 = vld [vmem:[#allocation2 + $0x20] sm:$0xff]
      %3731 = vrot.lane.b32.xlu0 %v3723, 29
      %v3732 = vpop.permute.xlu0 %3731
      %3733 = vrot.lane.b32.xlu0 %v3724, 29
      %v3734 = vpop.permute.xlu0 %3733
      %3735 = vrot.lane.b32.xlu0 %v3725, 29
      %v3736 = vpop.permute.xlu0 %3735
      %3737 = vrot.lane.b32.xlu0 %v3726, 29
      %v3738 = vpop.permute.xlu0 %3737
      %vm3739 = vcmask 236544
      %v3740 = vsel %vm3739, %v3732, %v3734
      %v3741 = vsel %vm3739, %v3734, %v3736
      %v3742 = vsel %vm3739, %v3736, %v3738
      %3746 = vst [vmem:[#allocation4 + $0xa8] sm:$0xff] %v3740
      %3747 = vst [vmem:[#allocation4 + $0xb0] sm:$0xff] %v3741
      %3748 = vst [vmem:[#allocation4 + $0xb8] sm:$0xff] %v3742
      %v3749 = vld [vmem:[#allocation2 + $0x8] sm:$0xff]
      %v3750 = vld [vmem:[#allocation2 + $0x10] sm:$0xff]
      %v3751 = vld [vmem:[#allocation2 + $0x18] sm:$0xff]
      %v3752 = vld [vmem:[#allocation2 + $0x20] sm:$0xff]
      %3757 = vrot.lane.b32.xlu0 %v3749, 28
      %v3758 = vpop.permute.xlu0 %3757
      %3759 = vrot.lane.b32.xlu0 %v3750, 28
      %v3760 = vpop.permute.xlu0 %3759
      %3761 = vrot.lane.b32.xlu0 %v3751, 28
      %v3762 = vpop.permute.xlu0 %3761
      %3763 = vrot.lane.b32.xlu0 %v3752, 28
      %v3764 = vpop.permute.xlu0 %3763
      %v3765 = vsel %vm1535, %v3758, %v3760
      %v3766 = vsel %vm1535, %v3760, %v3762
      %v3767 = vsel %vm1535, %v3762, %v3764
      %3771 = vst [vmem:[#allocation4 + $0xc0] sm:$0xff] %v3765
      %3772 = vst [vmem:[#allocation4 + $0xc8] sm:$0xff] %v3766
      %3773 = vst [vmem:[#allocation4 + $0xd0] sm:$0xff] %v3767
      %v3774 = vld [vmem:[%s266 + $0x40] sm:$0xff]
      %v3775 = vld [vmem:[#allocation4] sm:$0xff]
      %v3776 = vld [vmem:[#allocation4 + $0x8] sm:$0xff]
      %v3777 = vld [vmem:[#allocation4 + $0x10] sm:$0xff]
      %v3778 = vld [vmem:[#allocation4 + $0x18] sm:$0xff]
      %v3779 = vld [vmem:[#allocation4 + $0x20] sm:$0xff]
      %v3780 = vld [vmem:[#allocation4 + $0x28] sm:$0xff]
      %v3781 = vld [vmem:[#allocation4 + $0x30] sm:$0xff]
      %v3782 = vld [vmem:[#allocation4 + $0x38] sm:$0xff]
      %v3783 = vld [vmem:[#allocation4 + $0x40] sm:$0xff]
      %v3784 = vld [vmem:[#allocation4 + $0x48] sm:$0xff]
      %v3785 = vld [vmem:[#allocation4 + $0x50] sm:$0xff]
      %v3786 = vld [vmem:[#allocation4 + $0x58] sm:$0xff]
      %v3787 = vld [vmem:[#allocation4 + $0x60] sm:$0xff]
      %v3788 = vld [vmem:[#allocation4 + $0x68] sm:$0xff]
      %v3789 = vld [vmem:[#allocation4 + $0x70] sm:$0xff]
      %v3790 = vld [vmem:[#allocation4 + $0x78] sm:$0xff]
      %v3791 = vld [vmem:[#allocation4 + $0x80] sm:$0xff]
      %v3792 = vld [vmem:[#allocation4 + $0x88] sm:$0xff]
      %v3793 = vld [vmem:[#allocation4 + $0x90] sm:$0xff]
      %v3794 = vld [vmem:[#allocation4 + $0x98] sm:$0xff]
      %v3795 = vld [vmem:[#allocation4 + $0xa0] sm:$0xff]
      %v3796 = vld [vmem:[#allocation4 + $0xa8] sm:$0xff]
      %v3797 = vld [vmem:[#allocation4 + $0xb0] sm:$0xff]
      %v3798 = vld [vmem:[#allocation4 + $0xb8] sm:$0xff]
      %v3799 = vld [vmem:[#allocation4 + $0xc0] sm:$0xff]
      %v3800 = vld [vmem:[#allocation4 + $0xc8] sm:$0xff]
      %v3801 = vld [vmem:[#allocation4 + $0xd0] sm:$0xff]
      %v3803 = vsel %vm680, %v3774, 0
      %3805 = vmatprep.subr.mxu0 %v3776
      %3806 = vmatpush1.msra.mxu0 %v3775
      %3807 = vmatprep.subr.mxu0 %v3779
      %3808 = vmatpush1.msra.mxu0 %v3778
      %3809 = vmatprep.subr.mxu0 %v3782
      %3810 = vmatpush1.msra.mxu0 %v3781
      %3811 = vmatprep.subr.mxu0 %v3785
      %3812 = vmatpush1.msra.mxu0 %v3784
      %3813 = vmatprep.subr.mxu0 %v3788
      %3814 = vmatpush1.msra.mxu0 %v3787
      %3815 = vmatprep.subr.mxu0 %v3791
      %3816 = vmatpush1.msra.mxu0 %v3790
      %3817 = vmatprep.subr.mxu0 %v3794
      %3818 = vmatpush1.msra.mxu0 %v3793
      %3819 = vmatprep.subr.mxu0 %v3797
      %3820 = vmatpush1.msra.mxu0 %v3796
      %3821 = vmatprep.subr.mxu0 %v3800
      %3822 = vmatpush1.msra.mxu0 %v3799
      %3823 = vmatprep.subr.mxu0 0.0
      %3824 = vmatpush1.msra.mxu0 0.0
      %3825 = vmatprep.subr.mxu0 0.0
      %3826 = vmatpush1.msra.mxu0 0.0
      %3827 = vmatprep.subr.mxu0 0.0
      %3828 = vmatpush1.msra.mxu0 0.0
      %3829 = vmatprep.subr.mxu0 0.0
      %3830 = vmatpush1.msra.mxu0 0.0
      %3831 = vmatprep.subr.mxu0 0.0
      %3832 = vmatpush1.msra.mxu0 0.0
      %3833 = vmatprep.subr.mxu0 0.0
      %3834 = vmatpush1.msra.mxu0 0.0
      %3835 = vmatprep.subr.mxu0 0.0
      %3836 = vmatpush1.msra.mxu0 0.0
      %3837 = vmatprep.subr.mxu0 0.0
      %3838 = vmatpush1.msra.mxu0 0.0
      %3839 = vmatprep.subr.mxu0 0.0
      %3840 = vmatpush1.msra.mxu0 0.0
      %3841 = vmatprep.subr.mxu0 0.0
      %3842 = vmatpush1.msra.mxu0 0.0
      %3843 = vmatprep.subr.mxu0 0.0
      %3844 = vmatpush1.msra.mxu0 0.0
      %3845 = vmatprep.subr.mxu0 0.0
      %3846 = vmatpush1.msra.mxu0 0.0
      %3847 = vmatprep.subr.mxu0 0.0
      %3848 = vmatpush1.msra.mxu0 0.0
      %3849 = vmatprep.subr.mxu0 0.0
      %3850 = vmatpush1.msra.mxu0 0.0
      %3851 = vmatprep.subr.mxu0 0.0
      %3852 = vmatpush1.msra.mxu0 0.0
      %3853 = vmatprep.subr.mxu0 0.0
      %3854 = vmatpush1.msra.mxu0 0.0
      %3855 = vmatprep.subr.mxu0 0.0
      %3856 = vmatpush1.msra.mxu0 0.0
      %3857 = vmatprep.subr.mxu0 0.0
      %3858 = vmatpush1.msra.mxu0 0.0
      %3859 = vmatprep.subr.mxu0 0.0
      %3860 = vmatpush1.msra.mxu0 0.0
      %3861 = vmatprep.subr.mxu0 0.0
      %3862 = vmatpush1.msra.mxu0 0.0
      %3863 = vmatprep.subr.mxu0 0.0
      %3864 = vmatpush1.msra.mxu0 0.0
      %3865 = vmatprep.subr.mxu0 0.0
      %3866 = vmatpush1.msra.mxu0 0.0
      %3867 = vmatprep.subr.mxu0 0.0
      %3868 = vmatpush1.msra.mxu0 0.0
      %3869 = vmatprep.mubr.f32.mxu0 0.0
      %3870 = vmatmul.mubr.f32.gmra.mrb[0].mxu0 %v3803
      %v3871 = vpop.f32.mrb[0].mxu0
      %v3872 = vadd.f32 0.0, %v3871
      %v3873 = vpop.f32.mrb[0].mxu0
      %v3874 = vadd.f32 0.0, %v3873
      %3875 = vdwg.mxu0
      %3876 = vmatprep.subr.mxu0 0.0
      %3877 = vmatpush1.msra.mxu0 %v3777
      %3878 = vmatprep.subr.mxu0 0.0
      %3879 = vmatpush1.msra.mxu0 %v3780
      %3880 = vmatprep.subr.mxu0 0.0
      %3881 = vmatpush1.msra.mxu0 %v3783
      %3882 = vmatprep.subr.mxu0 0.0
      %3883 = vmatpush1.msra.mxu0 %v3786
      %3884 = vmatprep.subr.mxu0 0.0
      %3885 = vmatpush1.msra.mxu0 %v3789
      %3886 = vmatprep.subr.mxu0 0.0
      %3887 = vmatpush1.msra.mxu0 %v3792
      %3888 = vmatprep.subr.mxu0 0.0
      %3889 = vmatpush1.msra.mxu0 %v3795
      %3890 = vmatprep.subr.mxu0 0.0
      %3891 = vmatpush1.msra.mxu0 %v3798
      %3892 = vmatprep.subr.mxu0 0.0
      %3893 = vmatpush1.msra.mxu0 %v3801
      %3894 = vmatprep.subr.mxu0 0.0
      %3895 = vmatpush1.msra.mxu0 0.0
      %3896 = vmatprep.subr.mxu0 0.0
      %3897 = vmatpush1.msra.mxu0 0.0
      %3898 = vmatprep.subr.mxu0 0.0
      %3899 = vmatpush1.msra.mxu0 0.0
      %3900 = vmatprep.subr.mxu0 0.0
      %3901 = vmatpush1.msra.mxu0 0.0
      %3902 = vmatprep.subr.mxu0 0.0
      %3903 = vmatpush1.msra.mxu0 0.0
      %3904 = vmatprep.subr.mxu0 0.0
      %3905 = vmatpush1.msra.mxu0 0.0
      %3906 = vmatprep.subr.mxu0 0.0
      %3907 = vmatpush1.msra.mxu0 0.0
      %3908 = vmatprep.subr.mxu0 0.0
      %3909 = vmatpush1.msra.mxu0 0.0
      %3910 = vmatprep.subr.mxu0 0.0
      %3911 = vmatpush1.msra.mxu0 0.0
      %3912 = vmatprep.subr.mxu0 0.0
      %3913 = vmatpush1.msra.mxu0 0.0
      %3914 = vmatprep.subr.mxu0 0.0
      %3915 = vmatpush1.msra.mxu0 0.0
      %3916 = vmatprep.subr.mxu0 0.0
      %3917 = vmatpush1.msra.mxu0 0.0
      %3918 = vmatprep.subr.mxu0 0.0
      %3919 = vmatpush1.msra.mxu0 0.0
      %3920 = vmatprep.subr.mxu0 0.0
      %3921 = vmatpush1.msra.mxu0 0.0
      %3922 = vmatprep.subr.mxu0 0.0
      %3923 = vmatpush1.msra.mxu0 0.0
      %3924 = vmatprep.subr.mxu0 0.0
      %3925 = vmatpush1.msra.mxu0 0.0
      %3926 = vmatprep.subr.mxu0 0.0
      %3927 = vmatpush1.msra.mxu0 0.0
      %3928 = vmatprep.subr.mxu0 0.0
      %3929 = vmatpush1.msra.mxu0 0.0
      %3930 = vmatprep.subr.mxu0 0.0
      %3931 = vmatpush1.msra.mxu0 0.0
      %3932 = vmatprep.subr.mxu0 0.0
      %3933 = vmatpush1.msra.mxu0 0.0
      %3934 = vmatprep.subr.mxu0 0.0
      %3935 = vmatpush1.msra.mxu0 0.0
      %3936 = vmatprep.subr.mxu0 0.0
      %3937 = vmatpush1.msra.mxu0 0.0
      %3938 = vmatprep.subr.mxu0 0.0
      %3939 = vmatpush1.msra.mxu0 0.0
      %3940 = vmatprep.mubr.f32.mxu0 0.0
      %3941 = vmatmul.mubr.f32.gmra.mrb[0].mxu0 %v3803
      %v3942 = vpop.f32.mrb[0].mxu0
      %v3943 = vadd.f32 0.0, %v3942
      %v3944 = vpop.f32.mrb[0].mxu0
      %3945 = vdwg.mxu0
      %v3946 = vadd.f32 %v3538, %v3872
      %v3947 = vadd.f32 %v3539, %v3874
      %v3948 = vadd.f32 %v3540, %v3943
      %v3949 = vld [vmem:[%s271] sm:$0xff]
      %3951 = vset.pattern.permute.xlu0 0
      %3952 = vperm.xlu0 %3951, %v3949
      %v3953 = vpop.permute.xlu0 %3952
      %v3955 = vadd.f32 %v3946, %v3953
      %v3956 = vadd.f32 %v3947, %v3953
      %v3957 = vadd.f32 %v3948, %v3953
      %v3958 = vmax.f32 %v3955, 0.0
      %v3959 = vmax.f32 %v3956, 0.0
      %v3960 = vmax.f32 %v3957, 0.0
      %v3962 = vlaneseq
      %v3963 = vshrl.u32 %v3962, 7
      %v3964 = vsub.s32 0, %v3963
      %v3965 = vrot.slane %v296, %v3964
      %v3966 = vlaneseq
      %v3967 = vshrl.u32 %v3966, 7
      %v3968 = vsub.s32 1, %v3967
      %v3969 = vrot.slane %v296, %v3968
      %v3970 = vlaneseq
      %v3971 = vshrl.u32 %v3970, 7
      %v3972 = vsub.s32 2, %v3971
      %v3973 = vrot.slane %v296, %v3972
      %v3977 = vmul.f32 %v3958, %v3965
      %v3978 = vmul.f32 %v3959, %v3969
      %v3979 = vmul.f32 %v3960, %v3973
      %3980 = vst [vmem:[#allocation3 + $0x8] sm:$0xff] %v3977
      %3981 = vst [vmem:[#allocation3 + $0x10] sm:$0xff] %v3978
      %3982 = vst [vmem:[#allocation3 + $0x18] sm:$0xff] %v3979
      %v3983 = vld [vmem:[#allocation3] sm:$0xff]
      %v3984 = vld [vmem:[#allocation3 + $0x8] sm:$0xff]
      %v3985 = vld [vmem:[#allocation3 + $0x10] sm:$0xff]
      %v3986 = vld [vmem:[#allocation3 + $0x18] sm:$0xff]
      %3991 = vrot.lane.b32.xlu0 %v3983, 100
      %v3992 = vpop.permute.xlu0 %3991
      %3993 = vrot.lane.b32.xlu0 %v3984, 100
      %v3994 = vpop.permute.xlu0 %3993
      %3995 = vrot.lane.b32.xlu0 %v3985, 100
      %v3996 = vpop.permute.xlu0 %3995
      %3997 = vrot.lane.b32.xlu0 %v3986, 100
      %v3998 = vpop.permute.xlu0 %3997
      %v3999 = vsel %vm314, %v3992, %v3994
      %v4000 = vsel %vm314, %v3994, %v3996
      %v4001 = vsel %vm314, %v3996, %v3998
      %4005 = vst [vmem:[#allocation4] sm:$0xff] %v3999
      %4006 = vst [vmem:[#allocation4 + $0x8] sm:$0xff] %v4000
      %4007 = vst [vmem:[#allocation4 + $0x10] sm:$0xff] %v4001
      %v4008 = vld [vmem:[#allocation3] sm:$0xff]
      %v4009 = vld [vmem:[#allocation3 + $0x8] sm:$0xff]
      %v4010 = vld [vmem:[#allocation3 + $0x10] sm:$0xff]
      %v4011 = vld [vmem:[#allocation3 + $0x18] sm:$0xff]
      %4016 = vrot.lane.b32.xlu0 %v4008, 99
      %v4017 = vpop.permute.xlu0 %4016
      %4018 = vrot.lane.b32.xlu0 %v4009, 99
      %v4019 = vpop.permute.xlu0 %4018
      %4020 = vrot.lane.b32.xlu0 %v4010, 99
      %v4021 = vpop.permute.xlu0 %4020
      %4022 = vrot.lane.b32.xlu0 %v4011, 99
      %v4023 = vpop.permute.xlu0 %4022
      %v4024 = vsel %vm340, %v4017, %v4019
      %v4025 = vsel %vm340, %v4019, %v4021
      %v4026 = vsel %vm340, %v4021, %v4023
      %4030 = vst [vmem:[#allocation4 + $0x18] sm:$0xff] %v4024
      %4031 = vst [vmem:[#allocation4 + $0x20] sm:$0xff] %v4025
      %4032 = vst [vmem:[#allocation4 + $0x28] sm:$0xff] %v4026
      %v4033 = vld [vmem:[#allocation3] sm:$0xff]
      %v4034 = vld [vmem:[#allocation3 + $0x8] sm:$0xff]
      %v4035 = vld [vmem:[#allocation3 + $0x10] sm:$0xff]
      %v4036 = vld [vmem:[#allocation3 + $0x18] sm:$0xff]
      %4041 = vrot.lane.b32.xlu0 %v4033, 98
      %v4042 = vpop.permute.xlu0 %4041
      %4043 = vrot.lane.b32.xlu0 %v4034, 98
      %v4044 = vpop.permute.xlu0 %4043
      %4045 = vrot.lane.b32.xlu0 %v4035, 98
      %v4046 = vpop.permute.xlu0 %4045
      %4047 = vrot.lane.b32.xlu0 %v4036, 98
      %v4048 = vpop.permute.xlu0 %4047
      %v4049 = vsel %vm366, %v4042, %v4044
      %v4050 = vsel %vm366, %v4044, %v4046
      %v4051 = vsel %vm366, %v4046, %v4048
      %4055 = vst [vmem:[#allocation4 + $0x30] sm:$0xff] %v4049
      %4056 = vst [vmem:[#allocation4 + $0x38] sm:$0xff] %v4050
      %4057 = vst [vmem:[#allocation4 + $0x40] sm:$0xff] %v4051
      %v4058 = vld [vmem:[#allocation3] sm:$0xff]
      %v4059 = vld [vmem:[#allocation3 + $0x8] sm:$0xff]
      %v4060 = vld [vmem:[#allocation3 + $0x10] sm:$0xff]
      %v4061 = vld [vmem:[#allocation3 + $0x18] sm:$0xff]
      %4066 = vrot.lane.b32.xlu0 %v4058, 97
      %v4067 = vpop.permute.xlu0 %4066
      %4068 = vrot.lane.b32.xlu0 %v4059, 97
      %v4069 = vpop.permute.xlu0 %4068
      %4070 = vrot.lane.b32.xlu0 %v4060, 97
      %v4071 = vpop.permute.xlu0 %4070
      %4072 = vrot.lane.b32.xlu0 %v4061, 97
      %v4073 = vpop.permute.xlu0 %4072
      %v4074 = vsel %vm392, %v4067, %v4069
      %v4075 = vsel %vm392, %v4069, %v4071
      %v4076 = vsel %vm392, %v4071, %v4073
      %4080 = vst [vmem:[#allocation4 + $0x48] sm:$0xff] %v4074
      %4081 = vst [vmem:[#allocation4 + $0x50] sm:$0xff] %v4075
      %4082 = vst [vmem:[#allocation4 + $0x58] sm:$0xff] %v4076
      %v4083 = vld [vmem:[#allocation3] sm:$0xff]
      %v4084 = vld [vmem:[#allocation3 + $0x8] sm:$0xff]
      %v4085 = vld [vmem:[#allocation3 + $0x10] sm:$0xff]
      %v4086 = vld [vmem:[#allocation3 + $0x18] sm:$0xff]
      %4091 = vrot.lane.b32.xlu0 %v4083, 96
      %v4092 = vpop.permute.xlu0 %4091
      %4093 = vrot.lane.b32.xlu0 %v4084, 96
      %v4094 = vpop.permute.xlu0 %4093
      %4095 = vrot.lane.b32.xlu0 %v4085, 96
      %v4096 = vpop.permute.xlu0 %4095
      %4097 = vrot.lane.b32.xlu0 %v4086, 96
      %v4098 = vpop.permute.xlu0 %4097
      %v4099 = vsel %vm418, %v4092, %v4094
      %v4100 = vsel %vm418, %v4094, %v4096
      %v4101 = vsel %vm418, %v4096, %v4098
      %4105 = vst [vmem:[#allocation4 + $0x60] sm:$0xff] %v4099
      %4106 = vst [vmem:[#allocation4 + $0x68] sm:$0xff] %v4100
      %4107 = vst [vmem:[#allocation4 + $0x70] sm:$0xff] %v4101
      %v4108 = vld [vmem:[#allocation3] sm:$0xff]
      %v4109 = vld [vmem:[#allocation3 + $0x8] sm:$0xff]
      %v4110 = vld [vmem:[#allocation3 + $0x10] sm:$0xff]
      %v4111 = vld [vmem:[#allocation3 + $0x18] sm:$0xff]
      %4116 = vrot.lane.b32.xlu0 %v4108, 95
      %v4117 = vpop.permute.xlu0 %4116
      %4118 = vrot.lane.b32.xlu0 %v4109, 95
      %v4119 = vpop.permute.xlu0 %4118
      %4120 = vrot.lane.b32.xlu0 %v4110, 95
      %v4121 = vpop.permute.xlu0 %4120
      %4122 = vrot.lane.b32.xlu0 %v4111, 95
      %v4123 = vpop.permute.xlu0 %4122
      %v4124 = vsel %vm444, %v4117, %v4119
      %v4125 = vsel %vm444, %v4119, %v4121
      %v4126 = vsel %vm444, %v4121, %v4123
      %4130 = vst [vmem:[#allocation4 + $0x78] sm:$0xff] %v4124
      %4131 = vst [vmem:[#allocation4 + $0x80] sm:$0xff] %v4125
      %4132 = vst [vmem:[#allocation4 + $0x88] sm:$0xff] %v4126
      %v4133 = vld [vmem:[#allocation3] sm:$0xff]
      %v4134 = vld [vmem:[#allocation3 + $0x8] sm:$0xff]
      %v4135 = vld [vmem:[#allocation3 + $0x10] sm:$0xff]
      %v4136 = vld [vmem:[#allocation3 + $0x18] sm:$0xff]
      %4141 = vrot.lane.b32.xlu0 %v4133, 94
      %v4142 = vpop.permute.xlu0 %4141
      %4143 = vrot.lane.b32.xlu0 %v4134, 94
      %v4144 = vpop.permute.xlu0 %4143
      %4145 = vrot.lane.b32.xlu0 %v4135, 94
      %v4146 = vpop.permute.xlu0 %4145
      %4147 = vrot.lane.b32.xlu0 %v4136, 94
      %v4148 = vpop.permute.xlu0 %4147
      %v4149 = vsel %vm470, %v4142, %v4144
      %v4150 = vsel %vm470, %v4144, %v4146
      %v4151 = vsel %vm470, %v4146, %v4148
      %4155 = vst [vmem:[#allocation4 + $0x90] sm:$0xff] %v4149
      %4156 = vst [vmem:[#allocation4 + $0x98] sm:$0xff] %v4150
      %4157 = vst [vmem:[#allocation4 + $0xa0] sm:$0xff] %v4151
      %v4158 = vld [vmem:[#allocation3] sm:$0xff]
      %v4159 = vld [vmem:[#allocation3 + $0x8] sm:$0xff]
      %v4160 = vld [vmem:[#allocation3 + $0x10] sm:$0xff]
      %v4161 = vld [vmem:[#allocation3 + $0x18] sm:$0xff]
      %4166 = vrot.lane.b32.xlu0 %v4158, 93
      %v4167 = vpop.permute.xlu0 %4166
      %4168 = vrot.lane.b32.xlu0 %v4159, 93
      %v4169 = vpop.permute.xlu0 %4168
      %4170 = vrot.lane.b32.xlu0 %v4160, 93
      %v4171 = vpop.permute.xlu0 %4170
      %4172 = vrot.lane.b32.xlu0 %v4161, 93
      %v4173 = vpop.permute.xlu0 %4172
      %v4174 = vsel %vm496, %v4167, %v4169
      %v4175 = vsel %vm496, %v4169, %v4171
      %v4176 = vsel %vm496, %v4171, %v4173
      %4180 = vst [vmem:[#allocation4 + $0xa8] sm:$0xff] %v4174
      %4181 = vst [vmem:[#allocation4 + $0xb0] sm:$0xff] %v4175
      %4182 = vst [vmem:[#allocation4 + $0xb8] sm:$0xff] %v4176
      %v4183 = vld [vmem:[#allocation3] sm:$0xff]
      %v4184 = vld [vmem:[#allocation3 + $0x8] sm:$0xff]
      %v4185 = vld [vmem:[#allocation3 + $0x10] sm:$0xff]
      %v4186 = vld [vmem:[#allocation3 + $0x18] sm:$0xff]
      %4191 = vrot.lane.b32.xlu0 %v4183, 92
      %v4192 = vpop.permute.xlu0 %4191
      %4193 = vrot.lane.b32.xlu0 %v4184, 92
      %v4194 = vpop.permute.xlu0 %4193
      %4195 = vrot.lane.b32.xlu0 %v4185, 92
      %v4196 = vpop.permute.xlu0 %4195
      %4197 = vrot.lane.b32.xlu0 %v4186, 92
      %v4198 = vpop.permute.xlu0 %4197
      %v4199 = vsel %vm522, %v4192, %v4194
      %v4200 = vsel %vm522, %v4194, %v4196
      %v4201 = vsel %vm522, %v4196, %v4198
      %4205 = vst [vmem:[#allocation4 + $0xc0] sm:$0xff] %v4199
      %4206 = vst [vmem:[#allocation4 + $0xc8] sm:$0xff] %v4200
      %4207 = vst [vmem:[#allocation4 + $0xd0] sm:$0xff] %v4201
      %v4208 = vld [vmem:[%s266 + $0x48] sm:$0xff]
      %v4209 = vld [vmem:[#allocation4] sm:$0xff]
      %v4210 = vld [vmem:[#allocation4 + $0x8] sm:$0xff]
      %v4211 = vld [vmem:[#allocation4 + $0x10] sm:$0xff]
      %v4212 = vld [vmem:[#allocation4 + $0x18] sm:$0xff]
      %v4213 = vld [vmem:[#allocation4 + $0x20] sm:$0xff]
      %v4214 = vld [vmem:[#allocation4 + $0x28] sm:$0xff]
      %v4215 = vld [vmem:[#allocation4 + $0x30] sm:$0xff]
      %v4216 = vld [vmem:[#allocation4 + $0x38] sm:$0xff]
      %v4217 = vld [vmem:[#allocation4 + $0x40] sm:$0xff]
      %v4218 = vld [vmem:[#allocation4 + $0x48] sm:$0xff]
      %v4219 = vld [vmem:[#allocation4 + $0x50] sm:$0xff]
      %v4220 = vld [vmem:[#allocation4 + $0x58] sm:$0xff]
      %v4221 = vld [vmem:[#allocation4 + $0x60] sm:$0xff]
      %v4222 = vld [vmem:[#allocation4 + $0x68] sm:$0xff]
      %v4223 = vld [vmem:[#allocation4 + $0x70] sm:$0xff]
      %v4224 = vld [vmem:[#allocation4 + $0x78] sm:$0xff]
      %v4225 = vld [vmem:[#allocation4 + $0x80] sm:$0xff]
      %v4226 = vld [vmem:[#allocation4 + $0x88] sm:$0xff]
      %v4227 = vld [vmem:[#allocation4 + $0x90] sm:$0xff]
      %v4228 = vld [vmem:[#allocation4 + $0x98] sm:$0xff]
      %v4229 = vld [vmem:[#allocation4 + $0xa0] sm:$0xff]
      %v4230 = vld [vmem:[#allocation4 + $0xa8] sm:$0xff]
      %v4231 = vld [vmem:[#allocation4 + $0xb0] sm:$0xff]
      %v4232 = vld [vmem:[#allocation4 + $0xb8] sm:$0xff]
      %v4233 = vld [vmem:[#allocation4 + $0xc0] sm:$0xff]
      %v4234 = vld [vmem:[#allocation4 + $0xc8] sm:$0xff]
      %v4235 = vld [vmem:[#allocation4 + $0xd0] sm:$0xff]
      %v4236 = vld [vmem:[#allocation3] sm:$0xff]
      %v4237 = vld [vmem:[#allocation3 + $0x8] sm:$0xff]
      %v4238 = vld [vmem:[#allocation3 + $0x10] sm:$0xff]
      %v4239 = vld [vmem:[#allocation3 + $0x18] sm:$0xff]
      %4244 = vrot.lane.b32.xlu0 %v4236, 76
      %v4245 = vpop.permute.xlu0 %4244
      %4246 = vrot.lane.b32.xlu0 %v4237, 76
      %v4247 = vpop.permute.xlu0 %4246
      %4248 = vrot.lane.b32.xlu0 %v4238, 76
      %v4249 = vpop.permute.xlu0 %4248
      %4250 = vrot.lane.b32.xlu0 %v4239, 76
      %v4251 = vpop.permute.xlu0 %4250
      %v4252 = vsel %vm576, %v4245, %v4247
      %v4253 = vsel %vm576, %v4247, %v4249
      %v4254 = vsel %vm576, %v4249, %v4251
      %4258 = vst [vmem:[#allocation4 + $0xd8] sm:$0xff] %v4252
      %4259 = vst [vmem:[#allocation4 + $0xe0] sm:$0xff] %v4253
      %4260 = vst [vmem:[#allocation4 + $0xe8] sm:$0xff] %v4254
      %v4261 = vld [vmem:[#allocation3] sm:$0xff]
      %v4262 = vld [vmem:[#allocation3 + $0x8] sm:$0xff]
      %v4263 = vld [vmem:[#allocation3 + $0x10] sm:$0xff]
      %v4264 = vld [vmem:[#allocation3 + $0x18] sm:$0xff]
      %4269 = vrot.lane.b32.xlu0 %v4261, 75
      %v4270 = vpop.permute.xlu0 %4269
      %4271 = vrot.lane.b32.xlu0 %v4262, 75
      %v4272 = vpop.permute.xlu0 %4271
      %4273 = vrot.lane.b32.xlu0 %v4263, 75
      %v4274 = vpop.permute.xlu0 %4273
      %4275 = vrot.lane.b32.xlu0 %v4264, 75
      %v4276 = vpop.permute.xlu0 %4275
      %v4277 = vsel %vm602, %v4270, %v4272
      %v4278 = vsel %vm602, %v4272, %v4274
      %v4279 = vsel %vm602, %v4274, %v4276
      %4283 = vst [vmem:[#allocation4 + $0xf0] sm:$0xff] %v4277
      %4284 = vst [vmem:[#allocation4 + $0xf8] sm:$0xff] %v4278
      %4285 = vst [vmem:[#allocation4 + $0x100] sm:$0xff] %v4279
      %v4286 = vld [vmem:[#allocation3] sm:$0xff]
      %v4287 = vld [vmem:[#allocation3 + $0x8] sm:$0xff]
      %v4288 = vld [vmem:[#allocation3 + $0x10] sm:$0xff]
      %v4289 = vld [vmem:[#allocation3 + $0x18] sm:$0xff]
      %4294 = vrot.lane.b32.xlu0 %v4286, 74
      %v4295 = vpop.permute.xlu0 %4294
      %4296 = vrot.lane.b32.xlu0 %v4287, 74
      %v4297 = vpop.permute.xlu0 %4296
      %4298 = vrot.lane.b32.xlu0 %v4288, 74
      %v4299 = vpop.permute.xlu0 %4298
      %4300 = vrot.lane.b32.xlu0 %v4289, 74
      %v4301 = vpop.permute.xlu0 %4300
      %v4302 = vsel %vm628, %v4295, %v4297
      %v4303 = vsel %vm628, %v4297, %v4299
      %v4304 = vsel %vm628, %v4299, %v4301
      %4308 = vst [vmem:[#allocation4 + $0x108] sm:$0xff] %v4302
      %4309 = vst [vmem:[#allocation4 + $0x110] sm:$0xff] %v4303
      %4310 = vst [vmem:[#allocation4 + $0x118] sm:$0xff] %v4304
      %v4311 = vld [vmem:[#allocation3] sm:$0xff]
      %v4312 = vld [vmem:[#allocation3 + $0x8] sm:$0xff]
      %v4313 = vld [vmem:[#allocation3 + $0x10] sm:$0xff]
      %v4314 = vld [vmem:[#allocation3 + $0x18] sm:$0xff]
      %4319 = vrot.lane.b32.xlu0 %v4311, 73
      %v4320 = vpop.permute.xlu0 %4319
      %4321 = vrot.lane.b32.xlu0 %v4312, 73
      %v4322 = vpop.permute.xlu0 %4321
      %4323 = vrot.lane.b32.xlu0 %v4313, 73
      %v4324 = vpop.permute.xlu0 %4323
      %4325 = vrot.lane.b32.xlu0 %v4314, 73
      %v4326 = vpop.permute.xlu0 %4325
      %v4327 = vsel %vm654, %v4320, %v4322
      %v4328 = vsel %vm654, %v4322, %v4324
      %v4329 = vsel %vm654, %v4324, %v4326
      %4333 = vst [vmem:[#allocation4 + $0x120] sm:$0xff] %v4327
      %4334 = vst [vmem:[#allocation4 + $0x128] sm:$0xff] %v4328
      %4335 = vst [vmem:[#allocation4 + $0x130] sm:$0xff] %v4329
      %v4336 = vld [vmem:[#allocation3] sm:$0xff]
      %v4337 = vld [vmem:[#allocation3 + $0x8] sm:$0xff]
      %v4338 = vld [vmem:[#allocation3 + $0x10] sm:$0xff]
      %v4339 = vld [vmem:[#allocation3 + $0x18] sm:$0xff]
      %4344 = vrot.lane.b32.xlu0 %v4336, 72
      %v4345 = vpop.permute.xlu0 %4344
      %4346 = vrot.lane.b32.xlu0 %v4337, 72
      %v4347 = vpop.permute.xlu0 %4346
      %4348 = vrot.lane.b32.xlu0 %v4338, 72
      %v4349 = vpop.permute.xlu0 %4348
      %4350 = vrot.lane.b32.xlu0 %v4339, 72
      %v4351 = vpop.permute.xlu0 %4350
      %v4352 = vsel %vm680, %v4345, %v4347
      %v4353 = vsel %vm680, %v4347, %v4349
      %v4354 = vsel %vm680, %v4349, %v4351
      %4358 = vst [vmem:[#allocation4 + $0x138] sm:$0xff] %v4352
      %4359 = vst [vmem:[#allocation4 + $0x140] sm:$0xff] %v4353
      %4360 = vst [vmem:[#allocation4 + $0x148] sm:$0xff] %v4354
      %v4361 = vld [vmem:[#allocation3] sm:$0xff]
      %v4362 = vld [vmem:[#allocation3 + $0x8] sm:$0xff]
      %v4363 = vld [vmem:[#allocation3 + $0x10] sm:$0xff]
      %v4364 = vld [vmem:[#allocation3 + $0x18] sm:$0xff]
      %4369 = vrot.lane.b32.xlu0 %v4361, 71
      %v4370 = vpop.permute.xlu0 %4369
      %4371 = vrot.lane.b32.xlu0 %v4362, 71
      %v4372 = vpop.permute.xlu0 %4371
      %4373 = vrot.lane.b32.xlu0 %v4363, 71
      %v4374 = vpop.permute.xlu0 %4373
      %4375 = vrot.lane.b32.xlu0 %v4364, 71
      %v4376 = vpop.permute.xlu0 %4375
      %v4377 = vsel %vm706, %v4370, %v4372
      %v4378 = vsel %vm706, %v4372, %v4374
      %v4379 = vsel %vm706, %v4374, %v4376
      %4383 = vst [vmem:[#allocation4 + $0x150] sm:$0xff] %v4377
      %4384 = vst [vmem:[#allocation4 + $0x158] sm:$0xff] %v4378
      %4385 = vst [vmem:[#allocation4 + $0x160] sm:$0xff] %v4379
      %v4386 = vld [vmem:[#allocation3] sm:$0xff]
      %v4387 = vld [vmem:[#allocation3 + $0x8] sm:$0xff]
      %v4388 = vld [vmem:[#allocation3 + $0x10] sm:$0xff]
      %v4389 = vld [vmem:[#allocation3 + $0x18] sm:$0xff]
      %4394 = vrot.lane.b32.xlu0 %v4386, 70
      %v4395 = vpop.permute.xlu0 %4394
      %4396 = vrot.lane.b32.xlu0 %v4387, 70
      %v4397 = vpop.permute.xlu0 %4396
      %4398 = vrot.lane.b32.xlu0 %v4388, 70
      %v4399 = vpop.permute.xlu0 %4398
      %4400 = vrot.lane.b32.xlu0 %v4389, 70
      %v4401 = vpop.permute.xlu0 %4400
      %v4402 = vsel %vm732, %v4395, %v4397
      %v4403 = vsel %vm732, %v4397, %v4399
      %v4404 = vsel %vm732, %v4399, %v4401
      %4408 = vst [vmem:[#allocation4 + $0x168] sm:$0xff] %v4402
      %4409 = vst [vmem:[#allocation4 + $0x170] sm:$0xff] %v4403
      %4410 = vst [vmem:[#allocation4 + $0x178] sm:$0xff] %v4404
      %v4411 = vld [vmem:[#allocation3] sm:$0xff]
      %v4412 = vld [vmem:[#allocation3 + $0x8] sm:$0xff]
      %v4413 = vld [vmem:[#allocation3 + $0x10] sm:$0xff]
      %v4414 = vld [vmem:[#allocation3 + $0x18] sm:$0xff]
      %4419 = vrot.lane.b32.xlu0 %v4411, 69
      %v4420 = vpop.permute.xlu0 %4419
      %4421 = vrot.lane.b32.xlu0 %v4412, 69
      %v4422 = vpop.permute.xlu0 %4421
      %4423 = vrot.lane.b32.xlu0 %v4413, 69
      %v4424 = vpop.permute.xlu0 %4423
      %4425 = vrot.lane.b32.xlu0 %v4414, 69
      %v4426 = vpop.permute.xlu0 %4425
      %v4427 = vsel %vm758, %v4420, %v4422
      %v4428 = vsel %vm758, %v4422, %v4424
      %v4429 = vsel %vm758, %v4424, %v4426
      %4433 = vst [vmem:[#allocation4 + $0x180] sm:$0xff] %v4427
      %4434 = vst [vmem:[#allocation4 + $0x188] sm:$0xff] %v4428
      %4435 = vst [vmem:[#allocation4 + $0x190] sm:$0xff] %v4429
      %v4436 = vld [vmem:[#allocation3] sm:$0xff]
      %v4437 = vld [vmem:[#allocation3 + $0x8] sm:$0xff]
      %v4438 = vld [vmem:[#allocation3 + $0x10] sm:$0xff]
      %v4439 = vld [vmem:[#allocation3 + $0x18] sm:$0xff]
      %4444 = vrot.lane.b32.xlu0 %v4436, 68
      %v4445 = vpop.permute.xlu0 %4444
      %4446 = vrot.lane.b32.xlu0 %v4437, 68
      %v4447 = vpop.permute.xlu0 %4446
      %4448 = vrot.lane.b32.xlu0 %v4438, 68
      %v4449 = vpop.permute.xlu0 %4448
      %4450 = vrot.lane.b32.xlu0 %v4439, 68
      %v4451 = vpop.permute.xlu0 %4450
      %v4452 = vsel %vm784, %v4445, %v4447
      %v4453 = vsel %vm784, %v4447, %v4449
      %v4454 = vsel %vm784, %v4449, %v4451
      %4458 = vst [vmem:[#allocation4 + $0x198] sm:$0xff] %v4452
      %4459 = vst [vmem:[#allocation4 + $0x1a0] sm:$0xff] %v4453
      %4460 = vst [vmem:[#allocation4 + $0x1a8] sm:$0xff] %v4454
      %v4461 = vld [vmem:[%s266 + $0x50] sm:$0xff]
      %v4462 = vld [vmem:[#allocation4 + $0xd8] sm:$0xff]
      %v4463 = vld [vmem:[#allocation4 + $0xe0] sm:$0xff]
      %v4464 = vld [vmem:[#allocation4 + $0xe8] sm:$0xff]
      %v4465 = vld [vmem:[#allocation4 + $0xf0] sm:$0xff]
      %v4466 = vld [vmem:[#allocation4 + $0xf8] sm:$0xff]
      %v4467 = vld [vmem:[#allocation4 + $0x100] sm:$0xff]
      %v4468 = vld [vmem:[#allocation4 + $0x108] sm:$0xff]
      %v4469 = vld [vmem:[#allocation4 + $0x110] sm:$0xff]
      %v4470 = vld [vmem:[#allocation4 + $0x118] sm:$0xff]
      %v4471 = vld [vmem:[#allocation4 + $0x120] sm:$0xff]
      %v4472 = vld [vmem:[#allocation4 + $0x128] sm:$0xff]
      %v4473 = vld [vmem:[#allocation4 + $0x130] sm:$0xff]
      %v4474 = vld [vmem:[#allocation4 + $0x138] sm:$0xff]
      %v4475 = vld [vmem:[#allocation4 + $0x140] sm:$0xff]
      %v4476 = vld [vmem:[#allocation4 + $0x148] sm:$0xff]
      %v4477 = vld [vmem:[#allocation4 + $0x150] sm:$0xff]
      %v4478 = vld [vmem:[#allocation4 + $0x158] sm:$0xff]
      %v4479 = vld [vmem:[#allocation4 + $0x160] sm:$0xff]
      %v4480 = vld [vmem:[#allocation4 + $0x168] sm:$0xff]
      %v4481 = vld [vmem:[#allocation4 + $0x170] sm:$0xff]
      %v4482 = vld [vmem:[#allocation4 + $0x178] sm:$0xff]
      %v4483 = vld [vmem:[#allocation4 + $0x180] sm:$0xff]
      %v4484 = vld [vmem:[#allocation4 + $0x188] sm:$0xff]
      %v4485 = vld [vmem:[#allocation4 + $0x190] sm:$0xff]
      %v4486 = vld [vmem:[#allocation4 + $0x198] sm:$0xff]
      %v4487 = vld [vmem:[#allocation4 + $0x1a0] sm:$0xff]
      %v4488 = vld [vmem:[#allocation4 + $0x1a8] sm:$0xff]
      %v4490 = vsel %vm680, %v4461, 0
      %4492 = vmatprep.subr.mxu0 %v4463
      %4493 = vmatpush1.msra.mxu0 %v4462
      %4494 = vmatprep.subr.mxu0 %v4466
      %4495 = vmatpush1.msra.mxu0 %v4465
      %4496 = vmatprep.subr.mxu0 %v4469
      %4497 = vmatpush1.msra.mxu0 %v4468
      %4498 = vmatprep.subr.mxu0 %v4472
      %4499 = vmatpush1.msra.mxu0 %v4471
      %4500 = vmatprep.subr.mxu0 %v4475
      %4501 = vmatpush1.msra.mxu0 %v4474
      %4502 = vmatprep.subr.mxu0 %v4478
      %4503 = vmatpush1.msra.mxu0 %v4477
      %4504 = vmatprep.subr.mxu0 %v4481
      %4505 = vmatpush1.msra.mxu0 %v4480
      %4506 = vmatprep.subr.mxu0 %v4484
      %4507 = vmatpush1.msra.mxu0 %v4483
      %4508 = vmatprep.subr.mxu0 %v4487
      %4509 = vmatpush1.msra.mxu0 %v4486
      %4510 = vmatprep.subr.mxu0 0.0
      %4511 = vmatpush1.msra.mxu0 0.0
      %4512 = vmatprep.subr.mxu0 0.0
      %4513 = vmatpush1.msra.mxu0 0.0
      %4514 = vmatprep.subr.mxu0 0.0
      %4515 = vmatpush1.msra.mxu0 0.0
      %4516 = vmatprep.subr.mxu0 0.0
      %4517 = vmatpush1.msra.mxu0 0.0
      %4518 = vmatprep.subr.mxu0 0.0
      %4519 = vmatpush1.msra.mxu0 0.0
      %4520 = vmatprep.subr.mxu0 0.0
      %4521 = vmatpush1.msra.mxu0 0.0
      %4522 = vmatprep.subr.mxu0 0.0
      %4523 = vmatpush1.msra.mxu0 0.0
      %4524 = vmatprep.subr.mxu0 0.0
      %4525 = vmatpush1.msra.mxu0 0.0
      %4526 = vmatprep.subr.mxu0 0.0
      %4527 = vmatpush1.msra.mxu0 0.0
      %4528 = vmatprep.subr.mxu0 0.0
      %4529 = vmatpush1.msra.mxu0 0.0
      %4530 = vmatprep.subr.mxu0 0.0
      %4531 = vmatpush1.msra.mxu0 0.0
      %4532 = vmatprep.subr.mxu0 0.0
      %4533 = vmatpush1.msra.mxu0 0.0
      %4534 = vmatprep.subr.mxu0 0.0
      %4535 = vmatpush1.msra.mxu0 0.0
      %4536 = vmatprep.subr.mxu0 0.0
      %4537 = vmatpush1.msra.mxu0 0.0
      %4538 = vmatprep.subr.mxu0 0.0
      %4539 = vmatpush1.msra.mxu0 0.0
      %4540 = vmatprep.subr.mxu0 0.0
      %4541 = vmatpush1.msra.mxu0 0.0
      %4542 = vmatprep.subr.mxu0 0.0
      %4543 = vmatpush1.msra.mxu0 0.0
      %4544 = vmatprep.subr.mxu0 0.0
      %4545 = vmatpush1.msra.mxu0 0.0
      %4546 = vmatprep.subr.mxu0 0.0
      %4547 = vmatpush1.msra.mxu0 0.0
      %4548 = vmatprep.subr.mxu0 0.0
      %4549 = vmatpush1.msra.mxu0 0.0
      %4550 = vmatprep.subr.mxu0 0.0
      %4551 = vmatpush1.msra.mxu0 0.0
      %4552 = vmatprep.subr.mxu0 0.0
      %4553 = vmatpush1.msra.mxu0 0.0
      %4554 = vmatprep.subr.mxu0 0.0
      %4555 = vmatpush1.msra.mxu0 0.0
      %4556 = vmatprep.mubr.f32.mxu0 0.0
      %4557 = vmatmul.mubr.f32.gmra.mrb[0].mxu0 %v4490
      %v4558 = vpop.f32.mrb[0].mxu0
      %v4559 = vadd.f32 0.0, %v4558
      %v4560 = vpop.f32.mrb[0].mxu0
      %v4561 = vadd.f32 0.0, %v4560
      %4562 = vdwg.mxu0
      %4563 = vmatprep.subr.mxu0 0.0
      %4564 = vmatpush1.msra.mxu0 %v4464
      %4565 = vmatprep.subr.mxu0 0.0
      %4566 = vmatpush1.msra.mxu0 %v4467
      %4567 = vmatprep.subr.mxu0 0.0
      %4568 = vmatpush1.msra.mxu0 %v4470
      %4569 = vmatprep.subr.mxu0 0.0
      %4570 = vmatpush1.msra.mxu0 %v4473
      %4571 = vmatprep.subr.mxu0 0.0
      %4572 = vmatpush1.msra.mxu0 %v4476
      %4573 = vmatprep.subr.mxu0 0.0
      %4574 = vmatpush1.msra.mxu0 %v4479
      %4575 = vmatprep.subr.mxu0 0.0
      %4576 = vmatpush1.msra.mxu0 %v4482
      %4577 = vmatprep.subr.mxu0 0.0
      %4578 = vmatpush1.msra.mxu0 %v4485
      %4579 = vmatprep.subr.mxu0 0.0
      %4580 = vmatpush1.msra.mxu0 %v4488
      %4581 = vmatprep.subr.mxu0 0.0
      %4582 = vmatpush1.msra.mxu0 0.0
      %4583 = vmatprep.subr.mxu0 0.0
      %4584 = vmatpush1.msra.mxu0 0.0
      %4585 = vmatprep.subr.mxu0 0.0
      %4586 = vmatpush1.msra.mxu0 0.0
      %4587 = vmatprep.subr.mxu0 0.0
      %4588 = vmatpush1.msra.mxu0 0.0
      %4589 = vmatprep.subr.mxu0 0.0
      %4590 = vmatpush1.msra.mxu0 0.0
      %4591 = vmatprep.subr.mxu0 0.0
      %4592 = vmatpush1.msra.mxu0 0.0
      %4593 = vmatprep.subr.mxu0 0.0
      %4594 = vmatpush1.msra.mxu0 0.0
      %4595 = vmatprep.subr.mxu0 0.0
      %4596 = vmatpush1.msra.mxu0 0.0
      %4597 = vmatprep.subr.mxu0 0.0
      %4598 = vmatpush1.msra.mxu0 0.0
      %4599 = vmatprep.subr.mxu0 0.0
      %4600 = vmatpush1.msra.mxu0 0.0
      %4601 = vmatprep.subr.mxu0 0.0
      %4602 = vmatpush1.msra.mxu0 0.0
      %4603 = vmatprep.subr.mxu0 0.0
      %4604 = vmatpush1.msra.mxu0 0.0
      %4605 = vmatprep.subr.mxu0 0.0
      %4606 = vmatpush1.msra.mxu0 0.0
      %4607 = vmatprep.subr.mxu0 0.0
      %4608 = vmatpush1.msra.mxu0 0.0
      %4609 = vmatprep.subr.mxu0 0.0
      %4610 = vmatpush1.msra.mxu0 0.0
      %4611 = vmatprep.subr.mxu0 0.0
      %4612 = vmatpush1.msra.mxu0 0.0
      %4613 = vmatprep.subr.mxu0 0.0
      %4614 = vmatpush1.msra.mxu0 0.0
      %4615 = vmatprep.subr.mxu0 0.0
      %4616 = vmatpush1.msra.mxu0 0.0
      %4617 = vmatprep.subr.mxu0 0.0
      %4618 = vmatpush1.msra.mxu0 0.0
      %4619 = vmatprep.subr.mxu0 0.0
      %4620 = vmatpush1.msra.mxu0 0.0
      %4621 = vmatprep.subr.mxu0 0.0
      %4622 = vmatpush1.msra.mxu0 0.0
      %4623 = vmatprep.subr.mxu0 0.0
      %4624 = vmatpush1.msra.mxu0 0.0
      %4625 = vmatprep.subr.mxu0 0.0
      %4626 = vmatpush1.msra.mxu0 0.0
      %4627 = vmatprep.mubr.f32.mxu0 0.0
      %4628 = vmatmul.mubr.f32.gmra.mrb[0].mxu0 %v4490
      %v4629 = vpop.f32.mrb[0].mxu0
      %v4630 = vadd.f32 0.0, %v4629
      %v4631 = vpop.f32.mrb[0].mxu0
      %4632 = vdwg.mxu0
      %v4634 = vsel %vm680, %v4208, 0
      %4636 = vmatprep.subr.mxu0 %v4210
      %4637 = vmatpush1.msra.mxu0 %v4209
      %4638 = vmatprep.subr.mxu0 %v4213
      %4639 = vmatpush1.msra.mxu0 %v4212
      %4640 = vmatprep.subr.mxu0 %v4216
      %4641 = vmatpush1.msra.mxu0 %v4215
      %4642 = vmatprep.subr.mxu0 %v4219
      %4643 = vmatpush1.msra.mxu0 %v4218
      %4644 = vmatprep.subr.mxu0 %v4222
      %4645 = vmatpush1.msra.mxu0 %v4221
      %4646 = vmatprep.subr.mxu0 %v4225
      %4647 = vmatpush1.msra.mxu0 %v4224
      %4648 = vmatprep.subr.mxu0 %v4228
      %4649 = vmatpush1.msra.mxu0 %v4227
      %4650 = vmatprep.subr.mxu0 %v4231
      %4651 = vmatpush1.msra.mxu0 %v4230
      %4652 = vmatprep.subr.mxu0 %v4234
      %4653 = vmatpush1.msra.mxu0 %v4233
      %4654 = vmatprep.subr.mxu0 0.0
      %4655 = vmatpush1.msra.mxu0 0.0
      %4656 = vmatprep.subr.mxu0 0.0
      %4657 = vmatpush1.msra.mxu0 0.0
      %4658 = vmatprep.subr.mxu0 0.0
      %4659 = vmatpush1.msra.mxu0 0.0
      %4660 = vmatprep.subr.mxu0 0.0
      %4661 = vmatpush1.msra.mxu0 0.0
      %4662 = vmatprep.subr.mxu0 0.0
      %4663 = vmatpush1.msra.mxu0 0.0
      %4664 = vmatprep.subr.mxu0 0.0
      %4665 = vmatpush1.msra.mxu0 0.0
      %4666 = vmatprep.subr.mxu0 0.0
      %4667 = vmatpush1.msra.mxu0 0.0
      %4668 = vmatprep.subr.mxu0 0.0
      %4669 = vmatpush1.msra.mxu0 0.0
      %4670 = vmatprep.subr.mxu0 0.0
      %4671 = vmatpush1.msra.mxu0 0.0
      %4672 = vmatprep.subr.mxu0 0.0
      %4673 = vmatpush1.msra.mxu0 0.0
      %4674 = vmatprep.subr.mxu0 0.0
      %4675 = vmatpush1.msra.mxu0 0.0
      %4676 = vmatprep.subr.mxu0 0.0
      %4677 = vmatpush1.msra.mxu0 0.0
      %4678 = vmatprep.subr.mxu0 0.0
      %4679 = vmatpush1.msra.mxu0 0.0
      %4680 = vmatprep.subr.mxu0 0.0
      %4681 = vmatpush1.msra.mxu0 0.0
      %4682 = vmatprep.subr.mxu0 0.0
      %4683 = vmatpush1.msra.mxu0 0.0
      %4684 = vmatprep.subr.mxu0 0.0
      %4685 = vmatpush1.msra.mxu0 0.0
      %4686 = vmatprep.subr.mxu0 0.0
      %4687 = vmatpush1.msra.mxu0 0.0
      %4688 = vmatprep.subr.mxu0 0.0
      %4689 = vmatpush1.msra.mxu0 0.0
      %4690 = vmatprep.subr.mxu0 0.0
      %4691 = vmatpush1.msra.mxu0 0.0
      %4692 = vmatprep.subr.mxu0 0.0
      %4693 = vmatpush1.msra.mxu0 0.0
      %4694 = vmatprep.subr.mxu0 0.0
      %4695 = vmatpush1.msra.mxu0 0.0
      %4696 = vmatprep.subr.mxu0 0.0
      %4697 = vmatpush1.msra.mxu0 0.0
      %4698 = vmatprep.subr.mxu0 0.0
      %4699 = vmatpush1.msra.mxu0 0.0
      %4700 = vmatprep.mubr.f32.mxu0 0.0
      %4701 = vmatmul.mubr.f32.gmra.mrb[0].mxu0 %v4634
      %v4702 = vpop.f32.mrb[0].mxu0
      %v4703 = vadd.f32 %v4559, %v4702
      %v4704 = vpop.f32.mrb[0].mxu0
      %v4705 = vadd.f32 %v4561, %v4704
      %4706 = vdwg.mxu0
      %4707 = vmatprep.subr.mxu0 0.0
      %4708 = vmatpush1.msra.mxu0 %v4211
      %4709 = vmatprep.subr.mxu0 0.0
      %4710 = vmatpush1.msra.mxu0 %v4214
      %4711 = vmatprep.subr.mxu0 0.0
      %4712 = vmatpush1.msra.mxu0 %v4217
      %4713 = vmatprep.subr.mxu0 0.0
      %4714 = vmatpush1.msra.mxu0 %v4220
      %4715 = vmatprep.subr.mxu0 0.0
      %4716 = vmatpush1.msra.mxu0 %v4223
      %4717 = vmatprep.subr.mxu0 0.0
      %4718 = vmatpush1.msra.mxu0 %v4226
      %4719 = vmatprep.subr.mxu0 0.0
      %4720 = vmatpush1.msra.mxu0 %v4229
      %4721 = vmatprep.subr.mxu0 0.0
      %4722 = vmatpush1.msra.mxu0 %v4232
      %4723 = vmatprep.subr.mxu0 0.0
      %4724 = vmatpush1.msra.mxu0 %v4235
      %4725 = vmatprep.subr.mxu0 0.0
      %4726 = vmatpush1.msra.mxu0 0.0
      %4727 = vmatprep.subr.mxu0 0.0
      %4728 = vmatpush1.msra.mxu0 0.0
      %4729 = vmatprep.subr.mxu0 0.0
      %4730 = vmatpush1.msra.mxu0 0.0
      %4731 = vmatprep.subr.mxu0 0.0
      %4732 = vmatpush1.msra.mxu0 0.0
      %4733 = vmatprep.subr.mxu0 0.0
      %4734 = vmatpush1.msra.mxu0 0.0
      %4735 = vmatprep.subr.mxu0 0.0
      %4736 = vmatpush1.msra.mxu0 0.0
      %4737 = vmatprep.subr.mxu0 0.0
      %4738 = vmatpush1.msra.mxu0 0.0
      %4739 = vmatprep.subr.mxu0 0.0
      %4740 = vmatpush1.msra.mxu0 0.0
      %4741 = vmatprep.subr.mxu0 0.0
      %4742 = vmatpush1.msra.mxu0 0.0
      %4743 = vmatprep.subr.mxu0 0.0
      %4744 = vmatpush1.msra.mxu0 0.0
      %4745 = vmatprep.subr.mxu0 0.0
      %4746 = vmatpush1.msra.mxu0 0.0
      %4747 = vmatprep.subr.mxu0 0.0
      %4748 = vmatpush1.msra.mxu0 0.0
      %4749 = vmatprep.subr.mxu0 0.0
      %4750 = vmatpush1.msra.mxu0 0.0
      %4751 = vmatprep.subr.mxu0 0.0
      %4752 = vmatpush1.msra.mxu0 0.0
      %4753 = vmatprep.subr.mxu0 0.0
      %4754 = vmatpush1.msra.mxu0 0.0
      %4755 = vmatprep.subr.mxu0 0.0
      %4756 = vmatpush1.msra.mxu0 0.0
      %4757 = vmatprep.subr.mxu0 0.0
      %4758 = vmatpush1.msra.mxu0 0.0
      %4759 = vmatprep.subr.mxu0 0.0
      %4760 = vmatpush1.msra.mxu0 0.0
      %4761 = vmatprep.subr.mxu0 0.0
      %4762 = vmatpush1.msra.mxu0 0.0
      %4763 = vmatprep.subr.mxu0 0.0
      %4764 = vmatpush1.msra.mxu0 0.0
      %4765 = vmatprep.subr.mxu0 0.0
      %4766 = vmatpush1.msra.mxu0 0.0
      %4767 = vmatprep.subr.mxu0 0.0
      %4768 = vmatpush1.msra.mxu0 0.0
      %4769 = vmatprep.subr.mxu0 0.0
      %4770 = vmatpush1.msra.mxu0 0.0
      %4771 = vmatprep.mubr.f32.mxu0 0.0
      %4772 = vmatmul.mubr.f32.gmra.mrb[0].mxu0 %v4634
      %v4773 = vpop.f32.mrb[0].mxu0
      %v4774 = vadd.f32 %v4630, %v4773
      %v4775 = vpop.f32.mrb[0].mxu0
      %4776 = vdwg.mxu0
      %v4777 = vld [vmem:[#allocation3] sm:$0xff]
      %v4778 = vld [vmem:[#allocation3 + $0x8] sm:$0xff]
      %v4779 = vld [vmem:[#allocation3 + $0x10] sm:$0xff]
      %v4780 = vld [vmem:[#allocation3 + $0x18] sm:$0xff]
      %4785 = vrot.lane.b32.xlu0 %v4777, 52
      %v4786 = vpop.permute.xlu0 %4785
      %4787 = vrot.lane.b32.xlu0 %v4778, 52
      %v4788 = vpop.permute.xlu0 %4787
      %4789 = vrot.lane.b32.xlu0 %v4779, 52
      %v4790 = vpop.permute.xlu0 %4789
      %4791 = vrot.lane.b32.xlu0 %v4780, 52
      %v4792 = vpop.permute.xlu0 %4791
      %v4793 = vsel %vm1126, %v4786, %v4788
      %v4794 = vsel %vm1126, %v4788, %v4790
      %v4795 = vsel %vm1126, %v4790, %v4792
      %4799 = vst [vmem:[#allocation4] sm:$0xff] %v4793
      %4800 = vst [vmem:[#allocation4 + $0x8] sm:$0xff] %v4794
      %4801 = vst [vmem:[#allocation4 + $0x10] sm:$0xff] %v4795
      %v4802 = vld [vmem:[#allocation3] sm:$0xff]
      %v4803 = vld [vmem:[#allocation3 + $0x8] sm:$0xff]
      %v4804 = vld [vmem:[#allocation3 + $0x10] sm:$0xff]
      %v4805 = vld [vmem:[#allocation3 + $0x18] sm:$0xff]
      %4810 = vrot.lane.b32.xlu0 %v4802, 51
      %v4811 = vpop.permute.xlu0 %4810
      %4812 = vrot.lane.b32.xlu0 %v4803, 51
      %v4813 = vpop.permute.xlu0 %4812
      %4814 = vrot.lane.b32.xlu0 %v4804, 51
      %v4815 = vpop.permute.xlu0 %4814
      %4816 = vrot.lane.b32.xlu0 %v4805, 51
      %v4817 = vpop.permute.xlu0 %4816
      %v4818 = vsel %vm1152, %v4811, %v4813
      %v4819 = vsel %vm1152, %v4813, %v4815
      %v4820 = vsel %vm1152, %v4815, %v4817
      %4824 = vst [vmem:[#allocation4 + $0x18] sm:$0xff] %v4818
      %4825 = vst [vmem:[#allocation4 + $0x20] sm:$0xff] %v4819
      %4826 = vst [vmem:[#allocation4 + $0x28] sm:$0xff] %v4820
      %v4827 = vld [vmem:[#allocation3] sm:$0xff]
      %v4828 = vld [vmem:[#allocation3 + $0x8] sm:$0xff]
      %v4829 = vld [vmem:[#allocation3 + $0x10] sm:$0xff]
      %v4830 = vld [vmem:[#allocation3 + $0x18] sm:$0xff]
      %4835 = vrot.lane.b32.xlu0 %v4827, 50
      %v4836 = vpop.permute.xlu0 %4835
      %4837 = vrot.lane.b32.xlu0 %v4828, 50
      %v4838 = vpop.permute.xlu0 %4837
      %4839 = vrot.lane.b32.xlu0 %v4829, 50
      %v4840 = vpop.permute.xlu0 %4839
      %4841 = vrot.lane.b32.xlu0 %v4830, 50
      %v4842 = vpop.permute.xlu0 %4841
      %v4843 = vsel %vm1178, %v4836, %v4838
      %v4844 = vsel %vm1178, %v4838, %v4840
      %v4845 = vsel %vm1178, %v4840, %v4842
      %4849 = vst [vmem:[#allocation4 + $0x30] sm:$0xff] %v4843
      %4850 = vst [vmem:[#allocation4 + $0x38] sm:$0xff] %v4844
      %4851 = vst [vmem:[#allocation4 + $0x40] sm:$0xff] %v4845
      %v4852 = vld [vmem:[#allocation3] sm:$0xff]
      %v4853 = vld [vmem:[#allocation3 + $0x8] sm:$0xff]
      %v4854 = vld [vmem:[#allocation3 + $0x10] sm:$0xff]
      %v4855 = vld [vmem:[#allocation3 + $0x18] sm:$0xff]
      %4860 = vrot.lane.b32.xlu0 %v4852, 49
      %v4861 = vpop.permute.xlu0 %4860
      %4862 = vrot.lane.b32.xlu0 %v4853, 49
      %v4863 = vpop.permute.xlu0 %4862
      %4864 = vrot.lane.b32.xlu0 %v4854, 49
      %v4865 = vpop.permute.xlu0 %4864
      %4866 = vrot.lane.b32.xlu0 %v4855, 49
      %v4867 = vpop.permute.xlu0 %4866
      %v4868 = vsel %vm1204, %v4861, %v4863
      %v4869 = vsel %vm1204, %v4863, %v4865
      %v4870 = vsel %vm1204, %v4865, %v4867
      %4874 = vst [vmem:[#allocation4 + $0x48] sm:$0xff] %v4868
      %4875 = vst [vmem:[#allocation4 + $0x50] sm:$0xff] %v4869
      %4876 = vst [vmem:[#allocation4 + $0x58] sm:$0xff] %v4870
      %v4877 = vld [vmem:[#allocation3] sm:$0xff]
      %v4878 = vld [vmem:[#allocation3 + $0x8] sm:$0xff]
      %v4879 = vld [vmem:[#allocation3 + $0x10] sm:$0xff]
      %v4880 = vld [vmem:[#allocation3 + $0x18] sm:$0xff]
      %4885 = vrot.lane.b32.xlu0 %v4877, 48
      %v4886 = vpop.permute.xlu0 %4885
      %4887 = vrot.lane.b32.xlu0 %v4878, 48
      %v4888 = vpop.permute.xlu0 %4887
      %4889 = vrot.lane.b32.xlu0 %v4879, 48
      %v4890 = vpop.permute.xlu0 %4889
      %4891 = vrot.lane.b32.xlu0 %v4880, 48
      %v4892 = vpop.permute.xlu0 %4891
      %v4893 = vsel %vm1230, %v4886, %v4888
      %v4894 = vsel %vm1230, %v4888, %v4890
      %v4895 = vsel %vm1230, %v4890, %v4892
      %4899 = vst [vmem:[#allocation4 + $0x60] sm:$0xff] %v4893
      %4900 = vst [vmem:[#allocation4 + $0x68] sm:$0xff] %v4894
      %4901 = vst [vmem:[#allocation4 + $0x70] sm:$0xff] %v4895
      %v4902 = vld [vmem:[#allocation3] sm:$0xff]
      %v4903 = vld [vmem:[#allocation3 + $0x8] sm:$0xff]
      %v4904 = vld [vmem:[#allocation3 + $0x10] sm:$0xff]
      %v4905 = vld [vmem:[#allocation3 + $0x18] sm:$0xff]
      %4910 = vrot.lane.b32.xlu0 %v4902, 47
      %v4911 = vpop.permute.xlu0 %4910
      %4912 = vrot.lane.b32.xlu0 %v4903, 47
      %v4913 = vpop.permute.xlu0 %4912
      %4914 = vrot.lane.b32.xlu0 %v4904, 47
      %v4915 = vpop.permute.xlu0 %4914
      %4916 = vrot.lane.b32.xlu0 %v4905, 47
      %v4917 = vpop.permute.xlu0 %4916
      %v4918 = vsel %vm1256, %v4911, %v4913
      %v4919 = vsel %vm1256, %v4913, %v4915
      %v4920 = vsel %vm1256, %v4915, %v4917
      %4924 = vst [vmem:[#allocation4 + $0x78] sm:$0xff] %v4918
      %4925 = vst [vmem:[#allocation4 + $0x80] sm:$0xff] %v4919
      %4926 = vst [vmem:[#allocation4 + $0x88] sm:$0xff] %v4920
      %v4927 = vld [vmem:[#allocation3] sm:$0xff]
      %v4928 = vld [vmem:[#allocation3 + $0x8] sm:$0xff]
      %v4929 = vld [vmem:[#allocation3 + $0x10] sm:$0xff]
      %v4930 = vld [vmem:[#allocation3 + $0x18] sm:$0xff]
      %4935 = vrot.lane.b32.xlu0 %v4927, 46
      %v4936 = vpop.permute.xlu0 %4935
      %4937 = vrot.lane.b32.xlu0 %v4928, 46
      %v4938 = vpop.permute.xlu0 %4937
      %4939 = vrot.lane.b32.xlu0 %v4929, 46
      %v4940 = vpop.permute.xlu0 %4939
      %4941 = vrot.lane.b32.xlu0 %v4930, 46
      %v4942 = vpop.permute.xlu0 %4941
      %v4943 = vsel %vm1282, %v4936, %v4938
      %v4944 = vsel %vm1282, %v4938, %v4940
      %v4945 = vsel %vm1282, %v4940, %v4942
      %4949 = vst [vmem:[#allocation4 + $0x90] sm:$0xff] %v4943
      %4950 = vst [vmem:[#allocation4 + $0x98] sm:$0xff] %v4944
      %4951 = vst [vmem:[#allocation4 + $0xa0] sm:$0xff] %v4945
      %v4952 = vld [vmem:[#allocation3] sm:$0xff]
      %v4953 = vld [vmem:[#allocation3 + $0x8] sm:$0xff]
      %v4954 = vld [vmem:[#allocation3 + $0x10] sm:$0xff]
      %v4955 = vld [vmem:[#allocation3 + $0x18] sm:$0xff]
      %4960 = vrot.lane.b32.xlu0 %v4952, 45
      %v4961 = vpop.permute.xlu0 %4960
      %4962 = vrot.lane.b32.xlu0 %v4953, 45
      %v4963 = vpop.permute.xlu0 %4962
      %4964 = vrot.lane.b32.xlu0 %v4954, 45
      %v4965 = vpop.permute.xlu0 %4964
      %4966 = vrot.lane.b32.xlu0 %v4955, 45
      %v4967 = vpop.permute.xlu0 %4966
      %v4968 = vsel %vm1308, %v4961, %v4963
      %v4969 = vsel %vm1308, %v4963, %v4965
      %v4970 = vsel %vm1308, %v4965, %v4967
      %4974 = vst [vmem:[#allocation4 + $0xa8] sm:$0xff] %v4968
      %4975 = vst [vmem:[#allocation4 + $0xb0] sm:$0xff] %v4969
      %4976 = vst [vmem:[#allocation4 + $0xb8] sm:$0xff] %v4970
      %v4977 = vld [vmem:[#allocation3] sm:$0xff]
      %v4978 = vld [vmem:[#allocation3 + $0x8] sm:$0xff]
      %v4979 = vld [vmem:[#allocation3 + $0x10] sm:$0xff]
      %v4980 = vld [vmem:[#allocation3 + $0x18] sm:$0xff]
      %4985 = vrot.lane.b32.xlu0 %v4977, 44
      %v4986 = vpop.permute.xlu0 %4985
      %4987 = vrot.lane.b32.xlu0 %v4978, 44
      %v4988 = vpop.permute.xlu0 %4987
      %4989 = vrot.lane.b32.xlu0 %v4979, 44
      %v4990 = vpop.permute.xlu0 %4989
      %4991 = vrot.lane.b32.xlu0 %v4980, 44
      %v4992 = vpop.permute.xlu0 %4991
      %v4993 = vsel %vm1334, %v4986, %v4988
      %v4994 = vsel %vm1334, %v4988, %v4990
      %v4995 = vsel %vm1334, %v4990, %v4992
      %4999 = vst [vmem:[#allocation4 + $0xc0] sm:$0xff] %v4993
      %5000 = vst [vmem:[#allocation4 + $0xc8] sm:$0xff] %v4994
      %5001 = vst [vmem:[#allocation4 + $0xd0] sm:$0xff] %v4995
      %v5002 = vld [vmem:[%s266 + $0x58] sm:$0xff]
      %v5003 = vld [vmem:[#allocation4] sm:$0xff]
      %v5004 = vld [vmem:[#allocation4 + $0x8] sm:$0xff]
      %v5005 = vld [vmem:[#allocation4 + $0x10] sm:$0xff]
      %v5006 = vld [vmem:[#allocation4 + $0x18] sm:$0xff]
      %v5007 = vld [vmem:[#allocation4 + $0x20] sm:$0xff]
      %v5008 = vld [vmem:[#allocation4 + $0x28] sm:$0xff]
      %v5009 = vld [vmem:[#allocation4 + $0x30] sm:$0xff]
      %v5010 = vld [vmem:[#allocation4 + $0x38] sm:$0xff]
      %v5011 = vld [vmem:[#allocation4 + $0x40] sm:$0xff]
      %v5012 = vld [vmem:[#allocation4 + $0x48] sm:$0xff]
      %v5013 = vld [vmem:[#allocation4 + $0x50] sm:$0xff]
      %v5014 = vld [vmem:[#allocation4 + $0x58] sm:$0xff]
      %v5015 = vld [vmem:[#allocation4 + $0x60] sm:$0xff]
      %v5016 = vld [vmem:[#allocation4 + $0x68] sm:$0xff]
      %v5017 = vld [vmem:[#allocation4 + $0x70] sm:$0xff]
      %v5018 = vld [vmem:[#allocation4 + $0x78] sm:$0xff]
      %v5019 = vld [vmem:[#allocation4 + $0x80] sm:$0xff]
      %v5020 = vld [vmem:[#allocation4 + $0x88] sm:$0xff]
      %v5021 = vld [vmem:[#allocation4 + $0x90] sm:$0xff]
      %v5022 = vld [vmem:[#allocation4 + $0x98] sm:$0xff]
      %v5023 = vld [vmem:[#allocation4 + $0xa0] sm:$0xff]
      %v5024 = vld [vmem:[#allocation4 + $0xa8] sm:$0xff]
      %v5025 = vld [vmem:[#allocation4 + $0xb0] sm:$0xff]
      %v5026 = vld [vmem:[#allocation4 + $0xb8] sm:$0xff]
      %v5027 = vld [vmem:[#allocation4 + $0xc0] sm:$0xff]
      %v5028 = vld [vmem:[#allocation4 + $0xc8] sm:$0xff]
      %v5029 = vld [vmem:[#allocation4 + $0xd0] sm:$0xff]
      %v5031 = vsel %vm680, %v5002, 0
      %5033 = vmatprep.subr.mxu0 %v5004
      %5034 = vmatpush1.msra.mxu0 %v5003
      %5035 = vmatprep.subr.mxu0 %v5007
      %5036 = vmatpush1.msra.mxu0 %v5006
      %5037 = vmatprep.subr.mxu0 %v5010
      %5038 = vmatpush1.msra.mxu0 %v5009
      %5039 = vmatprep.subr.mxu0 %v5013
      %5040 = vmatpush1.msra.mxu0 %v5012
      %5041 = vmatprep.subr.mxu0 %v5016
      %5042 = vmatpush1.msra.mxu0 %v5015
      %5043 = vmatprep.subr.mxu0 %v5019
      %5044 = vmatpush1.msra.mxu0 %v5018
      %5045 = vmatprep.subr.mxu0 %v5022
      %5046 = vmatpush1.msra.mxu0 %v5021
      %5047 = vmatprep.subr.mxu0 %v5025
      %5048 = vmatpush1.msra.mxu0 %v5024
      %5049 = vmatprep.subr.mxu0 %v5028
      %5050 = vmatpush1.msra.mxu0 %v5027
      %5051 = vmatprep.subr.mxu0 0.0
      %5052 = vmatpush1.msra.mxu0 0.0
      %5053 = vmatprep.subr.mxu0 0.0
      %5054 = vmatpush1.msra.mxu0 0.0
      %5055 = vmatprep.subr.mxu0 0.0
      %5056 = vmatpush1.msra.mxu0 0.0
      %5057 = vmatprep.subr.mxu0 0.0
      %5058 = vmatpush1.msra.mxu0 0.0
      %5059 = vmatprep.subr.mxu0 0.0
      %5060 = vmatpush1.msra.mxu0 0.0
      %5061 = vmatprep.subr.mxu0 0.0
      %5062 = vmatpush1.msra.mxu0 0.0
      %5063 = vmatprep.subr.mxu0 0.0
      %5064 = vmatpush1.msra.mxu0 0.0
      %5065 = vmatprep.subr.mxu0 0.0
      %5066 = vmatpush1.msra.mxu0 0.0
      %5067 = vmatprep.subr.mxu0 0.0
      %5068 = vmatpush1.msra.mxu0 0.0
      %5069 = vmatprep.subr.mxu0 0.0
      %5070 = vmatpush1.msra.mxu0 0.0
      %5071 = vmatprep.subr.mxu0 0.0
      %5072 = vmatpush1.msra.mxu0 0.0
      %5073 = vmatprep.subr.mxu0 0.0
      %5074 = vmatpush1.msra.mxu0 0.0
      %5075 = vmatprep.subr.mxu0 0.0
      %5076 = vmatpush1.msra.mxu0 0.0
      %5077 = vmatprep.subr.mxu0 0.0
      %5078 = vmatpush1.msra.mxu0 0.0
      %5079 = vmatprep.subr.mxu0 0.0
      %5080 = vmatpush1.msra.mxu0 0.0
      %5081 = vmatprep.subr.mxu0 0.0
      %5082 = vmatpush1.msra.mxu0 0.0
      %5083 = vmatprep.subr.mxu0 0.0
      %5084 = vmatpush1.msra.mxu0 0.0
      %5085 = vmatprep.subr.mxu0 0.0
      %5086 = vmatpush1.msra.mxu0 0.0
      %5087 = vmatprep.subr.mxu0 0.0
      %5088 = vmatpush1.msra.mxu0 0.0
      %5089 = vmatprep.subr.mxu0 0.0
      %5090 = vmatpush1.msra.mxu0 0.0
      %5091 = vmatprep.subr.mxu0 0.0
      %5092 = vmatpush1.msra.mxu0 0.0
      %5093 = vmatprep.subr.mxu0 0.0
      %5094 = vmatpush1.msra.mxu0 0.0
      %5095 = vmatprep.subr.mxu0 0.0
      %5096 = vmatpush1.msra.mxu0 0.0
      %5097 = vmatprep.mubr.f32.mxu0 0.0
      %5098 = vmatmul.mubr.f32.gmra.mrb[0].mxu0 %v5031
      %v5099 = vpop.f32.mrb[0].mxu0
      %v5100 = vadd.f32 0.0, %v5099
      %v5101 = vpop.f32.mrb[0].mxu0
      %v5102 = vadd.f32 0.0, %v5101
      %5103 = vdwg.mxu0
      %5104 = vmatprep.subr.mxu0 0.0
      %5105 = vmatpush1.msra.mxu0 %v5005
      %5106 = vmatprep.subr.mxu0 0.0
      %5107 = vmatpush1.msra.mxu0 %v5008
      %5108 = vmatprep.subr.mxu0 0.0
      %5109 = vmatpush1.msra.mxu0 %v5011
      %5110 = vmatprep.subr.mxu0 0.0
      %5111 = vmatpush1.msra.mxu0 %v5014
      %5112 = vmatprep.subr.mxu0 0.0
      %5113 = vmatpush1.msra.mxu0 %v5017
      %5114 = vmatprep.subr.mxu0 0.0
      %5115 = vmatpush1.msra.mxu0 %v5020
      %5116 = vmatprep.subr.mxu0 0.0
      %5117 = vmatpush1.msra.mxu0 %v5023
      %5118 = vmatprep.subr.mxu0 0.0
      %5119 = vmatpush1.msra.mxu0 %v5026
      %5120 = vmatprep.subr.mxu0 0.0
      %5121 = vmatpush1.msra.mxu0 %v5029
      %5122 = vmatprep.subr.mxu0 0.0
      %5123 = vmatpush1.msra.mxu0 0.0
      %5124 = vmatprep.subr.mxu0 0.0
      %5125 = vmatpush1.msra.mxu0 0.0
      %5126 = vmatprep.subr.mxu0 0.0
      %5127 = vmatpush1.msra.mxu0 0.0
      %5128 = vmatprep.subr.mxu0 0.0
      %5129 = vmatpush1.msra.mxu0 0.0
      %5130 = vmatprep.subr.mxu0 0.0
      %5131 = vmatpush1.msra.mxu0 0.0
      %5132 = vmatprep.subr.mxu0 0.0
      %5133 = vmatpush1.msra.mxu0 0.0
      %5134 = vmatprep.subr.mxu0 0.0
      %5135 = vmatpush1.msra.mxu0 0.0
      %5136 = vmatprep.subr.mxu0 0.0
      %5137 = vmatpush1.msra.mxu0 0.0
      %5138 = vmatprep.subr.mxu0 0.0
      %5139 = vmatpush1.msra.mxu0 0.0
      %5140 = vmatprep.subr.mxu0 0.0
      %5141 = vmatpush1.msra.mxu0 0.0
      %5142 = vmatprep.subr.mxu0 0.0
      %5143 = vmatpush1.msra.mxu0 0.0
      %5144 = vmatprep.subr.mxu0 0.0
      %5145 = vmatpush1.msra.mxu0 0.0
      %5146 = vmatprep.subr.mxu0 0.0
      %5147 = vmatpush1.msra.mxu0 0.0
      %5148 = vmatprep.subr.mxu0 0.0
      %5149 = vmatpush1.msra.mxu0 0.0
      %5150 = vmatprep.subr.mxu0 0.0
      %5151 = vmatpush1.msra.mxu0 0.0
      %5152 = vmatprep.subr.mxu0 0.0
      %5153 = vmatpush1.msra.mxu0 0.0
      %5154 = vmatprep.subr.mxu0 0.0
      %5155 = vmatpush1.msra.mxu0 0.0
      %5156 = vmatprep.subr.mxu0 0.0
      %5157 = vmatpush1.msra.mxu0 0.0
      %5158 = vmatprep.subr.mxu0 0.0
      %5159 = vmatpush1.msra.mxu0 0.0
      %5160 = vmatprep.subr.mxu0 0.0
      %5161 = vmatpush1.msra.mxu0 0.0
      %5162 = vmatprep.subr.mxu0 0.0
      %5163 = vmatpush1.msra.mxu0 0.0
      %5164 = vmatprep.subr.mxu0 0.0
      %5165 = vmatpush1.msra.mxu0 0.0
      %5166 = vmatprep.subr.mxu0 0.0
      %5167 = vmatpush1.msra.mxu0 0.0
      %5168 = vmatprep.mubr.f32.mxu0 0.0
      %5169 = vmatmul.mubr.f32.gmra.mrb[0].mxu0 %v5031
      %v5170 = vpop.f32.mrb[0].mxu0
      %v5171 = vadd.f32 0.0, %v5170
      %v5172 = vpop.f32.mrb[0].mxu0
      %5173 = vdwg.mxu0
      %v5174 = vadd.f32 %v4703, %v5100
      %v5175 = vadd.f32 %v4705, %v5102
      %v5176 = vadd.f32 %v4774, %v5171
      %v5177 = vld [vmem:[#allocation3] sm:$0xff]
      %v5178 = vld [vmem:[#allocation3 + $0x8] sm:$0xff]
      %v5179 = vld [vmem:[#allocation3 + $0x10] sm:$0xff]
      %v5180 = vld [vmem:[#allocation3 + $0x18] sm:$0xff]
      %5185 = vrot.lane.b32.xlu0 %v5177, 28
      %v5186 = vpop.permute.xlu0 %5185
      %5187 = vrot.lane.b32.xlu0 %v5178, 28
      %v5188 = vpop.permute.xlu0 %5187
      %5189 = vrot.lane.b32.xlu0 %v5179, 28
      %v5190 = vpop.permute.xlu0 %5189
      %5191 = vrot.lane.b32.xlu0 %v5180, 28
      %v5192 = vpop.permute.xlu0 %5191
      %v5193 = vsel %vm1535, %v5186, %v5188
      %v5194 = vsel %vm1535, %v5188, %v5190
      %v5195 = vsel %vm1535, %v5190, %v5192
      %5199 = vst [vmem:[#allocation4 + $0xd8] sm:$0xff] %v5193
      %5200 = vst [vmem:[#allocation4 + $0xe0] sm:$0xff] %v5194
      %5201 = vst [vmem:[#allocation4 + $0xe8] sm:$0xff] %v5195
      %v5202 = vld [vmem:[#allocation3] sm:$0xff]
      %v5203 = vld [vmem:[#allocation3 + $0x8] sm:$0xff]
      %v5204 = vld [vmem:[#allocation3 + $0x10] sm:$0xff]
      %v5205 = vld [vmem:[#allocation3 + $0x18] sm:$0xff]
      %5210 = vrot.lane.b32.xlu0 %v5202, 27
      %v5211 = vpop.permute.xlu0 %5210
      %5212 = vrot.lane.b32.xlu0 %v5203, 27
      %v5213 = vpop.permute.xlu0 %5212
      %5214 = vrot.lane.b32.xlu0 %v5204, 27
      %v5215 = vpop.permute.xlu0 %5214
      %5216 = vrot.lane.b32.xlu0 %v5205, 27
      %v5217 = vpop.permute.xlu0 %5216
      %v5218 = vsel %vm1561, %v5211, %v5213
      %v5219 = vsel %vm1561, %v5213, %v5215
      %v5220 = vsel %vm1561, %v5215, %v5217
      %5224 = vst [vmem:[#allocation4 + $0xf0] sm:$0xff] %v5218
      %5225 = vst [vmem:[#allocation4 + $0xf8] sm:$0xff] %v5219
      %5226 = vst [vmem:[#allocation4 + $0x100] sm:$0xff] %v5220
      %v5227 = vld [vmem:[#allocation3] sm:$0xff]
      %v5228 = vld [vmem:[#allocation3 + $0x8] sm:$0xff]
      %v5229 = vld [vmem:[#allocation3 + $0x10] sm:$0xff]
      %v5230 = vld [vmem:[#allocation3 + $0x18] sm:$0xff]
      %5235 = vrot.lane.b32.xlu0 %v5227, 26
      %v5236 = vpop.permute.xlu0 %5235
      %5237 = vrot.lane.b32.xlu0 %v5228, 26
      %v5238 = vpop.permute.xlu0 %5237
      %5239 = vrot.lane.b32.xlu0 %v5229, 26
      %v5240 = vpop.permute.xlu0 %5239
      %5241 = vrot.lane.b32.xlu0 %v5230, 26
      %v5242 = vpop.permute.xlu0 %5241
      %v5243 = vsel %vm1587, %v5236, %v5238
      %v5244 = vsel %vm1587, %v5238, %v5240
      %v5245 = vsel %vm1587, %v5240, %v5242
      %5249 = vst [vmem:[#allocation4 + $0x108] sm:$0xff] %v5243
      %5250 = vst [vmem:[#allocation4 + $0x110] sm:$0xff] %v5244
      %5251 = vst [vmem:[#allocation4 + $0x118] sm:$0xff] %v5245
      %v5252 = vld [vmem:[#allocation3] sm:$0xff]
      %v5253 = vld [vmem:[#allocation3 + $0x8] sm:$0xff]
      %v5254 = vld [vmem:[#allocation3 + $0x10] sm:$0xff]
      %v5255 = vld [vmem:[#allocation3 + $0x18] sm:$0xff]
      %5260 = vrot.lane.b32.xlu0 %v5252, 25
      %v5261 = vpop.permute.xlu0 %5260
      %5262 = vrot.lane.b32.xlu0 %v5253, 25
      %v5263 = vpop.permute.xlu0 %5262
      %5264 = vrot.lane.b32.xlu0 %v5254, 25
      %v5265 = vpop.permute.xlu0 %5264
      %5266 = vrot.lane.b32.xlu0 %v5255, 25
      %v5267 = vpop.permute.xlu0 %5266
      %v5268 = vsel %vm1613, %v5261, %v5263
      %v5269 = vsel %vm1613, %v5263, %v5265
      %v5270 = vsel %vm1613, %v5265, %v5267
      %5274 = vst [vmem:[#allocation4 + $0x120] sm:$0xff] %v5268
      %5275 = vst [vmem:[#allocation4 + $0x128] sm:$0xff] %v5269
      %5276 = vst [vmem:[#allocation4 + $0x130] sm:$0xff] %v5270
      %v5277 = vld [vmem:[#allocation3] sm:$0xff]
      %v5278 = vld [vmem:[#allocation3 + $0x8] sm:$0xff]
      %v5279 = vld [vmem:[#allocation3 + $0x10] sm:$0xff]
      %v5280 = vld [vmem:[#allocation3 + $0x18] sm:$0xff]
      %5285 = vrot.lane.b32.xlu0 %v5277, 24
      %v5286 = vpop.permute.xlu0 %5285
      %5287 = vrot.lane.b32.xlu0 %v5278, 24
      %v5288 = vpop.permute.xlu0 %5287
      %5289 = vrot.lane.b32.xlu0 %v5279, 24
      %v5290 = vpop.permute.xlu0 %5289
      %5291 = vrot.lane.b32.xlu0 %v5280, 24
      %v5292 = vpop.permute.xlu0 %5291
      %v5293 = vsel %vm1639, %v5286, %v5288
      %v5294 = vsel %vm1639, %v5288, %v5290
      %v5295 = vsel %vm1639, %v5290, %v5292
      %5299 = vst [vmem:[#allocation4 + $0x138] sm:$0xff] %v5293
      %5300 = vst [vmem:[#allocation4 + $0x140] sm:$0xff] %v5294
      %5301 = vst [vmem:[#allocation4 + $0x148] sm:$0xff] %v5295
      %v5302 = vld [vmem:[#allocation3] sm:$0xff]
      %v5303 = vld [vmem:[#allocation3 + $0x8] sm:$0xff]
      %v5304 = vld [vmem:[#allocation3 + $0x10] sm:$0xff]
      %v5305 = vld [vmem:[#allocation3 + $0x18] sm:$0xff]
      %5310 = vrot.lane.b32.xlu0 %v5302, 23
      %v5311 = vpop.permute.xlu0 %5310
      %5312 = vrot.lane.b32.xlu0 %v5303, 23
      %v5313 = vpop.permute.xlu0 %5312
      %5314 = vrot.lane.b32.xlu0 %v5304, 23
      %v5315 = vpop.permute.xlu0 %5314
      %5316 = vrot.lane.b32.xlu0 %v5305, 23
      %v5317 = vpop.permute.xlu0 %5316
      %v5318 = vsel %vm1665, %v5311, %v5313
      %v5319 = vsel %vm1665, %v5313, %v5315
      %v5320 = vsel %vm1665, %v5315, %v5317
      %5324 = vst [vmem:[#allocation4 + $0x150] sm:$0xff] %v5318
      %5325 = vst [vmem:[#allocation4 + $0x158] sm:$0xff] %v5319
      %5326 = vst [vmem:[#allocation4 + $0x160] sm:$0xff] %v5320
      %v5327 = vld [vmem:[#allocation3] sm:$0xff]
      %v5328 = vld [vmem:[#allocation3 + $0x8] sm:$0xff]
      %v5329 = vld [vmem:[#allocation3 + $0x10] sm:$0xff]
      %v5330 = vld [vmem:[#allocation3 + $0x18] sm:$0xff]
      %5335 = vrot.lane.b32.xlu0 %v5327, 22
      %v5336 = vpop.permute.xlu0 %5335
      %5337 = vrot.lane.b32.xlu0 %v5328, 22
      %v5338 = vpop.permute.xlu0 %5337
      %5339 = vrot.lane.b32.xlu0 %v5329, 22
      %v5340 = vpop.permute.xlu0 %5339
      %5341 = vrot.lane.b32.xlu0 %v5330, 22
      %v5342 = vpop.permute.xlu0 %5341
      %v5343 = vsel %vm1691, %v5336, %v5338
      %v5344 = vsel %vm1691, %v5338, %v5340
      %v5345 = vsel %vm1691, %v5340, %v5342
      %5349 = vst [vmem:[#allocation4 + $0x168] sm:$0xff] %v5343
      %5350 = vst [vmem:[#allocation4 + $0x170] sm:$0xff] %v5344
      %5351 = vst [vmem:[#allocation4 + $0x178] sm:$0xff] %v5345
      %v5352 = vld [vmem:[#allocation3] sm:$0xff]
      %v5353 = vld [vmem:[#allocation3 + $0x8] sm:$0xff]
      %v5354 = vld [vmem:[#allocation3 + $0x10] sm:$0xff]
      %v5355 = vld [vmem:[#allocation3 + $0x18] sm:$0xff]
      %5360 = vrot.lane.b32.xlu0 %v5352, 21
      %v5361 = vpop.permute.xlu0 %5360
      %5362 = vrot.lane.b32.xlu0 %v5353, 21
      %v5363 = vpop.permute.xlu0 %5362
      %5364 = vrot.lane.b32.xlu0 %v5354, 21
      %v5365 = vpop.permute.xlu0 %5364
      %5366 = vrot.lane.b32.xlu0 %v5355, 21
      %v5367 = vpop.permute.xlu0 %5366
      %v5368 = vsel %vm1717, %v5361, %v5363
      %v5369 = vsel %vm1717, %v5363, %v5365
      %v5370 = vsel %vm1717, %v5365, %v5367
      %5374 = vst [vmem:[#allocation4 + $0x180] sm:$0xff] %v5368
      %5375 = vst [vmem:[#allocation4 + $0x188] sm:$0xff] %v5369
      %5376 = vst [vmem:[#allocation4 + $0x190] sm:$0xff] %v5370
      %v5377 = vld [vmem:[#allocation3] sm:$0xff]
      %v5378 = vld [vmem:[#allocation3 + $0x8] sm:$0xff]
      %v5379 = vld [vmem:[#allocation3 + $0x10] sm:$0xff]
      %v5380 = vld [vmem:[#allocation3 + $0x18] sm:$0xff]
      %5385 = vrot.lane.b32.xlu0 %v5377, 20
      %v5386 = vpop.permute.xlu0 %5385
      %5387 = vrot.lane.b32.xlu0 %v5378, 20
      %v5388 = vpop.permute.xlu0 %5387
      %5389 = vrot.lane.b32.xlu0 %v5379, 20
      %v5390 = vpop.permute.xlu0 %5389
      %5391 = vrot.lane.b32.xlu0 %v5380, 20
      %v5392 = vpop.permute.xlu0 %5391
      %v5393 = vsel %vm1743, %v5386, %v5388
      %v5394 = vsel %vm1743, %v5388, %v5390
      %v5395 = vsel %vm1743, %v5390, %v5392
      %5399 = vst [vmem:[#allocation4 + $0x198] sm:$0xff] %v5393
      %5400 = vst [vmem:[#allocation4 + $0x1a0] sm:$0xff] %v5394
      %5401 = vst [vmem:[#allocation4 + $0x1a8] sm:$0xff] %v5395
      %v5402 = vld [vmem:[%s266 + $0x60] sm:$0xff]
      %v5403 = vld [vmem:[#allocation4 + $0xd8] sm:$0xff]
      %v5404 = vld [vmem:[#allocation4 + $0xe0] sm:$0xff]
      %v5405 = vld [vmem:[#allocation4 + $0xe8] sm:$0xff]
      %v5406 = vld [vmem:[#allocation4 + $0xf0] sm:$0xff]
      %v5407 = vld [vmem:[#allocation4 + $0xf8] sm:$0xff]
      %v5408 = vld [vmem:[#allocation4 + $0x100] sm:$0xff]
      %v5409 = vld [vmem:[#allocation4 + $0x108] sm:$0xff]
      %v5410 = vld [vmem:[#allocation4 + $0x110] sm:$0xff]
      %v5411 = vld [vmem:[#allocation4 + $0x118] sm:$0xff]
      %v5412 = vld [vmem:[#allocation4 + $0x120] sm:$0xff]
      %v5413 = vld [vmem:[#allocation4 + $0x128] sm:$0xff]
      %v5414 = vld [vmem:[#allocation4 + $0x130] sm:$0xff]
      %v5415 = vld [vmem:[#allocation4 + $0x138] sm:$0xff]
      %v5416 = vld [vmem:[#allocation4 + $0x140] sm:$0xff]
      %v5417 = vld [vmem:[#allocation4 + $0x148] sm:$0xff]
      %v5418 = vld [vmem:[#allocation4 + $0x150] sm:$0xff]
      %v5419 = vld [vmem:[#allocation4 + $0x158] sm:$0xff]
      %v5420 = vld [vmem:[#allocation4 + $0x160] sm:$0xff]
      %v5421 = vld [vmem:[#allocation4 + $0x168] sm:$0xff]
      %v5422 = vld [vmem:[#allocation4 + $0x170] sm:$0xff]
      %v5423 = vld [vmem:[#allocation4 + $0x178] sm:$0xff]
      %v5424 = vld [vmem:[#allocation4 + $0x180] sm:$0xff]
      %v5425 = vld [vmem:[#allocation4 + $0x188] sm:$0xff]
      %v5426 = vld [vmem:[#allocation4 + $0x190] sm:$0xff]
      %v5427 = vld [vmem:[#allocation4 + $0x198] sm:$0xff]
      %v5428 = vld [vmem:[#allocation4 + $0x1a0] sm:$0xff]
      %v5429 = vld [vmem:[#allocation4 + $0x1a8] sm:$0xff]
      %v5431 = vsel %vm680, %v5402, 0
      %5433 = vmatprep.subr.mxu0 %v5404
      %5434 = vmatpush1.msra.mxu0 %v5403
      %5435 = vmatprep.subr.mxu0 %v5407
      %5436 = vmatpush1.msra.mxu0 %v5406
      %5437 = vmatprep.subr.mxu0 %v5410
      %5438 = vmatpush1.msra.mxu0 %v5409
      %5439 = vmatprep.subr.mxu0 %v5413
      %5440 = vmatpush1.msra.mxu0 %v5412
      %5441 = vmatprep.subr.mxu0 %v5416
      %5442 = vmatpush1.msra.mxu0 %v5415
      %5443 = vmatprep.subr.mxu0 %v5419
      %5444 = vmatpush1.msra.mxu0 %v5418
      %5445 = vmatprep.subr.mxu0 %v5422
      %5446 = vmatpush1.msra.mxu0 %v5421
      %5447 = vmatprep.subr.mxu0 %v5425
      %5448 = vmatpush1.msra.mxu0 %v5424
      %5449 = vmatprep.subr.mxu0 %v5428
      %5450 = vmatpush1.msra.mxu0 %v5427
      %5451 = vmatprep.subr.mxu0 0.0
      %5452 = vmatpush1.msra.mxu0 0.0
      %5453 = vmatprep.subr.mxu0 0.0
      %5454 = vmatpush1.msra.mxu0 0.0
      %5455 = vmatprep.subr.mxu0 0.0
      %5456 = vmatpush1.msra.mxu0 0.0
      %5457 = vmatprep.subr.mxu0 0.0
      %5458 = vmatpush1.msra.mxu0 0.0
      %5459 = vmatprep.subr.mxu0 0.0
      %5460 = vmatpush1.msra.mxu0 0.0
      %5461 = vmatprep.subr.mxu0 0.0
      %5462 = vmatpush1.msra.mxu0 0.0
      %5463 = vmatprep.subr.mxu0 0.0
      %5464 = vmatpush1.msra.mxu0 0.0
      %5465 = vmatprep.subr.mxu0 0.0
      %5466 = vmatpush1.msra.mxu0 0.0
      %5467 = vmatprep.subr.mxu0 0.0
      %5468 = vmatpush1.msra.mxu0 0.0
      %5469 = vmatprep.subr.mxu0 0.0
      %5470 = vmatpush1.msra.mxu0 0.0
      %5471 = vmatprep.subr.mxu0 0.0
      %5472 = vmatpush1.msra.mxu0 0.0
      %5473 = vmatprep.subr.mxu0 0.0
      %5474 = vmatpush1.msra.mxu0 0.0
      %5475 = vmatprep.subr.mxu0 0.0
      %5476 = vmatpush1.msra.mxu0 0.0
      %5477 = vmatprep.subr.mxu0 0.0
      %5478 = vmatpush1.msra.mxu0 0.0
      %5479 = vmatprep.subr.mxu0 0.0
      %5480 = vmatpush1.msra.mxu0 0.0
      %5481 = vmatprep.subr.mxu0 0.0
      %5482 = vmatpush1.msra.mxu0 0.0
      %5483 = vmatprep.subr.mxu0 0.0
      %5484 = vmatpush1.msra.mxu0 0.0
      %5485 = vmatprep.subr.mxu0 0.0
      %5486 = vmatpush1.msra.mxu0 0.0
      %5487 = vmatprep.subr.mxu0 0.0
      %5488 = vmatpush1.msra.mxu0 0.0
      %5489 = vmatprep.subr.mxu0 0.0
      %5490 = vmatpush1.msra.mxu0 0.0
      %5491 = vmatprep.subr.mxu0 0.0
      %5492 = vmatpush1.msra.mxu0 0.0
      %5493 = vmatprep.subr.mxu0 0.0
      %5494 = vmatpush1.msra.mxu0 0.0
      %5495 = vmatprep.subr.mxu0 0.0
      %5496 = vmatpush1.msra.mxu0 0.0
      %5497 = vmatprep.mubr.f32.mxu0 0.0
      %5498 = vmatmul.mubr.f32.gmra.mrb[0].mxu0 %v5431
      %v5499 = vpop.f32.mrb[0].mxu0
      %v5500 = vadd.f32 0.0, %v5499
      %v5501 = vpop.f32.mrb[0].mxu0
      %v5502 = vadd.f32 0.0, %v5501
      %5503 = vdwg.mxu0
      %5504 = vmatprep.subr.mxu0 0.0
      %5505 = vmatpush1.msra.mxu0 %v5405
      %5506 = vmatprep.subr.mxu0 0.0
      %5507 = vmatpush1.msra.mxu0 %v5408
      %5508 = vmatprep.subr.mxu0 0.0
      %5509 = vmatpush1.msra.mxu0 %v5411
      %5510 = vmatprep.subr.mxu0 0.0
      %5511 = vmatpush1.msra.mxu0 %v5414
      %5512 = vmatprep.subr.mxu0 0.0
      %5513 = vmatpush1.msra.mxu0 %v5417
      %5514 = vmatprep.subr.mxu0 0.0
      %5515 = vmatpush1.msra.mxu0 %v5420
      %5516 = vmatprep.subr.mxu0 0.0
      %5517 = vmatpush1.msra.mxu0 %v5423
      %5518 = vmatprep.subr.mxu0 0.0
      %5519 = vmatpush1.msra.mxu0 %v5426
      %5520 = vmatprep.subr.mxu0 0.0
      %5521 = vmatpush1.msra.mxu0 %v5429
      %5522 = vmatprep.subr.mxu0 0.0
      %5523 = vmatpush1.msra.mxu0 0.0
      %5524 = vmatprep.subr.mxu0 0.0
      %5525 = vmatpush1.msra.mxu0 0.0
      %5526 = vmatprep.subr.mxu0 0.0
      %5527 = vmatpush1.msra.mxu0 0.0
      %5528 = vmatprep.subr.mxu0 0.0
      %5529 = vmatpush1.msra.mxu0 0.0
      %5530 = vmatprep.subr.mxu0 0.0
      %5531 = vmatpush1.msra.mxu0 0.0
      %5532 = vmatprep.subr.mxu0 0.0
      %5533 = vmatpush1.msra.mxu0 0.0
      %5534 = vmatprep.subr.mxu0 0.0
      %5535 = vmatpush1.msra.mxu0 0.0
      %5536 = vmatprep.subr.mxu0 0.0
      %5537 = vmatpush1.msra.mxu0 0.0
      %5538 = vmatprep.subr.mxu0 0.0
      %5539 = vmatpush1.msra.mxu0 0.0
      %5540 = vmatprep.subr.mxu0 0.0
      %5541 = vmatpush1.msra.mxu0 0.0
      %5542 = vmatprep.subr.mxu0 0.0
      %5543 = vmatpush1.msra.mxu0 0.0
      %5544 = vmatprep.subr.mxu0 0.0
      %5545 = vmatpush1.msra.mxu0 0.0
      %5546 = vmatprep.subr.mxu0 0.0
      %5547 = vmatpush1.msra.mxu0 0.0
      %5548 = vmatprep.subr.mxu0 0.0
      %5549 = vmatpush1.msra.mxu0 0.0
      %5550 = vmatprep.subr.mxu0 0.0
      %5551 = vmatpush1.msra.mxu0 0.0
      %5552 = vmatprep.subr.mxu0 0.0
      %5553 = vmatpush1.msra.mxu0 0.0
      %5554 = vmatprep.subr.mxu0 0.0
      %5555 = vmatpush1.msra.mxu0 0.0
      %5556 = vmatprep.subr.mxu0 0.0
      %5557 = vmatpush1.msra.mxu0 0.0
      %5558 = vmatprep.subr.mxu0 0.0
      %5559 = vmatpush1.msra.mxu0 0.0
      %5560 = vmatprep.subr.mxu0 0.0
      %5561 = vmatpush1.msra.mxu0 0.0
      %5562 = vmatprep.subr.mxu0 0.0
      %5563 = vmatpush1.msra.mxu0 0.0
      %5564 = vmatprep.subr.mxu0 0.0
      %5565 = vmatpush1.msra.mxu0 0.0
      %5566 = vmatprep.subr.mxu0 0.0
      %5567 = vmatpush1.msra.mxu0 0.0
      %5568 = vmatprep.mubr.f32.mxu0 0.0
      %5569 = vmatmul.mubr.f32.gmra.mrb[0].mxu0 %v5431
      %v5570 = vpop.f32.mrb[0].mxu0
      %v5571 = vadd.f32 0.0, %v5570
      %v5572 = vpop.f32.mrb[0].mxu0
      %5573 = vdwg.mxu0
      %v5574 = vadd.f32 %v5174, %v5500
      %v5575 = vadd.f32 %v5175, %v5502
      %v5576 = vadd.f32 %v5176, %v5571
      %v5577 = vld [vmem:[#allocation3] sm:$0xff]
      %v5578 = vld [vmem:[#allocation3 + $0x8] sm:$0xff]
      %v5579 = vld [vmem:[#allocation3 + $0x10] sm:$0xff]
      %v5580 = vld [vmem:[#allocation3 + $0x18] sm:$0xff]
      %5585 = vrot.lane.b32.xlu0 %v5577, 4
      %v5586 = vpop.permute.xlu0 %5585
      %5587 = vrot.lane.b32.xlu0 %v5578, 4
      %v5588 = vpop.permute.xlu0 %5587
      %5589 = vrot.lane.b32.xlu0 %v5579, 4
      %v5590 = vpop.permute.xlu0 %5589
      %5591 = vrot.lane.b32.xlu0 %v5580, 4
      %v5592 = vpop.permute.xlu0 %5591
      %v5593 = vsel %vm1944, %v5586, %v5588
      %v5594 = vsel %vm1944, %v5588, %v5590
      %v5595 = vsel %vm1944, %v5590, %v5592
      %5599 = vst [vmem:[#allocation4] sm:$0xff] %v5593
      %5600 = vst [vmem:[#allocation4 + $0x8] sm:$0xff] %v5594
      %5601 = vst [vmem:[#allocation4 + $0x10] sm:$0xff] %v5595
      %v5602 = vld [vmem:[#allocation3] sm:$0xff]
      %v5603 = vld [vmem:[#allocation3 + $0x8] sm:$0xff]
      %v5604 = vld [vmem:[#allocation3 + $0x10] sm:$0xff]
      %v5605 = vld [vmem:[#allocation3 + $0x18] sm:$0xff]
      %5610 = vrot.lane.b32.xlu0 %v5602, 3
      %v5611 = vpop.permute.xlu0 %5610
      %5612 = vrot.lane.b32.xlu0 %v5603, 3
      %v5613 = vpop.permute.xlu0 %5612
      %5614 = vrot.lane.b32.xlu0 %v5604, 3
      %v5615 = vpop.permute.xlu0 %5614
      %5616 = vrot.lane.b32.xlu0 %v5605, 3
      %v5617 = vpop.permute.xlu0 %5616
      %v5618 = vsel %vm1970, %v5611, %v5613
      %v5619 = vsel %vm1970, %v5613, %v5615
      %v5620 = vsel %vm1970, %v5615, %v5617
      %5624 = vst [vmem:[#allocation4 + $0x18] sm:$0xff] %v5618
      %5625 = vst [vmem:[#allocation4 + $0x20] sm:$0xff] %v5619
      %5626 = vst [vmem:[#allocation4 + $0x28] sm:$0xff] %v5620
      %v5627 = vld [vmem:[#allocation3] sm:$0xff]
      %v5628 = vld [vmem:[#allocation3 + $0x8] sm:$0xff]
      %v5629 = vld [vmem:[#allocation3 + $0x10] sm:$0xff]
      %v5630 = vld [vmem:[#allocation3 + $0x18] sm:$0xff]
      %5635 = vrot.lane.b32.xlu0 %v5627, 2
      %v5636 = vpop.permute.xlu0 %5635
      %5637 = vrot.lane.b32.xlu0 %v5628, 2
      %v5638 = vpop.permute.xlu0 %5637
      %5639 = vrot.lane.b32.xlu0 %v5629, 2
      %v5640 = vpop.permute.xlu0 %5639
      %5641 = vrot.lane.b32.xlu0 %v5630, 2
      %v5642 = vpop.permute.xlu0 %5641
      %v5643 = vsel %vm1996, %v5636, %v5638
      %v5644 = vsel %vm1996, %v5638, %v5640
      %v5645 = vsel %vm1996, %v5640, %v5642
      %5649 = vst [vmem:[#allocation4 + $0x30] sm:$0xff] %v5643
      %5650 = vst [vmem:[#allocation4 + $0x38] sm:$0xff] %v5644
      %5651 = vst [vmem:[#allocation4 + $0x40] sm:$0xff] %v5645
      %v5652 = vld [vmem:[#allocation3] sm:$0xff]
      %v5653 = vld [vmem:[#allocation3 + $0x8] sm:$0xff]
      %v5654 = vld [vmem:[#allocation3 + $0x10] sm:$0xff]
      %v5655 = vld [vmem:[#allocation3 + $0x18] sm:$0xff]
      %5660 = vrot.lane.b32.xlu0 %v5652, 1
      %v5661 = vpop.permute.xlu0 %5660
      %5662 = vrot.lane.b32.xlu0 %v5653, 1
      %v5663 = vpop.permute.xlu0 %5662
      %5664 = vrot.lane.b32.xlu0 %v5654, 1
      %v5665 = vpop.permute.xlu0 %5664
      %5666 = vrot.lane.b32.xlu0 %v5655, 1
      %v5667 = vpop.permute.xlu0 %5666
      %v5668 = vsel %vm2022, %v5661, %v5663
      %v5669 = vsel %vm2022, %v5663, %v5665
      %v5670 = vsel %vm2022, %v5665, %v5667
      %5674 = vst [vmem:[#allocation4 + $0x48] sm:$0xff] %v5668
      %5675 = vst [vmem:[#allocation4 + $0x50] sm:$0xff] %v5669
      %5676 = vst [vmem:[#allocation4 + $0x58] sm:$0xff] %v5670
      %v5677 = vld [vmem:[#allocation3 + $0x8] sm:$0xff]
      %v5678 = vld [vmem:[#allocation3 + $0x10] sm:$0xff]
      %v5679 = vld [vmem:[#allocation3 + $0x18] sm:$0xff]
      %5680 = vst [vmem:[#allocation4 + $0x60] sm:$0xff] %v5677
      %5681 = vst [vmem:[#allocation4 + $0x68] sm:$0xff] %v5678
      %5682 = vst [vmem:[#allocation4 + $0x70] sm:$0xff] %v5679
      %v5683 = vld [vmem:[#allocation3 + $0x8] sm:$0xff]
      %v5684 = vld [vmem:[#allocation3 + $0x10] sm:$0xff]
      %v5685 = vld [vmem:[#allocation3 + $0x18] sm:$0xff]
      %v5686 = vld [vmem:[#allocation3 + $0x20] sm:$0xff]
      %5691 = vrot.lane.b32.xlu0 %v5683, 127
      %v5692 = vpop.permute.xlu0 %5691
      %5693 = vrot.lane.b32.xlu0 %v5684, 127
      %v5694 = vpop.permute.xlu0 %5693
      %5695 = vrot.lane.b32.xlu0 %v5685, 127
      %v5696 = vpop.permute.xlu0 %5695
      %5697 = vrot.lane.b32.xlu0 %v5686, 127
      %v5698 = vpop.permute.xlu0 %5697
      %v5699 = vsel %vm2054, %v5692, %v5694
      %v5700 = vsel %vm2054, %v5694, %v5696
      %v5701 = vsel %vm2054, %v5696, %v5698
      %5705 = vst [vmem:[#allocation4 + $0x78] sm:$0xff] %v5699
      %5706 = vst [vmem:[#allocation4 + $0x80] sm:$0xff] %v5700
      %5707 = vst [vmem:[#allocation4 + $0x88] sm:$0xff] %v5701
      %v5708 = vld [vmem:[#allocation3 + $0x8] sm:$0xff]
      %v5709 = vld [vmem:[#allocation3 + $0x10] sm:$0xff]
      %v5710 = vld [vmem:[#allocation3 + $0x18] sm:$0xff]
      %v5711 = vld [vmem:[#allocation3 + $0x20] sm:$0xff]
      %5716 = vrot.lane.b32.xlu0 %v5708, 126
      %v5717 = vpop.permute.xlu0 %5716
      %5718 = vrot.lane.b32.xlu0 %v5709, 126
      %v5719 = vpop.permute.xlu0 %5718
      %5720 = vrot.lane.b32.xlu0 %v5710, 126
      %v5721 = vpop.permute.xlu0 %5720
      %5722 = vrot.lane.b32.xlu0 %v5711, 126
      %v5723 = vpop.permute.xlu0 %5722
      %v5724 = vsel %vm2080, %v5717, %v5719
      %v5725 = vsel %vm2080, %v5719, %v5721
      %v5726 = vsel %vm2080, %v5721, %v5723
      %5730 = vst [vmem:[#allocation4 + $0x90] sm:$0xff] %v5724
      %5731 = vst [vmem:[#allocation4 + $0x98] sm:$0xff] %v5725
      %5732 = vst [vmem:[#allocation4 + $0xa0] sm:$0xff] %v5726
      %v5733 = vld [vmem:[#allocation3 + $0x8] sm:$0xff]
      %v5734 = vld [vmem:[#allocation3 + $0x10] sm:$0xff]
      %v5735 = vld [vmem:[#allocation3 + $0x18] sm:$0xff]
      %v5736 = vld [vmem:[#allocation3 + $0x20] sm:$0xff]
      %5741 = vrot.lane.b32.xlu0 %v5733, 125
      %v5742 = vpop.permute.xlu0 %5741
      %5743 = vrot.lane.b32.xlu0 %v5734, 125
      %v5744 = vpop.permute.xlu0 %5743
      %5745 = vrot.lane.b32.xlu0 %v5735, 125
      %v5746 = vpop.permute.xlu0 %5745
      %5747 = vrot.lane.b32.xlu0 %v5736, 125
      %v5748 = vpop.permute.xlu0 %5747
      %v5749 = vsel %vm2106, %v5742, %v5744
      %v5750 = vsel %vm2106, %v5744, %v5746
      %v5751 = vsel %vm2106, %v5746, %v5748
      %5755 = vst [vmem:[#allocation4 + $0xa8] sm:$0xff] %v5749
      %5756 = vst [vmem:[#allocation4 + $0xb0] sm:$0xff] %v5750
      %5757 = vst [vmem:[#allocation4 + $0xb8] sm:$0xff] %v5751
      %v5758 = vld [vmem:[#allocation3 + $0x8] sm:$0xff]
      %v5759 = vld [vmem:[#allocation3 + $0x10] sm:$0xff]
      %v5760 = vld [vmem:[#allocation3 + $0x18] sm:$0xff]
      %v5761 = vld [vmem:[#allocation3 + $0x20] sm:$0xff]
      %5766 = vrot.lane.b32.xlu0 %v5758, 124
      %v5767 = vpop.permute.xlu0 %5766
      %5768 = vrot.lane.b32.xlu0 %v5759, 124
      %v5769 = vpop.permute.xlu0 %5768
      %5770 = vrot.lane.b32.xlu0 %v5760, 124
      %v5771 = vpop.permute.xlu0 %5770
      %5772 = vrot.lane.b32.xlu0 %v5761, 124
      %v5773 = vpop.permute.xlu0 %5772
      %v5774 = vsel %vm2132, %v5767, %v5769
      %v5775 = vsel %vm2132, %v5769, %v5771
      %v5776 = vsel %vm2132, %v5771, %v5773
      %5780 = vst [vmem:[#allocation4 + $0xc0] sm:$0xff] %v5774
      %5781 = vst [vmem:[#allocation4 + $0xc8] sm:$0xff] %v5775
      %5782 = vst [vmem:[#allocation4 + $0xd0] sm:$0xff] %v5776
      %v5783 = vld [vmem:[%s266 + $0x68] sm:$0xff]
      %v5784 = vld [vmem:[#allocation4] sm:$0xff]
      %v5785 = vld [vmem:[#allocation4 + $0x8] sm:$0xff]
      %v5786 = vld [vmem:[#allocation4 + $0x10] sm:$0xff]
      %v5787 = vld [vmem:[#allocation4 + $0x18] sm:$0xff]
      %v5788 = vld [vmem:[#allocation4 + $0x20] sm:$0xff]
      %v5789 = vld [vmem:[#allocation4 + $0x28] sm:$0xff]
      %v5790 = vld [vmem:[#allocation4 + $0x30] sm:$0xff]
      %v5791 = vld [vmem:[#allocation4 + $0x38] sm:$0xff]
      %v5792 = vld [vmem:[#allocation4 + $0x40] sm:$0xff]
      %v5793 = vld [vmem:[#allocation4 + $0x48] sm:$0xff]
      %v5794 = vld [vmem:[#allocation4 + $0x50] sm:$0xff]
      %v5795 = vld [vmem:[#allocation4 + $0x58] sm:$0xff]
      %v5796 = vld [vmem:[#allocation4 + $0x60] sm:$0xff]
      %v5797 = vld [vmem:[#allocation4 + $0x68] sm:$0xff]
      %v5798 = vld [vmem:[#allocation4 + $0x70] sm:$0xff]
      %v5799 = vld [vmem:[#allocation4 + $0x78] sm:$0xff]
      %v5800 = vld [vmem:[#allocation4 + $0x80] sm:$0xff]
      %v5801 = vld [vmem:[#allocation4 + $0x88] sm:$0xff]
      %v5802 = vld [vmem:[#allocation4 + $0x90] sm:$0xff]
      %v5803 = vld [vmem:[#allocation4 + $0x98] sm:$0xff]
      %v5804 = vld [vmem:[#allocation4 + $0xa0] sm:$0xff]
      %v5805 = vld [vmem:[#allocation4 + $0xa8] sm:$0xff]
      %v5806 = vld [vmem:[#allocation4 + $0xb0] sm:$0xff]
      %v5807 = vld [vmem:[#allocation4 + $0xb8] sm:$0xff]
      %v5808 = vld [vmem:[#allocation4 + $0xc0] sm:$0xff]
      %v5809 = vld [vmem:[#allocation4 + $0xc8] sm:$0xff]
      %v5810 = vld [vmem:[#allocation4 + $0xd0] sm:$0xff]
      %v5812 = vsel %vm680, %v5783, 0
      %5814 = vmatprep.subr.mxu0 %v5785
      %5815 = vmatpush1.msra.mxu0 %v5784
      %5816 = vmatprep.subr.mxu0 %v5788
      %5817 = vmatpush1.msra.mxu0 %v5787
      %5818 = vmatprep.subr.mxu0 %v5791
      %5819 = vmatpush1.msra.mxu0 %v5790
      %5820 = vmatprep.subr.mxu0 %v5794
      %5821 = vmatpush1.msra.mxu0 %v5793
      %5822 = vmatprep.subr.mxu0 %v5797
      %5823 = vmatpush1.msra.mxu0 %v5796
      %5824 = vmatprep.subr.mxu0 %v5800
      %5825 = vmatpush1.msra.mxu0 %v5799
      %5826 = vmatprep.subr.mxu0 %v5803
      %5827 = vmatpush1.msra.mxu0 %v5802
      %5828 = vmatprep.subr.mxu0 %v5806
      %5829 = vmatpush1.msra.mxu0 %v5805
      %5830 = vmatprep.subr.mxu0 %v5809
      %5831 = vmatpush1.msra.mxu0 %v5808
      %5832 = vmatprep.subr.mxu0 0.0
      %5833 = vmatpush1.msra.mxu0 0.0
      %5834 = vmatprep.subr.mxu0 0.0
      %5835 = vmatpush1.msra.mxu0 0.0
      %5836 = vmatprep.subr.mxu0 0.0
      %5837 = vmatpush1.msra.mxu0 0.0
      %5838 = vmatprep.subr.mxu0 0.0
      %5839 = vmatpush1.msra.mxu0 0.0
      %5840 = vmatprep.subr.mxu0 0.0
      %5841 = vmatpush1.msra.mxu0 0.0
      %5842 = vmatprep.subr.mxu0 0.0
      %5843 = vmatpush1.msra.mxu0 0.0
      %5844 = vmatprep.subr.mxu0 0.0
      %5845 = vmatpush1.msra.mxu0 0.0
      %5846 = vmatprep.subr.mxu0 0.0
      %5847 = vmatpush1.msra.mxu0 0.0
      %5848 = vmatprep.subr.mxu0 0.0
      %5849 = vmatpush1.msra.mxu0 0.0
      %5850 = vmatprep.subr.mxu0 0.0
      %5851 = vmatpush1.msra.mxu0 0.0
      %5852 = vmatprep.subr.mxu0 0.0
      %5853 = vmatpush1.msra.mxu0 0.0
      %5854 = vmatprep.subr.mxu0 0.0
      %5855 = vmatpush1.msra.mxu0 0.0
      %5856 = vmatprep.subr.mxu0 0.0
      %5857 = vmatpush1.msra.mxu0 0.0
      %5858 = vmatprep.subr.mxu0 0.0
      %5859 = vmatpush1.msra.mxu0 0.0
      %5860 = vmatprep.subr.mxu0 0.0
      %5861 = vmatpush1.msra.mxu0 0.0
      %5862 = vmatprep.subr.mxu0 0.0
      %5863 = vmatpush1.msra.mxu0 0.0
      %5864 = vmatprep.subr.mxu0 0.0
      %5865 = vmatpush1.msra.mxu0 0.0
      %5866 = vmatprep.subr.mxu0 0.0
      %5867 = vmatpush1.msra.mxu0 0.0
      %5868 = vmatprep.subr.mxu0 0.0
      %5869 = vmatpush1.msra.mxu0 0.0
      %5870 = vmatprep.subr.mxu0 0.0
      %5871 = vmatpush1.msra.mxu0 0.0
      %5872 = vmatprep.subr.mxu0 0.0
      %5873 = vmatpush1.msra.mxu0 0.0
      %5874 = vmatprep.subr.mxu0 0.0
      %5875 = vmatpush1.msra.mxu0 0.0
      %5876 = vmatprep.subr.mxu0 0.0
      %5877 = vmatpush1.msra.mxu0 0.0
      %5878 = vmatprep.mubr.f32.mxu0 0.0
      %5879 = vmatmul.mubr.f32.gmra.mrb[0].mxu0 %v5812
      %v5880 = vpop.f32.mrb[0].mxu0
      %v5881 = vadd.f32 0.0, %v5880
      %v5882 = vpop.f32.mrb[0].mxu0
      %v5883 = vadd.f32 0.0, %v5882
      %5884 = vdwg.mxu0
      %5885 = vmatprep.subr.mxu0 0.0
      %5886 = vmatpush1.msra.mxu0 %v5786
      %5887 = vmatprep.subr.mxu0 0.0
      %5888 = vmatpush1.msra.mxu0 %v5789
      %5889 = vmatprep.subr.mxu0 0.0
      %5890 = vmatpush1.msra.mxu0 %v5792
      %5891 = vmatprep.subr.mxu0 0.0
      %5892 = vmatpush1.msra.mxu0 %v5795
      %5893 = vmatprep.subr.mxu0 0.0
      %5894 = vmatpush1.msra.mxu0 %v5798
      %5895 = vmatprep.subr.mxu0 0.0
      %5896 = vmatpush1.msra.mxu0 %v5801
      %5897 = vmatprep.subr.mxu0 0.0
      %5898 = vmatpush1.msra.mxu0 %v5804
      %5899 = vmatprep.subr.mxu0 0.0
      %5900 = vmatpush1.msra.mxu0 %v5807
      %5901 = vmatprep.subr.mxu0 0.0
      %5902 = vmatpush1.msra.mxu0 %v5810
      %5903 = vmatprep.subr.mxu0 0.0
      %5904 = vmatpush1.msra.mxu0 0.0
      %5905 = vmatprep.subr.mxu0 0.0
      %5906 = vmatpush1.msra.mxu0 0.0
      %5907 = vmatprep.subr.mxu0 0.0
      %5908 = vmatpush1.msra.mxu0 0.0
      %5909 = vmatprep.subr.mxu0 0.0
      %5910 = vmatpush1.msra.mxu0 0.0
      %5911 = vmatprep.subr.mxu0 0.0
      %5912 = vmatpush1.msra.mxu0 0.0
      %5913 = vmatprep.subr.mxu0 0.0
      %5914 = vmatpush1.msra.mxu0 0.0
      %5915 = vmatprep.subr.mxu0 0.0
      %5916 = vmatpush1.msra.mxu0 0.0
      %5917 = vmatprep.subr.mxu0 0.0
      %5918 = vmatpush1.msra.mxu0 0.0
      %5919 = vmatprep.subr.mxu0 0.0
      %5920 = vmatpush1.msra.mxu0 0.0
      %5921 = vmatprep.subr.mxu0 0.0
      %5922 = vmatpush1.msra.mxu0 0.0
      %5923 = vmatprep.subr.mxu0 0.0
      %5924 = vmatpush1.msra.mxu0 0.0
      %5925 = vmatprep.subr.mxu0 0.0
      %5926 = vmatpush1.msra.mxu0 0.0
      %5927 = vmatprep.subr.mxu0 0.0
      %5928 = vmatpush1.msra.mxu0 0.0
      %5929 = vmatprep.subr.mxu0 0.0
      %5930 = vmatpush1.msra.mxu0 0.0
      %5931 = vmatprep.subr.mxu0 0.0
      %5932 = vmatpush1.msra.mxu0 0.0
      %5933 = vmatprep.subr.mxu0 0.0
      %5934 = vmatpush1.msra.mxu0 0.0
      %5935 = vmatprep.subr.mxu0 0.0
      %5936 = vmatpush1.msra.mxu0 0.0
      %5937 = vmatprep.subr.mxu0 0.0
      %5938 = vmatpush1.msra.mxu0 0.0
      %5939 = vmatprep.subr.mxu0 0.0
      %5940 = vmatpush1.msra.mxu0 0.0
      %5941 = vmatprep.subr.mxu0 0.0
      %5942 = vmatpush1.msra.mxu0 0.0
      %5943 = vmatprep.subr.mxu0 0.0
      %5944 = vmatpush1.msra.mxu0 0.0
      %5945 = vmatprep.subr.mxu0 0.0
      %5946 = vmatpush1.msra.mxu0 0.0
      %5947 = vmatprep.subr.mxu0 0.0
      %5948 = vmatpush1.msra.mxu0 0.0
      %5949 = vmatprep.mubr.f32.mxu0 0.0
      %5950 = vmatmul.mubr.f32.gmra.mrb[0].mxu0 %v5812
      %v5951 = vpop.f32.mrb[0].mxu0
      %v5952 = vadd.f32 0.0, %v5951
      %v5953 = vpop.f32.mrb[0].mxu0
      %5954 = vdwg.mxu0
      %v5955 = vadd.f32 %v5574, %v5881
      %v5956 = vadd.f32 %v5575, %v5883
      %v5957 = vadd.f32 %v5576, %v5952
      %v5958 = vld [vmem:[#allocation3 + $0x8] sm:$0xff]
      %v5959 = vld [vmem:[#allocation3 + $0x10] sm:$0xff]
      %v5960 = vld [vmem:[#allocation3 + $0x18] sm:$0xff]
      %v5961 = vld [vmem:[#allocation3 + $0x20] sm:$0xff]
      %5966 = vrot.lane.b32.xlu0 %v5958, 108
      %v5967 = vpop.permute.xlu0 %5966
      %5968 = vrot.lane.b32.xlu0 %v5959, 108
      %v5969 = vpop.permute.xlu0 %5968
      %5970 = vrot.lane.b32.xlu0 %v5960, 108
      %v5971 = vpop.permute.xlu0 %5970
      %5972 = vrot.lane.b32.xlu0 %v5961, 108
      %v5973 = vpop.permute.xlu0 %5972
      %v5974 = vsel %vm2333, %v5967, %v5969
      %v5975 = vsel %vm2333, %v5969, %v5971
      %v5976 = vsel %vm2333, %v5971, %v5973
      %5980 = vst [vmem:[#allocation4 + $0xd8] sm:$0xff] %v5974
      %5981 = vst [vmem:[#allocation4 + $0xe0] sm:$0xff] %v5975
      %5982 = vst [vmem:[#allocation4 + $0xe8] sm:$0xff] %v5976
      %v5983 = vld [vmem:[#allocation3 + $0x8] sm:$0xff]
      %v5984 = vld [vmem:[#allocation3 + $0x10] sm:$0xff]
      %v5985 = vld [vmem:[#allocation3 + $0x18] sm:$0xff]
      %v5986 = vld [vmem:[#allocation3 + $0x20] sm:$0xff]
      %5991 = vrot.lane.b32.xlu0 %v5983, 107
      %v5992 = vpop.permute.xlu0 %5991
      %5993 = vrot.lane.b32.xlu0 %v5984, 107
      %v5994 = vpop.permute.xlu0 %5993
      %5995 = vrot.lane.b32.xlu0 %v5985, 107
      %v5996 = vpop.permute.xlu0 %5995
      %5997 = vrot.lane.b32.xlu0 %v5986, 107
      %v5998 = vpop.permute.xlu0 %5997
      %v5999 = vsel %vm2359, %v5992, %v5994
      %v6000 = vsel %vm2359, %v5994, %v5996
      %v6001 = vsel %vm2359, %v5996, %v5998
      %6005 = vst [vmem:[#allocation4 + $0xf0] sm:$0xff] %v5999
      %6006 = vst [vmem:[#allocation4 + $0xf8] sm:$0xff] %v6000
      %6007 = vst [vmem:[#allocation4 + $0x100] sm:$0xff] %v6001
      %v6008 = vld [vmem:[#allocation3 + $0x8] sm:$0xff]
      %v6009 = vld [vmem:[#allocation3 + $0x10] sm:$0xff]
      %v6010 = vld [vmem:[#allocation3 + $0x18] sm:$0xff]
      %v6011 = vld [vmem:[#allocation3 + $0x20] sm:$0xff]
      %6016 = vrot.lane.b32.xlu0 %v6008, 106
      %v6017 = vpop.permute.xlu0 %6016
      %6018 = vrot.lane.b32.xlu0 %v6009, 106
      %v6019 = vpop.permute.xlu0 %6018
      %6020 = vrot.lane.b32.xlu0 %v6010, 106
      %v6021 = vpop.permute.xlu0 %6020
      %6022 = vrot.lane.b32.xlu0 %v6011, 106
      %v6023 = vpop.permute.xlu0 %6022
      %v6024 = vsel %vm2385, %v6017, %v6019
      %v6025 = vsel %vm2385, %v6019, %v6021
      %v6026 = vsel %vm2385, %v6021, %v6023
      %6030 = vst [vmem:[#allocation4 + $0x108] sm:$0xff] %v6024
      %6031 = vst [vmem:[#allocation4 + $0x110] sm:$0xff] %v6025
      %6032 = vst [vmem:[#allocation4 + $0x118] sm:$0xff] %v6026
      %v6033 = vld [vmem:[#allocation3 + $0x8] sm:$0xff]
      %v6034 = vld [vmem:[#allocation3 + $0x10] sm:$0xff]
      %v6035 = vld [vmem:[#allocation3 + $0x18] sm:$0xff]
      %v6036 = vld [vmem:[#allocation3 + $0x20] sm:$0xff]
      %6041 = vrot.lane.b32.xlu0 %v6033, 105
      %v6042 = vpop.permute.xlu0 %6041
      %6043 = vrot.lane.b32.xlu0 %v6034, 105
      %v6044 = vpop.permute.xlu0 %6043
      %6045 = vrot.lane.b32.xlu0 %v6035, 105
      %v6046 = vpop.permute.xlu0 %6045
      %6047 = vrot.lane.b32.xlu0 %v6036, 105
      %v6048 = vpop.permute.xlu0 %6047
      %v6049 = vsel %vm2411, %v6042, %v6044
      %v6050 = vsel %vm2411, %v6044, %v6046
      %v6051 = vsel %vm2411, %v6046, %v6048
      %6055 = vst [vmem:[#allocation4 + $0x120] sm:$0xff] %v6049
      %6056 = vst [vmem:[#allocation4 + $0x128] sm:$0xff] %v6050
      %6057 = vst [vmem:[#allocation4 + $0x130] sm:$0xff] %v6051
      %v6058 = vld [vmem:[#allocation3 + $0x8] sm:$0xff]
      %v6059 = vld [vmem:[#allocation3 + $0x10] sm:$0xff]
      %v6060 = vld [vmem:[#allocation3 + $0x18] sm:$0xff]
      %v6061 = vld [vmem:[#allocation3 + $0x20] sm:$0xff]
      %6066 = vrot.lane.b32.xlu0 %v6058, 104
      %v6067 = vpop.permute.xlu0 %6066
      %6068 = vrot.lane.b32.xlu0 %v6059, 104
      %v6069 = vpop.permute.xlu0 %6068
      %6070 = vrot.lane.b32.xlu0 %v6060, 104
      %v6071 = vpop.permute.xlu0 %6070
      %6072 = vrot.lane.b32.xlu0 %v6061, 104
      %v6073 = vpop.permute.xlu0 %6072
      %v6074 = vsel %vm2437, %v6067, %v6069
      %v6075 = vsel %vm2437, %v6069, %v6071
      %v6076 = vsel %vm2437, %v6071, %v6073
      %6080 = vst [vmem:[#allocation4 + $0x138] sm:$0xff] %v6074
      %6081 = vst [vmem:[#allocation4 + $0x140] sm:$0xff] %v6075
      %6082 = vst [vmem:[#allocation4 + $0x148] sm:$0xff] %v6076
      %v6083 = vld [vmem:[#allocation3 + $0x8] sm:$0xff]
      %v6084 = vld [vmem:[#allocation3 + $0x10] sm:$0xff]
      %v6085 = vld [vmem:[#allocation3 + $0x18] sm:$0xff]
      %v6086 = vld [vmem:[#allocation3 + $0x20] sm:$0xff]
      %6091 = vrot.lane.b32.xlu0 %v6083, 103
      %v6092 = vpop.permute.xlu0 %6091
      %6093 = vrot.lane.b32.xlu0 %v6084, 103
      %v6094 = vpop.permute.xlu0 %6093
      %6095 = vrot.lane.b32.xlu0 %v6085, 103
      %v6096 = vpop.permute.xlu0 %6095
      %6097 = vrot.lane.b32.xlu0 %v6086, 103
      %v6098 = vpop.permute.xlu0 %6097
      %v6099 = vsel %vm2463, %v6092, %v6094
      %v6100 = vsel %vm2463, %v6094, %v6096
      %v6101 = vsel %vm2463, %v6096, %v6098
      %6105 = vst [vmem:[#allocation4 + $0x150] sm:$0xff] %v6099
      %6106 = vst [vmem:[#allocation4 + $0x158] sm:$0xff] %v6100
      %6107 = vst [vmem:[#allocation4 + $0x160] sm:$0xff] %v6101
      %v6108 = vld [vmem:[#allocation3 + $0x8] sm:$0xff]
      %v6109 = vld [vmem:[#allocation3 + $0x10] sm:$0xff]
      %v6110 = vld [vmem:[#allocation3 + $0x18] sm:$0xff]
      %v6111 = vld [vmem:[#allocation3 + $0x20] sm:$0xff]
      %6116 = vrot.lane.b32.xlu0 %v6108, 102
      %v6117 = vpop.permute.xlu0 %6116
      %6118 = vrot.lane.b32.xlu0 %v6109, 102
      %v6119 = vpop.permute.xlu0 %6118
      %6120 = vrot.lane.b32.xlu0 %v6110, 102
      %v6121 = vpop.permute.xlu0 %6120
      %6122 = vrot.lane.b32.xlu0 %v6111, 102
      %v6123 = vpop.permute.xlu0 %6122
      %v6124 = vsel %vm2489, %v6117, %v6119
      %v6125 = vsel %vm2489, %v6119, %v6121
      %v6126 = vsel %vm2489, %v6121, %v6123
      %6130 = vst [vmem:[#allocation4 + $0x168] sm:$0xff] %v6124
      %6131 = vst [vmem:[#allocation4 + $0x170] sm:$0xff] %v6125
      %6132 = vst [vmem:[#allocation4 + $0x178] sm:$0xff] %v6126
      %v6133 = vld [vmem:[#allocation3 + $0x8] sm:$0xff]
      %v6134 = vld [vmem:[#allocation3 + $0x10] sm:$0xff]
      %v6135 = vld [vmem:[#allocation3 + $0x18] sm:$0xff]
      %v6136 = vld [vmem:[#allocation3 + $0x20] sm:$0xff]
      %6141 = vrot.lane.b32.xlu0 %v6133, 101
      %v6142 = vpop.permute.xlu0 %6141
      %6143 = vrot.lane.b32.xlu0 %v6134, 101
      %v6144 = vpop.permute.xlu0 %6143
      %6145 = vrot.lane.b32.xlu0 %v6135, 101
      %v6146 = vpop.permute.xlu0 %6145
      %6147 = vrot.lane.b32.xlu0 %v6136, 101
      %v6148 = vpop.permute.xlu0 %6147
      %v6149 = vsel %vm2515, %v6142, %v6144
      %v6150 = vsel %vm2515, %v6144, %v6146
      %v6151 = vsel %vm2515, %v6146, %v6148
      %6155 = vst [vmem:[#allocation4 + $0x180] sm:$0xff] %v6149
      %6156 = vst [vmem:[#allocation4 + $0x188] sm:$0xff] %v6150
      %6157 = vst [vmem:[#allocation4 + $0x190] sm:$0xff] %v6151
      %v6158 = vld [vmem:[#allocation3 + $0x8] sm:$0xff]
      %v6159 = vld [vmem:[#allocation3 + $0x10] sm:$0xff]
      %v6160 = vld [vmem:[#allocation3 + $0x18] sm:$0xff]
      %v6161 = vld [vmem:[#allocation3 + $0x20] sm:$0xff]
      %6166 = vrot.lane.b32.xlu0 %v6158, 100
      %v6167 = vpop.permute.xlu0 %6166
      %6168 = vrot.lane.b32.xlu0 %v6159, 100
      %v6169 = vpop.permute.xlu0 %6168
      %6170 = vrot.lane.b32.xlu0 %v6160, 100
      %v6171 = vpop.permute.xlu0 %6170
      %6172 = vrot.lane.b32.xlu0 %v6161, 100
      %v6173 = vpop.permute.xlu0 %6172
      %v6174 = vsel %vm314, %v6167, %v6169
      %v6175 = vsel %vm314, %v6169, %v6171
      %v6176 = vsel %vm314, %v6171, %v6173
      %6180 = vst [vmem:[#allocation4 + $0x198] sm:$0xff] %v6174
      %6181 = vst [vmem:[#allocation4 + $0x1a0] sm:$0xff] %v6175
      %6182 = vst [vmem:[#allocation4 + $0x1a8] sm:$0xff] %v6176
      %v6183 = vld [vmem:[%s266 + $0x70] sm:$0xff]
      %v6184 = vld [vmem:[#allocation4 + $0xd8] sm:$0xff]
      %v6185 = vld [vmem:[#allocation4 + $0xe0] sm:$0xff]
      %v6186 = vld [vmem:[#allocation4 + $0xe8] sm:$0xff]
      %v6187 = vld [vmem:[#allocation4 + $0xf0] sm:$0xff]
      %v6188 = vld [vmem:[#allocation4 + $0xf8] sm:$0xff]
      %v6189 = vld [vmem:[#allocation4 + $0x100] sm:$0xff]
      %v6190 = vld [vmem:[#allocation4 + $0x108] sm:$0xff]
      %v6191 = vld [vmem:[#allocation4 + $0x110] sm:$0xff]
      %v6192 = vld [vmem:[#allocation4 + $0x118] sm:$0xff]
      %v6193 = vld [vmem:[#allocation4 + $0x120] sm:$0xff]
      %v6194 = vld [vmem:[#allocation4 + $0x128] sm:$0xff]
      %v6195 = vld [vmem:[#allocation4 + $0x130] sm:$0xff]
      %v6196 = vld [vmem:[#allocation4 + $0x138] sm:$0xff]
      %v6197 = vld [vmem:[#allocation4 + $0x140] sm:$0xff]
      %v6198 = vld [vmem:[#allocation4 + $0x148] sm:$0xff]
      %v6199 = vld [vmem:[#allocation4 + $0x150] sm:$0xff]
      %v6200 = vld [vmem:[#allocation4 + $0x158] sm:$0xff]
      %v6201 = vld [vmem:[#allocation4 + $0x160] sm:$0xff]
      %v6202 = vld [vmem:[#allocation4 + $0x168] sm:$0xff]
      %v6203 = vld [vmem:[#allocation4 + $0x170] sm:$0xff]
      %v6204 = vld [vmem:[#allocation4 + $0x178] sm:$0xff]
      %v6205 = vld [vmem:[#allocation4 + $0x180] sm:$0xff]
      %v6206 = vld [vmem:[#allocation4 + $0x188] sm:$0xff]
      %v6207 = vld [vmem:[#allocation4 + $0x190] sm:$0xff]
      %v6208 = vld [vmem:[#allocation4 + $0x198] sm:$0xff]
      %v6209 = vld [vmem:[#allocation4 + $0x1a0] sm:$0xff]
      %v6210 = vld [vmem:[#allocation4 + $0x1a8] sm:$0xff]
      %v6212 = vsel %vm680, %v6183, 0
      %6214 = vmatprep.subr.mxu0 %v6185
      %6215 = vmatpush1.msra.mxu0 %v6184
      %6216 = vmatprep.subr.mxu0 %v6188
      %6217 = vmatpush1.msra.mxu0 %v6187
      %6218 = vmatprep.subr.mxu0 %v6191
      %6219 = vmatpush1.msra.mxu0 %v6190
      %6220 = vmatprep.subr.mxu0 %v6194
      %6221 = vmatpush1.msra.mxu0 %v6193
      %6222 = vmatprep.subr.mxu0 %v6197
      %6223 = vmatpush1.msra.mxu0 %v6196
      %6224 = vmatprep.subr.mxu0 %v6200
      %6225 = vmatpush1.msra.mxu0 %v6199
      %6226 = vmatprep.subr.mxu0 %v6203
      %6227 = vmatpush1.msra.mxu0 %v6202
      %6228 = vmatprep.subr.mxu0 %v6206
      %6229 = vmatpush1.msra.mxu0 %v6205
      %6230 = vmatprep.subr.mxu0 %v6209
      %6231 = vmatpush1.msra.mxu0 %v6208
      %6232 = vmatprep.subr.mxu0 0.0
      %6233 = vmatpush1.msra.mxu0 0.0
      %6234 = vmatprep.subr.mxu0 0.0
      %6235 = vmatpush1.msra.mxu0 0.0
      %6236 = vmatprep.subr.mxu0 0.0
      %6237 = vmatpush1.msra.mxu0 0.0
      %6238 = vmatprep.subr.mxu0 0.0
      %6239 = vmatpush1.msra.mxu0 0.0
      %6240 = vmatprep.subr.mxu0 0.0
      %6241 = vmatpush1.msra.mxu0 0.0
      %6242 = vmatprep.subr.mxu0 0.0
      %6243 = vmatpush1.msra.mxu0 0.0
      %6244 = vmatprep.subr.mxu0 0.0
      %6245 = vmatpush1.msra.mxu0 0.0
      %6246 = vmatprep.subr.mxu0 0.0
      %6247 = vmatpush1.msra.mxu0 0.0
      %6248 = vmatprep.subr.mxu0 0.0
      %6249 = vmatpush1.msra.mxu0 0.0
      %6250 = vmatprep.subr.mxu0 0.0
      %6251 = vmatpush1.msra.mxu0 0.0
      %6252 = vmatprep.subr.mxu0 0.0
      %6253 = vmatpush1.msra.mxu0 0.0
      %6254 = vmatprep.subr.mxu0 0.0
      %6255 = vmatpush1.msra.mxu0 0.0
      %6256 = vmatprep.subr.mxu0 0.0
      %6257 = vmatpush1.msra.mxu0 0.0
      %6258 = vmatprep.subr.mxu0 0.0
      %6259 = vmatpush1.msra.mxu0 0.0
      %6260 = vmatprep.subr.mxu0 0.0
      %6261 = vmatpush1.msra.mxu0 0.0
      %6262 = vmatprep.subr.mxu0 0.0
      %6263 = vmatpush1.msra.mxu0 0.0
      %6264 = vmatprep.subr.mxu0 0.0
      %6265 = vmatpush1.msra.mxu0 0.0
      %6266 = vmatprep.subr.mxu0 0.0
      %6267 = vmatpush1.msra.mxu0 0.0
      %6268 = vmatprep.subr.mxu0 0.0
      %6269 = vmatpush1.msra.mxu0 0.0
      %6270 = vmatprep.subr.mxu0 0.0
      %6271 = vmatpush1.msra.mxu0 0.0
      %6272 = vmatprep.subr.mxu0 0.0
      %6273 = vmatpush1.msra.mxu0 0.0
      %6274 = vmatprep.subr.mxu0 0.0
      %6275 = vmatpush1.msra.mxu0 0.0
      %6276 = vmatprep.subr.mxu0 0.0
      %6277 = vmatpush1.msra.mxu0 0.0
      %6278 = vmatprep.mubr.f32.mxu0 0.0
      %6279 = vmatmul.mubr.f32.gmra.mrb[0].mxu0 %v6212
      %v6280 = vpop.f32.mrb[0].mxu0
      %v6281 = vadd.f32 0.0, %v6280
      %v6282 = vpop.f32.mrb[0].mxu0
      %v6283 = vadd.f32 0.0, %v6282
      %6284 = vdwg.mxu0
      %6285 = vmatprep.subr.mxu0 0.0
      %6286 = vmatpush1.msra.mxu0 %v6186
      %6287 = vmatprep.subr.mxu0 0.0
      %6288 = vmatpush1.msra.mxu0 %v6189
      %6289 = vmatprep.subr.mxu0 0.0
      %6290 = vmatpush1.msra.mxu0 %v6192
      %6291 = vmatprep.subr.mxu0 0.0
      %6292 = vmatpush1.msra.mxu0 %v6195
      %6293 = vmatprep.subr.mxu0 0.0
      %6294 = vmatpush1.msra.mxu0 %v6198
      %6295 = vmatprep.subr.mxu0 0.0
      %6296 = vmatpush1.msra.mxu0 %v6201
      %6297 = vmatprep.subr.mxu0 0.0
      %6298 = vmatpush1.msra.mxu0 %v6204
      %6299 = vmatprep.subr.mxu0 0.0
      %6300 = vmatpush1.msra.mxu0 %v6207
      %6301 = vmatprep.subr.mxu0 0.0
      %6302 = vmatpush1.msra.mxu0 %v6210
      %6303 = vmatprep.subr.mxu0 0.0
      %6304 = vmatpush1.msra.mxu0 0.0
      %6305 = vmatprep.subr.mxu0 0.0
      %6306 = vmatpush1.msra.mxu0 0.0
      %6307 = vmatprep.subr.mxu0 0.0
      %6308 = vmatpush1.msra.mxu0 0.0
      %6309 = vmatprep.subr.mxu0 0.0
      %6310 = vmatpush1.msra.mxu0 0.0
      %6311 = vmatprep.subr.mxu0 0.0
      %6312 = vmatpush1.msra.mxu0 0.0
      %6313 = vmatprep.subr.mxu0 0.0
      %6314 = vmatpush1.msra.mxu0 0.0
      %6315 = vmatprep.subr.mxu0 0.0
      %6316 = vmatpush1.msra.mxu0 0.0
      %6317 = vmatprep.subr.mxu0 0.0
      %6318 = vmatpush1.msra.mxu0 0.0
      %6319 = vmatprep.subr.mxu0 0.0
      %6320 = vmatpush1.msra.mxu0 0.0
      %6321 = vmatprep.subr.mxu0 0.0
      %6322 = vmatpush1.msra.mxu0 0.0
      %6323 = vmatprep.subr.mxu0 0.0
      %6324 = vmatpush1.msra.mxu0 0.0
      %6325 = vmatprep.subr.mxu0 0.0
      %6326 = vmatpush1.msra.mxu0 0.0
      %6327 = vmatprep.subr.mxu0 0.0
      %6328 = vmatpush1.msra.mxu0 0.0
      %6329 = vmatprep.subr.mxu0 0.0
      %6330 = vmatpush1.msra.mxu0 0.0
      %6331 = vmatprep.subr.mxu0 0.0
      %6332 = vmatpush1.msra.mxu0 0.0
      %6333 = vmatprep.subr.mxu0 0.0
      %6334 = vmatpush1.msra.mxu0 0.0
      %6335 = vmatprep.subr.mxu0 0.0
      %6336 = vmatpush1.msra.mxu0 0.0
      %6337 = vmatprep.subr.mxu0 0.0
      %6338 = vmatpush1.msra.mxu0 0.0
      %6339 = vmatprep.subr.mxu0 0.0
      %6340 = vmatpush1.msra.mxu0 0.0
      %6341 = vmatprep.subr.mxu0 0.0
      %6342 = vmatpush1.msra.mxu0 0.0
      %6343 = vmatprep.subr.mxu0 0.0
      %6344 = vmatpush1.msra.mxu0 0.0
      %6345 = vmatprep.subr.mxu0 0.0
      %6346 = vmatpush1.msra.mxu0 0.0
      %6347 = vmatprep.subr.mxu0 0.0
      %6348 = vmatpush1.msra.mxu0 0.0
      %6349 = vmatprep.mubr.f32.mxu0 0.0
      %6350 = vmatmul.mubr.f32.gmra.mrb[0].mxu0 %v6212
      %v6351 = vpop.f32.mrb[0].mxu0
      %v6352 = vadd.f32 0.0, %v6351
      %v6353 = vpop.f32.mrb[0].mxu0
      %6354 = vdwg.mxu0
      %v6355 = vadd.f32 %v5955, %v6281
      %v6356 = vadd.f32 %v5956, %v6283
      %v6357 = vadd.f32 %v5957, %v6352
      %v6358 = vld [vmem:[#allocation3 + $0x8] sm:$0xff]
      %v6359 = vld [vmem:[#allocation3 + $0x10] sm:$0xff]
      %v6360 = vld [vmem:[#allocation3 + $0x18] sm:$0xff]
      %v6361 = vld [vmem:[#allocation3 + $0x20] sm:$0xff]
      %6366 = vrot.lane.b32.xlu0 %v6358, 84
      %v6367 = vpop.permute.xlu0 %6366
      %6368 = vrot.lane.b32.xlu0 %v6359, 84
      %v6369 = vpop.permute.xlu0 %6368
      %6370 = vrot.lane.b32.xlu0 %v6360, 84
      %v6371 = vpop.permute.xlu0 %6370
      %6372 = vrot.lane.b32.xlu0 %v6361, 84
      %v6373 = vpop.permute.xlu0 %6372
      %v6374 = vsel %vm2741, %v6367, %v6369
      %v6375 = vsel %vm2741, %v6369, %v6371
      %v6376 = vsel %vm2741, %v6371, %v6373
      %6380 = vst [vmem:[#allocation4] sm:$0xff] %v6374
      %6381 = vst [vmem:[#allocation4 + $0x8] sm:$0xff] %v6375
      %6382 = vst [vmem:[#allocation4 + $0x10] sm:$0xff] %v6376
      %v6383 = vld [vmem:[#allocation3 + $0x8] sm:$0xff]
      %v6384 = vld [vmem:[#allocation3 + $0x10] sm:$0xff]
      %v6385 = vld [vmem:[#allocation3 + $0x18] sm:$0xff]
      %v6386 = vld [vmem:[#allocation3 + $0x20] sm:$0xff]
      %6391 = vrot.lane.b32.xlu0 %v6383, 83
      %v6392 = vpop.permute.xlu0 %6391
      %6393 = vrot.lane.b32.xlu0 %v6384, 83
      %v6394 = vpop.permute.xlu0 %6393
      %6395 = vrot.lane.b32.xlu0 %v6385, 83
      %v6396 = vpop.permute.xlu0 %6395
      %6397 = vrot.lane.b32.xlu0 %v6386, 83
      %v6398 = vpop.permute.xlu0 %6397
      %v6399 = vsel %vm2767, %v6392, %v6394
      %v6400 = vsel %vm2767, %v6394, %v6396
      %v6401 = vsel %vm2767, %v6396, %v6398
      %6405 = vst [vmem:[#allocation4 + $0x18] sm:$0xff] %v6399
      %6406 = vst [vmem:[#allocation4 + $0x20] sm:$0xff] %v6400
      %6407 = vst [vmem:[#allocation4 + $0x28] sm:$0xff] %v6401
      %v6408 = vld [vmem:[#allocation3 + $0x8] sm:$0xff]
      %v6409 = vld [vmem:[#allocation3 + $0x10] sm:$0xff]
      %v6410 = vld [vmem:[#allocation3 + $0x18] sm:$0xff]
      %v6411 = vld [vmem:[#allocation3 + $0x20] sm:$0xff]
      %6416 = vrot.lane.b32.xlu0 %v6408, 82
      %v6417 = vpop.permute.xlu0 %6416
      %6418 = vrot.lane.b32.xlu0 %v6409, 82
      %v6419 = vpop.permute.xlu0 %6418
      %6420 = vrot.lane.b32.xlu0 %v6410, 82
      %v6421 = vpop.permute.xlu0 %6420
      %6422 = vrot.lane.b32.xlu0 %v6411, 82
      %v6423 = vpop.permute.xlu0 %6422
      %v6424 = vsel %vm2793, %v6417, %v6419
      %v6425 = vsel %vm2793, %v6419, %v6421
      %v6426 = vsel %vm2793, %v6421, %v6423
      %6430 = vst [vmem:[#allocation4 + $0x30] sm:$0xff] %v6424
      %6431 = vst [vmem:[#allocation4 + $0x38] sm:$0xff] %v6425
      %6432 = vst [vmem:[#allocation4 + $0x40] sm:$0xff] %v6426
      %v6433 = vld [vmem:[#allocation3 + $0x8] sm:$0xff]
      %v6434 = vld [vmem:[#allocation3 + $0x10] sm:$0xff]
      %v6435 = vld [vmem:[#allocation3 + $0x18] sm:$0xff]
      %v6436 = vld [vmem:[#allocation3 + $0x20] sm:$0xff]
      %6441 = vrot.lane.b32.xlu0 %v6433, 81
      %v6442 = vpop.permute.xlu0 %6441
      %6443 = vrot.lane.b32.xlu0 %v6434, 81
      %v6444 = vpop.permute.xlu0 %6443
      %6445 = vrot.lane.b32.xlu0 %v6435, 81
      %v6446 = vpop.permute.xlu0 %6445
      %6447 = vrot.lane.b32.xlu0 %v6436, 81
      %v6448 = vpop.permute.xlu0 %6447
      %v6449 = vsel %vm2819, %v6442, %v6444
      %v6450 = vsel %vm2819, %v6444, %v6446
      %v6451 = vsel %vm2819, %v6446, %v6448
      %6455 = vst [vmem:[#allocation4 + $0x48] sm:$0xff] %v6449
      %6456 = vst [vmem:[#allocation4 + $0x50] sm:$0xff] %v6450
      %6457 = vst [vmem:[#allocation4 + $0x58] sm:$0xff] %v6451
      %v6458 = vld [vmem:[#allocation3 + $0x8] sm:$0xff]
      %v6459 = vld [vmem:[#allocation3 + $0x10] sm:$0xff]
      %v6460 = vld [vmem:[#allocation3 + $0x18] sm:$0xff]
      %v6461 = vld [vmem:[#allocation3 + $0x20] sm:$0xff]
      %6466 = vrot.lane.b32.xlu0 %v6458, 80
      %v6467 = vpop.permute.xlu0 %6466
      %6468 = vrot.lane.b32.xlu0 %v6459, 80
      %v6469 = vpop.permute.xlu0 %6468
      %6470 = vrot.lane.b32.xlu0 %v6460, 80
      %v6471 = vpop.permute.xlu0 %6470
      %6472 = vrot.lane.b32.xlu0 %v6461, 80
      %v6473 = vpop.permute.xlu0 %6472
      %v6474 = vsel %vm2845, %v6467, %v6469
      %v6475 = vsel %vm2845, %v6469, %v6471
      %v6476 = vsel %vm2845, %v6471, %v6473
      %6480 = vst [vmem:[#allocation4 + $0x60] sm:$0xff] %v6474
      %6481 = vst [vmem:[#allocation4 + $0x68] sm:$0xff] %v6475
      %6482 = vst [vmem:[#allocation4 + $0x70] sm:$0xff] %v6476
      %v6483 = vld [vmem:[#allocation3 + $0x8] sm:$0xff]
      %v6484 = vld [vmem:[#allocation3 + $0x10] sm:$0xff]
      %v6485 = vld [vmem:[#allocation3 + $0x18] sm:$0xff]
      %v6486 = vld [vmem:[#allocation3 + $0x20] sm:$0xff]
      %6491 = vrot.lane.b32.xlu0 %v6483, 79
      %v6492 = vpop.permute.xlu0 %6491
      %6493 = vrot.lane.b32.xlu0 %v6484, 79
      %v6494 = vpop.permute.xlu0 %6493
      %6495 = vrot.lane.b32.xlu0 %v6485, 79
      %v6496 = vpop.permute.xlu0 %6495
      %6497 = vrot.lane.b32.xlu0 %v6486, 79
      %v6498 = vpop.permute.xlu0 %6497
      %v6499 = vsel %vm2871, %v6492, %v6494
      %v6500 = vsel %vm2871, %v6494, %v6496
      %v6501 = vsel %vm2871, %v6496, %v6498
      %6505 = vst [vmem:[#allocation4 + $0x78] sm:$0xff] %v6499
      %6506 = vst [vmem:[#allocation4 + $0x80] sm:$0xff] %v6500
      %6507 = vst [vmem:[#allocation4 + $0x88] sm:$0xff] %v6501
      %v6508 = vld [vmem:[#allocation3 + $0x8] sm:$0xff]
      %v6509 = vld [vmem:[#allocation3 + $0x10] sm:$0xff]
      %v6510 = vld [vmem:[#allocation3 + $0x18] sm:$0xff]
      %v6511 = vld [vmem:[#allocation3 + $0x20] sm:$0xff]
      %6516 = vrot.lane.b32.xlu0 %v6508, 78
      %v6517 = vpop.permute.xlu0 %6516
      %6518 = vrot.lane.b32.xlu0 %v6509, 78
      %v6519 = vpop.permute.xlu0 %6518
      %6520 = vrot.lane.b32.xlu0 %v6510, 78
      %v6521 = vpop.permute.xlu0 %6520
      %6522 = vrot.lane.b32.xlu0 %v6511, 78
      %v6523 = vpop.permute.xlu0 %6522
      %v6524 = vsel %vm2897, %v6517, %v6519
      %v6525 = vsel %vm2897, %v6519, %v6521
      %v6526 = vsel %vm2897, %v6521, %v6523
      %6530 = vst [vmem:[#allocation4 + $0x90] sm:$0xff] %v6524
      %6531 = vst [vmem:[#allocation4 + $0x98] sm:$0xff] %v6525
      %6532 = vst [vmem:[#allocation4 + $0xa0] sm:$0xff] %v6526
      %v6533 = vld [vmem:[#allocation3 + $0x8] sm:$0xff]
      %v6534 = vld [vmem:[#allocation3 + $0x10] sm:$0xff]
      %v6535 = vld [vmem:[#allocation3 + $0x18] sm:$0xff]
      %v6536 = vld [vmem:[#allocation3 + $0x20] sm:$0xff]
      %6541 = vrot.lane.b32.xlu0 %v6533, 77
      %v6542 = vpop.permute.xlu0 %6541
      %6543 = vrot.lane.b32.xlu0 %v6534, 77
      %v6544 = vpop.permute.xlu0 %6543
      %6545 = vrot.lane.b32.xlu0 %v6535, 77
      %v6546 = vpop.permute.xlu0 %6545
      %6547 = vrot.lane.b32.xlu0 %v6536, 77
      %v6548 = vpop.permute.xlu0 %6547
      %v6549 = vsel %vm2923, %v6542, %v6544
      %v6550 = vsel %vm2923, %v6544, %v6546
      %v6551 = vsel %vm2923, %v6546, %v6548
      %6555 = vst [vmem:[#allocation4 + $0xa8] sm:$0xff] %v6549
      %6556 = vst [vmem:[#allocation4 + $0xb0] sm:$0xff] %v6550
      %6557 = vst [vmem:[#allocation4 + $0xb8] sm:$0xff] %v6551
      %v6558 = vld [vmem:[#allocation3 + $0x8] sm:$0xff]
      %v6559 = vld [vmem:[#allocation3 + $0x10] sm:$0xff]
      %v6560 = vld [vmem:[#allocation3 + $0x18] sm:$0xff]
      %v6561 = vld [vmem:[#allocation3 + $0x20] sm:$0xff]
      %6566 = vrot.lane.b32.xlu0 %v6558, 76
      %v6567 = vpop.permute.xlu0 %6566
      %6568 = vrot.lane.b32.xlu0 %v6559, 76
      %v6569 = vpop.permute.xlu0 %6568
      %6570 = vrot.lane.b32.xlu0 %v6560, 76
      %v6571 = vpop.permute.xlu0 %6570
      %6572 = vrot.lane.b32.xlu0 %v6561, 76
      %v6573 = vpop.permute.xlu0 %6572
      %v6574 = vsel %vm576, %v6567, %v6569
      %v6575 = vsel %vm576, %v6569, %v6571
      %v6576 = vsel %vm576, %v6571, %v6573
      %6580 = vst [vmem:[#allocation4 + $0xc0] sm:$0xff] %v6574
      %6581 = vst [vmem:[#allocation4 + $0xc8] sm:$0xff] %v6575
      %6582 = vst [vmem:[#allocation4 + $0xd0] sm:$0xff] %v6576
      %v6583 = vld [vmem:[%s266 + $0x78] sm:$0xff]
      %v6584 = vld [vmem:[#allocation4] sm:$0xff]
      %v6585 = vld [vmem:[#allocation4 + $0x8] sm:$0xff]
      %v6586 = vld [vmem:[#allocation4 + $0x10] sm:$0xff]
      %v6587 = vld [vmem:[#allocation4 + $0x18] sm:$0xff]
      %v6588 = vld [vmem:[#allocation4 + $0x20] sm:$0xff]
      %v6589 = vld [vmem:[#allocation4 + $0x28] sm:$0xff]
      %v6590 = vld [vmem:[#allocation4 + $0x30] sm:$0xff]
      %v6591 = vld [vmem:[#allocation4 + $0x38] sm:$0xff]
      %v6592 = vld [vmem:[#allocation4 + $0x40] sm:$0xff]
      %v6593 = vld [vmem:[#allocation4 + $0x48] sm:$0xff]
      %v6594 = vld [vmem:[#allocation4 + $0x50] sm:$0xff]
      %v6595 = vld [vmem:[#allocation4 + $0x58] sm:$0xff]
      %v6596 = vld [vmem:[#allocation4 + $0x60] sm:$0xff]
      %v6597 = vld [vmem:[#allocation4 + $0x68] sm:$0xff]
      %v6598 = vld [vmem:[#allocation4 + $0x70] sm:$0xff]
      %v6599 = vld [vmem:[#allocation4 + $0x78] sm:$0xff]
      %v6600 = vld [vmem:[#allocation4 + $0x80] sm:$0xff]
      %v6601 = vld [vmem:[#allocation4 + $0x88] sm:$0xff]
      %v6602 = vld [vmem:[#allocation4 + $0x90] sm:$0xff]
      %v6603 = vld [vmem:[#allocation4 + $0x98] sm:$0xff]
      %v6604 = vld [vmem:[#allocation4 + $0xa0] sm:$0xff]
      %v6605 = vld [vmem:[#allocation4 + $0xa8] sm:$0xff]
      %v6606 = vld [vmem:[#allocation4 + $0xb0] sm:$0xff]
      %v6607 = vld [vmem:[#allocation4 + $0xb8] sm:$0xff]
      %v6608 = vld [vmem:[#allocation4 + $0xc0] sm:$0xff]
      %v6609 = vld [vmem:[#allocation4 + $0xc8] sm:$0xff]
      %v6610 = vld [vmem:[#allocation4 + $0xd0] sm:$0xff]
      %v6612 = vsel %vm680, %v6583, 0
      %6614 = vmatprep.subr.mxu0 %v6585
      %6615 = vmatpush1.msra.mxu0 %v6584
      %6616 = vmatprep.subr.mxu0 %v6588
      %6617 = vmatpush1.msra.mxu0 %v6587
      %6618 = vmatprep.subr.mxu0 %v6591
      %6619 = vmatpush1.msra.mxu0 %v6590
      %6620 = vmatprep.subr.mxu0 %v6594
      %6621 = vmatpush1.msra.mxu0 %v6593
      %6622 = vmatprep.subr.mxu0 %v6597
      %6623 = vmatpush1.msra.mxu0 %v6596
      %6624 = vmatprep.subr.mxu0 %v6600
      %6625 = vmatpush1.msra.mxu0 %v6599
      %6626 = vmatprep.subr.mxu0 %v6603
      %6627 = vmatpush1.msra.mxu0 %v6602
      %6628 = vmatprep.subr.mxu0 %v6606
      %6629 = vmatpush1.msra.mxu0 %v6605
      %6630 = vmatprep.subr.mxu0 %v6609
      %6631 = vmatpush1.msra.mxu0 %v6608
      %6632 = vmatprep.subr.mxu0 0.0
      %6633 = vmatpush1.msra.mxu0 0.0
      %6634 = vmatprep.subr.mxu0 0.0
      %6635 = vmatpush1.msra.mxu0 0.0
      %6636 = vmatprep.subr.mxu0 0.0
      %6637 = vmatpush1.msra.mxu0 0.0
      %6638 = vmatprep.subr.mxu0 0.0
      %6639 = vmatpush1.msra.mxu0 0.0
      %6640 = vmatprep.subr.mxu0 0.0
      %6641 = vmatpush1.msra.mxu0 0.0
      %6642 = vmatprep.subr.mxu0 0.0
      %6643 = vmatpush1.msra.mxu0 0.0
      %6644 = vmatprep.subr.mxu0 0.0
      %6645 = vmatpush1.msra.mxu0 0.0
      %6646 = vmatprep.subr.mxu0 0.0
      %6647 = vmatpush1.msra.mxu0 0.0
      %6648 = vmatprep.subr.mxu0 0.0
      %6649 = vmatpush1.msra.mxu0 0.0
      %6650 = vmatprep.subr.mxu0 0.0
      %6651 = vmatpush1.msra.mxu0 0.0
      %6652 = vmatprep.subr.mxu0 0.0
      %6653 = vmatpush1.msra.mxu0 0.0
      %6654 = vmatprep.subr.mxu0 0.0
      %6655 = vmatpush1.msra.mxu0 0.0
      %6656 = vmatprep.subr.mxu0 0.0
      %6657 = vmatpush1.msra.mxu0 0.0
      %6658 = vmatprep.subr.mxu0 0.0
      %6659 = vmatpush1.msra.mxu0 0.0
      %6660 = vmatprep.subr.mxu0 0.0
      %6661 = vmatpush1.msra.mxu0 0.0
      %6662 = vmatprep.subr.mxu0 0.0
      %6663 = vmatpush1.msra.mxu0 0.0
      %6664 = vmatprep.subr.mxu0 0.0
      %6665 = vmatpush1.msra.mxu0 0.0
      %6666 = vmatprep.subr.mxu0 0.0
      %6667 = vmatpush1.msra.mxu0 0.0
      %6668 = vmatprep.subr.mxu0 0.0
      %6669 = vmatpush1.msra.mxu0 0.0
      %6670 = vmatprep.subr.mxu0 0.0
      %6671 = vmatpush1.msra.mxu0 0.0
      %6672 = vmatprep.subr.mxu0 0.0
      %6673 = vmatpush1.msra.mxu0 0.0
      %6674 = vmatprep.subr.mxu0 0.0
      %6675 = vmatpush1.msra.mxu0 0.0
      %6676 = vmatprep.subr.mxu0 0.0
      %6677 = vmatpush1.msra.mxu0 0.0
      %6678 = vmatprep.mubr.f32.mxu0 0.0
      %6679 = vmatmul.mubr.f32.gmra.mrb[0].mxu0 %v6612
      %v6680 = vpop.f32.mrb[0].mxu0
      %v6681 = vadd.f32 0.0, %v6680
      %v6682 = vpop.f32.mrb[0].mxu0
      %v6683 = vadd.f32 0.0, %v6682
      %6684 = vdwg.mxu0
      %6685 = vmatprep.subr.mxu0 0.0
      %6686 = vmatpush1.msra.mxu0 %v6586
      %6687 = vmatprep.subr.mxu0 0.0
      %6688 = vmatpush1.msra.mxu0 %v6589
      %6689 = vmatprep.subr.mxu0 0.0
      %6690 = vmatpush1.msra.mxu0 %v6592
      %6691 = vmatprep.subr.mxu0 0.0
      %6692 = vmatpush1.msra.mxu0 %v6595
      %6693 = vmatprep.subr.mxu0 0.0
      %6694 = vmatpush1.msra.mxu0 %v6598
      %6695 = vmatprep.subr.mxu0 0.0
      %6696 = vmatpush1.msra.mxu0 %v6601
      %6697 = vmatprep.subr.mxu0 0.0
      %6698 = vmatpush1.msra.mxu0 %v6604
      %6699 = vmatprep.subr.mxu0 0.0
      %6700 = vmatpush1.msra.mxu0 %v6607
      %6701 = vmatprep.subr.mxu0 0.0
      %6702 = vmatpush1.msra.mxu0 %v6610
      %6703 = vmatprep.subr.mxu0 0.0
      %6704 = vmatpush1.msra.mxu0 0.0
      %6705 = vmatprep.subr.mxu0 0.0
      %6706 = vmatpush1.msra.mxu0 0.0
      %6707 = vmatprep.subr.mxu0 0.0
      %6708 = vmatpush1.msra.mxu0 0.0
      %6709 = vmatprep.subr.mxu0 0.0
      %6710 = vmatpush1.msra.mxu0 0.0
      %6711 = vmatprep.subr.mxu0 0.0
      %6712 = vmatpush1.msra.mxu0 0.0
      %6713 = vmatprep.subr.mxu0 0.0
      %6714 = vmatpush1.msra.mxu0 0.0
      %6715 = vmatprep.subr.mxu0 0.0
      %6716 = vmatpush1.msra.mxu0 0.0
      %6717 = vmatprep.subr.mxu0 0.0
      %6718 = vmatpush1.msra.mxu0 0.0
      %6719 = vmatprep.subr.mxu0 0.0
      %6720 = vmatpush1.msra.mxu0 0.0
      %6721 = vmatprep.subr.mxu0 0.0
      %6722 = vmatpush1.msra.mxu0 0.0
      %6723 = vmatprep.subr.mxu0 0.0
      %6724 = vmatpush1.msra.mxu0 0.0
      %6725 = vmatprep.subr.mxu0 0.0
      %6726 = vmatpush1.msra.mxu0 0.0
      %6727 = vmatprep.subr.mxu0 0.0
      %6728 = vmatpush1.msra.mxu0 0.0
      %6729 = vmatprep.subr.mxu0 0.0
      %6730 = vmatpush1.msra.mxu0 0.0
      %6731 = vmatprep.subr.mxu0 0.0
      %6732 = vmatpush1.msra.mxu0 0.0
      %6733 = vmatprep.subr.mxu0 0.0
      %6734 = vmatpush1.msra.mxu0 0.0
      %6735 = vmatprep.subr.mxu0 0.0
      %6736 = vmatpush1.msra.mxu0 0.0
      %6737 = vmatprep.subr.mxu0 0.0
      %6738 = vmatpush1.msra.mxu0 0.0
      %6739 = vmatprep.subr.mxu0 0.0
      %6740 = vmatpush1.msra.mxu0 0.0
      %6741 = vmatprep.subr.mxu0 0.0
      %6742 = vmatpush1.msra.mxu0 0.0
      %6743 = vmatprep.subr.mxu0 0.0
      %6744 = vmatpush1.msra.mxu0 0.0
      %6745 = vmatprep.subr.mxu0 0.0
      %6746 = vmatpush1.msra.mxu0 0.0
      %6747 = vmatprep.subr.mxu0 0.0
      %6748 = vmatpush1.msra.mxu0 0.0
      %6749 = vmatprep.mubr.f32.mxu0 0.0
      %6750 = vmatmul.mubr.f32.gmra.mrb[0].mxu0 %v6612
      %v6751 = vpop.f32.mrb[0].mxu0
      %v6752 = vadd.f32 0.0, %v6751
      %v6753 = vpop.f32.mrb[0].mxu0
      %6754 = vdwg.mxu0
      %v6755 = vadd.f32 %v6355, %v6681
      %v6756 = vadd.f32 %v6356, %v6683
      %v6757 = vadd.f32 %v6357, %v6752
      %v6758 = vld [vmem:[#allocation3 + $0x8] sm:$0xff]
      %v6759 = vld [vmem:[#allocation3 + $0x10] sm:$0xff]
      %v6760 = vld [vmem:[#allocation3 + $0x18] sm:$0xff]
      %v6761 = vld [vmem:[#allocation3 + $0x20] sm:$0xff]
      %6766 = vrot.lane.b32.xlu0 %v6758, 60
      %v6767 = vpop.permute.xlu0 %6766
      %6768 = vrot.lane.b32.xlu0 %v6759, 60
      %v6769 = vpop.permute.xlu0 %6768
      %6770 = vrot.lane.b32.xlu0 %v6760, 60
      %v6771 = vpop.permute.xlu0 %6770
      %6772 = vrot.lane.b32.xlu0 %v6761, 60
      %v6773 = vpop.permute.xlu0 %6772
      %v6774 = vsel %vm3149, %v6767, %v6769
      %v6775 = vsel %vm3149, %v6769, %v6771
      %v6776 = vsel %vm3149, %v6771, %v6773
      %6780 = vst [vmem:[#allocation4 + $0xd8] sm:$0xff] %v6774
      %6781 = vst [vmem:[#allocation4 + $0xe0] sm:$0xff] %v6775
      %6782 = vst [vmem:[#allocation4 + $0xe8] sm:$0xff] %v6776
      %v6783 = vld [vmem:[#allocation3 + $0x8] sm:$0xff]
      %v6784 = vld [vmem:[#allocation3 + $0x10] sm:$0xff]
      %v6785 = vld [vmem:[#allocation3 + $0x18] sm:$0xff]
      %v6786 = vld [vmem:[#allocation3 + $0x20] sm:$0xff]
      %6791 = vrot.lane.b32.xlu0 %v6783, 59
      %v6792 = vpop.permute.xlu0 %6791
      %6793 = vrot.lane.b32.xlu0 %v6784, 59
      %v6794 = vpop.permute.xlu0 %6793
      %6795 = vrot.lane.b32.xlu0 %v6785, 59
      %v6796 = vpop.permute.xlu0 %6795
      %6797 = vrot.lane.b32.xlu0 %v6786, 59
      %v6798 = vpop.permute.xlu0 %6797
      %v6799 = vsel %vm3175, %v6792, %v6794
      %v6800 = vsel %vm3175, %v6794, %v6796
      %v6801 = vsel %vm3175, %v6796, %v6798
      %6805 = vst [vmem:[#allocation4 + $0xf0] sm:$0xff] %v6799
      %6806 = vst [vmem:[#allocation4 + $0xf8] sm:$0xff] %v6800
      %6807 = vst [vmem:[#allocation4 + $0x100] sm:$0xff] %v6801
      %v6808 = vld [vmem:[#allocation3 + $0x8] sm:$0xff]
      %v6809 = vld [vmem:[#allocation3 + $0x10] sm:$0xff]
      %v6810 = vld [vmem:[#allocation3 + $0x18] sm:$0xff]
      %v6811 = vld [vmem:[#allocation3 + $0x20] sm:$0xff]
      %6816 = vrot.lane.b32.xlu0 %v6808, 58
      %v6817 = vpop.permute.xlu0 %6816
      %6818 = vrot.lane.b32.xlu0 %v6809, 58
      %v6819 = vpop.permute.xlu0 %6818
      %6820 = vrot.lane.b32.xlu0 %v6810, 58
      %v6821 = vpop.permute.xlu0 %6820
      %6822 = vrot.lane.b32.xlu0 %v6811, 58
      %v6823 = vpop.permute.xlu0 %6822
      %v6824 = vsel %vm3201, %v6817, %v6819
      %v6825 = vsel %vm3201, %v6819, %v6821
      %v6826 = vsel %vm3201, %v6821, %v6823
      %6830 = vst [vmem:[#allocation4 + $0x108] sm:$0xff] %v6824
      %6831 = vst [vmem:[#allocation4 + $0x110] sm:$0xff] %v6825
      %6832 = vst [vmem:[#allocation4 + $0x118] sm:$0xff] %v6826
      %v6833 = vld [vmem:[#allocation3 + $0x8] sm:$0xff]
      %v6834 = vld [vmem:[#allocation3 + $0x10] sm:$0xff]
      %v6835 = vld [vmem:[#allocation3 + $0x18] sm:$0xff]
      %v6836 = vld [vmem:[#allocation3 + $0x20] sm:$0xff]
      %6841 = vrot.lane.b32.xlu0 %v6833, 57
      %v6842 = vpop.permute.xlu0 %6841
      %6843 = vrot.lane.b32.xlu0 %v6834, 57
      %v6844 = vpop.permute.xlu0 %6843
      %6845 = vrot.lane.b32.xlu0 %v6835, 57
      %v6846 = vpop.permute.xlu0 %6845
      %6847 = vrot.lane.b32.xlu0 %v6836, 57
      %v6848 = vpop.permute.xlu0 %6847
      %v6849 = vsel %vm3227, %v6842, %v6844
      %v6850 = vsel %vm3227, %v6844, %v6846
      %v6851 = vsel %vm3227, %v6846, %v6848
      %6855 = vst [vmem:[#allocation4 + $0x120] sm:$0xff] %v6849
      %6856 = vst [vmem:[#allocation4 + $0x128] sm:$0xff] %v6850
      %6857 = vst [vmem:[#allocation4 + $0x130] sm:$0xff] %v6851
      %v6858 = vld [vmem:[#allocation3 + $0x8] sm:$0xff]
      %v6859 = vld [vmem:[#allocation3 + $0x10] sm:$0xff]
      %v6860 = vld [vmem:[#allocation3 + $0x18] sm:$0xff]
      %v6861 = vld [vmem:[#allocation3 + $0x20] sm:$0xff]
      %6866 = vrot.lane.b32.xlu0 %v6858, 56
      %v6867 = vpop.permute.xlu0 %6866
      %6868 = vrot.lane.b32.xlu0 %v6859, 56
      %v6869 = vpop.permute.xlu0 %6868
      %6870 = vrot.lane.b32.xlu0 %v6860, 56
      %v6871 = vpop.permute.xlu0 %6870
      %6872 = vrot.lane.b32.xlu0 %v6861, 56
      %v6873 = vpop.permute.xlu0 %6872
      %v6874 = vsel %vm3253, %v6867, %v6869
      %v6875 = vsel %vm3253, %v6869, %v6871
      %v6876 = vsel %vm3253, %v6871, %v6873
      %6880 = vst [vmem:[#allocation4 + $0x138] sm:$0xff] %v6874
      %6881 = vst [vmem:[#allocation4 + $0x140] sm:$0xff] %v6875
      %6882 = vst [vmem:[#allocation4 + $0x148] sm:$0xff] %v6876
      %v6883 = vld [vmem:[#allocation3 + $0x8] sm:$0xff]
      %v6884 = vld [vmem:[#allocation3 + $0x10] sm:$0xff]
      %v6885 = vld [vmem:[#allocation3 + $0x18] sm:$0xff]
      %v6886 = vld [vmem:[#allocation3 + $0x20] sm:$0xff]
      %6891 = vrot.lane.b32.xlu0 %v6883, 55
      %v6892 = vpop.permute.xlu0 %6891
      %6893 = vrot.lane.b32.xlu0 %v6884, 55
      %v6894 = vpop.permute.xlu0 %6893
      %6895 = vrot.lane.b32.xlu0 %v6885, 55
      %v6896 = vpop.permute.xlu0 %6895
      %6897 = vrot.lane.b32.xlu0 %v6886, 55
      %v6898 = vpop.permute.xlu0 %6897
      %v6899 = vsel %vm3279, %v6892, %v6894
      %v6900 = vsel %vm3279, %v6894, %v6896
      %v6901 = vsel %vm3279, %v6896, %v6898
      %6905 = vst [vmem:[#allocation4 + $0x150] sm:$0xff] %v6899
      %6906 = vst [vmem:[#allocation4 + $0x158] sm:$0xff] %v6900
      %6907 = vst [vmem:[#allocation4 + $0x160] sm:$0xff] %v6901
      %v6908 = vld [vmem:[#allocation3 + $0x8] sm:$0xff]
      %v6909 = vld [vmem:[#allocation3 + $0x10] sm:$0xff]
      %v6910 = vld [vmem:[#allocation3 + $0x18] sm:$0xff]
      %v6911 = vld [vmem:[#allocation3 + $0x20] sm:$0xff]
      %6916 = vrot.lane.b32.xlu0 %v6908, 54
      %v6917 = vpop.permute.xlu0 %6916
      %6918 = vrot.lane.b32.xlu0 %v6909, 54
      %v6919 = vpop.permute.xlu0 %6918
      %6920 = vrot.lane.b32.xlu0 %v6910, 54
      %v6921 = vpop.permute.xlu0 %6920
      %6922 = vrot.lane.b32.xlu0 %v6911, 54
      %v6923 = vpop.permute.xlu0 %6922
      %v6924 = vsel %vm3305, %v6917, %v6919
      %v6925 = vsel %vm3305, %v6919, %v6921
      %v6926 = vsel %vm3305, %v6921, %v6923
      %6930 = vst [vmem:[#allocation4 + $0x168] sm:$0xff] %v6924
      %6931 = vst [vmem:[#allocation4 + $0x170] sm:$0xff] %v6925
      %6932 = vst [vmem:[#allocation4 + $0x178] sm:$0xff] %v6926
      %v6933 = vld [vmem:[#allocation3 + $0x8] sm:$0xff]
      %v6934 = vld [vmem:[#allocation3 + $0x10] sm:$0xff]
      %v6935 = vld [vmem:[#allocation3 + $0x18] sm:$0xff]
      %v6936 = vld [vmem:[#allocation3 + $0x20] sm:$0xff]
      %6941 = vrot.lane.b32.xlu0 %v6933, 53
      %v6942 = vpop.permute.xlu0 %6941
      %6943 = vrot.lane.b32.xlu0 %v6934, 53
      %v6944 = vpop.permute.xlu0 %6943
      %6945 = vrot.lane.b32.xlu0 %v6935, 53
      %v6946 = vpop.permute.xlu0 %6945
      %6947 = vrot.lane.b32.xlu0 %v6936, 53
      %v6948 = vpop.permute.xlu0 %6947
      %v6949 = vsel %vm3331, %v6942, %v6944
      %v6950 = vsel %vm3331, %v6944, %v6946
      %v6951 = vsel %vm3331, %v6946, %v6948
      %6955 = vst [vmem:[#allocation4 + $0x180] sm:$0xff] %v6949
      %6956 = vst [vmem:[#allocation4 + $0x188] sm:$0xff] %v6950
      %6957 = vst [vmem:[#allocation4 + $0x190] sm:$0xff] %v6951
      %v6958 = vld [vmem:[#allocation3 + $0x8] sm:$0xff]
      %v6959 = vld [vmem:[#allocation3 + $0x10] sm:$0xff]
      %v6960 = vld [vmem:[#allocation3 + $0x18] sm:$0xff]
      %v6961 = vld [vmem:[#allocation3 + $0x20] sm:$0xff]
      %6966 = vrot.lane.b32.xlu0 %v6958, 52
      %v6967 = vpop.permute.xlu0 %6966
      %6968 = vrot.lane.b32.xlu0 %v6959, 52
      %v6969 = vpop.permute.xlu0 %6968
      %6970 = vrot.lane.b32.xlu0 %v6960, 52
      %v6971 = vpop.permute.xlu0 %6970
      %6972 = vrot.lane.b32.xlu0 %v6961, 52
      %v6973 = vpop.permute.xlu0 %6972
      %v6974 = vsel %vm1126, %v6967, %v6969
      %v6975 = vsel %vm1126, %v6969, %v6971
      %v6976 = vsel %vm1126, %v6971, %v6973
      %6980 = vst [vmem:[#allocation4 + $0x198] sm:$0xff] %v6974
      %6981 = vst [vmem:[#allocation4 + $0x1a0] sm:$0xff] %v6975
      %6982 = vst [vmem:[#allocation4 + $0x1a8] sm:$0xff] %v6976
      %v6983 = vld [vmem:[%s266 + $0x80] sm:$0xff]
      %v6984 = vld [vmem:[#allocation4 + $0xd8] sm:$0xff]
      %v6985 = vld [vmem:[#allocation4 + $0xe0] sm:$0xff]
      %v6986 = vld [vmem:[#allocation4 + $0xe8] sm:$0xff]
      %v6987 = vld [vmem:[#allocation4 + $0xf0] sm:$0xff]
      %v6988 = vld [vmem:[#allocation4 + $0xf8] sm:$0xff]
      %v6989 = vld [vmem:[#allocation4 + $0x100] sm:$0xff]
      %v6990 = vld [vmem:[#allocation4 + $0x108] sm:$0xff]
      %v6991 = vld [vmem:[#allocation4 + $0x110] sm:$0xff]
      %v6992 = vld [vmem:[#allocation4 + $0x118] sm:$0xff]
      %v6993 = vld [vmem:[#allocation4 + $0x120] sm:$0xff]
      %v6994 = vld [vmem:[#allocation4 + $0x128] sm:$0xff]
      %v6995 = vld [vmem:[#allocation4 + $0x130] sm:$0xff]
      %v6996 = vld [vmem:[#allocation4 + $0x138] sm:$0xff]
      %v6997 = vld [vmem:[#allocation4 + $0x140] sm:$0xff]
      %v6998 = vld [vmem:[#allocation4 + $0x148] sm:$0xff]
      %v6999 = vld [vmem:[#allocation4 + $0x150] sm:$0xff]
      %v7000 = vld [vmem:[#allocation4 + $0x158] sm:$0xff]
      %v7001 = vld [vmem:[#allocation4 + $0x160] sm:$0xff]
      %v7002 = vld [vmem:[#allocation4 + $0x168] sm:$0xff]
      %v7003 = vld [vmem:[#allocation4 + $0x170] sm:$0xff]
      %v7004 = vld [vmem:[#allocation4 + $0x178] sm:$0xff]
      %v7005 = vld [vmem:[#allocation4 + $0x180] sm:$0xff]
      %v7006 = vld [vmem:[#allocation4 + $0x188] sm:$0xff]
      %v7007 = vld [vmem:[#allocation4 + $0x190] sm:$0xff]
      %v7008 = vld [vmem:[#allocation4 + $0x198] sm:$0xff]
      %v7009 = vld [vmem:[#allocation4 + $0x1a0] sm:$0xff]
      %v7010 = vld [vmem:[#allocation4 + $0x1a8] sm:$0xff]
      %v7012 = vsel %vm680, %v6983, 0
      %7014 = vmatprep.subr.mxu0 %v6985
      %7015 = vmatpush1.msra.mxu0 %v6984
      %7016 = vmatprep.subr.mxu0 %v6988
      %7017 = vmatpush1.msra.mxu0 %v6987
      %7018 = vmatprep.subr.mxu0 %v6991
      %7019 = vmatpush1.msra.mxu0 %v6990
      %7020 = vmatprep.subr.mxu0 %v6994
      %7021 = vmatpush1.msra.mxu0 %v6993
      %7022 = vmatprep.subr.mxu0 %v6997
      %7023 = vmatpush1.msra.mxu0 %v6996
      %7024 = vmatprep.subr.mxu0 %v7000
      %7025 = vmatpush1.msra.mxu0 %v6999
      %7026 = vmatprep.subr.mxu0 %v7003
      %7027 = vmatpush1.msra.mxu0 %v7002
      %7028 = vmatprep.subr.mxu0 %v7006
      %7029 = vmatpush1.msra.mxu0 %v7005
      %7030 = vmatprep.subr.mxu0 %v7009
      %7031 = vmatpush1.msra.mxu0 %v7008
      %7032 = vmatprep.subr.mxu0 0.0
      %7033 = vmatpush1.msra.mxu0 0.0
      %7034 = vmatprep.subr.mxu0 0.0
      %7035 = vmatpush1.msra.mxu0 0.0
      %7036 = vmatprep.subr.mxu0 0.0
      %7037 = vmatpush1.msra.mxu0 0.0
      %7038 = vmatprep.subr.mxu0 0.0
      %7039 = vmatpush1.msra.mxu0 0.0
      %7040 = vmatprep.subr.mxu0 0.0
      %7041 = vmatpush1.msra.mxu0 0.0
      %7042 = vmatprep.subr.mxu0 0.0
      %7043 = vmatpush1.msra.mxu0 0.0
      %7044 = vmatprep.subr.mxu0 0.0
      %7045 = vmatpush1.msra.mxu0 0.0
      %7046 = vmatprep.subr.mxu0 0.0
      %7047 = vmatpush1.msra.mxu0 0.0
      %7048 = vmatprep.subr.mxu0 0.0
      %7049 = vmatpush1.msra.mxu0 0.0
      %7050 = vmatprep.subr.mxu0 0.0
      %7051 = vmatpush1.msra.mxu0 0.0
      %7052 = vmatprep.subr.mxu0 0.0
      %7053 = vmatpush1.msra.mxu0 0.0
      %7054 = vmatprep.subr.mxu0 0.0
      %7055 = vmatpush1.msra.mxu0 0.0
      %7056 = vmatprep.subr.mxu0 0.0
      %7057 = vmatpush1.msra.mxu0 0.0
      %7058 = vmatprep.subr.mxu0 0.0
      %7059 = vmatpush1.msra.mxu0 0.0
      %7060 = vmatprep.subr.mxu0 0.0
      %7061 = vmatpush1.msra.mxu0 0.0
      %7062 = vmatprep.subr.mxu0 0.0
      %7063 = vmatpush1.msra.mxu0 0.0
      %7064 = vmatprep.subr.mxu0 0.0
      %7065 = vmatpush1.msra.mxu0 0.0
      %7066 = vmatprep.subr.mxu0 0.0
      %7067 = vmatpush1.msra.mxu0 0.0
      %7068 = vmatprep.subr.mxu0 0.0
      %7069 = vmatpush1.msra.mxu0 0.0
      %7070 = vmatprep.subr.mxu0 0.0
      %7071 = vmatpush1.msra.mxu0 0.0
      %7072 = vmatprep.subr.mxu0 0.0
      %7073 = vmatpush1.msra.mxu0 0.0
      %7074 = vmatprep.subr.mxu0 0.0
      %7075 = vmatpush1.msra.mxu0 0.0
      %7076 = vmatprep.subr.mxu0 0.0
      %7077 = vmatpush1.msra.mxu0 0.0
      %7078 = vmatprep.mubr.f32.mxu0 0.0
      %7079 = vmatmul.mubr.f32.gmra.mrb[0].mxu0 %v7012
      %v7080 = vpop.f32.mrb[0].mxu0
      %v7081 = vadd.f32 0.0, %v7080
      %v7082 = vpop.f32.mrb[0].mxu0
      %v7083 = vadd.f32 0.0, %v7082
      %7084 = vdwg.mxu0
      %7085 = vmatprep.subr.mxu0 0.0
      %7086 = vmatpush1.msra.mxu0 %v6986
      %7087 = vmatprep.subr.mxu0 0.0
      %7088 = vmatpush1.msra.mxu0 %v6989
      %7089 = vmatprep.subr.mxu0 0.0
      %7090 = vmatpush1.msra.mxu0 %v6992
      %7091 = vmatprep.subr.mxu0 0.0
      %7092 = vmatpush1.msra.mxu0 %v6995
      %7093 = vmatprep.subr.mxu0 0.0
      %7094 = vmatpush1.msra.mxu0 %v6998
      %7095 = vmatprep.subr.mxu0 0.0
      %7096 = vmatpush1.msra.mxu0 %v7001
      %7097 = vmatprep.subr.mxu0 0.0
      %7098 = vmatpush1.msra.mxu0 %v7004
      %7099 = vmatprep.subr.mxu0 0.0
      %7100 = vmatpush1.msra.mxu0 %v7007
      %7101 = vmatprep.subr.mxu0 0.0
      %7102 = vmatpush1.msra.mxu0 %v7010
      %7103 = vmatprep.subr.mxu0 0.0
      %7104 = vmatpush1.msra.mxu0 0.0
      %7105 = vmatprep.subr.mxu0 0.0
      %7106 = vmatpush1.msra.mxu0 0.0
      %7107 = vmatprep.subr.mxu0 0.0
      %7108 = vmatpush1.msra.mxu0 0.0
      %7109 = vmatprep.subr.mxu0 0.0
      %7110 = vmatpush1.msra.mxu0 0.0
      %7111 = vmatprep.subr.mxu0 0.0
      %7112 = vmatpush1.msra.mxu0 0.0
      %7113 = vmatprep.subr.mxu0 0.0
      %7114 = vmatpush1.msra.mxu0 0.0
      %7115 = vmatprep.subr.mxu0 0.0
      %7116 = vmatpush1.msra.mxu0 0.0
      %7117 = vmatprep.subr.mxu0 0.0
      %7118 = vmatpush1.msra.mxu0 0.0
      %7119 = vmatprep.subr.mxu0 0.0
      %7120 = vmatpush1.msra.mxu0 0.0
      %7121 = vmatprep.subr.mxu0 0.0
      %7122 = vmatpush1.msra.mxu0 0.0
      %7123 = vmatprep.subr.mxu0 0.0
      %7124 = vmatpush1.msra.mxu0 0.0
      %7125 = vmatprep.subr.mxu0 0.0
      %7126 = vmatpush1.msra.mxu0 0.0
      %7127 = vmatprep.subr.mxu0 0.0
      %7128 = vmatpush1.msra.mxu0 0.0
      %7129 = vmatprep.subr.mxu0 0.0
      %7130 = vmatpush1.msra.mxu0 0.0
      %7131 = vmatprep.subr.mxu0 0.0
      %7132 = vmatpush1.msra.mxu0 0.0
      %7133 = vmatprep.subr.mxu0 0.0
      %7134 = vmatpush1.msra.mxu0 0.0
      %7135 = vmatprep.subr.mxu0 0.0
      %7136 = vmatpush1.msra.mxu0 0.0
      %7137 = vmatprep.subr.mxu0 0.0
      %7138 = vmatpush1.msra.mxu0 0.0
      %7139 = vmatprep.subr.mxu0 0.0
      %7140 = vmatpush1.msra.mxu0 0.0
      %7141 = vmatprep.subr.mxu0 0.0
      %7142 = vmatpush1.msra.mxu0 0.0
      %7143 = vmatprep.subr.mxu0 0.0
      %7144 = vmatpush1.msra.mxu0 0.0
      %7145 = vmatprep.subr.mxu0 0.0
      %7146 = vmatpush1.msra.mxu0 0.0
      %7147 = vmatprep.subr.mxu0 0.0
      %7148 = vmatpush1.msra.mxu0 0.0
      %7149 = vmatprep.mubr.f32.mxu0 0.0
      %7150 = vmatmul.mubr.f32.gmra.mrb[0].mxu0 %v7012
      %v7151 = vpop.f32.mrb[0].mxu0
      %v7152 = vadd.f32 0.0, %v7151
      %v7153 = vpop.f32.mrb[0].mxu0
      %7154 = vdwg.mxu0
      %v7155 = vadd.f32 %v6755, %v7081
      %v7156 = vadd.f32 %v6756, %v7083
      %v7157 = vadd.f32 %v6757, %v7152
      %v7158 = vld [vmem:[#allocation3 + $0x8] sm:$0xff]
      %v7159 = vld [vmem:[#allocation3 + $0x10] sm:$0xff]
      %v7160 = vld [vmem:[#allocation3 + $0x18] sm:$0xff]
      %v7161 = vld [vmem:[#allocation3 + $0x20] sm:$0xff]
      %7166 = vrot.lane.b32.xlu0 %v7158, 36
      %v7167 = vpop.permute.xlu0 %7166
      %7168 = vrot.lane.b32.xlu0 %v7159, 36
      %v7169 = vpop.permute.xlu0 %7168
      %7170 = vrot.lane.b32.xlu0 %v7160, 36
      %v7171 = vpop.permute.xlu0 %7170
      %7172 = vrot.lane.b32.xlu0 %v7161, 36
      %v7173 = vpop.permute.xlu0 %7172
      %v7174 = vsel %vm3557, %v7167, %v7169
      %v7175 = vsel %vm3557, %v7169, %v7171
      %v7176 = vsel %vm3557, %v7171, %v7173
      %7180 = vst [vmem:[#allocation4] sm:$0xff] %v7174
      %7181 = vst [vmem:[#allocation4 + $0x8] sm:$0xff] %v7175
      %7182 = vst [vmem:[#allocation4 + $0x10] sm:$0xff] %v7176
      %v7183 = vld [vmem:[#allocation3 + $0x8] sm:$0xff]
      %v7184 = vld [vmem:[#allocation3 + $0x10] sm:$0xff]
      %v7185 = vld [vmem:[#allocation3 + $0x18] sm:$0xff]
      %v7186 = vld [vmem:[#allocation3 + $0x20] sm:$0xff]
      %7191 = vrot.lane.b32.xlu0 %v7183, 35
      %v7192 = vpop.permute.xlu0 %7191
      %7193 = vrot.lane.b32.xlu0 %v7184, 35
      %v7194 = vpop.permute.xlu0 %7193
      %7195 = vrot.lane.b32.xlu0 %v7185, 35
      %v7196 = vpop.permute.xlu0 %7195
      %7197 = vrot.lane.b32.xlu0 %v7186, 35
      %v7198 = vpop.permute.xlu0 %7197
      %v7199 = vsel %vm3583, %v7192, %v7194
      %v7200 = vsel %vm3583, %v7194, %v7196
      %v7201 = vsel %vm3583, %v7196, %v7198
      %7205 = vst [vmem:[#allocation4 + $0x18] sm:$0xff] %v7199
      %7206 = vst [vmem:[#allocation4 + $0x20] sm:$0xff] %v7200
      %7207 = vst [vmem:[#allocation4 + $0x28] sm:$0xff] %v7201
      %v7208 = vld [vmem:[#allocation3 + $0x8] sm:$0xff]
      %v7209 = vld [vmem:[#allocation3 + $0x10] sm:$0xff]
      %v7210 = vld [vmem:[#allocation3 + $0x18] sm:$0xff]
      %v7211 = vld [vmem:[#allocation3 + $0x20] sm:$0xff]
      %7216 = vrot.lane.b32.xlu0 %v7208, 34
      %v7217 = vpop.permute.xlu0 %7216
      %7218 = vrot.lane.b32.xlu0 %v7209, 34
      %v7219 = vpop.permute.xlu0 %7218
      %7220 = vrot.lane.b32.xlu0 %v7210, 34
      %v7221 = vpop.permute.xlu0 %7220
      %7222 = vrot.lane.b32.xlu0 %v7211, 34
      %v7223 = vpop.permute.xlu0 %7222
      %v7224 = vsel %vm3609, %v7217, %v7219
      %v7225 = vsel %vm3609, %v7219, %v7221
      %v7226 = vsel %vm3609, %v7221, %v7223
      %7230 = vst [vmem:[#allocation4 + $0x30] sm:$0xff] %v7224
      %7231 = vst [vmem:[#allocation4 + $0x38] sm:$0xff] %v7225
      %7232 = vst [vmem:[#allocation4 + $0x40] sm:$0xff] %v7226
      %v7233 = vld [vmem:[#allocation3 + $0x8] sm:$0xff]
      %v7234 = vld [vmem:[#allocation3 + $0x10] sm:$0xff]
      %v7235 = vld [vmem:[#allocation3 + $0x18] sm:$0xff]
      %v7236 = vld [vmem:[#allocation3 + $0x20] sm:$0xff]
      %7241 = vrot.lane.b32.xlu0 %v7233, 33
      %v7242 = vpop.permute.xlu0 %7241
      %7243 = vrot.lane.b32.xlu0 %v7234, 33
      %v7244 = vpop.permute.xlu0 %7243
      %7245 = vrot.lane.b32.xlu0 %v7235, 33
      %v7246 = vpop.permute.xlu0 %7245
      %7247 = vrot.lane.b32.xlu0 %v7236, 33
      %v7248 = vpop.permute.xlu0 %7247
      %v7249 = vsel %vm3635, %v7242, %v7244
      %v7250 = vsel %vm3635, %v7244, %v7246
      %v7251 = vsel %vm3635, %v7246, %v7248
      %7255 = vst [vmem:[#allocation4 + $0x48] sm:$0xff] %v7249
      %7256 = vst [vmem:[#allocation4 + $0x50] sm:$0xff] %v7250
      %7257 = vst [vmem:[#allocation4 + $0x58] sm:$0xff] %v7251
      %v7258 = vld [vmem:[#allocation3 + $0x8] sm:$0xff]
      %v7259 = vld [vmem:[#allocation3 + $0x10] sm:$0xff]
      %v7260 = vld [vmem:[#allocation3 + $0x18] sm:$0xff]
      %v7261 = vld [vmem:[#allocation3 + $0x20] sm:$0xff]
      %7266 = vrot.lane.b32.xlu0 %v7258, 32
      %v7267 = vpop.permute.xlu0 %7266
      %7268 = vrot.lane.b32.xlu0 %v7259, 32
      %v7269 = vpop.permute.xlu0 %7268
      %7270 = vrot.lane.b32.xlu0 %v7260, 32
      %v7271 = vpop.permute.xlu0 %7270
      %7272 = vrot.lane.b32.xlu0 %v7261, 32
      %v7273 = vpop.permute.xlu0 %7272
      %v7274 = vsel %vm3661, %v7267, %v7269
      %v7275 = vsel %vm3661, %v7269, %v7271
      %v7276 = vsel %vm3661, %v7271, %v7273
      %7280 = vst [vmem:[#allocation4 + $0x60] sm:$0xff] %v7274
      %7281 = vst [vmem:[#allocation4 + $0x68] sm:$0xff] %v7275
      %7282 = vst [vmem:[#allocation4 + $0x70] sm:$0xff] %v7276
      %v7283 = vld [vmem:[#allocation3 + $0x8] sm:$0xff]
      %v7284 = vld [vmem:[#allocation3 + $0x10] sm:$0xff]
      %v7285 = vld [vmem:[#allocation3 + $0x18] sm:$0xff]
      %v7286 = vld [vmem:[#allocation3 + $0x20] sm:$0xff]
      %7291 = vrot.lane.b32.xlu0 %v7283, 31
      %v7292 = vpop.permute.xlu0 %7291
      %7293 = vrot.lane.b32.xlu0 %v7284, 31
      %v7294 = vpop.permute.xlu0 %7293
      %7295 = vrot.lane.b32.xlu0 %v7285, 31
      %v7296 = vpop.permute.xlu0 %7295
      %7297 = vrot.lane.b32.xlu0 %v7286, 31
      %v7298 = vpop.permute.xlu0 %7297
      %v7299 = vsel %vm3687, %v7292, %v7294
      %v7300 = vsel %vm3687, %v7294, %v7296
      %v7301 = vsel %vm3687, %v7296, %v7298
      %7305 = vst [vmem:[#allocation4 + $0x78] sm:$0xff] %v7299
      %7306 = vst [vmem:[#allocation4 + $0x80] sm:$0xff] %v7300
      %7307 = vst [vmem:[#allocation4 + $0x88] sm:$0xff] %v7301
      %v7308 = vld [vmem:[#allocation3 + $0x8] sm:$0xff]
      %v7309 = vld [vmem:[#allocation3 + $0x10] sm:$0xff]
      %v7310 = vld [vmem:[#allocation3 + $0x18] sm:$0xff]
      %v7311 = vld [vmem:[#allocation3 + $0x20] sm:$0xff]
      %7316 = vrot.lane.b32.xlu0 %v7308, 30
      %v7317 = vpop.permute.xlu0 %7316
      %7318 = vrot.lane.b32.xlu0 %v7309, 30
      %v7319 = vpop.permute.xlu0 %7318
      %7320 = vrot.lane.b32.xlu0 %v7310, 30
      %v7321 = vpop.permute.xlu0 %7320
      %7322 = vrot.lane.b32.xlu0 %v7311, 30
      %v7323 = vpop.permute.xlu0 %7322
      %v7324 = vsel %vm3713, %v7317, %v7319
      %v7325 = vsel %vm3713, %v7319, %v7321
      %v7326 = vsel %vm3713, %v7321, %v7323
      %7330 = vst [vmem:[#allocation4 + $0x90] sm:$0xff] %v7324
      %7331 = vst [vmem:[#allocation4 + $0x98] sm:$0xff] %v7325
      %7332 = vst [vmem:[#allocation4 + $0xa0] sm:$0xff] %v7326
      %v7333 = vld [vmem:[#allocation3 + $0x8] sm:$0xff]
      %v7334 = vld [vmem:[#allocation3 + $0x10] sm:$0xff]
      %v7335 = vld [vmem:[#allocation3 + $0x18] sm:$0xff]
      %v7336 = vld [vmem:[#allocation3 + $0x20] sm:$0xff]
      %7341 = vrot.lane.b32.xlu0 %v7333, 29
      %v7342 = vpop.permute.xlu0 %7341
      %7343 = vrot.lane.b32.xlu0 %v7334, 29
      %v7344 = vpop.permute.xlu0 %7343
      %7345 = vrot.lane.b32.xlu0 %v7335, 29
      %v7346 = vpop.permute.xlu0 %7345
      %7347 = vrot.lane.b32.xlu0 %v7336, 29
      %v7348 = vpop.permute.xlu0 %7347
      %v7349 = vsel %vm3739, %v7342, %v7344
      %v7350 = vsel %vm3739, %v7344, %v7346
      %v7351 = vsel %vm3739, %v7346, %v7348
      %7355 = vst [vmem:[#allocation4 + $0xa8] sm:$0xff] %v7349
      %7356 = vst [vmem:[#allocation4 + $0xb0] sm:$0xff] %v7350
      %7357 = vst [vmem:[#allocation4 + $0xb8] sm:$0xff] %v7351
      %v7358 = vld [vmem:[#allocation3 + $0x8] sm:$0xff]
      %v7359 = vld [vmem:[#allocation3 + $0x10] sm:$0xff]
      %v7360 = vld [vmem:[#allocation3 + $0x18] sm:$0xff]
      %v7361 = vld [vmem:[#allocation3 + $0x20] sm:$0xff]
      %7366 = vrot.lane.b32.xlu0 %v7358, 28
      %v7367 = vpop.permute.xlu0 %7366
      %7368 = vrot.lane.b32.xlu0 %v7359, 28
      %v7369 = vpop.permute.xlu0 %7368
      %7370 = vrot.lane.b32.xlu0 %v7360, 28
      %v7371 = vpop.permute.xlu0 %7370
      %7372 = vrot.lane.b32.xlu0 %v7361, 28
      %v7373 = vpop.permute.xlu0 %7372
      %v7374 = vsel %vm1535, %v7367, %v7369
      %v7375 = vsel %vm1535, %v7369, %v7371
      %v7376 = vsel %vm1535, %v7371, %v7373
      %7380 = vst [vmem:[#allocation4 + $0xc0] sm:$0xff] %v7374
      %7381 = vst [vmem:[#allocation4 + $0xc8] sm:$0xff] %v7375
      %7382 = vst [vmem:[#allocation4 + $0xd0] sm:$0xff] %v7376
      %v7383 = vld [vmem:[%s266 + $0x88] sm:$0xff]
      %v7384 = vld [vmem:[#allocation4] sm:$0xff]
      %v7385 = vld [vmem:[#allocation4 + $0x8] sm:$0xff]
      %v7386 = vld [vmem:[#allocation4 + $0x10] sm:$0xff]
      %v7387 = vld [vmem:[#allocation4 + $0x18] sm:$0xff]
      %v7388 = vld [vmem:[#allocation4 + $0x20] sm:$0xff]
      %v7389 = vld [vmem:[#allocation4 + $0x28] sm:$0xff]
      %v7390 = vld [vmem:[#allocation4 + $0x30] sm:$0xff]
      %v7391 = vld [vmem:[#allocation4 + $0x38] sm:$0xff]
      %v7392 = vld [vmem:[#allocation4 + $0x40] sm:$0xff]
      %v7393 = vld [vmem:[#allocation4 + $0x48] sm:$0xff]
      %v7394 = vld [vmem:[#allocation4 + $0x50] sm:$0xff]
      %v7395 = vld [vmem:[#allocation4 + $0x58] sm:$0xff]
      %v7396 = vld [vmem:[#allocation4 + $0x60] sm:$0xff]
      %v7397 = vld [vmem:[#allocation4 + $0x68] sm:$0xff]
      %v7398 = vld [vmem:[#allocation4 + $0x70] sm:$0xff]
      %v7399 = vld [vmem:[#allocation4 + $0x78] sm:$0xff]
      %v7400 = vld [vmem:[#allocation4 + $0x80] sm:$0xff]
      %v7401 = vld [vmem:[#allocation4 + $0x88] sm:$0xff]
      %v7402 = vld [vmem:[#allocation4 + $0x90] sm:$0xff]
      %v7403 = vld [vmem:[#allocation4 + $0x98] sm:$0xff]
      %v7404 = vld [vmem:[#allocation4 + $0xa0] sm:$0xff]
      %v7405 = vld [vmem:[#allocation4 + $0xa8] sm:$0xff]
      %v7406 = vld [vmem:[#allocation4 + $0xb0] sm:$0xff]
      %v7407 = vld [vmem:[#allocation4 + $0xb8] sm:$0xff]
      %v7408 = vld [vmem:[#allocation4 + $0xc0] sm:$0xff]
      %v7409 = vld [vmem:[#allocation4 + $0xc8] sm:$0xff]
      %v7410 = vld [vmem:[#allocation4 + $0xd0] sm:$0xff]
      %v7412 = vsel %vm680, %v7383, 0
      %7414 = vmatprep.subr.mxu0 %v7385
      %7415 = vmatpush1.msra.mxu0 %v7384
      %7416 = vmatprep.subr.mxu0 %v7388
      %7417 = vmatpush1.msra.mxu0 %v7387
      %7418 = vmatprep.subr.mxu0 %v7391
      %7419 = vmatpush1.msra.mxu0 %v7390
      %7420 = vmatprep.subr.mxu0 %v7394
      %7421 = vmatpush1.msra.mxu0 %v7393
      %7422 = vmatprep.subr.mxu0 %v7397
      %7423 = vmatpush1.msra.mxu0 %v7396
      %7424 = vmatprep.subr.mxu0 %v7400
      %7425 = vmatpush1.msra.mxu0 %v7399
      %7426 = vmatprep.subr.mxu0 %v7403
      %7427 = vmatpush1.msra.mxu0 %v7402
      %7428 = vmatprep.subr.mxu0 %v7406
      %7429 = vmatpush1.msra.mxu0 %v7405
      %7430 = vmatprep.subr.mxu0 %v7409
      %7431 = vmatpush1.msra.mxu0 %v7408
      %7432 = vmatprep.subr.mxu0 0.0
      %7433 = vmatpush1.msra.mxu0 0.0
      %7434 = vmatprep.subr.mxu0 0.0
      %7435 = vmatpush1.msra.mxu0 0.0
      %7436 = vmatprep.subr.mxu0 0.0
      %7437 = vmatpush1.msra.mxu0 0.0
      %7438 = vmatprep.subr.mxu0 0.0
      %7439 = vmatpush1.msra.mxu0 0.0
      %7440 = vmatprep.subr.mxu0 0.0
      %7441 = vmatpush1.msra.mxu0 0.0
      %7442 = vmatprep.subr.mxu0 0.0
      %7443 = vmatpush1.msra.mxu0 0.0
      %7444 = vmatprep.subr.mxu0 0.0
      %7445 = vmatpush1.msra.mxu0 0.0
      %7446 = vmatprep.subr.mxu0 0.0
      %7447 = vmatpush1.msra.mxu0 0.0
      %7448 = vmatprep.subr.mxu0 0.0
      %7449 = vmatpush1.msra.mxu0 0.0
      %7450 = vmatprep.subr.mxu0 0.0
      %7451 = vmatpush1.msra.mxu0 0.0
      %7452 = vmatprep.subr.mxu0 0.0
      %7453 = vmatpush1.msra.mxu0 0.0
      %7454 = vmatprep.subr.mxu0 0.0
      %7455 = vmatpush1.msra.mxu0 0.0
      %7456 = vmatprep.subr.mxu0 0.0
      %7457 = vmatpush1.msra.mxu0 0.0
      %7458 = vmatprep.subr.mxu0 0.0
      %7459 = vmatpush1.msra.mxu0 0.0
      %7460 = vmatprep.subr.mxu0 0.0
      %7461 = vmatpush1.msra.mxu0 0.0
      %7462 = vmatprep.subr.mxu0 0.0
      %7463 = vmatpush1.msra.mxu0 0.0
      %7464 = vmatprep.subr.mxu0 0.0
      %7465 = vmatpush1.msra.mxu0 0.0
      %7466 = vmatprep.subr.mxu0 0.0
      %7467 = vmatpush1.msra.mxu0 0.0
      %7468 = vmatprep.subr.mxu0 0.0
      %7469 = vmatpush1.msra.mxu0 0.0
      %7470 = vmatprep.subr.mxu0 0.0
      %7471 = vmatpush1.msra.mxu0 0.0
      %7472 = vmatprep.subr.mxu0 0.0
      %7473 = vmatpush1.msra.mxu0 0.0
      %7474 = vmatprep.subr.mxu0 0.0
      %7475 = vmatpush1.msra.mxu0 0.0
      %7476 = vmatprep.subr.mxu0 0.0
      %7477 = vmatpush1.msra.mxu0 0.0
      %7478 = vmatprep.mubr.f32.mxu0 0.0
      %7479 = vmatmul.mubr.f32.gmra.mrb[0].mxu0 %v7412
      %v7480 = vpop.f32.mrb[0].mxu0
      %v7481 = vadd.f32 0.0, %v7480
      %v7482 = vpop.f32.mrb[0].mxu0
      %v7483 = vadd.f32 0.0, %v7482
      %7484 = vdwg.mxu0
      %7485 = vmatprep.subr.mxu0 0.0
      %7486 = vmatpush1.msra.mxu0 %v7386
      %7487 = vmatprep.subr.mxu0 0.0
      %7488 = vmatpush1.msra.mxu0 %v7389
      %7489 = vmatprep.subr.mxu0 0.0
      %7490 = vmatpush1.msra.mxu0 %v7392
      %7491 = vmatprep.subr.mxu0 0.0
      %7492 = vmatpush1.msra.mxu0 %v7395
      %7493 = vmatprep.subr.mxu0 0.0
      %7494 = vmatpush1.msra.mxu0 %v7398
      %7495 = vmatprep.subr.mxu0 0.0
      %7496 = vmatpush1.msra.mxu0 %v7401
      %7497 = vmatprep.subr.mxu0 0.0
      %7498 = vmatpush1.msra.mxu0 %v7404
      %7499 = vmatprep.subr.mxu0 0.0
      %7500 = vmatpush1.msra.mxu0 %v7407
      %7501 = vmatprep.subr.mxu0 0.0
      %7502 = vmatpush1.msra.mxu0 %v7410
      %7503 = vmatprep.subr.mxu0 0.0
      %7504 = vmatpush1.msra.mxu0 0.0
      %7505 = vmatprep.subr.mxu0 0.0
      %7506 = vmatpush1.msra.mxu0 0.0
      %7507 = vmatprep.subr.mxu0 0.0
      %7508 = vmatpush1.msra.mxu0 0.0
      %7509 = vmatprep.subr.mxu0 0.0
      %7510 = vmatpush1.msra.mxu0 0.0
      %7511 = vmatprep.subr.mxu0 0.0
      %7512 = vmatpush1.msra.mxu0 0.0
      %7513 = vmatprep.subr.mxu0 0.0
      %7514 = vmatpush1.msra.mxu0 0.0
      %7515 = vmatprep.subr.mxu0 0.0
      %7516 = vmatpush1.msra.mxu0 0.0
      %7517 = vmatprep.subr.mxu0 0.0
      %7518 = vmatpush1.msra.mxu0 0.0
      %7519 = vmatprep.subr.mxu0 0.0
      %7520 = vmatpush1.msra.mxu0 0.0
      %7521 = vmatprep.subr.mxu0 0.0
      %7522 = vmatpush1.msra.mxu0 0.0
      %7523 = vmatprep.subr.mxu0 0.0
      %7524 = vmatpush1.msra.mxu0 0.0
      %7525 = vmatprep.subr.mxu0 0.0
      %7526 = vmatpush1.msra.mxu0 0.0
      %7527 = vmatprep.subr.mxu0 0.0
      %7528 = vmatpush1.msra.mxu0 0.0
      %7529 = vmatprep.subr.mxu0 0.0
      %7530 = vmatpush1.msra.mxu0 0.0
      %7531 = vmatprep.subr.mxu0 0.0
      %7532 = vmatpush1.msra.mxu0 0.0
      %7533 = vmatprep.subr.mxu0 0.0
      %7534 = vmatpush1.msra.mxu0 0.0
      %7535 = vmatprep.subr.mxu0 0.0
      %7536 = vmatpush1.msra.mxu0 0.0
      %7537 = vmatprep.subr.mxu0 0.0
      %7538 = vmatpush1.msra.mxu0 0.0
      %7539 = vmatprep.subr.mxu0 0.0
      %7540 = vmatpush1.msra.mxu0 0.0
      %7541 = vmatprep.subr.mxu0 0.0
      %7542 = vmatpush1.msra.mxu0 0.0
      %7543 = vmatprep.subr.mxu0 0.0
      %7544 = vmatpush1.msra.mxu0 0.0
      %7545 = vmatprep.subr.mxu0 0.0
      %7546 = vmatpush1.msra.mxu0 0.0
      %7547 = vmatprep.subr.mxu0 0.0
      %7548 = vmatpush1.msra.mxu0 0.0
      %7549 = vmatprep.mubr.f32.mxu0 0.0
      %7550 = vmatmul.mubr.f32.gmra.mrb[0].mxu0 %v7412
      %v7551 = vpop.f32.mrb[0].mxu0
      %v7552 = vadd.f32 0.0, %v7551
      %v7553 = vpop.f32.mrb[0].mxu0
      %7554 = vdwg.mxu0
      %v7555 = vadd.f32 %v7155, %v7481
      %v7556 = vadd.f32 %v7156, %v7483
      %v7557 = vadd.f32 %v7157, %v7552
      %v7558 = vld [vmem:[%s271 + $0x8] sm:$0xff]
      %7560 = vset.pattern.permute.xlu0 0
      %7561 = vperm.xlu0 %7560, %v7558
      %v7562 = vpop.permute.xlu0 %7561
      %v7564 = vadd.f32 %v7555, %v7562
      %v7565 = vadd.f32 %v7556, %v7562
      %v7566 = vadd.f32 %v7557, %v7562
      %v7567 = vmax.f32 %v7564, 0.0
      %v7568 = vmax.f32 %v7565, 0.0
      %v7569 = vmax.f32 %v7566, 0.0
      %v7570 = vld [vmem:[#allocation2 + $0x8] sm:$0xff]
      %v7571 = vld [vmem:[#allocation2 + $0x10] sm:$0xff]
      %v7572 = vld [vmem:[#allocation2 + $0x18] sm:$0xff]
      %v7573 = vadd.f32 %v7570, %v7567
      %v7574 = vadd.f32 %v7571, %v7568
      %v7575 = vadd.f32 %v7572, %v7569
      %7577 = vset.pattern.permute.xlu0 0
      %7578 = vperm.xlu0 %7577, %v297
      %v7579 = vpop.permute.xlu0 %7578
      %v7581 = vsub.f32 %v7573, %v7579
      %v7582 = vsub.f32 %v7574, %v7579
      %v7583 = vsub.f32 %v7575, %v7579
      %v7584 = vmax.f32 %v7581, 0.0
      %v7585 = vmax.f32 %v7582, 0.0
      %v7586 = vmax.f32 %v7583, 0.0
      %v7587 = vmul.f32 %v7584, %v3965
      %v7588 = vmul.f32 %v7585, %v3969
      %v7589 = vmul.f32 %v7586, %v3973
      %7590 = vst [vmem:[#allocation2 + $0x8] sm:$0xff] %v7587
      %7591 = vst [vmem:[#allocation2 + $0x10] sm:$0xff] %v7588
      %7592 = vst [vmem:[#allocation2 + $0x18] sm:$0xff] %v7589
      %v7595 = vcombine.low %v7587, %v7588
      %7597 = vst [vmem:[%s276] sm:$0xff] %v7595
      %7598 = vst [vmem:[%s276 + $0x8] sm:$0xf] %v7589
      %p7599 = scmp.lt.s32.totalorder %s20, 1
      %s7600 = scalar_select %p7599, %s20, 1
      %s7601 = smul.addr %s7600, 3
      %s7602 = smul.addr %s7601, 4
      %s7603 = scalar_lea.vmem %s5, %s7602
      // Predicated region
      $region45: #{rescnn_forward.1} parent=39 // pred_check
        %p7604 = pneg %p166
      $region46: #{rescnn_forward.1} parent=39 // pred_check_branch
        %7606 = sbr.rel (%p7604) target = $region48
      $region47: #{rescnn_forward.1} parent=39 // pred_region
        _
      $region48: #{rescnn_forward.1} parent=39 // pred_fallthru
        _
    $region40: #{rescnn_forward.1} parent=5 // pred_fallthru
      _
    %p7607 = scmp.le.s32.totalorder 2, %s11
    // Predicated region
    $region49: #{rescnn_forward.1} parent=5 // pred_check
      %p7608 = pneg %p7607
    $region50: #{rescnn_forward.1} parent=5 // pred_check_branch
      %7610 = sbr.rel (%p7608) target = $region52
    $region51: #{rescnn_forward.1} parent=5 // pred_region
      %s7611 = ssub.s32 %s11, 2
      // Predicated region
      $region53: #{rescnn_forward.1} parent=51 // pred_check
        %p7612 = pneg %p172
      $region54: #{rescnn_forward.1} parent=51 // pred_check_branch
        %7614 = sbr.rel (%p7612) target = $region56
      $region55: #{rescnn_forward.1} parent=51 // pred_region
        %p7615 = scmp.lt.s32.totalorder %s22, 1
        %s7616 = scalar_select %p7615, %s22, 1
        %s7617 = smul.addr %s7616, 3
        %s7618 = smul.addr %s7617, 4
        %s7619 = scalar_lea.vmem %s5, %s7618
      $region56: #{rescnn_forward.1} parent=51 // pred_fallthru
        _
    $region52: #{rescnn_forward.1} parent=5 // pred_fallthru
      _
  $region6: #{rescnn_forward.1} parent=0 // loop_footer
    %s15 = sadd.s32 1, %s11
  $region7: #{rescnn_forward.1} parent=0 // loop_footer_branch
    %10 = sbr.rel target = $region3
  $region8: #{rescnn_forward.1} parent=0 // loop_exit
    _

</llo_original>
